<compile_context>
chip_gen: v6e
topology: v6e:2x2x1
jax: 0.10.0
libtpu: 0.0.40
codegen_flags: <defaults>
</compile_context>

<pallas_src>
import functools

import numpy as np
import jax
import jax.numpy as jnp
from jax.experimental import pallas as pl
from jax.experimental.pallas import tpu as pltpu


def _round_up(x, m):
    return -(-x // m) * m


def _vmem_limit(block_bytes, scratch_bytes=0):
    need = 2 * block_bytes + scratch_bytes + (4 << 20)      # double-buffer + headroom
    return int(min(max(need, 16 << 20), 64 << 20))


# --------------------------------------------------------------------------
# Pooling / bilinear interpolation matrices (PyTorch semantics), cached.
# --------------------------------------------------------------------------
def _adaptive_pool_matrix(out_size, in_size):
    """Row-stochastic matrix reproducing nn.AdaptiveAvgPool2d along one axis."""
    P = np.zeros((out_size, in_size), np.float32)
    for i in range(out_size):
        start = (i * in_size) // out_size
        end = -(-((i + 1) * in_size) // out_size)  # ceil
        P[i, start:end] = 1.0 / (end - start)
    return P


def _bilinear_matrix(out_size, in_size):
    """F.interpolate(mode='bilinear', align_corners=False) along one axis."""
    A = np.zeros((out_size, in_size), np.float32)
    for i in range(out_size):
        src = (i + 0.5) * (in_size / out_size) - 0.5
        src = max(src, 0.0)
        x0 = min(int(np.floor(src)), in_size - 1)
        x1 = min(x0 + 1, in_size - 1)
        frac = src - x0
        A[i, x0] += 1.0 - frac
        A[i, x1] += frac
    return A


@functools.lru_cache(maxsize=None)
def _ppm_matrices(pool_scales, h, w):
    """Pool / upsample matrices in layout L (pixel (h,w) -> row h*(w+2)+w+1).

    Each branch's pooled axis is padded to a sublane multiple (s2p); the pad
    rows of the pool matrix and the pad columns of the upsample matrix are
    zero, so the spurious ReLU(beta) values on pad rows cancel exactly.
    """
    wp = w + 2
    hwp = h * wp
    pool_blocks, up_mats, s2p_list = [], [], []
    for s in pool_scales:
        s2 = s * s
        s2p = _round_up(s2, 8)
        ph = _adaptive_pool_matrix(s, h)
        pw = _adaptive_pool_matrix(s, w)
        pool = np.einsum("ph,qw->pqhw", ph, pw).reshape(s2, h, w)
        pool = np.pad(pool, ((0, s2p - s2), (0, 0), (1, 1))).reshape(s2p, hwp)
        ah = _bilinear_matrix(h, s)
        aw = _bilinear_matrix(w, s)
        up = np.einsum("hp,wq->hwpq", ah, aw).reshape(h, w, s2)
        up = np.pad(up, ((0, 0), (1, 1), (0, s2p - s2))).reshape(hwp, s2p)
        pool_blocks.append(pool.astype(np.float32))
        up_mats.append(up.astype(np.float32))
        s2p_list.append(s2p)
    pool_all = np.concatenate(pool_blocks, axis=0).astype(np.float32)
    offsets = tuple(int(o) for o in np.cumsum([0] + s2p_list[:-1]))
    return pool_all, tuple(up_mats), tuple(s2p_list), offsets


# --------------------------------------------------------------------------
# Kernel 1: fused PPM branches -> padded concatenated feature map
# --------------------------------------------------------------------------
def _make_ppm_kernel(num_branches, wp, hwp, cin, cmid, ctot, cpad, tot_rows,
                     s2p_list, s2p_offsets):
    out_dt = jnp.bfloat16

    def kernel(x_ref, pool_ref, w_ref, bias_ref, *rest):
        up_refs = rest[:num_branches]
        out_ref = rest[num_branches]

        x = x_ref[0]                                               # (hwp, cin) bf16
        # all branches pool from the same x read (one matmul for all branches)
        pooled = jnp.dot(pool_ref[...], x, preferred_element_type=jnp.float32)

        # zero the top/bottom halo rows and the channel padding
        out_ref[0, pl.ds(0, wp), :] = jnp.zeros((wp, cpad), out_dt)
        nbot = tot_rows - (wp + hwp)
        out_ref[0, pl.ds(wp + hwp, nbot), :] = jnp.zeros((nbot, cpad), out_dt)
        if cpad > ctot:
            out_ref[0, pl.ds(wp, hwp), pl.ds(ctot, cpad - ctot)] = (
                jnp.zeros((hwp, cpad - ctot), out_dt))

        # passthrough of conv5 itself (first Ctot slice of the concat)
        out_ref[0, pl.ds(wp, hwp), pl.ds(0, cin)] = x.astype(out_dt)

        # PPM branches: 1x1 conv (BN scale folded into w) + bias + ReLU + upsample
        for b in range(num_branches):
            o, sp = s2p_offsets[b], s2p_list[b]
            pb = pooled[o:o + sp].astype(jnp.bfloat16)             # (sp, cin)
            y = jnp.dot(pb, w_ref[b], preferred_element_type=jnp.float32)
            y = jnp.maximum(y + bias_ref[b], 0.0)                  # BN bias + ReLU
            up = jnp.dot(up_refs[b][...], y.astype(jnp.bfloat16),
                         preferred_element_type=jnp.float32)       # (hwp, cmid)
            c0 = cin + b * cmid
            out_ref[0, pl.ds(wp, hwp), pl.ds(c0, cmid)] = up.astype(out_dt)

    return kernel


def _ppm_fused(x_l, pool_all, w_stack, bias_stack, up_mats, *, wp, hwp, cin,
               cmid, ctot, cpad, tot_rows, s2p_list, s2p_offsets):
    n = x_l.shape[0]
    nb = len(up_mats)
    s2tot = pool_all.shape[0]
    kernel = _make_ppm_kernel(nb, wp, hwp, cin, cmid, ctot, cpad, tot_rows,
                              s2p_list, s2p_offsets)

    in_specs = [
        pl.BlockSpec((1, hwp, cin), lambda i: (i, 0, 0)),
        pl.BlockSpec((s2tot, hwp), lambda i: (0, 0)),
        pl.BlockSpec((nb, cin, cmid), lambda i: (0, 0, 0)),
        pl.BlockSpec((nb, 1, cmid), lambda i: (0, 0, 0)),
    ] + [pl.BlockSpec((hwp, sp), lambda i: (0, 0)) for sp in s2p_list]

    flops = 2 * n * (s2tot * hwp * cin
                     + sum(sp * cin * cmid + hwp * sp * cmid for sp in s2p_list))
    bytes_acc = int(n * (hwp * cin * 2 + tot_rows * cpad * 2)
                    + s2tot * hwp * 2 + nb * cin * cmid * 2
                    + sum(hwp * sp * 2 for sp in s2p_list))
    block_bytes = (hwp * cin * 2 + s2tot * hwp * 2 + nb * cin * cmid * 2
                   + nb * cmid * 4 + sum(hwp * sp * 2 for sp in s2p_list)
                   + tot_rows * cpad * 2)

    return pl.pallas_call(
        kernel,
        out_shape=jax.ShapeDtypeStruct((n, tot_rows, cpad), jnp.bfloat16),
        grid=(n,),
        in_specs=in_specs,
        out_specs=pl.BlockSpec((1, tot_rows, cpad), lambda i: (i, 0, 0)),
        compiler_params=pltpu.CompilerParams(
            dimension_semantics=("parallel",),
            vmem_limit_bytes=_vmem_limit(block_bytes)),
        cost_estimate=pl.CostEstimate(flops=int(flops), transcendentals=0,
                                      bytes_accessed=bytes_acc),
    )(x_l, pool_all, w_stack, bias_stack, *up_mats)


# --------------------------------------------------------------------------
# Kernel 2: 3x3 conv (halo taps from contiguous slices, K-chunked reduction)
#           + BN bias + ReLU + final 1x1 conv + bias
# --------------------------------------------------------------------------
def _make_conv_last_kernel(wp, out_rows):
    def kernel(feat_ref, w3_ref, b2_ref, w1_ref, b1_ref, out_ref, acc_ref):
        k = pl.program_id(1)

        @pl.when(k == 0)
        def _init():
            acc_ref[...] = jnp.zeros_like(acc_ref)

        partial = None
        for t in range(9):                      # 3x3 taps as shifted row-slices
            kh, kw = divmod(t, 3)
            off = kh * wp + kw
            tap = feat_ref[0, pl.ds(off, out_rows), :]        # (out_rows, tk) bf16
            d = jnp.dot(tap, w3_ref[t], preferred_element_type=jnp.float32)
            partial = d if partial is None else partial + d
        acc_ref[...] += partial

        @pl.when(k == pl.num_programs(1) - 1)
        def _finalize():
            y = jnp.maximum(acc_ref[...] + b2_ref[...], 0.0)  # BN bias + ReLU
            # Dropout2d(0.1) is identity in eval mode.
            out = jnp.dot(y.astype(jnp.bfloat16), w1_ref[...],
                          preferred_element_type=jnp.float32) + b1_ref[...]
            out_ref[0] = out

    return kernel


def _conv_last(feat, w3p, bias2, w1p, b1p, *, wp, out_rows, tk):
    n, tot_rows, cpad = feat.shape
    kt = cpad // tk
    cmid = w3p.shape[2]
    inner_p = w1p.shape[1]
    kernel = _make_conv_last_kernel(wp, out_rows)

    flops = 2 * n * out_rows * cpad * cmid * 9 + 2 * n * out_rows * cmid * inner_p
    bytes_acc = int(n * tot_rows * cpad * 2 + 9 * cpad * cmid * 2
                    + cmid * inner_p * 2 + n * out_rows * inner_p * 4)
    block_bytes = (tot_rows * tk * 2 + 9 * tk * cmid * 2 + cmid * 4
                   + cmid * inner_p * 2 + inner_p * 4 + out_rows * inner_p * 4)
    scratch_bytes = out_rows * cmid * 4

    return pl.pallas_call(
        kernel,
        out_shape=jax.ShapeDtypeStruct((n, out_rows, inner_p), jnp.float32),
        grid=(n, kt),
        in_specs=[
            pl.BlockSpec((1, tot_rows, tk), lambda i, k: (i, 0, k)),
            pl.BlockSpec((9, tk, cmid), lambda i, k: (0, k, 0)),
            pl.BlockSpec((1, cmid), lambda i, k: (0, 0)),
            pl.BlockSpec((cmid, inner_p), lambda i, k: (0, 0)),
            pl.BlockSpec((1, inner_p), lambda i, k: (0, 0)),
        ],
        out_specs=pl.BlockSpec((1, out_rows, inner_p), lambda i, k: (i, 0, 0)),
        scratch_shapes=[pltpu.VMEM((out_rows, cmid), jnp.float32)],
        compiler_params=pltpu.CompilerParams(
            dimension_semantics=("parallel", "arbitrary"),
            vmem_limit_bytes=_vmem_limit(block_bytes, scratch_bytes)),
        cost_estimate=pl.CostEstimate(flops=int(flops), transcendentals=0,
                                      bytes_accessed=bytes_acc),
    )(feat, w3p, bias2, w1p, b1p)


# --------------------------------------------------------------------------
# Parameter construction (deterministic, synthetic — mirrors init_weights)
# --------------------------------------------------------------------------
def init_params(key, fc_dim, mid, inner, pool_scales):
    eps = 1e-5
    ks = jax.random.split(key, len(pool_scales) + 3)
    ppm = []
    for i, _s in enumerate(pool_scales):
        w = jax.random.normal(ks[i], (fc_dim, mid), jnp.float32) * np.sqrt(2.0 / fc_dim)
        gamma = jnp.ones((mid,), jnp.float32)
        beta = jnp.full((mid,), 1e-4, jnp.float32)
        scale = gamma / jnp.sqrt(1.0 + eps)        # running_mean=0, running_var=1
        bias = beta
        ppm.append(dict(w=w, scale=scale.reshape(1, mid), bias=bias.reshape(1, mid)))
    ctot = fc_dim + len(pool_scales) * mid
    w3 = jax.random.normal(ks[-3], (3, 3, ctot, mid), jnp.float32) * np.sqrt(2.0 / (ctot * 9))
    scale2 = (jnp.ones((mid,), jnp.float32) / jnp.sqrt(1.0 + eps)).reshape(1, mid)
    bias2 = jnp.full((1, mid), 1e-4, jnp.float32)
    w1 = jax.random.normal(ks[-2], (mid, inner), jnp.float32) * np.sqrt(2.0 / mid)
    b1 = (jax.random.normal(ks[-1], (inner,), jnp.float32) * 0.01).reshape(1, inner)
    return dict(ppm=ppm, w3=w3, scale2=scale2, bias2=bias2, w1=w1, b1=b1)


# --------------------------------------------------------------------------
# Forward pass (Pallas path)
# --------------------------------------------------------------------------
@functools.partial(jax.jit, static_argnums=(2,))
def ppm_deepsup_forward(conv5_nchw, params, pool_scales):
    n, cin, h, w = conv5_nchw.shape
    wp = w + 2
    hwp = h * wp
    tot_rows = _round_up((h + 2) * wp + 2, 8)       # full padded map + slack rows
    cmid = params["ppm"][0]["w"].shape[1]
    inner = params["w1"].shape[1]
    ctot = cin + len(pool_scales) * cmid
    cpad = _round_up(ctot, 128)                     # lane-dense channel padding
    inner_p = _round_up(inner, 128)                 # lane-dense output channels
    tk = 256 if (cpad % 256 == 0 and cpad >= 512) else 128

    # NCHW -> width-padded, HW-flattened layout (bf16 operands)
    x_nhwc = jnp.transpose(conv5_nchw, (0, 2, 3, 1))
    x_l = jnp.pad(x_nhwc, ((0, 0), (0, 0), (1, 1), (0, 0)))
    x_l = x_l.reshape(n, hwp, cin).astype(jnp.bfloat16)

    pool_np, up_np, s2p_list, s2p_off = _ppm_matrices(tuple(pool_scales), h, w)
    pool_all = jnp.asarray(pool_np, jnp.bfloat16)
    up_mats = [jnp.asarray(u, jnp.bfloat16) for u in up_np]

    # fold eval-mode BatchNorm scale into the conv weights
    w_stack = jnp.stack([(p["w"] * p["scale"]).astype(jnp.bfloat16)
                         for p in params["ppm"]])                    # (B, Cin, Cmid)
    bias_stack = jnp.stack([p["bias"].astype(jnp.float32)
                            for p in params["ppm"]])                 # (B, 1, Cmid)

    feat = _ppm_fused(x_l, pool_all, w_stack, bias_stack, up_mats,
                      wp=wp, hwp=hwp, cin=cin, cmid=cmid, ctot=ctot, cpad=cpad,
                      tot_rows=tot_rows, s2p_list=s2p_list, s2p_offsets=s2p_off)

    w3 = (params["w3"] * params["scale2"][0]).reshape(9, ctot, cmid)  # fold BN
    w3p = jnp.zeros((9, cpad, cmid), jnp.bfloat16).at[:, :ctot, :].set(
        w3.astype(jnp.bfloat16))
    w1p = jnp.zeros((cmid, inner_p), jnp.bfloat16).at[:, :inner].set(
        params["w1"].astype(jnp.bfloat16))
    b1p = jnp.zeros((1, inner_p), jnp.float32).at[:, :inner].set(params["b1"])

    out = _conv_last(feat, w3p, params["bias2"].astype(jnp.float32), w1p, b1p,
                     wp=wp, out_rows=hwp, tk=tk)                     # (N, H*WP, inner_p)

    out = out.reshape(n, h, wp, inner_p)[:, :, :w, :inner]           # drop junk cols
    return jnp.transpose(out, (0, 3, 1, 2))                          # NCHW out


# --------------------------------------------------------------------------
# Pure-JAX reference (for correctness check only)
# --------------------------------------------------------------------------
def reference_forward(conv5_nchw, params, pool_scales):
    N, C, H, W = conv5_nchw.shape
    x = jnp.transpose(conv5_nchw, (0, 2, 3, 1))
    feats = [x]
    for s, p in zip(pool_scales, params["ppm"]):
        Ph = jnp.asarray(_adaptive_pool_matrix(s, H))
        Pw = jnp.asarray(_adaptive_pool_matrix(s, W))
        pooled = jnp.einsum("ph,qw,nhwc->npqc", Ph, Pw, x)
        y = jnp.einsum("npqc,cd->npqd", pooled, p["w"]) * p["scale"][0] + p["bias"][0]
        y = jax.nn.relu(y)
        Ah = jnp.asarray(_bilinear_matrix(H, s))
        Aw = jnp.asarray(_bilinear_matrix(W, s))
        feats.append(jnp.einsum("hp,wq,npqd->nhwd", Ah, Aw, y))
    cat = jnp.concatenate(feats, axis=-1)
    z = jax.lax.conv_general_dilated(cat, params["w3"], (1, 1), ((1, 1), (1, 1)),
                                     dimension_numbers=("NHWC", "HWIO", "NHWC"))
    z = jax.nn.relu(z * params["scale2"][0] + params["bias2"][0])
    out = jnp.einsum("nhwc,cd->nhwd", z, params["w1"]) + params["b1"][0]
    return jnp.transpose(out, (0, 3, 1, 2))


if __name__ == "__main__":
    # Small shapes consistent with the module (fc_dim/512/256 scaled down).
    N, fc_dim, H, W = 2, 32, 12, 12
    mid, inner = 64, 16
    pool_scales = (1, 2, 3, 6)

    key = jax.random.PRNGKey(0)
    kx, kp = jax.random.split(key)
    conv5 = jax.random.normal(kx, (N, fc_dim, H, W), jnp.float32)   # NCHW, like PyTorch
    params = init_params(kp, fc_dim, mid, inner, pool_scales)

    out = jax.block_until_ready(ppm_deepsup_forward(conv5, params, pool_scales))
    ref = jax.block_until_ready(reference_forward(conv5, params, pool_scales))

    assert out.shape == (N, inner, H, W), out.shape
    np.testing.assert_allclose(np.asarray(out), np.asarray(ref), rtol=5e-2, atol=5e-2)
    print("KERNEL_OK")
</pallas_src>

<mosaic_0001>
module attributes {stable_mosaic.version = 11 : i64} {
  func.func @kernel(%arg0: i32, %arg1: memref<1x168x32xbf16, #tpu.memory_space<vmem>>, %arg2: memref<72x168xbf16, #tpu.memory_space<vmem>>, %arg3: memref<4x32x64xbf16, #tpu.memory_space<vmem>>, %arg4: memref<4x1x64xf32, #tpu.memory_space<vmem>>, %arg5: memref<168x8xbf16, #tpu.memory_space<vmem>>, %arg6: memref<168x8xbf16, #tpu.memory_space<vmem>>, %arg7: memref<168x16xbf16, #tpu.memory_space<vmem>>, %arg8: memref<168x40xbf16, #tpu.memory_space<vmem>>, %arg9: memref<1x200x384xbf16, #tpu.memory_space<vmem>>) attributes {dimension_semantics = [#tpu.dimension_semantics<parallel>], iteration_bounds = array<i64: 2>, scalar_prefetch = 0 : i64, scratch_operands = 0 : i64, tpu.core_type = #tpu.core_type<tc>, window_params = [{transform_indices = @transform_0, window_bounds = array<i64: 1, 168, 32>}, {pipeline_mode = #tpu.pipeline_mode<synchronous>, transform_indices = @transform_1, window_bounds = array<i64: 72, 168>}, {pipeline_mode = #tpu.pipeline_mode<synchronous>, transform_indices = @transform_2, window_bounds = array<i64: 4, 32, 64>}, {pipeline_mode = #tpu.pipeline_mode<synchronous>, transform_indices = @transform_3, window_bounds = array<i64: 4, 1, 64>}, {pipeline_mode = #tpu.pipeline_mode<synchronous>, transform_indices = @transform_4, window_bounds = array<i64: 168, 8>}, {pipeline_mode = #tpu.pipeline_mode<synchronous>, transform_indices = @transform_5, window_bounds = array<i64: 168, 8>}, {pipeline_mode = #tpu.pipeline_mode<synchronous>, transform_indices = @transform_6, window_bounds = array<i64: 168, 16>}, {pipeline_mode = #tpu.pipeline_mode<synchronous>, transform_indices = @transform_7, window_bounds = array<i64: 168, 40>}, {transform_indices = @transform_8, window_bounds = array<i64: 1, 200, 384>}]} {
    %c0 = arith.constant 0 : index
    %c0_0 = arith.constant 0 : index
    %c0_1 = arith.constant 0 : index
    %0 = vector.load %arg1[%c0, %c0_0, %c0_1] : memref<1x168x32xbf16, #tpu.memory_space<vmem>>, vector<1x168x32xbf16>
    %1 = vector.shape_cast %0 : vector<1x168x32xbf16> to vector<168x32xbf16>
    %c0_2 = arith.constant 0 : index
    %c0_3 = arith.constant 0 : index
    %2 = vector.load %arg2[%c0_2, %c0_3] : memref<72x168xbf16, #tpu.memory_space<vmem>>, vector<72x168xbf16>
    %cst = arith.constant dense<0.000000e+00> : vector<72x32xf32>
    %3 = tpu.matmul %2, %1, %cst {dimension_numbers = #tpu.dot_dimension_numbers<[1], [0], [0], [1], [0, 0, 1, 1], [], []>} : vector<72x168xbf16>, vector<168x32xbf16>, vector<72x32xf32> -> vector<72x32xf32>
    %cst_4 = arith.constant 0.000000e+00 : bf16
    %4 = vector.broadcast %cst_4 : bf16 to vector<14x384xbf16>
    %c0_5 = arith.constant 0 : index
    %c0_6 = arith.constant 0 : index
    %c0_7 = arith.constant 0 : index
    %5 = vector.load %arg9[%c0_5, %c0_6, %c0_7] : memref<1x200x384xbf16, #tpu.memory_space<vmem>>, vector<1x14x384xbf16>
    %6 = vector.shape_cast %5 : vector<1x14x384xbf16> to vector<14x384xbf16>
    %7 = vector.shape_cast %4 : vector<14x384xbf16> to vector<1x14x384xbf16>
    tpu.vector_store %arg9[%c0_5, %c0_6, %c0_7], %7 {strides = array<i32>} : memref<1x200x384xbf16, #tpu.memory_space<vmem>>, vector<1x14x384xbf16>,
    %cst_8 = arith.constant 0.000000e+00 : bf16
    %8 = vector.broadcast %cst_8 : bf16 to vector<18x384xbf16>
    %c0_9 = arith.constant 0 : index
    %c182 = arith.constant 182 : index
    %c0_10 = arith.constant 0 : index
    %9 = vector.load %arg9[%c0_9, %c182, %c0_10] : memref<1x200x384xbf16, #tpu.memory_space<vmem>>, vector<1x18x384xbf16>
    %10 = vector.shape_cast %9 : vector<1x18x384xbf16> to vector<18x384xbf16>
    %11 = vector.shape_cast %8 : vector<18x384xbf16> to vector<1x18x384xbf16>
    tpu.vector_store %arg9[%c0_9, %c182, %c0_10], %11 {strides = array<i32>} : memref<1x200x384xbf16, #tpu.memory_space<vmem>>, vector<1x18x384xbf16>,
    %cst_11 = arith.constant 0.000000e+00 : bf16
    %12 = vector.broadcast %cst_11 : bf16 to vector<168x96xbf16>
    %c0_12 = arith.constant 0 : index
    %c14 = arith.constant 14 : index
    %c288 = arith.constant 288 : index
    %13 = vector.load %arg9[%c0_12, %c14, %c288] : memref<1x200x384xbf16, #tpu.memory_space<vmem>>, vector<1x168x96xbf16>
    %14 = vector.shape_cast %13 : vector<1x168x96xbf16> to vector<168x96xbf16>
    %15 = vector.shape_cast %12 : vector<168x96xbf16> to vector<1x168x96xbf16>
    tpu.vector_store %arg9[%c0_12, %c14, %c288], %15 {strides = array<i32>} : memref<1x200x384xbf16, #tpu.memory_space<vmem>>, vector<1x168x96xbf16>,
    %c0_13 = arith.constant 0 : index
    %c14_14 = arith.constant 14 : index
    %c0_15 = arith.constant 0 : index
    %16 = vector.load %arg9[%c0_13, %c14_14, %c0_15] : memref<1x200x384xbf16, #tpu.memory_space<vmem>>, vector<1x168x32xbf16>
    %17 = vector.shape_cast %16 : vector<1x168x32xbf16> to vector<168x32xbf16>
    %18 = vector.shape_cast %1 : vector<168x32xbf16> to vector<1x168x32xbf16>
    tpu.vector_store %arg9[%c0_13, %c14_14, %c0_15], %18 {strides = array<i32>} : memref<1x200x384xbf16, #tpu.memory_space<vmem>>, vector<1x168x32xbf16>,
    %19 = vector.extract_strided_slice %3 {offsets = [0, 0], sizes = [8, 32], strides = [1, 1]} : vector<72x32xf32> to vector<8x32xf32>
    %20 = arith.truncf %19 : vector<8x32xf32> to vector<8x32xbf16>
    %c0_16 = arith.constant 0 : index
    %c0_17 = arith.constant 0 : index
    %c0_18 = arith.constant 0 : index
    %21 = vector.load %arg3[%c0_16, %c0_17, %c0_18] : memref<4x32x64xbf16, #tpu.memory_space<vmem>>, vector<1x32x64xbf16>
    %22 = vector.shape_cast %21 : vector<1x32x64xbf16> to vector<32x64xbf16>
    %cst_19 = arith.constant dense<0.000000e+00> : vector<8x64xf32>
    %23 = tpu.matmul %20, %22, %cst_19 {dimension_numbers = #tpu.dot_dimension_numbers<[1], [0], [0], [1], [0, 0, 1, 1], [], []>} : vector<8x32xbf16>, vector<32x64xbf16>, vector<8x64xf32> -> vector<8x64xf32>
    %c0_20 = arith.constant 0 : index
    %c0_21 = arith.constant 0 : index
    %c0_22 = arith.constant 0 : index
    %24 = vector.load %arg4[%c0_20, %c0_21, %c0_22] : memref<4x1x64xf32, #tpu.memory_space<vmem>>, vector<1x1x64xf32>
    %25 = vector.shape_cast %24 : vector<1x1x64xf32> to vector<1x64xf32>
    %26 = vector.broadcast %25 : vector<1x64xf32> to vector<8x64xf32>
    %27 = arith.addf %23, %26 : vector<8x64xf32>
    %cst_23 = arith.constant 0.000000e+00 : f32
    %28 = vector.broadcast %cst_23 : f32 to vector<8x64xf32>
    %29 = arith.maximumf %27, %28 : vector<8x64xf32>
    %c0_24 = arith.constant 0 : index
    %c0_25 = arith.constant 0 : index
    %30 = vector.load %arg5[%c0_24, %c0_25] : memref<168x8xbf16, #tpu.memory_space<vmem>>, vector<168x8xbf16>
    %31 = arith.truncf %29 : vector<8x64xf32> to vector<8x64xbf16>
    %cst_26 = arith.constant dense<0.000000e+00> : vector<168x64xf32>
    %32 = tpu.matmul %30, %31, %cst_26 {dimension_numbers = #tpu.dot_dimension_numbers<[1], [0], [0], [1], [0, 0, 1, 1], [], []>} : vector<168x8xbf16>, vector<8x64xbf16>, vector<168x64xf32> -> vector<168x64xf32>
    %33 = arith.truncf %32 : vector<168x64xf32> to vector<168x64xbf16>
    %c0_27 = arith.constant 0 : index
    %c14_28 = arith.constant 14 : index
    %c32 = arith.constant 32 : index
    %34 = vector.load %arg9[%c0_27, %c14_28, %c32] : memref<1x200x384xbf16, #tpu.memory_space<vmem>>, vector<1x168x64xbf16>
    %35 = vector.shape_cast %34 : vector<1x168x64xbf16> to vector<168x64xbf16>
    %36 = vector.shape_cast %33 : vector<168x64xbf16> to vector<1x168x64xbf16>
    tpu.vector_store %arg9[%c0_27, %c14_28, %c32], %36 {strides = array<i32>} : memref<1x200x384xbf16, #tpu.memory_space<vmem>>, vector<1x168x64xbf16>,
    %37 = vector.extract_strided_slice %3 {offsets = [8, 0], sizes = [8, 32], strides = [1, 1]} : vector<72x32xf32> to vector<8x32xf32>
    %38 = arith.truncf %37 : vector<8x32xf32> to vector<8x32xbf16>
    %c1 = arith.constant 1 : index
    %c0_29 = arith.constant 0 : index
    %c0_30 = arith.constant 0 : index
    %39 = vector.load %arg3[%c1, %c0_29, %c0_30] : memref<4x32x64xbf16, #tpu.memory_space<vmem>>, vector<1x32x64xbf16>
    %40 = vector.shape_cast %39 : vector<1x32x64xbf16> to vector<32x64xbf16>
    %cst_31 = arith.constant dense<0.000000e+00> : vector<8x64xf32>
    %41 = tpu.matmul %38, %40, %cst_31 {dimension_numbers = #tpu.dot_dimension_numbers<[1], [0], [0], [1], [0, 0, 1, 1], [], []>} : vector<8x32xbf16>, vector<32x64xbf16>, vector<8x64xf32> -> vector<8x64xf32>
    %c1_32 = arith.constant 1 : index
    %c0_33 = arith.constant 0 : index
    %c0_34 = arith.constant 0 : index
    %42 = vector.load %arg4[%c1_32, %c0_33, %c0_34] : memref<4x1x64xf32, #tpu.memory_space<vmem>>, vector<1x1x64xf32>
    %43 = vector.shape_cast %42 : vector<1x1x64xf32> to vector<1x64xf32>
    %44 = vector.broadcast %43 : vector<1x64xf32> to vector<8x64xf32>
    %45 = arith.addf %41, %44 : vector<8x64xf32>
    %cst_35 = arith.constant 0.000000e+00 : f32
    %46 = vector.broadcast %cst_35 : f32 to vector<8x64xf32>
    %47 = arith.maximumf %45, %46 : vector<8x64xf32>
    %c0_36 = arith.constant 0 : index
    %c0_37 = arith.constant 0 : index
    %48 = vector.load %arg6[%c0_36, %c0_37] : memref<168x8xbf16, #tpu.memory_space<vmem>>, vector<168x8xbf16>
    %49 = arith.truncf %47 : vector<8x64xf32> to vector<8x64xbf16>
    %cst_38 = arith.constant dense<0.000000e+00> : vector<168x64xf32>
    %50 = tpu.matmul %48, %49, %cst_38 {dimension_numbers = #tpu.dot_dimension_numbers<[1], [0], [0], [1], [0, 0, 1, 1], [], []>} : vector<168x8xbf16>, vector<8x64xbf16>, vector<168x64xf32> -> vector<168x64xf32>
    %51 = arith.truncf %50 : vector<168x64xf32> to vector<168x64xbf16>
    %c0_39 = arith.constant 0 : index
    %c14_40 = arith.constant 14 : index
    %c96 = arith.constant 96 : index
    %52 = vector.load %arg9[%c0_39, %c14_40, %c96] : memref<1x200x384xbf16, #tpu.memory_space<vmem>>, vector<1x168x64xbf16>
    %53 = vector.shape_cast %52 : vector<1x168x64xbf16> to vector<168x64xbf16>
    %54 = vector.shape_cast %51 : vector<168x64xbf16> to vector<1x168x64xbf16>
    tpu.vector_store %arg9[%c0_39, %c14_40, %c96], %54 {strides = array<i32>} : memref<1x200x384xbf16, #tpu.memory_space<vmem>>, vector<1x168x64xbf16>,
    %55 = vector.extract_strided_slice %3 {offsets = [16, 0], sizes = [16, 32], strides = [1, 1]} : vector<72x32xf32> to vector<16x32xf32>
    %56 = arith.truncf %55 : vector<16x32xf32> to vector<16x32xbf16>
    %c2 = arith.constant 2 : index
    %c0_41 = arith.constant 0 : index
    %c0_42 = arith.constant 0 : index
    %57 = vector.load %arg3[%c2, %c0_41, %c0_42] : memref<4x32x64xbf16, #tpu.memory_space<vmem>>, vector<1x32x64xbf16>
    %58 = vector.shape_cast %57 : vector<1x32x64xbf16> to vector<32x64xbf16>
    %cst_43 = arith.constant dense<0.000000e+00> : vector<16x64xf32>
    %59 = tpu.matmul %56, %58, %cst_43 {dimension_numbers = #tpu.dot_dimension_numbers<[1], [0], [0], [1], [0, 0, 1, 1], [], []>} : vector<16x32xbf16>, vector<32x64xbf16>, vector<16x64xf32> -> vector<16x64xf32>
    %c2_44 = arith.constant 2 : index
    %c0_45 = arith.constant 0 : index
    %c0_46 = arith.constant 0 : index
    %60 = vector.load %arg4[%c2_44, %c0_45, %c0_46] : memref<4x1x64xf32, #tpu.memory_space<vmem>>, vector<1x1x64xf32>
    %61 = vector.shape_cast %60 : vector<1x1x64xf32> to vector<1x64xf32>
    %62 = vector.broadcast %61 : vector<1x64xf32> to vector<16x64xf32>
    %63 = arith.addf %59, %62 : vector<16x64xf32>
    %cst_47 = arith.constant 0.000000e+00 : f32
    %64 = vector.broadcast %cst_47 : f32 to vector<16x64xf32>
    %65 = arith.maximumf %63, %64 : vector<16x64xf32>
    %c0_48 = arith.constant 0 : index
    %c0_49 = arith.constant 0 : index
    %66 = vector.load %arg7[%c0_48, %c0_49] : memref<168x16xbf16, #tpu.memory_space<vmem>>, vector<168x16xbf16>
    %67 = arith.truncf %65 : vector<16x64xf32> to vector<16x64xbf16>
    %cst_50 = arith.constant dense<0.000000e+00> : vector<168x64xf32>
    %68 = tpu.matmul %66, %67, %cst_50 {dimension_numbers = #tpu.dot_dimension_numbers<[1], [0], [0], [1], [0, 0, 1, 1], [], []>} : vector<168x16xbf16>, vector<16x64xbf16>, vector<168x64xf32> -> vector<168x64xf32>
    %69 = arith.truncf %68 : vector<168x64xf32> to vector<168x64xbf16>
    %c0_51 = arith.constant 0 : index
    %c14_52 = arith.constant 14 : index
    %c160 = arith.constant 160 : index
    %70 = vector.load %arg9[%c0_51, %c14_52, %c160] : memref<1x200x384xbf16, #tpu.memory_space<vmem>>, vector<1x168x64xbf16>
    %71 = vector.shape_cast %70 : vector<1x168x64xbf16> to vector<168x64xbf16>
    %72 = vector.shape_cast %69 : vector<168x64xbf16> to vector<1x168x64xbf16>
    tpu.vector_store %arg9[%c0_51, %c14_52, %c160], %72 {strides = array<i32>} : memref<1x200x384xbf16, #tpu.memory_space<vmem>>, vector<1x168x64xbf16>,
    %73 = vector.extract_strided_slice %3 {offsets = [32, 0], sizes = [40, 32], strides = [1, 1]} : vector<72x32xf32> to vector<40x32xf32>
    %74 = arith.truncf %73 : vector<40x32xf32> to vector<40x32xbf16>
    %c3 = arith.constant 3 : index
    %c0_53 = arith.constant 0 : index
    %c0_54 = arith.constant 0 : index
    %75 = vector.load %arg3[%c3, %c0_53, %c0_54] : memref<4x32x64xbf16, #tpu.memory_space<vmem>>, vector<1x32x64xbf16>
    %76 = vector.shape_cast %75 : vector<1x32x64xbf16> to vector<32x64xbf16>
    %cst_55 = arith.constant dense<0.000000e+00> : vector<40x64xf32>
    %77 = tpu.matmul %74, %76, %cst_55 {dimension_numbers = #tpu.dot_dimension_numbers<[1], [0], [0], [1], [0, 0, 1, 1], [], []>} : vector<40x32xbf16>, vector<32x64xbf16>, vector<40x64xf32> -> vector<40x64xf32>
    %c3_56 = arith.constant 3 : index
    %c0_57 = arith.constant 0 : index
    %c0_58 = arith.constant 0 : index
    %78 = vector.load %arg4[%c3_56, %c0_57, %c0_58] : memref<4x1x64xf32, #tpu.memory_space<vmem>>, vector<1x1x64xf32>
    %79 = vector.shape_cast %78 : vector<1x1x64xf32> to vector<1x64xf32>
    %80 = vector.broadcast %79 : vector<1x64xf32> to vector<40x64xf32>
    %81 = arith.addf %77, %80 : vector<40x64xf32>
    %cst_59 = arith.constant 0.000000e+00 : f32
    %82 = vector.broadcast %cst_59 : f32 to vector<40x64xf32>
    %83 = arith.maximumf %81, %82 : vector<40x64xf32>
    %c0_60 = arith.constant 0 : index
    %c0_61 = arith.constant 0 : index
    %84 = vector.load %arg8[%c0_60, %c0_61] : memref<168x40xbf16, #tpu.memory_space<vmem>>, vector<168x40xbf16>
    %85 = arith.truncf %83 : vector<40x64xf32> to vector<40x64xbf16>
    %cst_62 = arith.constant dense<0.000000e+00> : vector<168x64xf32>
    %86 = tpu.matmul %84, %85, %cst_62 {dimension_numbers = #tpu.dot_dimension_numbers<[1], [0], [0], [1], [0, 0, 1, 1], [], []>} : vector<168x40xbf16>, vector<40x64xbf16>, vector<168x64xf32> -> vector<168x64xf32>
    %87 = arith.truncf %86 : vector<168x64xf32> to vector<168x64xbf16>
    %c0_63 = arith.constant 0 : index
    %c14_64 = arith.constant 14 : index
    %c224 = arith.constant 224 : index
    %88 = vector.load %arg9[%c0_63, %c14_64, %c224] : memref<1x200x384xbf16, #tpu.memory_space<vmem>>, vector<1x168x64xbf16>
    %89 = vector.shape_cast %88 : vector<1x168x64xbf16> to vector<168x64xbf16>
    %90 = vector.shape_cast %87 : vector<168x64xbf16> to vector<1x168x64xbf16>
    tpu.vector_store %arg9[%c0_63, %c14_64, %c224], %90 {strides = array<i32>} : memref<1x200x384xbf16, #tpu.memory_space<vmem>>, vector<1x168x64xbf16>,
    return
  }
  func.func @transform_0(%arg0: i32) -> (i32, i32, i32) {
    %c0_i32 = arith.constant 0 : i32
    %c0_i32_0 = arith.constant 0 : i32
    %c0_i32_1 = arith.constant 0 : i32
    return %arg0, %c0_i32, %c0_i32_0 : i32, i32, i32
  }
  func.func @transform_1(%arg0: i32) -> (i32, i32) {
    %c0_i32 = arith.constant 0 : i32
    %c0_i32_0 = arith.constant 0 : i32
    %c0_i32_1 = arith.constant 0 : i32
    return %c0_i32, %c0_i32_0 : i32, i32
  }
  func.func @transform_2(%arg0: i32) -> (i32, i32, i32) {
    %c0_i32 = arith.constant 0 : i32
    %c0_i32_0 = arith.constant 0 : i32
    %c0_i32_1 = arith.constant 0 : i32
    %c0_i32_2 = arith.constant 0 : i32
    return %c0_i32, %c0_i32_0, %c0_i32_1 : i32, i32, i32
  }
  func.func @transform_3(%arg0: i32) -> (i32, i32, i32) {
    %c0_i32 = arith.constant 0 : i32
    %c0_i32_0 = arith.constant 0 : i32
    %c0_i32_1 = arith.constant 0 : i32
    %c0_i32_2 = arith.constant 0 : i32
    return %c0_i32, %c0_i32_0, %c0_i32_1 : i32, i32, i32
  }
  func.func @transform_4(%arg0: i32) -> (i32, i32) {
    %c0_i32 = arith.constant 0 : i32
    %c0_i32_0 = arith.constant 0 : i32
    %c0_i32_1 = arith.constant 0 : i32
    return %c0_i32, %c0_i32_0 : i32, i32
  }
  func.func @transform_5(%arg0: i32) -> (i32, i32) {
    %c0_i32 = arith.constant 0 : i32
    %c0_i32_0 = arith.constant 0 : i32
    %c0_i32_1 = arith.constant 0 : i32
    return %c0_i32, %c0_i32_0 : i32, i32
  }
  func.func @transform_6(%arg0: i32) -> (i32, i32) {
    %c0_i32 = arith.constant 0 : i32
    %c0_i32_0 = arith.constant 0 : i32
    %c0_i32_1 = arith.constant 0 : i32
    return %c0_i32, %c0_i32_0 : i32, i32
  }
  func.func @transform_7(%arg0: i32) -> (i32, i32) {
    %c0_i32 = arith.constant 0 : i32
    %c0_i32_0 = arith.constant 0 : i32
    %c0_i32_1 = arith.constant 0 : i32
    return %c0_i32, %c0_i32_0 : i32, i32
  }
  func.func @transform_8(%arg0: i32) -> (i32, i32, i32) {
    %c0_i32 = arith.constant 0 : i32
    %c0_i32_0 = arith.constant 0 : i32
    %c0_i32_1 = arith.constant 0 : i32
    return %arg0, %c0_i32, %c0_i32_0 : i32, i32, i32
  }
}

module attributes {stable_mosaic.version = 11 : i64} {
  func.func @kernel(%arg0: i32, %arg1: i32, %arg2: memref<1x200x128xbf16, #tpu.memory_space<vmem>>, %arg3: memref<9x128x64xbf16, #tpu.memory_space<vmem>>, %arg4: memref<1x64xf32, #tpu.memory_space<vmem>>, %arg5: memref<64x128xbf16, #tpu.memory_space<vmem>>, %arg6: memref<1x128xf32, #tpu.memory_space<vmem>>, %arg7: memref<1x168x128xf32, #tpu.memory_space<vmem>>, %arg8: memref<168x64xf32, #tpu.memory_space<vmem>>) attributes {dimension_semantics = [#tpu.dimension_semantics<parallel>, #tpu.dimension_semantics<arbitrary>], iteration_bounds = array<i64: 2, 3>, scalar_prefetch = 0 : i64, scratch_operands = 1 : i64, tpu.core_type = #tpu.core_type<tc>, window_params = [{transform_indices = @transform_0, window_bounds = array<i64: 1, 200, 128>}, {transform_indices = @transform_1, window_bounds = array<i64: 9, 128, 64>}, {pipeline_mode = #tpu.pipeline_mode<synchronous>, transform_indices = @transform_2, window_bounds = array<i64: 1, 64>}, {pipeline_mode = #tpu.pipeline_mode<synchronous>, transform_indices = @transform_3, window_bounds = array<i64: 64, 128>}, {pipeline_mode = #tpu.pipeline_mode<synchronous>, transform_indices = @transform_4, window_bounds = array<i64: 1, 128>}, {transform_indices = @transform_5, window_bounds = array<i64: 1, 168, 128>}]} {
    %c0_i32 = arith.constant 0 : i32
    %0 = arith.cmpi eq, %arg1, %c0_i32 : i32
    %1 = arith.extui %0 : i1 to i32
    %c0_i32_0 = arith.constant 0 : i32
    %2 = arith.cmpi ne, %1, %c0_i32_0 : i32
    scf.if %2 {
      %cst_53 = arith.constant 0.000000e+00 : f32
      %62 = vector.broadcast %cst_53 : f32 to vector<168x64xf32>
      %c0_54 = arith.constant 0 : index
      %c0_55 = arith.constant 0 : index
      %63 = vector.load %arg8[%c0_54, %c0_55] : memref<168x64xf32, #tpu.memory_space<vmem>>, vector<168x64xf32>
      tpu.vector_store %arg8[%c0_54, %c0_55], %62 {strides = array<i32>} : memref<168x64xf32, #tpu.memory_space<vmem>>, vector<168x64xf32>,
    } else {
    }
    %c0 = arith.constant 0 : index
    %c0_1 = arith.constant 0 : index
    %c0_2 = arith.constant 0 : index
    %3 = vector.load %arg2[%c0, %c0_1, %c0_2] : memref<1x200x128xbf16, #tpu.memory_space<vmem>>, vector<1x168x128xbf16>
    %4 = vector.shape_cast %3 : vector<1x168x128xbf16> to vector<168x128xbf16>
    %c0_3 = arith.constant 0 : index
    %c0_4 = arith.constant 0 : index
    %c0_5 = arith.constant 0 : index
    %5 = vector.load %arg3[%c0_3, %c0_4, %c0_5] : memref<9x128x64xbf16, #tpu.memory_space<vmem>>, vector<1x128x64xbf16>
    %6 = vector.shape_cast %5 : vector<1x128x64xbf16> to vector<128x64xbf16>
    %cst = arith.constant dense<0.000000e+00> : vector<168x64xf32>
    %7 = tpu.matmul %4, %6, %cst {dimension_numbers = #tpu.dot_dimension_numbers<[1], [0], [0], [1], [0, 0, 1, 1], [], []>} : vector<168x128xbf16>, vector<128x64xbf16>, vector<168x64xf32> -> vector<168x64xf32>
    %c0_6 = arith.constant 0 : index
    %c1 = arith.constant 1 : index
    %c0_7 = arith.constant 0 : index
    %8 = vector.load %arg2[%c0_6, %c1, %c0_7] : memref<1x200x128xbf16, #tpu.memory_space<vmem>>, vector<1x168x128xbf16>
    %9 = vector.shape_cast %8 : vector<1x168x128xbf16> to vector<168x128xbf16>
    %c1_8 = arith.constant 1 : index
    %c0_9 = arith.constant 0 : index
    %c0_10 = arith.constant 0 : index
    %10 = vector.load %arg3[%c1_8, %c0_9, %c0_10] : memref<9x128x64xbf16, #tpu.memory_space<vmem>>, vector<1x128x64xbf16>
    %11 = vector.shape_cast %10 : vector<1x128x64xbf16> to vector<128x64xbf16>
    %cst_11 = arith.constant dense<0.000000e+00> : vector<168x64xf32>
    %12 = tpu.matmul %9, %11, %cst_11 {dimension_numbers = #tpu.dot_dimension_numbers<[1], [0], [0], [1], [0, 0, 1, 1], [], []>} : vector<168x128xbf16>, vector<128x64xbf16>, vector<168x64xf32> -> vector<168x64xf32>
    %13 = arith.addf %7, %12 : vector<168x64xf32>
    %c0_12 = arith.constant 0 : index
    %c2 = arith.constant 2 : index
    %c0_13 = arith.constant 0 : index
    %14 = vector.load %arg2[%c0_12, %c2, %c0_13] : memref<1x200x128xbf16, #tpu.memory_space<vmem>>, vector<1x168x128xbf16>
    %15 = vector.shape_cast %14 : vector<1x168x128xbf16> to vector<168x128xbf16>
    %c2_14 = arith.constant 2 : index
    %c0_15 = arith.constant 0 : index
    %c0_16 = arith.constant 0 : index
    %16 = vector.load %arg3[%c2_14, %c0_15, %c0_16] : memref<9x128x64xbf16, #tpu.memory_space<vmem>>, vector<1x128x64xbf16>
    %17 = vector.shape_cast %16 : vector<1x128x64xbf16> to vector<128x64xbf16>
    %cst_17 = arith.constant dense<0.000000e+00> : vector<168x64xf32>
    %18 = tpu.matmul %15, %17, %cst_17 {dimension_numbers = #tpu.dot_dimension_numbers<[1], [0], [0], [1], [0, 0, 1, 1], [], []>} : vector<168x128xbf16>, vector<128x64xbf16>, vector<168x64xf32> -> vector<168x64xf32>
    %19 = arith.addf %13, %18 : vector<168x64xf32>
    %c0_18 = arith.constant 0 : index
    %c14 = arith.constant 14 : index
    %c0_19 = arith.constant 0 : index
    %20 = vector.load %arg2[%c0_18, %c14, %c0_19] : memref<1x200x128xbf16, #tpu.memory_space<vmem>>, vector<1x168x128xbf16>
    %21 = vector.shape_cast %20 : vector<1x168x128xbf16> to vector<168x128xbf16>
    %c3 = arith.constant 3 : index
    %c0_20 = arith.constant 0 : index
    %c0_21 = arith.constant 0 : index
    %22 = vector.load %arg3[%c3, %c0_20, %c0_21] : memref<9x128x64xbf16, #tpu.memory_space<vmem>>, vector<1x128x64xbf16>
    %23 = vector.shape_cast %22 : vector<1x128x64xbf16> to vector<128x64xbf16>
    %cst_22 = arith.constant dense<0.000000e+00> : vector<168x64xf32>
    %24 = tpu.matmul %21, %23, %cst_22 {dimension_numbers = #tpu.dot_dimension_numbers<[1], [0], [0], [1], [0, 0, 1, 1], [], []>} : vector<168x128xbf16>, vector<128x64xbf16>, vector<168x64xf32> -> vector<168x64xf32>
    %25 = arith.addf %19, %24 : vector<168x64xf32>
    %c0_23 = arith.constant 0 : index
    %c15 = arith.constant 15 : index
    %c0_24 = arith.constant 0 : index
    %26 = vector.load %arg2[%c0_23, %c15, %c0_24] : memref<1x200x128xbf16, #tpu.memory_space<vmem>>, vector<1x168x128xbf16>
    %27 = vector.shape_cast %26 : vector<1x168x128xbf16> to vector<168x128xbf16>
    %c4 = arith.constant 4 : index
    %c0_25 = arith.constant 0 : index
    %c0_26 = arith.constant 0 : index
    %28 = vector.load %arg3[%c4, %c0_25, %c0_26] : memref<9x128x64xbf16, #tpu.memory_space<vmem>>, vector<1x128x64xbf16>
    %29 = vector.shape_cast %28 : vector<1x128x64xbf16> to vector<128x64xbf16>
    %cst_27 = arith.constant dense<0.000000e+00> : vector<168x64xf32>
    %30 = tpu.matmul %27, %29, %cst_27 {dimension_numbers = #tpu.dot_dimension_numbers<[1], [0], [0], [1], [0, 0, 1, 1], [], []>} : vector<168x128xbf16>, vector<128x64xbf16>, vector<168x64xf32> -> vector<168x64xf32>
    %31 = arith.addf %25, %30 : vector<168x64xf32>
    %c0_28 = arith.constant 0 : index
    %c16 = arith.constant 16 : index
    %c0_29 = arith.constant 0 : index
    %32 = vector.load %arg2[%c0_28, %c16, %c0_29] : memref<1x200x128xbf16, #tpu.memory_space<vmem>>, vector<1x168x128xbf16>
    %33 = vector.shape_cast %32 : vector<1x168x128xbf16> to vector<168x128xbf16>
    %c5 = arith.constant 5 : index
    %c0_30 = arith.constant 0 : index
    %c0_31 = arith.constant 0 : index
    %34 = vector.load %arg3[%c5, %c0_30, %c0_31] : memref<9x128x64xbf16, #tpu.memory_space<vmem>>, vector<1x128x64xbf16>
    %35 = vector.shape_cast %34 : vector<1x128x64xbf16> to vector<128x64xbf16>
    %cst_32 = arith.constant dense<0.000000e+00> : vector<168x64xf32>
    %36 = tpu.matmul %33, %35, %cst_32 {dimension_numbers = #tpu.dot_dimension_numbers<[1], [0], [0], [1], [0, 0, 1, 1], [], []>} : vector<168x128xbf16>, vector<128x64xbf16>, vector<168x64xf32> -> vector<168x64xf32>
    %37 = arith.addf %31, %36 : vector<168x64xf32>
    %c0_33 = arith.constant 0 : index
    %c28 = arith.constant 28 : index
    %c0_34 = arith.constant 0 : index
    %38 = vector.load %arg2[%c0_33, %c28, %c0_34] : memref<1x200x128xbf16, #tpu.memory_space<vmem>>, vector<1x168x128xbf16>
    %39 = vector.shape_cast %38 : vector<1x168x128xbf16> to vector<168x128xbf16>
    %c6 = arith.constant 6 : index
    %c0_35 = arith.constant 0 : index
    %c0_36 = arith.constant 0 : index
    %40 = vector.load %arg3[%c6, %c0_35, %c0_36] : memref<9x128x64xbf16, #tpu.memory_space<vmem>>, vector<1x128x64xbf16>
    %41 = vector.shape_cast %40 : vector<1x128x64xbf16> to vector<128x64xbf16>
    %cst_37 = arith.constant dense<0.000000e+00> : vector<168x64xf32>
    %42 = tpu.matmul %39, %41, %cst_37 {dimension_numbers = #tpu.dot_dimension_numbers<[1], [0], [0], [1], [0, 0, 1, 1], [], []>} : vector<168x128xbf16>, vector<128x64xbf16>, vector<168x64xf32> -> vector<168x64xf32>
    %43 = arith.addf %37, %42 : vector<168x64xf32>
    %c0_38 = arith.constant 0 : index
    %c29 = arith.constant 29 : index
    %c0_39 = arith.constant 0 : index
    %44 = vector.load %arg2[%c0_38, %c29, %c0_39] : memref<1x200x128xbf16, #tpu.memory_space<vmem>>, vector<1x168x128xbf16>
    %45 = vector.shape_cast %44 : vector<1x168x128xbf16> to vector<168x128xbf16>
    %c7 = arith.constant 7 : index
    %c0_40 = arith.constant 0 : index
    %c0_41 = arith.constant 0 : index
    %46 = vector.load %arg3[%c7, %c0_40, %c0_41] : memref<9x128x64xbf16, #tpu.memory_space<vmem>>, vector<1x128x64xbf16>
    %47 = vector.shape_cast %46 : vector<1x128x64xbf16> to vector<128x64xbf16>
    %cst_42 = arith.constant dense<0.000000e+00> : vector<168x64xf32>
    %48 = tpu.matmul %45, %47, %cst_42 {dimension_numbers = #tpu.dot_dimension_numbers<[1], [0], [0], [1], [0, 0, 1, 1], [], []>} : vector<168x128xbf16>, vector<128x64xbf16>, vector<168x64xf32> -> vector<168x64xf32>
    %49 = arith.addf %43, %48 : vector<168x64xf32>
    %c0_43 = arith.constant 0 : index
    %c30 = arith.constant 30 : index
    %c0_44 = arith.constant 0 : index
    %50 = vector.load %arg2[%c0_43, %c30, %c0_44] : memref<1x200x128xbf16, #tpu.memory_space<vmem>>, vector<1x168x128xbf16>
    %51 = vector.shape_cast %50 : vector<1x168x128xbf16> to vector<168x128xbf16>
    %c8 = arith.constant 8 : index
    %c0_45 = arith.constant 0 : index
    %c0_46 = arith.constant 0 : index
    %52 = vector.load %arg3[%c8, %c0_45, %c0_46] : memref<9x128x64xbf16, #tpu.memory_space<vmem>>, vector<1x128x64xbf16>
    %53 = vector.shape_cast %52 : vector<1x128x64xbf16> to vector<128x64xbf16>
    %cst_47 = arith.constant dense<0.000000e+00> : vector<168x64xf32>
    %54 = tpu.matmul %51, %53, %cst_47 {dimension_numbers = #tpu.dot_dimension_numbers<[1], [0], [0], [1], [0, 0, 1, 1], [], []>} : vector<168x128xbf16>, vector<128x64xbf16>, vector<168x64xf32> -> vector<168x64xf32>
    %55 = arith.addf %49, %54 : vector<168x64xf32>
    %c0_48 = arith.constant 0 : index
    %c0_49 = arith.constant 0 : index
    %56 = vector.load %arg8[%c0_48, %c0_49] : memref<168x64xf32, #tpu.memory_space<vmem>>, vector<168x64xf32>
    %57 = arith.addf %56, %55 : vector<168x64xf32>
    %c0_50 = arith.constant 0 : index
    %c0_51 = arith.constant 0 : index
    %58 = vector.load %arg8[%c0_50, %c0_51] : memref<168x64xf32, #tpu.memory_space<vmem>>, vector<168x64xf32>
    tpu.vector_store %arg8[%c0_50, %c0_51], %57 {strides = array<i32>} : memref<168x64xf32, #tpu.memory_space<vmem>>, vector<168x64xf32>,
    %c2_i32 = arith.constant 2 : i32
    %59 = arith.cmpi eq, %arg1, %c2_i32 : i32
    %60 = arith.extui %59 : i1 to i32
    %c0_i32_52 = arith.constant 0 : i32
    %61 = arith.cmpi ne, %60, %c0_i32_52 : i32
    scf.if %61 {
      %c0_53 = arith.constant 0 : index
      %c0_54 = arith.constant 0 : index
      %62 = vector.load %arg8[%c0_53, %c0_54] : memref<168x64xf32, #tpu.memory_space<vmem>>, vector<168x64xf32>
      %c0_55 = arith.constant 0 : index
      %c0_56 = arith.constant 0 : index
      %63 = vector.load %arg4[%c0_55, %c0_56] : memref<1x64xf32, #tpu.memory_space<vmem>>, vector<1x64xf32>
      %64 = vector.broadcast %63 : vector<1x64xf32> to vector<168x64xf32>
      %65 = arith.addf %62, %64 : vector<168x64xf32>
      %cst_57 = arith.constant 0.000000e+00 : f32
      %66 = vector.broadcast %cst_57 : f32 to vector<168x64xf32>
      %67 = arith.maximumf %65, %66 : vector<168x64xf32>
      %68 = arith.truncf %67 : vector<168x64xf32> to vector<168x64xbf16>
      %c0_58 = arith.constant 0 : index
      %c0_59 = arith.constant 0 : index
      %69 = vector.load %arg5[%c0_58, %c0_59] : memref<64x128xbf16, #tpu.memory_space<vmem>>, vector<64x128xbf16>
      %cst_60 = arith.constant dense<0.000000e+00> : vector<168x128xf32>
      %70 = tpu.matmul %68, %69, %cst_60 {dimension_numbers = #tpu.dot_dimension_numbers<[1], [0], [0], [1], [0, 0, 1, 1], [], []>} : vector<168x64xbf16>, vector<64x128xbf16>, vector<168x128xf32> -> vector<168x128xf32>
      %c0_61 = arith.constant 0 : index
      %c0_62 = arith.constant 0 : index
      %71 = vector.load %arg6[%c0_61, %c0_62] : memref<1x128xf32, #tpu.memory_space<vmem>>, vector<1x128xf32>
      %72 = vector.broadcast %71 : vector<1x128xf32> to vector<168x128xf32>
      %73 = arith.addf %70, %72 : vector<168x128xf32>
      %c0_63 = arith.constant 0 : index
      %c0_64 = arith.constant 0 : index
      %c0_65 = arith.constant 0 : index
      %74 = vector.load %arg7[%c0_63, %c0_64, %c0_65] : memref<1x168x128xf32, #tpu.memory_space<vmem>>, vector<1x168x128xf32>
      %75 = vector.shape_cast %74 : vector<1x168x128xf32> to vector<168x128xf32>
      %76 = vector.shape_cast %73 : vector<168x128xf32> to vector<1x168x128xf32>
      tpu.vector_store %arg7[%c0_63, %c0_64, %c0_65], %76 {strides = array<i32>} : memref<1x168x128xf32, #tpu.memory_space<vmem>>, vector<1x168x128xf32>,
    } else {
    }
    return
  }
  func.func @transform_0(%arg0: i32, %arg1: i32) -> (i32, i32, i32) {
    %c0_i32 = arith.constant 0 : i32
    %c0_i32_0 = arith.constant 0 : i32
    return %arg0, %c0_i32, %arg1 : i32, i32, i32
  }
  func.func @transform_1(%arg0: i32, %arg1: i32) -> (i32, i32, i32) {
    %c0_i32 = arith.constant 0 : i32
    %c0_i32_0 = arith.constant 0 : i32
    %c0_i32_1 = arith.constant 0 : i32
    return %c0_i32, %arg1, %c0_i32_0 : i32, i32, i32
  }
  func.func @transform_2(%arg0: i32, %arg1: i32) -> (i32, i32) {
    %c0_i32 = arith.constant 0 : i32
    %c0_i32_0 = arith.constant 0 : i32
    %c0_i32_1 = arith.constant 0 : i32
    return %c0_i32, %c0_i32_0 : i32, i32
  }
  func.func @transform_3(%arg0: i32, %arg1: i32) -> (i32, i32) {
    %c0_i32 = arith.constant 0 : i32
    %c0_i32_0 = arith.constant 0 : i32
    %c0_i32_1 = arith.constant 0 : i32
    return %c0_i32, %c0_i32_0 : i32, i32
  }
  func.func @transform_4(%arg0: i32, %arg1: i32) -> (i32, i32) {
    %c0_i32 = arith.constant 0 : i32
    %c0_i32_0 = arith.constant 0 : i32
    %c0_i32_1 = arith.constant 0 : i32
    return %c0_i32, %c0_i32_0 : i32, i32
  }
  func.func @transform_5(%arg0: i32, %arg1: i32) -> (i32, i32, i32) {
    %c0_i32 = arith.constant 0 : i32
    %c0_i32_0 = arith.constant 0 : i32
    %c0_i32_1 = arith.constant 0 : i32
    return %arg0, %c0_i32, %c0_i32_0 : i32, i32, i32
  }
}

</mosaic_0001>

<llo_original>
// kernel: ppm_deepsup_forward.2
$region0: #{ppm_deepsup_forward.2}
  #allocation0 [shape = 'u32[]', space=smem, size = 0x4, offset = 0x4, fixed_abs, tag = 'smem constant byte address 0x4 - core index']
  #allocation1 [shape = 'u32[144,128]{1,0:T(1,128)}', space=vmem, size = 0x12000, scoped, tag = 'internal scratch']
  %s0 = inlined_call_operand.vmem [shape: bf16[2,168,32], index: 0, kind: input, shape index: {}]
  %s1 = inlined_call_operand.vmem [shape: bf16[72,168], index: 1, kind: input, shape index: {}]
  %s2 = inlined_call_operand.vmem [shape: bf16[4,32,64], index: 2, kind: input, shape index: {}]
  %s3 = inlined_call_operand.vmem [shape: f32[4,1,64], index: 3, kind: input, shape index: {}]
  %s4 = inlined_call_operand.vmem [shape: bf16[168,8], index: 4, kind: input, shape index: {}]
  %s5 = inlined_call_operand.vmem [shape: bf16[168,8], index: 5, kind: input, shape index: {}]
  %s6 = inlined_call_operand.vmem [shape: bf16[168,16], index: 6, kind: input, shape index: {}]
  %s7 = inlined_call_operand.vmem [shape: bf16[168,40], index: 7, kind: input, shape index: {}]
  %s8 = inlined_call_operand.vmem [shape: bf16[2,200,384], index: 8, kind: output, shape index: {}]
  %s9 = sld [smem:[#allocation0]]
  $region65: #{ppm_deepsup_forward.2} parent=0
    _
  %s11 = ssub.s32 1, %s9
  %s12 = scalar_select 0, %s11, %s9
  loop: start=0, step=1, limit=4
  $region2: #{ppm_deepsup_forward.2} parent=0 // loop_pre_header
    _
  $region3: #{ppm_deepsup_forward.2} parent=0 // loop_header
    %s14 = sphi 0, %s18
    %p15 = scmp.ge.s32.totalorder %s14, 4
    %s24 = sphi 0, %s26
    %s27 = sphi 0, %s24
    %s28 = sphi 0, %s27
    %s44 = sphi 0, %s28
    %s48 = sphi 0, %s48
    %s50 = sphi 0, %s48
    %s51 = sphi 0, %s50
    %s65 = sphi 0, %s51
    %s69 = sphi 0, %s69
    %s71 = sphi 0, %s69
    %s72 = sphi 0, %s71
    %s86 = sphi 0, %s72
    %s90 = sphi 0, %s90
    %s92 = sphi 0, %s90
    %s93 = sphi 0, %s92
    %s107 = sphi 0, %s93
    %s111 = sphi 0, %s111
    %s113 = sphi 0, %s111
    %s114 = sphi 0, %s113
    %s128 = sphi 0, %s114
    %s132 = sphi 0, %s132
    %s134 = sphi 0, %s132
    %s135 = sphi 0, %s134
    %s149 = sphi 0, %s135
    %s153 = sphi 0, %s153
    %s155 = sphi 0, %s153
    %s156 = sphi 0, %s155
    %s170 = sphi 0, %s156
    %s174 = sphi 0, %s174
    %s176 = sphi 0, %s174
    %s177 = sphi 0, %s176
    %s191 = sphi 0, %s177
    %s197 = sphi 0, %s199
    %s200 = sphi 0, %s197
    %s201 = sphi 0, %s200
    %s217 = sphi 0, %s201
  $region4: #{ppm_deepsup_forward.2} parent=0 // loop_header_branch
    %17 = sbr.rel (%p15) target = $region8
  $region5: #{ppm_deepsup_forward.2} parent=0 // loop_body
    %s19 = ssub.s32 %s14, 1
    %s20 = ssub.s32 %s14, 2
    %s21 = sadd.s32 %s14, 1
    %s22 = ssub.s32 %s14, %s21
    %p23 = scmp.eq.s32.totalorder %s22, 0
    %s25 = sadd.s32 %s24, 1
    %s26 = scalar_select %p23, %s24, %s25
    %p29 = pneg %p23
    %p30 = scmp.eq.s32.totalorder %s14, 1
    %p31 = por %p29, %p30
    %p32 = scmp.ne.s32.totalorder %s24, %s27
    %p33 = scmp.eq.s32.totalorder %s14, 0
    %p34 = por %p32, %p33
    %p35 = scmp.ne.s32.totalorder %s24, %s27
    %p36 = scmp.eq.s32.totalorder %s19, 1
    %p37 = por %p35, %p36
    %p38 = scmp.ne.s32.totalorder %s27, %s28
    %p39 = scmp.eq.s32.totalorder %s19, 0
    %p40 = por %p38, %p39
    %p41 = scmp.ne.s32.totalorder %s27, %s28
    %p42 = scmp.eq.s32.totalorder %s20, 1
    %p43 = por %p41, %p42
    %p45 = scmp.ne.s32.totalorder %s28, %s44
    %p46 = scmp.eq.s32.totalorder %s20, 0
    %p47 = por %p45, %p46
    %s49 = sadd.s32 %s48, 1
    %p52 = scmp.eq.s32.totalorder %s14, 1
    %p53 = scmp.ne.s32.totalorder %s48, %s50
    %p54 = scmp.eq.s32.totalorder %s14, 0
    %p55 = por %p53, %p54
    %p56 = scmp.ne.s32.totalorder %s48, %s50
    %p57 = scmp.eq.s32.totalorder %s19, 1
    %p58 = por %p56, %p57
    %p59 = scmp.ne.s32.totalorder %s50, %s51
    %p60 = scmp.eq.s32.totalorder %s19, 0
    %p61 = por %p59, %p60
    %p62 = scmp.ne.s32.totalorder %s50, %s51
    %p63 = scmp.eq.s32.totalorder %s20, 1
    %p64 = por %p62, %p63
    %p66 = scmp.ne.s32.totalorder %s51, %s65
    %p67 = scmp.eq.s32.totalorder %s20, 0
    %p68 = por %p66, %p67
    %s70 = sadd.s32 %s69, 1
    %p73 = scmp.eq.s32.totalorder %s14, 1
    %p74 = scmp.ne.s32.totalorder %s69, %s71
    %p75 = scmp.eq.s32.totalorder %s14, 0
    %p76 = por %p74, %p75
    %p77 = scmp.ne.s32.totalorder %s69, %s71
    %p78 = scmp.eq.s32.totalorder %s19, 1
    %p79 = por %p77, %p78
    %p80 = scmp.ne.s32.totalorder %s71, %s72
    %p81 = scmp.eq.s32.totalorder %s19, 0
    %p82 = por %p80, %p81
    %p83 = scmp.ne.s32.totalorder %s71, %s72
    %p84 = scmp.eq.s32.totalorder %s20, 1
    %p85 = por %p83, %p84
    %p87 = scmp.ne.s32.totalorder %s72, %s86
    %p88 = scmp.eq.s32.totalorder %s20, 0
    %p89 = por %p87, %p88
    %s91 = sadd.s32 %s90, 1
    %p94 = scmp.eq.s32.totalorder %s14, 1
    %p95 = scmp.ne.s32.totalorder %s90, %s92
    %p96 = scmp.eq.s32.totalorder %s14, 0
    %p97 = por %p95, %p96
    %p98 = scmp.ne.s32.totalorder %s90, %s92
    %p99 = scmp.eq.s32.totalorder %s19, 1
    %p100 = por %p98, %p99
    %p101 = scmp.ne.s32.totalorder %s92, %s93
    %p102 = scmp.eq.s32.totalorder %s19, 0
    %p103 = por %p101, %p102
    %p104 = scmp.ne.s32.totalorder %s92, %s93
    %p105 = scmp.eq.s32.totalorder %s20, 1
    %p106 = por %p104, %p105
    %p108 = scmp.ne.s32.totalorder %s93, %s107
    %p109 = scmp.eq.s32.totalorder %s20, 0
    %p110 = por %p108, %p109
    %s112 = sadd.s32 %s111, 1
    %p115 = scmp.eq.s32.totalorder %s14, 1
    %p116 = scmp.ne.s32.totalorder %s111, %s113
    %p117 = scmp.eq.s32.totalorder %s14, 0
    %p118 = por %p116, %p117
    %p119 = scmp.ne.s32.totalorder %s111, %s113
    %p120 = scmp.eq.s32.totalorder %s19, 1
    %p121 = por %p119, %p120
    %p122 = scmp.ne.s32.totalorder %s113, %s114
    %p123 = scmp.eq.s32.totalorder %s19, 0
    %p124 = por %p122, %p123
    %p125 = scmp.ne.s32.totalorder %s113, %s114
    %p126 = scmp.eq.s32.totalorder %s20, 1
    %p127 = por %p125, %p126
    %p129 = scmp.ne.s32.totalorder %s114, %s128
    %p130 = scmp.eq.s32.totalorder %s20, 0
    %p131 = por %p129, %p130
    %s133 = sadd.s32 %s132, 1
    %p136 = scmp.eq.s32.totalorder %s14, 1
    %p137 = scmp.ne.s32.totalorder %s132, %s134
    %p138 = scmp.eq.s32.totalorder %s14, 0
    %p139 = por %p137, %p138
    %p140 = scmp.ne.s32.totalorder %s132, %s134
    %p141 = scmp.eq.s32.totalorder %s19, 1
    %p142 = por %p140, %p141
    %p143 = scmp.ne.s32.totalorder %s134, %s135
    %p144 = scmp.eq.s32.totalorder %s19, 0
    %p145 = por %p143, %p144
    %p146 = scmp.ne.s32.totalorder %s134, %s135
    %p147 = scmp.eq.s32.totalorder %s20, 1
    %p148 = por %p146, %p147
    %p150 = scmp.ne.s32.totalorder %s135, %s149
    %p151 = scmp.eq.s32.totalorder %s20, 0
    %p152 = por %p150, %p151
    %s154 = sadd.s32 %s153, 1
    %p157 = scmp.eq.s32.totalorder %s14, 1
    %p158 = scmp.ne.s32.totalorder %s153, %s155
    %p159 = scmp.eq.s32.totalorder %s14, 0
    %p160 = por %p158, %p159
    %p161 = scmp.ne.s32.totalorder %s153, %s155
    %p162 = scmp.eq.s32.totalorder %s19, 1
    %p163 = por %p161, %p162
    %p164 = scmp.ne.s32.totalorder %s155, %s156
    %p165 = scmp.eq.s32.totalorder %s19, 0
    %p166 = por %p164, %p165
    %p167 = scmp.ne.s32.totalorder %s155, %s156
    %p168 = scmp.eq.s32.totalorder %s20, 1
    %p169 = por %p167, %p168
    %p171 = scmp.ne.s32.totalorder %s156, %s170
    %p172 = scmp.eq.s32.totalorder %s20, 0
    %p173 = por %p171, %p172
    %s175 = sadd.s32 %s174, 1
    %p178 = scmp.eq.s32.totalorder %s14, 1
    %p179 = scmp.ne.s32.totalorder %s174, %s176
    %p180 = scmp.eq.s32.totalorder %s14, 0
    %p181 = por %p179, %p180
    %p182 = scmp.ne.s32.totalorder %s174, %s176
    %p183 = scmp.eq.s32.totalorder %s19, 1
    %p184 = por %p182, %p183
    %p185 = scmp.ne.s32.totalorder %s176, %s177
    %p186 = scmp.eq.s32.totalorder %s19, 0
    %p187 = por %p185, %p186
    %p188 = scmp.ne.s32.totalorder %s176, %s177
    %p189 = scmp.eq.s32.totalorder %s20, 1
    %p190 = por %p188, %p189
    %p192 = scmp.ne.s32.totalorder %s177, %s191
    %p193 = scmp.eq.s32.totalorder %s20, 0
    %p194 = por %p192, %p193
    %s195 = ssub.s32 %s14, %s21
    %p196 = scmp.eq.s32.totalorder %s195, 0
    %s198 = sadd.s32 %s197, 1
    %s199 = scalar_select %p196, %s197, %s198
    %p202 = pneg %p196
    %p203 = scmp.eq.s32.totalorder %s14, 1
    %p204 = por %p202, %p203
    %p205 = scmp.ne.s32.totalorder %s197, %s200
    %p206 = scmp.eq.s32.totalorder %s14, 0
    %p207 = por %p205, %p206
    %p208 = scmp.ne.s32.totalorder %s197, %s200
    %p209 = scmp.eq.s32.totalorder %s19, 1
    %p210 = por %p208, %p209
    %p211 = scmp.ne.s32.totalorder %s200, %s201
    %p212 = scmp.eq.s32.totalorder %s19, 0
    %p213 = por %p211, %p212
    %p214 = scmp.ne.s32.totalorder %s200, %s201
    %p215 = scmp.eq.s32.totalorder %s20, 1
    %p216 = por %p214, %p215
    %p218 = scmp.ne.s32.totalorder %s201, %s217
    %p219 = scmp.eq.s32.totalorder %s20, 0
    %p220 = por %p218, %p219
    %p221 = scmp.le.s32.totalorder 1, %s14
    %p222 = scmp.lt.s32.totalorder %s14, 3
    %p223 = pnand %p221, %p222
    %p224 = pneg %p223
    // Predicated region
    $region9: #{ppm_deepsup_forward.2} parent=5 // pred_check
      _
    $region10: #{ppm_deepsup_forward.2} parent=5 // pred_check_branch
      %226 = sbr.rel (%p223) target = $region12
    $region11: #{ppm_deepsup_forward.2} parent=5 // pred_region
      %s227 = ssub.s32 %s14, 1
      // Predicated region
      $region13: #{ppm_deepsup_forward.2} parent=11 // pred_check
        %p228 = pneg %p61
      $region14: #{ppm_deepsup_forward.2} parent=11 // pred_check_branch
        %230 = sbr.rel (%p228) target = $region16
      $region15: #{ppm_deepsup_forward.2} parent=11 // pred_region
        _
      $region16: #{ppm_deepsup_forward.2} parent=11 // pred_fallthru
        _
      // Predicated region
      $region17: #{ppm_deepsup_forward.2} parent=11 // pred_check
        %p231 = pneg %p82
      $region18: #{ppm_deepsup_forward.2} parent=11 // pred_check_branch
        %233 = sbr.rel (%p231) target = $region20
      $region19: #{ppm_deepsup_forward.2} parent=11 // pred_region
        _
      $region20: #{ppm_deepsup_forward.2} parent=11 // pred_fallthru
        _
      // Predicated region
      $region21: #{ppm_deepsup_forward.2} parent=11 // pred_check
        %p234 = pneg %p103
      $region22: #{ppm_deepsup_forward.2} parent=11 // pred_check_branch
        %236 = sbr.rel (%p234) target = $region24
      $region23: #{ppm_deepsup_forward.2} parent=11 // pred_region
        _
      $region24: #{ppm_deepsup_forward.2} parent=11 // pred_fallthru
        _
      // Predicated region
      $region25: #{ppm_deepsup_forward.2} parent=11 // pred_check
        %p237 = pneg %p124
      $region26: #{ppm_deepsup_forward.2} parent=11 // pred_check_branch
        %239 = sbr.rel (%p237) target = $region28
      $region27: #{ppm_deepsup_forward.2} parent=11 // pred_region
        _
      $region28: #{ppm_deepsup_forward.2} parent=11 // pred_fallthru
        _
      // Predicated region
      $region29: #{ppm_deepsup_forward.2} parent=11 // pred_check
        %p240 = pneg %p145
      $region30: #{ppm_deepsup_forward.2} parent=11 // pred_check_branch
        %242 = sbr.rel (%p240) target = $region32
      $region31: #{ppm_deepsup_forward.2} parent=11 // pred_region
        _
      $region32: #{ppm_deepsup_forward.2} parent=11 // pred_fallthru
        _
      // Predicated region
      $region33: #{ppm_deepsup_forward.2} parent=11 // pred_check
        %p243 = pneg %p166
      $region34: #{ppm_deepsup_forward.2} parent=11 // pred_check_branch
        %245 = sbr.rel (%p243) target = $region36
      $region35: #{ppm_deepsup_forward.2} parent=11 // pred_region
        _
      $region36: #{ppm_deepsup_forward.2} parent=11 // pred_fallthru
        _
      // Predicated region
      $region37: #{ppm_deepsup_forward.2} parent=11 // pred_check
        %p246 = pneg %p187
      $region38: #{ppm_deepsup_forward.2} parent=11 // pred_check_branch
        %248 = sbr.rel (%p246) target = $region40
      $region39: #{ppm_deepsup_forward.2} parent=11 // pred_region
        _
      $region40: #{ppm_deepsup_forward.2} parent=11 // pred_fallthru
        _
    $region12: #{ppm_deepsup_forward.2} parent=5 // pred_fallthru
      _
    %p249 = scmp.lt.s32.totalorder %s14, 2
    // Predicated region
    $region41: #{ppm_deepsup_forward.2} parent=5 // pred_check
      %p250 = pneg %p249
    $region42: #{ppm_deepsup_forward.2} parent=5 // pred_check_branch
      %252 = sbr.rel (%p250) target = $region44
    $region43: #{ppm_deepsup_forward.2} parent=5 // pred_region
      // Predicated region
      $region45: #{ppm_deepsup_forward.2} parent=43 // pred_check
        %p253 = pneg %p34
      $region46: #{ppm_deepsup_forward.2} parent=43 // pred_check_branch
        %255 = sbr.rel (%p253) target = $region48
      $region47: #{ppm_deepsup_forward.2} parent=43 // pred_region
        %p256 = scmp.lt.s32.totalorder %s14, 1
        %s257 = scalar_select %p256, %s14, 1
        %s258 = smul.addr %s257, 21
        %s259 = smul.addr %s258, 4
        %s260 = scalar_lea.vmem %s0, %s259
      $region48: #{ppm_deepsup_forward.2} parent=43 // pred_fallthru
        _
    $region44: #{ppm_deepsup_forward.2} parent=5 // pred_fallthru
      _
    %p261 = scmp.le.s32.totalorder 1, %s14
    %p262 = scmp.lt.s32.totalorder %s14, 3
    %p263 = pnand %p261, %p262
    %p264 = pneg %p263
    // Predicated region
    $region49: #{ppm_deepsup_forward.2} parent=5 // pred_check
      _
    $region50: #{ppm_deepsup_forward.2} parent=5 // pred_check_branch
      %266 = sbr.rel (%p263) target = $region52
    $region51: #{ppm_deepsup_forward.2} parent=5 // pred_region
      %s267 = ssub.s32 %s14, 1
      %p268 = scmp.lt.s32.totalorder %s19, 1
      %s269 = scalar_select %p268, %s19, 1
      %s270 = smul.addr %s269, 21
      %s271 = smul.addr %s270, 4
      %s272 = scalar_lea.vmem %s0, %s271
      %p273 = pneg %p40
      %p274 = pneg %p37
      %p275 = pneg %p61
      %p276 = pneg %p58
      %p277 = pneg %p82
      %p278 = pneg %p79
      %p279 = pneg %p103
      %p280 = pneg %p100
      %p281 = pneg %p124
      %p282 = pneg %p121
      %p283 = pneg %p145
      %p284 = pneg %p142
      %p285 = pneg %p166
      %p286 = pneg %p163
      %p287 = pneg %p187
      %p288 = pneg %p184
      %p289 = pneg %p213
      %p290 = pneg %p210
      %p291 = scmp.lt.s32.totalorder %s19, 1
      %s292 = scalar_select %p291, %s19, 1
      %s293 = smul.addr %s292, 75
      %s294 = smul.addr %s293, 4
      %s295 = scalar_lea.vmem %s8, %s294
      %p296 = scmp.lt.s32.totalorder %s19, 1
      %s297 = scalar_select %p296, %s19, 1
      %s298 = smul.addr %s297, 21
      %s299 = smul.addr %s298, 4
      %s300 = scalar_lea.vmem %s0, %s299
      %p301 = scmp.lt.s32.totalorder %s19, 1
      %s302 = scalar_select %p301, %s19, 1
      %s303 = smul.addr %s302, 75
      %s304 = smul.addr %s303, 4
      %s305 = scalar_lea.vmem %s8, %s304
      %v307 = vld [vmem:[%s300] sm:$0xf]
      %v308 = vld [vmem:[%s300 + $0x4] sm:$0xf]
      %v309 = vld [vmem:[%s300 + $0x8] sm:$0xf]
      %v310 = vld [vmem:[%s300 + $0xc] sm:$0xf]
      %v311 = vld [vmem:[%s300 + $0x10] sm:$0xf]
      %v312 = vld [vmem:[%s300 + $0x14] sm:$0xf]
      %v313 = vld [vmem:[%s300 + $0x18] sm:$0xf]
      %v314 = vld [vmem:[%s300 + $0x1c] sm:$0xf]
      %v315 = vld [vmem:[%s300 + $0x20] sm:$0xf]
      %v316 = vld [vmem:[%s300 + $0x24] sm:$0xf]
      %v317 = vld [vmem:[%s300 + $0x28] sm:$0xf]
      %v318 = vld [vmem:[%s300 + $0x2c] sm:$0xf]
      %v319 = vld [vmem:[%s300 + $0x30] sm:$0xf]
      %v320 = vld [vmem:[%s300 + $0x34] sm:$0xf]
      %v321 = vld [vmem:[%s300 + $0x38] sm:$0xf]
      %v322 = vld [vmem:[%s300 + $0x3c] sm:$0xf]
      %v323 = vld [vmem:[%s300 + $0x40] sm:$0xf]
      %v324 = vld [vmem:[%s300 + $0x44] sm:$0xf]
      %v325 = vld [vmem:[%s300 + $0x48] sm:$0xf]
      %v326 = vld [vmem:[%s300 + $0x4c] sm:$0xf]
      %v327 = vld [vmem:[%s300 + $0x50] sm:$0xf]
      %v328 = vld [vmem:[%s1] sm:$0xff]
      %v329 = vld [vmem:[%s1 + $0x8] sm:$0xff]
      %v330 = vld [vmem:[%s1 + $0x10] sm:$0xff]
      %v331 = vld [vmem:[%s1 + $0x18] sm:$0xff]
      %v332 = vld [vmem:[%s1 + $0x20] sm:$0xff]
      %v333 = vld [vmem:[%s1 + $0x28] sm:$0xff]
      %v334 = vld [vmem:[%s1 + $0x30] sm:$0xff]
      %v335 = vld [vmem:[%s1 + $0x38] sm:$0xff]
      %v336 = vld [vmem:[%s1 + $0x40] sm:$0xff]
      %v346 = vunpack.c.l.b16 %v328
      %v347 = vunpack.c.h.b16 %v328
      %v348 = vunpack.c.l.b16 %v329
      %v349 = vunpack.c.h.b16 %v329
      %v350 = vunpack.c.l.b16 %v330
      %v351 = vunpack.c.h.b16 %v330
      %v352 = vunpack.c.l.b16 %v331
      %v353 = vunpack.c.h.b16 %v331
      %v354 = vunpack.c.l.b16 %v332
      %v355 = vunpack.c.h.b16 %v332
      %v356 = vunpack.c.l.b16 %v333
      %v357 = vunpack.c.h.b16 %v333
      %v358 = vunpack.c.l.b16 %v334
      %v359 = vunpack.c.h.b16 %v334
      %v360 = vunpack.c.l.b16 %v335
      %v361 = vunpack.c.h.b16 %v335
      %v362 = vunpack.c.l.b16 %v336
      %v363 = vunpack.c.h.b16 %v336
      %v364 = vpack.c.b16 %v348, %v346
      %v365 = vpack.c.b16 %v349, %v347
      %v366 = vpack.c.b16 %v352, %v350
      %v367 = vpack.c.b16 %v353, %v351
      %v368 = vpack.c.b16 %v356, %v354
      %v369 = vpack.c.b16 %v357, %v355
      %v370 = vpack.c.b16 %v360, %v358
      %v371 = vpack.c.b16 %v361, %v359
      %v372 = vpack.c.b16 %v362, %v362
      %v373 = vpack.c.b16 %v363, %v363
      %v400 = vunpack.c.l.b16 %v307
      %v401 = vunpack.c.l.b16 %v308
      %v402 = vunpack.c.l.b16 %v309
      %v403 = vunpack.c.l.b16 %v310
      %v404 = vunpack.c.l.b16 %v311
      %v405 = vunpack.c.l.b16 %v312
      %v406 = vunpack.c.l.b16 %v313
      %v407 = vunpack.c.l.b16 %v314
      %v408 = vunpack.c.l.b16 %v315
      %v409 = vunpack.c.l.b16 %v316
      %v410 = vunpack.c.l.b16 %v317
      %v411 = vunpack.c.l.b16 %v318
      %v412 = vunpack.c.l.b16 %v319
      %v413 = vunpack.c.l.b16 %v320
      %v414 = vunpack.c.l.b16 %v321
      %v415 = vunpack.c.l.b16 %v322
      %v416 = vunpack.c.l.b16 %v323
      %v417 = vunpack.c.l.b16 %v324
      %v418 = vunpack.c.l.b16 %v325
      %v419 = vunpack.c.l.b16 %v326
      %v420 = vunpack.c.l.b16 %v327
      %v421 = vpack.c.b16 %v401, %v400
      %v422 = vpack.c.b16 %v403, %v402
      %v423 = vpack.c.b16 %v405, %v404
      %v424 = vpack.c.b16 %v407, %v406
      %v425 = vpack.c.b16 %v409, %v408
      %v426 = vpack.c.b16 %v411, %v410
      %v427 = vpack.c.b16 %v413, %v412
      %v428 = vpack.c.b16 %v415, %v414
      %v429 = vpack.c.b16 %v417, %v416
      %v430 = vpack.c.b16 %v419, %v418
      %v431 = vpack.c.b16 %v420, %v420
      %vm442 = vcmask 326656
      %v444 = vsel %vm442, %v365, 0
      %v447 = vsel %vm442, %v367, 0
      %v450 = vsel %vm442, %v369, 0
      %v453 = vsel %vm442, %v371, 0
      %v456 = vsel %vm442, %v373, 0
      %vm458 = vcmask 1043456
      %v460 = vsel %vm458, %v431, 0
      %462 = vmatprep.subr.bf16.mxu0 0
      %463 = vmatpush1.bf16.msra.mxu0 %v428
      %464 = vmatprep.subr.bf16.mxu0 0
      %465 = vmatpush1.bf16.msra.mxu0 %v427
      %466 = vmatprep.subr.bf16.mxu0 0
      %467 = vmatpush1.bf16.msra.mxu0 %v426
      %468 = vmatprep.subr.bf16.mxu0 0
      %469 = vmatpush1.bf16.msra.mxu0 %v425
      %470 = vmatprep.subr.bf16.mxu0 0
      %471 = vmatpush1.bf16.msra.mxu0 %v424
      %472 = vmatprep.subr.bf16.mxu0 0
      %473 = vmatpush1.bf16.msra.mxu0 %v423
      %474 = vmatprep.subr.bf16.mxu0 0
      %475 = vmatpush1.bf16.msra.mxu0 %v422
      %476 = vmatprep.subr.bf16.mxu0 0
      %477 = vmatpush1.bf16.msra.mxu0 %v421
      %478 = vmatprep.subr.bf16.mxu0 0
      %479 = vmatpush2.bf16.msra.mxu0 0
      %480 = vmatprep.subr.bf16.mxu0 0
      %481 = vmatpush2.bf16.msra.mxu0 0
      %482 = vmatprep.subr.bf16.mxu0 0
      %483 = vmatpush2.bf16.msra.mxu0 0
      %484 = vmatprep.subr.bf16.mxu0 0
      %485 = vmatpush2.bf16.msra.mxu0 0
      %486 = vmatprep.subr.bf16.mxu0 0
      %487 = vmatpush2.bf16.msra.mxu0 0
      %488 = vmatprep.subr.bf16.mxu0 0
      %489 = vmatpush2.bf16.msra.mxu0 %v460
      %490 = vmatprep.subr.bf16.mxu0 0
      %491 = vmatpush2.bf16.msra.mxu0 %v430
      %492 = vmatprep.subr.bf16.mxu0 0
      %493 = vmatpush2.bf16.msra.mxu0 %v429
      %494 = vmatprep.mubr.bf16.mxu0 %v444
      %495 = vmatmul.mubr.bf16.gmra.mxu0 %v364
      %v496 = vpop.f32.mrf.mxu0
      %v497 = vadd.f32 0.0, %v496
      %v498 = vpop.f32.mrf.mxu0
      %v499 = vpop.f32.mrf.mxu0
      %v500 = vadd.f32 0.0, %v499
      %v501 = vpop.f32.mrf.mxu0
      %502 = vmatprep.mubr.bf16.mxu0 %v447
      %503 = vmatmul.mubr.bf16.gmra.mxu0 %v366
      %v504 = vpop.f32.mrf.mxu0
      %v505 = vadd.f32 0.0, %v504
      %v506 = vpop.f32.mrf.mxu0
      %v507 = vpop.f32.mrf.mxu0
      %v508 = vadd.f32 0.0, %v507
      %v509 = vpop.f32.mrf.mxu0
      %510 = vmatprep.mubr.bf16.mxu0 %v450
      %511 = vmatmul.mubr.bf16.gmra.mxu0 %v368
      %v512 = vpop.f32.mrf.mxu0
      %v513 = vadd.f32 0.0, %v512
      %v514 = vpop.f32.mrf.mxu0
      %v515 = vpop.f32.mrf.mxu0
      %v516 = vadd.f32 0.0, %v515
      %v517 = vpop.f32.mrf.mxu0
      %518 = vmatprep.mubr.bf16.mxu0 %v453
      %519 = vmatmul.mubr.bf16.gmra.mxu0 %v370
      %v520 = vpop.f32.mrf.mxu0
      %v521 = vadd.f32 0.0, %v520
      %v522 = vpop.f32.mrf.mxu0
      %v523 = vpop.f32.mrf.mxu0
      %v524 = vadd.f32 0.0, %v523
      %v525 = vpop.f32.mrf.mxu0
      %526 = vmatprep.mubr.bf16.mxu0 %v456
      %527 = vmatmul.mubr.bf16.gmra.mxu0 %v372
      %v528 = vpop.f32.mrf.mxu0
      %v529 = vadd.f32 0.0, %v528
      %v530 = vpop.f32.mrf.mxu0
      %v531 = vpop.f32.mrf.mxu0
      %v532 = vpop.f32.mrf.mxu0
      %533 = vdwg.mxu0
      %534 = vst [vmem:[%s305] sm:$0xff] 0
      %535 = vst [vmem:[%s305 + $0x8] sm:$0xf] 0
      %536 = vst [vmem:[%s305 + $0xc] sm:$0x77] 0
      %537 = vst [vmem:[%s305 + $0x14] sm:$0x7] 0
      %538 = vst [vmem:[%s305 + $0x108] sm:$0x88] 0
      %539 = vst [vmem:[%s305 + $0x110] sm:$0x8] 0
      %540 = vst [vmem:[%s305 + $0x114] sm:$0xff] 0
      %541 = vst [vmem:[%s305 + $0x11c] sm:$0xf] 0
      %542 = vst [vmem:[%s305 + $0x120] sm:$0xff] 0
      %543 = vst [vmem:[%s305 + $0x128] sm:$0xf] 0
      %vm544 = vcmask 1043715
      %545 = vst.msk [vmem:[%s305 + $0x14] sm:$0x8] %vm544, 0
      %vm546 = vcmask 1043712
      %547 = vst.msk [vmem:[%s305 + $0x20] sm:$0xf] %vm546, 0
      %548 = vst.msk [vmem:[%s305 + $0x2c] sm:$0xf] %vm546, 0
      %549 = vst.msk [vmem:[%s305 + $0x38] sm:$0xf] %vm546, 0
      %550 = vst.msk [vmem:[%s305 + $0x44] sm:$0xf] %vm546, 0
      %551 = vst.msk [vmem:[%s305 + $0x50] sm:$0xf] %vm546, 0
      %552 = vst.msk [vmem:[%s305 + $0x5c] sm:$0xf] %vm546, 0
      %553 = vst.msk [vmem:[%s305 + $0x68] sm:$0xf] %vm546, 0
      %554 = vst.msk [vmem:[%s305 + $0x74] sm:$0xf] %vm546, 0
      %555 = vst.msk [vmem:[%s305 + $0x80] sm:$0xf] %vm546, 0
      %556 = vst.msk [vmem:[%s305 + $0x8c] sm:$0xf] %vm546, 0
      %557 = vst.msk [vmem:[%s305 + $0x98] sm:$0xf] %vm546, 0
      %558 = vst.msk [vmem:[%s305 + $0xa4] sm:$0xf] %vm546, 0
      %559 = vst.msk [vmem:[%s305 + $0xb0] sm:$0xf] %vm546, 0
      %560 = vst.msk [vmem:[%s305 + $0xbc] sm:$0xf] %vm546, 0
      %561 = vst.msk [vmem:[%s305 + $0xc8] sm:$0xf] %vm546, 0
      %562 = vst.msk [vmem:[%s305 + $0xd4] sm:$0xf] %vm546, 0
      %563 = vst.msk [vmem:[%s305 + $0xe0] sm:$0xf] %vm546, 0
      %564 = vst.msk [vmem:[%s305 + $0xec] sm:$0xf] %vm546, 0
      %565 = vst.msk [vmem:[%s305 + $0xf8] sm:$0xf] %vm546, 0
      %566 = vst.msk [vmem:[%s305 + $0x104] sm:$0xf] %vm546, 0
      %vm567 = vcmask 1042688
      %568 = vst.msk [vmem:[%s305 + $0x110] sm:$0x7] %vm567, 0
      %vm569 = vcmask 1042432
      %vm570 = vcmask 1046532
      %vm571 = vmor %vm569, %vm570
      %v572 = vrot.slane %v307, 5
      %v573 = vrot.slane %v572, 4
      %v574 = vrot.slane %v308, 5
      %v575 = vsel %vm571, %v573, %v574
      %v576 = vrot.slane %v574, 4
      %v577 = vrot.slane %v309, 5
      %v578 = vsel %vm571, %v576, %v577
      %v579 = vrot.slane %v577, 4
      %v580 = vrot.slane %v310, 5
      %v581 = vsel %vm571, %v579, %v580
      %v582 = vrot.slane %v580, 4
      %v583 = vrot.slane %v311, 5
      %v584 = vsel %vm571, %v582, %v583
      %v585 = vrot.slane %v583, 4
      %v586 = vrot.slane %v312, 5
      %v587 = vsel %vm571, %v585, %v586
      %v588 = vrot.slane %v586, 4
      %v589 = vrot.slane %v313, 5
      %v590 = vsel %vm571, %v588, %v589
      %v591 = vrot.slane %v589, 4
      %v592 = vrot.slane %v314, 5
      %v593 = vsel %vm571, %v591, %v592
      %v594 = vrot.slane %v592, 4
      %v595 = vrot.slane %v315, 5
      %v596 = vsel %vm571, %v594, %v595
      %v597 = vrot.slane %v595, 4
      %v598 = vrot.slane %v316, 5
      %v599 = vsel %vm571, %v597, %v598
      %v600 = vrot.slane %v598, 4
      %v601 = vrot.slane %v317, 5
      %v602 = vsel %vm571, %v600, %v601
      %v603 = vrot.slane %v601, 4
      %v604 = vrot.slane %v318, 5
      %v605 = vsel %vm571, %v603, %v604
      %v606 = vrot.slane %v604, 4
      %v607 = vrot.slane %v319, 5
      %v608 = vsel %vm571, %v606, %v607
      %v609 = vrot.slane %v607, 4
      %v610 = vrot.slane %v320, 5
      %v611 = vsel %vm571, %v609, %v610
      %v612 = vrot.slane %v610, 4
      %v613 = vrot.slane %v321, 5
      %v614 = vsel %vm571, %v612, %v613
      %v615 = vrot.slane %v613, 4
      %v616 = vrot.slane %v322, 5
      %v617 = vsel %vm571, %v615, %v616
      %v618 = vrot.slane %v616, 4
      %v619 = vrot.slane %v323, 5
      %v620 = vsel %vm571, %v618, %v619
      %v621 = vrot.slane %v619, 4
      %v622 = vrot.slane %v324, 5
      %v623 = vsel %vm571, %v621, %v622
      %v624 = vrot.slane %v622, 4
      %v625 = vrot.slane %v325, 5
      %v626 = vsel %vm571, %v624, %v625
      %v627 = vrot.slane %v625, 4
      %v628 = vrot.slane %v326, 5
      %v629 = vsel %vm571, %v627, %v628
      %v630 = vrot.slane %v628, 4
      %v631 = vrot.slane %v327, 5
      %v632 = vsel %vm571, %v630, %v631
      %v633 = vrot.slane %v631, 4
      %vm656 = vcmask 257027
      %657 = vst.msk [vmem:[%s305 + $0xc] sm:$0x8] %vm656, %v572
      %vm658 = vcmask 257024
      %659 = vst.msk [vmem:[%s305 + $0x18] sm:$0xf] %vm658, %v575
      %660 = vst.msk [vmem:[%s305 + $0x24] sm:$0xf] %vm658, %v578
      %661 = vst.msk [vmem:[%s305 + $0x30] sm:$0xf] %vm658, %v581
      %662 = vst.msk [vmem:[%s305 + $0x3c] sm:$0xf] %vm658, %v584
      %663 = vst.msk [vmem:[%s305 + $0x48] sm:$0xf] %vm658, %v587
      %664 = vst.msk [vmem:[%s305 + $0x54] sm:$0xf] %vm658, %v590
      %665 = vst.msk [vmem:[%s305 + $0x60] sm:$0xf] %vm658, %v593
      %666 = vst.msk [vmem:[%s305 + $0x6c] sm:$0xf] %vm658, %v596
      %667 = vst.msk [vmem:[%s305 + $0x78] sm:$0xf] %vm658, %v599
      %668 = vst.msk [vmem:[%s305 + $0x84] sm:$0xf] %vm658, %v602
      %669 = vst.msk [vmem:[%s305 + $0x90] sm:$0xf] %vm658, %v605
      %670 = vst.msk [vmem:[%s305 + $0x9c] sm:$0xf] %vm658, %v608
      %671 = vst.msk [vmem:[%s305 + $0xa8] sm:$0xf] %vm658, %v611
      %672 = vst.msk [vmem:[%s305 + $0xb4] sm:$0xf] %vm658, %v614
      %673 = vst.msk [vmem:[%s305 + $0xc0] sm:$0xf] %vm658, %v617
      %674 = vst.msk [vmem:[%s305 + $0xcc] sm:$0xf] %vm658, %v620
      %675 = vst.msk [vmem:[%s305 + $0xd8] sm:$0xf] %vm658, %v623
      %676 = vst.msk [vmem:[%s305 + $0xe4] sm:$0xf] %vm658, %v626
      %677 = vst.msk [vmem:[%s305 + $0xf0] sm:$0xf] %vm658, %v629
      %678 = vst.msk [vmem:[%s305 + $0xfc] sm:$0xf] %vm658, %v632
      %vm679 = vcmask 256000
      %680 = vst.msk [vmem:[%s305 + $0x108] sm:$0x7] %vm679, %v633
      %v681 = vpack.c.bf16 %v497, %v497
      %v682 = vld [vmem:[%s2] sm:$0xf]
      %v683 = vld [vmem:[%s2 + $0x4] sm:$0xf]
      %v684 = vld [vmem:[%s2 + $0x8] sm:$0xf]
      %v685 = vld [vmem:[%s2 + $0xc] sm:$0xf]
      %v686 = vld [vmem:[%s3] sm:$0x1]
      %v688 = vlaneseq
      %v689 = vshrl.u32 %v688, 7
      %v690 = vsub.s32 0, %v689
      %v691 = vrot.slane %v686, %v690
      %v697 = vunpack.c.l.b16 %v682
      %v698 = vunpack.c.l.b16 %v683
      %v699 = vunpack.c.l.b16 %v684
      %v700 = vunpack.c.l.b16 %v685
      %v701 = vpack.c.b16 %v698, %v697
      %v702 = vpack.c.b16 %v700, %v699
      %vm705 = vcmask 261120
      %v707 = vsel %vm705, %v681, 0
      %709 = vmatprep.subr.bf16.mxu0 0
      %710 = vmatpush1.bf16.msra.mxu0 0
      %711 = vmatprep.subr.bf16.mxu0 0
      %712 = vmatpush1.bf16.msra.mxu0 0
      %713 = vmatprep.subr.bf16.mxu0 0
      %714 = vmatpush1.bf16.msra.mxu0 0
      %715 = vmatprep.subr.bf16.mxu0 0
      %716 = vmatpush1.bf16.msra.mxu0 0
      %717 = vmatprep.subr.bf16.mxu0 0
      %718 = vmatpush1.bf16.msra.mxu0 0
      %719 = vmatprep.subr.bf16.mxu0 0
      %720 = vmatpush1.bf16.msra.mxu0 0
      %721 = vmatprep.subr.bf16.mxu0 0
      %722 = vmatpush1.bf16.msra.mxu0 %v702
      %723 = vmatprep.subr.bf16.mxu0 0
      %724 = vmatpush1.bf16.msra.mxu0 %v701
      %725 = vmatprep.subr.bf16.mxu0 0
      %726 = vmatpush2.bf16.msra.mxu0 0
      %727 = vmatprep.subr.bf16.mxu0 0
      %728 = vmatpush2.bf16.msra.mxu0 0
      %729 = vmatprep.subr.bf16.mxu0 0
      %730 = vmatpush2.bf16.msra.mxu0 0
      %731 = vmatprep.subr.bf16.mxu0 0
      %732 = vmatpush2.bf16.msra.mxu0 0
      %733 = vmatprep.subr.bf16.mxu0 0
      %734 = vmatpush2.bf16.msra.mxu0 0
      %735 = vmatprep.subr.bf16.mxu0 0
      %736 = vmatpush2.bf16.msra.mxu0 0
      %737 = vmatprep.subr.bf16.mxu0 0
      %738 = vmatpush2.bf16.msra.mxu0 0
      %739 = vmatprep.subr.bf16.mxu0 0
      %740 = vmatpush2.bf16.msra.mxu0 0
      %741 = vmatprep.mubr.bf16.mxu0 0
      %742 = vmatmul.mubr.bf16.gmra.mxu0 %v707
      %v743 = vpop.f32.mrf.mxu0
      %v744 = vadd.f32 %v691, %v743
      %v745 = vpop.f32.mrf.mxu0
      %v746 = vpop.f32.mrf.mxu0
      %v747 = vpop.f32.mrf.mxu0
      %748 = vdwg.mxu0
      %v749 = vmax.f32 %v744, 0.0
      %v750 = vld [vmem:[%s4] sm:$0xf]
      %v751 = vld [vmem:[%s4 + $0x4] sm:$0xf]
      %v752 = vld [vmem:[%s4 + $0x8] sm:$0xf]
      %v753 = vld [vmem:[%s4 + $0xc] sm:$0xf]
      %v754 = vld [vmem:[%s4 + $0x10] sm:$0xf]
      %v755 = vld [vmem:[%s4 + $0x14] sm:$0xf]
      %v756 = vld [vmem:[%s4 + $0x18] sm:$0xf]
      %v757 = vld [vmem:[%s4 + $0x1c] sm:$0xf]
      %v758 = vld [vmem:[%s4 + $0x20] sm:$0xf]
      %v759 = vld [vmem:[%s4 + $0x24] sm:$0xf]
      %v760 = vld [vmem:[%s4 + $0x28] sm:$0xf]
      %v761 = vld [vmem:[%s4 + $0x2c] sm:$0xf]
      %v762 = vld [vmem:[%s4 + $0x30] sm:$0xf]
      %v763 = vld [vmem:[%s4 + $0x34] sm:$0xf]
      %v764 = vld [vmem:[%s4 + $0x38] sm:$0xf]
      %v765 = vld [vmem:[%s4 + $0x3c] sm:$0xf]
      %v766 = vld [vmem:[%s4 + $0x40] sm:$0xf]
      %v767 = vld [vmem:[%s4 + $0x44] sm:$0xf]
      %v768 = vld [vmem:[%s4 + $0x48] sm:$0xf]
      %v769 = vld [vmem:[%s4 + $0x4c] sm:$0xf]
      %v770 = vld [vmem:[%s4 + $0x50] sm:$0xf]
      %v771 = vpack.c.bf16 %v749, %v749
      %v793 = vunpack.c.l.b16 %v750
      %v794 = vunpack.c.l.b16 %v751
      %v795 = vunpack.c.l.b16 %v752
      %v796 = vunpack.c.l.b16 %v753
      %v797 = vunpack.c.l.b16 %v754
      %v798 = vunpack.c.l.b16 %v755
      %v799 = vunpack.c.l.b16 %v756
      %v800 = vunpack.c.l.b16 %v757
      %v801 = vunpack.c.l.b16 %v758
      %v802 = vunpack.c.l.b16 %v759
      %v803 = vunpack.c.l.b16 %v760
      %v804 = vunpack.c.l.b16 %v761
      %v805 = vunpack.c.l.b16 %v762
      %v806 = vunpack.c.l.b16 %v763
      %v807 = vunpack.c.l.b16 %v764
      %v808 = vunpack.c.l.b16 %v765
      %v809 = vunpack.c.l.b16 %v766
      %v810 = vunpack.c.l.b16 %v767
      %v811 = vunpack.c.l.b16 %v768
      %v812 = vunpack.c.l.b16 %v769
      %v813 = vunpack.c.l.b16 %v770
      %v814 = vpack.c.b16 %v794, %v793
      %v815 = vpack.c.b16 %v796, %v795
      %v816 = vpack.c.b16 %v798, %v797
      %v817 = vpack.c.b16 %v800, %v799
      %v818 = vpack.c.b16 %v802, %v801
      %v819 = vpack.c.b16 %v804, %v803
      %v820 = vpack.c.b16 %v806, %v805
      %v821 = vpack.c.b16 %v808, %v807
      %v822 = vpack.c.b16 %v810, %v809
      %v823 = vpack.c.b16 %v812, %v811
      %v824 = vpack.c.b16 %v813, %v813
      %vm825 = vcmask 64512
      %v827 = vsel %vm825, %v814, 0
      %v830 = vsel %vm825, %v815, 0
      %v833 = vsel %vm825, %v816, 0
      %v836 = vsel %vm825, %v817, 0
      %v839 = vsel %vm825, %v818, 0
      %v842 = vsel %vm825, %v819, 0
      %v845 = vsel %vm825, %v820, 0
      %v848 = vsel %vm825, %v821, 0
      %v851 = vsel %vm825, %v822, 0
      %v854 = vsel %vm825, %v823, 0
      %v857 = vsel %vm825, %v824, 0
      %v860 = vsel %vm458, %v771, 0
      %862 = vmatprep.subr.bf16.mxu0 0
      %863 = vmatpush1.bf16.msra.mxu0 0
      %864 = vmatprep.subr.bf16.mxu0 0
      %865 = vmatpush1.bf16.msra.mxu0 0
      %866 = vmatprep.subr.bf16.mxu0 0
      %867 = vmatpush1.bf16.msra.mxu0 0
      %868 = vmatprep.subr.bf16.mxu0 0
      %869 = vmatpush1.bf16.msra.mxu0 0
      %870 = vmatprep.subr.bf16.mxu0 0
      %871 = vmatpush1.bf16.msra.mxu0 0
      %872 = vmatprep.subr.bf16.mxu0 0
      %873 = vmatpush1.bf16.msra.mxu0 0
      %874 = vmatprep.subr.bf16.mxu0 0
      %875 = vmatpush1.bf16.msra.mxu0 0
      %876 = vmatprep.subr.bf16.mxu0 0
      %877 = vmatpush1.bf16.msra.mxu0 %v860
      %878 = vmatprep.subr.bf16.mxu0 0
      %879 = vmatpush2.bf16.msra.mxu0 0
      %880 = vmatprep.subr.bf16.mxu0 0
      %881 = vmatpush2.bf16.msra.mxu0 0
      %882 = vmatprep.subr.bf16.mxu0 0
      %883 = vmatpush2.bf16.msra.mxu0 0
      %884 = vmatprep.subr.bf16.mxu0 0
      %885 = vmatpush2.bf16.msra.mxu0 0
      %886 = vmatprep.subr.bf16.mxu0 0
      %887 = vmatpush2.bf16.msra.mxu0 0
      %888 = vmatprep.subr.bf16.mxu0 0
      %889 = vmatpush2.bf16.msra.mxu0 0
      %890 = vmatprep.subr.bf16.mxu0 0
      %891 = vmatpush2.bf16.msra.mxu0 0
      %892 = vmatprep.subr.bf16.mxu0 0
      %893 = vmatpush2.bf16.msra.mxu0 0
      %894 = vmatprep.mubr.bf16.mxu0 0
      %895 = vmatmul.mubr.bf16.gmra.mxu0 %v827
      %v896 = vpop.f32.mrf.mxu0
      %v897 = vadd.f32 0.0, %v896
      %v898 = vpop.f32.mrf.mxu0
      %v899 = vpop.f32.mrf.mxu0
      %v900 = vadd.f32 0.0, %v899
      %v901 = vpop.f32.mrf.mxu0
      %902 = vmatprep.mubr.bf16.mxu0 0
      %903 = vmatmul.mubr.bf16.gmra.mxu0 %v830
      %v904 = vpop.f32.mrf.mxu0
      %v905 = vadd.f32 0.0, %v904
      %v906 = vpop.f32.mrf.mxu0
      %v907 = vpop.f32.mrf.mxu0
      %v908 = vadd.f32 0.0, %v907
      %v909 = vpop.f32.mrf.mxu0
      %910 = vmatprep.mubr.bf16.mxu0 0
      %911 = vmatmul.mubr.bf16.gmra.mxu0 %v833
      %v912 = vpop.f32.mrf.mxu0
      %v913 = vadd.f32 0.0, %v912
      %v914 = vpop.f32.mrf.mxu0
      %v915 = vpop.f32.mrf.mxu0
      %v916 = vadd.f32 0.0, %v915
      %v917 = vpop.f32.mrf.mxu0
      %918 = vmatprep.mubr.bf16.mxu0 0
      %919 = vmatmul.mubr.bf16.gmra.mxu0 %v836
      %v920 = vpop.f32.mrf.mxu0
      %v921 = vadd.f32 0.0, %v920
      %v922 = vpop.f32.mrf.mxu0
      %v923 = vpop.f32.mrf.mxu0
      %v924 = vadd.f32 0.0, %v923
      %v925 = vpop.f32.mrf.mxu0
      %926 = vmatprep.mubr.bf16.mxu0 0
      %927 = vmatmul.mubr.bf16.gmra.mxu0 %v839
      %v928 = vpop.f32.mrf.mxu0
      %v929 = vadd.f32 0.0, %v928
      %v930 = vpop.f32.mrf.mxu0
      %v931 = vpop.f32.mrf.mxu0
      %v932 = vadd.f32 0.0, %v931
      %v933 = vpop.f32.mrf.mxu0
      %934 = vmatprep.mubr.bf16.mxu0 0
      %935 = vmatmul.mubr.bf16.gmra.mxu0 %v842
      %v936 = vpop.f32.mrf.mxu0
      %v937 = vadd.f32 0.0, %v936
      %v938 = vpop.f32.mrf.mxu0
      %v939 = vpop.f32.mrf.mxu0
      %v940 = vadd.f32 0.0, %v939
      %v941 = vpop.f32.mrf.mxu0
      %942 = vmatprep.mubr.bf16.mxu0 0
      %943 = vmatmul.mubr.bf16.gmra.mxu0 %v845
      %v944 = vpop.f32.mrf.mxu0
      %v945 = vadd.f32 0.0, %v944
      %v946 = vpop.f32.mrf.mxu0
      %v947 = vpop.f32.mrf.mxu0
      %v948 = vadd.f32 0.0, %v947
      %v949 = vpop.f32.mrf.mxu0
      %950 = vmatprep.mubr.bf16.mxu0 0
      %951 = vmatmul.mubr.bf16.gmra.mxu0 %v848
      %v952 = vpop.f32.mrf.mxu0
      %v953 = vadd.f32 0.0, %v952
      %v954 = vpop.f32.mrf.mxu0
      %v955 = vpop.f32.mrf.mxu0
      %v956 = vadd.f32 0.0, %v955
      %v957 = vpop.f32.mrf.mxu0
      %958 = vmatprep.mubr.bf16.mxu0 0
      %959 = vmatmul.mubr.bf16.gmra.mxu0 %v851
      %v960 = vpop.f32.mrf.mxu0
      %v961 = vadd.f32 0.0, %v960
      %v962 = vpop.f32.mrf.mxu0
      %v963 = vpop.f32.mrf.mxu0
      %v964 = vadd.f32 0.0, %v963
      %v965 = vpop.f32.mrf.mxu0
      %966 = vmatprep.mubr.bf16.mxu0 0
      %967 = vmatmul.mubr.bf16.gmra.mxu0 %v854
      %v968 = vpop.f32.mrf.mxu0
      %v969 = vadd.f32 0.0, %v968
      %v970 = vpop.f32.mrf.mxu0
      %v971 = vpop.f32.mrf.mxu0
      %v972 = vadd.f32 0.0, %v971
      %v973 = vpop.f32.mrf.mxu0
      %974 = vmatprep.mubr.bf16.mxu0 0
      %975 = vmatmul.mubr.bf16.gmra.mxu0 %v857
      %v976 = vpop.f32.mrf.mxu0
      %v977 = vadd.f32 0.0, %v976
      %v978 = vpop.f32.mrf.mxu0
      %v979 = vpop.f32.mrf.mxu0
      %v980 = vpop.f32.mrf.mxu0
      %981 = vdwg.mxu0
      %v982 = vpack.c.bf16 %v900, %v897
      %v983 = vpack.c.bf16 %v908, %v905
      %v984 = vpack.c.bf16 %v916, %v913
      %v985 = vpack.c.bf16 %v924, %v921
      %v986 = vpack.c.bf16 %v932, %v929
      %v987 = vpack.c.bf16 %v940, %v937
      %v988 = vpack.c.bf16 %v948, %v945
      %v989 = vpack.c.bf16 %v956, %v953
      %v990 = vpack.c.bf16 %v964, %v961
      %v991 = vpack.c.bf16 %v972, %v969
      %v992 = vpack.c.bf16 %v977, %v977
      %v1004 = vunpack.c.l.b16 %v982
      %v1005 = vunpack.c.h.b16 %v982
      %v1006 = vunpack.c.l.b16 %v983
      %v1007 = vunpack.c.h.b16 %v983
      %v1008 = vunpack.c.l.b16 %v984
      %v1009 = vunpack.c.h.b16 %v984
      %v1010 = vunpack.c.l.b16 %v985
      %v1011 = vunpack.c.h.b16 %v985
      %v1012 = vunpack.c.l.b16 %v986
      %v1013 = vunpack.c.h.b16 %v986
      %v1014 = vunpack.c.l.b16 %v987
      %v1015 = vunpack.c.h.b16 %v987
      %v1016 = vunpack.c.l.b16 %v988
      %v1017 = vunpack.c.h.b16 %v988
      %v1018 = vunpack.c.l.b16 %v989
      %v1019 = vunpack.c.h.b16 %v989
      %v1020 = vunpack.c.l.b16 %v990
      %v1021 = vunpack.c.h.b16 %v990
      %v1022 = vunpack.c.l.b16 %v991
      %v1023 = vunpack.c.h.b16 %v991
      %v1024 = vunpack.c.l.b16 %v992
      %v1025 = vpack.c.b16 %v1004, %v1004
      %v1026 = vpack.c.b16 %v1005, %v1005
      %v1027 = vpack.c.b16 %v1006, %v1006
      %v1028 = vpack.c.b16 %v1007, %v1007
      %v1029 = vpack.c.b16 %v1008, %v1008
      %v1030 = vpack.c.b16 %v1009, %v1009
      %v1031 = vpack.c.b16 %v1010, %v1010
      %v1032 = vpack.c.b16 %v1011, %v1011
      %v1033 = vpack.c.b16 %v1012, %v1012
      %v1034 = vpack.c.b16 %v1013, %v1013
      %v1035 = vpack.c.b16 %v1014, %v1014
      %v1036 = vpack.c.b16 %v1015, %v1015
      %v1037 = vpack.c.b16 %v1016, %v1016
      %v1038 = vpack.c.b16 %v1017, %v1017
      %v1039 = vpack.c.b16 %v1018, %v1018
      %v1040 = vpack.c.b16 %v1019, %v1019
      %v1041 = vpack.c.b16 %v1020, %v1020
      %v1042 = vpack.c.b16 %v1021, %v1021
      %v1043 = vpack.c.b16 %v1022, %v1022
      %v1044 = vpack.c.b16 %v1023, %v1023
      %v1045 = vpack.c.b16 %v1024, %v1024
      %v1046 = vrot.slane %v1025, 5
      %v1047 = vrot.slane %v1046, 4
      %v1048 = vrot.slane %v1026, 5
      %v1049 = vsel %vm571, %v1047, %v1048
      %v1050 = vrot.slane %v1048, 4
      %v1051 = vrot.slane %v1027, 5
      %v1052 = vsel %vm571, %v1050, %v1051
      %v1053 = vrot.slane %v1051, 4
      %v1054 = vrot.slane %v1028, 5
      %v1055 = vsel %vm571, %v1053, %v1054
      %v1056 = vrot.slane %v1054, 4
      %v1057 = vrot.slane %v1029, 5
      %v1058 = vsel %vm571, %v1056, %v1057
      %v1059 = vrot.slane %v1057, 4
      %v1060 = vrot.slane %v1030, 5
      %v1061 = vsel %vm571, %v1059, %v1060
      %v1062 = vrot.slane %v1060, 4
      %v1063 = vrot.slane %v1031, 5
      %v1064 = vsel %vm571, %v1062, %v1063
      %v1065 = vrot.slane %v1063, 4
      %v1066 = vrot.slane %v1032, 5
      %v1067 = vsel %vm571, %v1065, %v1066
      %v1068 = vrot.slane %v1066, 4
      %v1069 = vrot.slane %v1033, 5
      %v1070 = vsel %vm571, %v1068, %v1069
      %v1071 = vrot.slane %v1069, 4
      %v1072 = vrot.slane %v1034, 5
      %v1073 = vsel %vm571, %v1071, %v1072
      %v1074 = vrot.slane %v1072, 4
      %v1075 = vrot.slane %v1035, 5
      %v1076 = vsel %vm571, %v1074, %v1075
      %v1077 = vrot.slane %v1075, 4
      %v1078 = vrot.slane %v1036, 5
      %v1079 = vsel %vm571, %v1077, %v1078
      %v1080 = vrot.slane %v1078, 4
      %v1081 = vrot.slane %v1037, 5
      %v1082 = vsel %vm571, %v1080, %v1081
      %v1083 = vrot.slane %v1081, 4
      %v1084 = vrot.slane %v1038, 5
      %v1085 = vsel %vm571, %v1083, %v1084
      %v1086 = vrot.slane %v1084, 4
      %v1087 = vrot.slane %v1039, 5
      %v1088 = vsel %vm571, %v1086, %v1087
      %v1089 = vrot.slane %v1087, 4
      %v1090 = vrot.slane %v1040, 5
      %v1091 = vsel %vm571, %v1089, %v1090
      %v1092 = vrot.slane %v1090, 4
      %v1093 = vrot.slane %v1041, 5
      %v1094 = vsel %vm571, %v1092, %v1093
      %v1095 = vrot.slane %v1093, 4
      %v1096 = vrot.slane %v1042, 5
      %v1097 = vsel %vm571, %v1095, %v1096
      %v1098 = vrot.slane %v1096, 4
      %v1099 = vrot.slane %v1043, 5
      %v1100 = vsel %vm571, %v1098, %v1099
      %v1101 = vrot.slane %v1099, 4
      %v1102 = vrot.slane %v1044, 5
      %v1103 = vsel %vm571, %v1101, %v1102
      %v1104 = vrot.slane %v1102, 4
      %v1105 = vrot.slane %v1045, 5
      %v1106 = vsel %vm571, %v1104, %v1105
      %v1107 = vrot.slane %v1105, 4
      %1108 = vrot.lane.b32.xlu0 %v1046, 32
      %v1109 = vpop.permute.xlu0 %1108
      %1110 = vrot.lane.b32.xlu0 %v1049, 32
      %v1111 = vpop.permute.xlu0 %1110
      %1112 = vrot.lane.b32.xlu0 %v1052, 32
      %v1113 = vpop.permute.xlu0 %1112
      %1114 = vrot.lane.b32.xlu0 %v1055, 32
      %v1115 = vpop.permute.xlu0 %1114
      %1116 = vrot.lane.b32.xlu0 %v1058, 32
      %v1117 = vpop.permute.xlu0 %1116
      %1118 = vrot.lane.b32.xlu0 %v1061, 32
      %v1119 = vpop.permute.xlu0 %1118
      %1120 = vrot.lane.b32.xlu0 %v1064, 32
      %v1121 = vpop.permute.xlu0 %1120
      %1122 = vrot.lane.b32.xlu0 %v1067, 32
      %v1123 = vpop.permute.xlu0 %1122
      %1124 = vrot.lane.b32.xlu0 %v1070, 32
      %v1125 = vpop.permute.xlu0 %1124
      %1126 = vrot.lane.b32.xlu0 %v1073, 32
      %v1127 = vpop.permute.xlu0 %1126
      %1128 = vrot.lane.b32.xlu0 %v1076, 32
      %v1129 = vpop.permute.xlu0 %1128
      %1130 = vrot.lane.b32.xlu0 %v1079, 32
      %v1131 = vpop.permute.xlu0 %1130
      %1132 = vrot.lane.b32.xlu0 %v1082, 32
      %v1133 = vpop.permute.xlu0 %1132
      %1134 = vrot.lane.b32.xlu0 %v1085, 32
      %v1135 = vpop.permute.xlu0 %1134
      %1136 = vrot.lane.b32.xlu0 %v1088, 32
      %v1137 = vpop.permute.xlu0 %1136
      %1138 = vrot.lane.b32.xlu0 %v1091, 32
      %v1139 = vpop.permute.xlu0 %1138
      %1140 = vrot.lane.b32.xlu0 %v1094, 32
      %v1141 = vpop.permute.xlu0 %1140
      %1142 = vrot.lane.b32.xlu0 %v1097, 32
      %v1143 = vpop.permute.xlu0 %1142
      %1144 = vrot.lane.b32.xlu0 %v1100, 32
      %v1145 = vpop.permute.xlu0 %1144
      %1146 = vrot.lane.b32.xlu0 %v1103, 32
      %v1147 = vpop.permute.xlu0 %1146
      %1148 = vrot.lane.b32.xlu0 %v1106, 32
      %v1149 = vpop.permute.xlu0 %1148
      %1150 = vrot.lane.b32.xlu0 %v1107, 32
      %v1151 = vpop.permute.xlu0 %1150
      %vm1174 = vcmask 781571
      %1175 = vst.msk [vmem:[%s305 + $0xc] sm:$0x8] %vm1174, %v1109
      %vm1176 = vcmask 781568
      %1177 = vst.msk [vmem:[%s305 + $0x18] sm:$0xf] %vm1176, %v1111
      %1178 = vst.msk [vmem:[%s305 + $0x24] sm:$0xf] %vm1176, %v1113
      %1179 = vst.msk [vmem:[%s305 + $0x30] sm:$0xf] %vm1176, %v1115
      %1180 = vst.msk [vmem:[%s305 + $0x3c] sm:$0xf] %vm1176, %v1117
      %1181 = vst.msk [vmem:[%s305 + $0x48] sm:$0xf] %vm1176, %v1119
      %1182 = vst.msk [vmem:[%s305 + $0x54] sm:$0xf] %vm1176, %v1121
      %1183 = vst.msk [vmem:[%s305 + $0x60] sm:$0xf] %vm1176, %v1123
      %1184 = vst.msk [vmem:[%s305 + $0x6c] sm:$0xf] %vm1176, %v1125
      %1185 = vst.msk [vmem:[%s305 + $0x78] sm:$0xf] %vm1176, %v1127
      %1186 = vst.msk [vmem:[%s305 + $0x84] sm:$0xf] %vm1176, %v1129
      %1187 = vst.msk [vmem:[%s305 + $0x90] sm:$0xf] %vm1176, %v1131
      %1188 = vst.msk [vmem:[%s305 + $0x9c] sm:$0xf] %vm1176, %v1133
      %1189 = vst.msk [vmem:[%s305 + $0xa8] sm:$0xf] %vm1176, %v1135
      %1190 = vst.msk [vmem:[%s305 + $0xb4] sm:$0xf] %vm1176, %v1137
      %1191 = vst.msk [vmem:[%s305 + $0xc0] sm:$0xf] %vm1176, %v1139
      %1192 = vst.msk [vmem:[%s305 + $0xcc] sm:$0xf] %vm1176, %v1141
      %1193 = vst.msk [vmem:[%s305 + $0xd8] sm:$0xf] %vm1176, %v1143
      %1194 = vst.msk [vmem:[%s305 + $0xe4] sm:$0xf] %vm1176, %v1145
      %1195 = vst.msk [vmem:[%s305 + $0xf0] sm:$0xf] %vm1176, %v1147
      %1196 = vst.msk [vmem:[%s305 + $0xfc] sm:$0xf] %vm1176, %v1149
      %vm1197 = vcmask 780544
      %1198 = vst.msk [vmem:[%s305 + $0x108] sm:$0x7] %vm1197, %v1151
      %v1199 = vpack.c.bf16 %v500, %v500
      %s1200 = scalar_lea.vmem %s2, 16
      %v1201 = vld [vmem:[%s1200] sm:$0xf]
      %v1202 = vld [vmem:[%s1200 + $0x4] sm:$0xf]
      %v1203 = vld [vmem:[%s1200 + $0x8] sm:$0xf]
      %v1204 = vld [vmem:[%s1200 + $0xc] sm:$0xf]
      %s1205 = scalar_lea.vmem %s3, 1
      %v1206 = vld [vmem:[%s1205] sm:$0x1]
      %v1208 = vlaneseq
      %v1209 = vshrl.u32 %v1208, 7
      %v1210 = vsub.s32 0, %v1209
      %v1211 = vrot.slane %v1206, %v1210
      %v1217 = vunpack.c.l.b16 %v1201
      %v1218 = vunpack.c.l.b16 %v1202
      %v1219 = vunpack.c.l.b16 %v1203
      %v1220 = vunpack.c.l.b16 %v1204
      %v1221 = vpack.c.b16 %v1218, %v1217
      %v1222 = vpack.c.b16 %v1220, %v1219
      %v1226 = vsel %vm705, %v1199, 0
      %1228 = vmatprep.subr.bf16.mxu0 0
      %1229 = vmatpush1.bf16.msra.mxu0 0
      %1230 = vmatprep.subr.bf16.mxu0 0
      %1231 = vmatpush1.bf16.msra.mxu0 0
      %1232 = vmatprep.subr.bf16.mxu0 0
      %1233 = vmatpush1.bf16.msra.mxu0 0
      %1234 = vmatprep.subr.bf16.mxu0 0
      %1235 = vmatpush1.bf16.msra.mxu0 0
      %1236 = vmatprep.subr.bf16.mxu0 0
      %1237 = vmatpush1.bf16.msra.mxu0 0
      %1238 = vmatprep.subr.bf16.mxu0 0
      %1239 = vmatpush1.bf16.msra.mxu0 0
      %1240 = vmatprep.subr.bf16.mxu0 0
      %1241 = vmatpush1.bf16.msra.mxu0 %v1222
      %1242 = vmatprep.subr.bf16.mxu0 0
      %1243 = vmatpush1.bf16.msra.mxu0 %v1221
      %1244 = vmatprep.subr.bf16.mxu0 0
      %1245 = vmatpush2.bf16.msra.mxu0 0
      %1246 = vmatprep.subr.bf16.mxu0 0
      %1247 = vmatpush2.bf16.msra.mxu0 0
      %1248 = vmatprep.subr.bf16.mxu0 0
      %1249 = vmatpush2.bf16.msra.mxu0 0
      %1250 = vmatprep.subr.bf16.mxu0 0
      %1251 = vmatpush2.bf16.msra.mxu0 0
      %1252 = vmatprep.subr.bf16.mxu0 0
      %1253 = vmatpush2.bf16.msra.mxu0 0
      %1254 = vmatprep.subr.bf16.mxu0 0
      %1255 = vmatpush2.bf16.msra.mxu0 0
      %1256 = vmatprep.subr.bf16.mxu0 0
      %1257 = vmatpush2.bf16.msra.mxu0 0
      %1258 = vmatprep.subr.bf16.mxu0 0
      %1259 = vmatpush2.bf16.msra.mxu0 0
      %1260 = vmatprep.mubr.bf16.mxu0 0
      %1261 = vmatmul.mubr.bf16.gmra.mxu0 %v1226
      %v1262 = vpop.f32.mrf.mxu0
      %v1263 = vadd.f32 %v1211, %v1262
      %v1264 = vpop.f32.mrf.mxu0
      %v1265 = vpop.f32.mrf.mxu0
      %v1266 = vpop.f32.mrf.mxu0
      %1267 = vdwg.mxu0
      %v1268 = vmax.f32 %v1263, 0.0
      %v1269 = vld [vmem:[%s5] sm:$0xf]
      %v1270 = vld [vmem:[%s5 + $0x4] sm:$0xf]
      %v1271 = vld [vmem:[%s5 + $0x8] sm:$0xf]
      %v1272 = vld [vmem:[%s5 + $0xc] sm:$0xf]
      %v1273 = vld [vmem:[%s5 + $0x10] sm:$0xf]
      %v1274 = vld [vmem:[%s5 + $0x14] sm:$0xf]
      %v1275 = vld [vmem:[%s5 + $0x18] sm:$0xf]
      %v1276 = vld [vmem:[%s5 + $0x1c] sm:$0xf]
      %v1277 = vld [vmem:[%s5 + $0x20] sm:$0xf]
      %v1278 = vld [vmem:[%s5 + $0x24] sm:$0xf]
      %v1279 = vld [vmem:[%s5 + $0x28] sm:$0xf]
      %v1280 = vld [vmem:[%s5 + $0x2c] sm:$0xf]
      %v1281 = vld [vmem:[%s5 + $0x30] sm:$0xf]
      %v1282 = vld [vmem:[%s5 + $0x34] sm:$0xf]
      %v1283 = vld [vmem:[%s5 + $0x38] sm:$0xf]
      %v1284 = vld [vmem:[%s5 + $0x3c] sm:$0xf]
      %v1285 = vld [vmem:[%s5 + $0x40] sm:$0xf]
      %v1286 = vld [vmem:[%s5 + $0x44] sm:$0xf]
      %v1287 = vld [vmem:[%s5 + $0x48] sm:$0xf]
      %v1288 = vld [vmem:[%s5 + $0x4c] sm:$0xf]
      %v1289 = vld [vmem:[%s5 + $0x50] sm:$0xf]
      %v1290 = vpack.c.bf16 %v1268, %v1268
      %v1312 = vunpack.c.l.b16 %v1269
      %v1313 = vunpack.c.l.b16 %v1270
      %v1314 = vunpack.c.l.b16 %v1271
      %v1315 = vunpack.c.l.b16 %v1272
      %v1316 = vunpack.c.l.b16 %v1273
      %v1317 = vunpack.c.l.b16 %v1274
      %v1318 = vunpack.c.l.b16 %v1275
      %v1319 = vunpack.c.l.b16 %v1276
      %v1320 = vunpack.c.l.b16 %v1277
      %v1321 = vunpack.c.l.b16 %v1278
      %v1322 = vunpack.c.l.b16 %v1279
      %v1323 = vunpack.c.l.b16 %v1280
      %v1324 = vunpack.c.l.b16 %v1281
      %v1325 = vunpack.c.l.b16 %v1282
      %v1326 = vunpack.c.l.b16 %v1283
      %v1327 = vunpack.c.l.b16 %v1284
      %v1328 = vunpack.c.l.b16 %v1285
      %v1329 = vunpack.c.l.b16 %v1286
      %v1330 = vunpack.c.l.b16 %v1287
      %v1331 = vunpack.c.l.b16 %v1288
      %v1332 = vunpack.c.l.b16 %v1289
      %v1333 = vpack.c.b16 %v1313, %v1312
      %v1334 = vpack.c.b16 %v1315, %v1314
      %v1335 = vpack.c.b16 %v1317, %v1316
      %v1336 = vpack.c.b16 %v1319, %v1318
      %v1337 = vpack.c.b16 %v1321, %v1320
      %v1338 = vpack.c.b16 %v1323, %v1322
      %v1339 = vpack.c.b16 %v1325, %v1324
      %v1340 = vpack.c.b16 %v1327, %v1326
      %v1341 = vpack.c.b16 %v1329, %v1328
      %v1342 = vpack.c.b16 %v1331, %v1330
      %v1343 = vpack.c.b16 %v1332, %v1332
      %v1345 = vsel %vm825, %v1333, 0
      %v1348 = vsel %vm825, %v1334, 0
      %v1351 = vsel %vm825, %v1335, 0
      %v1354 = vsel %vm825, %v1336, 0
      %v1357 = vsel %vm825, %v1337, 0
      %v1360 = vsel %vm825, %v1338, 0
      %v1363 = vsel %vm825, %v1339, 0
      %v1366 = vsel %vm825, %v1340, 0
      %v1369 = vsel %vm825, %v1341, 0
      %v1372 = vsel %vm825, %v1342, 0
      %v1375 = vsel %vm825, %v1343, 0
      %v1378 = vsel %vm458, %v1290, 0
      %1380 = vmatprep.subr.bf16.mxu0 0
      %1381 = vmatpush1.bf16.msra.mxu0 0
      %1382 = vmatprep.subr.bf16.mxu0 0
      %1383 = vmatpush1.bf16.msra.mxu0 0
      %1384 = vmatprep.subr.bf16.mxu0 0
      %1385 = vmatpush1.bf16.msra.mxu0 0
      %1386 = vmatprep.subr.bf16.mxu0 0
      %1387 = vmatpush1.bf16.msra.mxu0 0
      %1388 = vmatprep.subr.bf16.mxu0 0
      %1389 = vmatpush1.bf16.msra.mxu0 0
      %1390 = vmatprep.subr.bf16.mxu0 0
      %1391 = vmatpush1.bf16.msra.mxu0 0
      %1392 = vmatprep.subr.bf16.mxu0 0
      %1393 = vmatpush1.bf16.msra.mxu0 0
      %1394 = vmatprep.subr.bf16.mxu0 0
      %1395 = vmatpush1.bf16.msra.mxu0 %v1378
      %1396 = vmatprep.subr.bf16.mxu0 0
      %1397 = vmatpush2.bf16.msra.mxu0 0
      %1398 = vmatprep.subr.bf16.mxu0 0
      %1399 = vmatpush2.bf16.msra.mxu0 0
      %1400 = vmatprep.subr.bf16.mxu0 0
      %1401 = vmatpush2.bf16.msra.mxu0 0
      %1402 = vmatprep.subr.bf16.mxu0 0
      %1403 = vmatpush2.bf16.msra.mxu0 0
      %1404 = vmatprep.subr.bf16.mxu0 0
      %1405 = vmatpush2.bf16.msra.mxu0 0
      %1406 = vmatprep.subr.bf16.mxu0 0
      %1407 = vmatpush2.bf16.msra.mxu0 0
      %1408 = vmatprep.subr.bf16.mxu0 0
      %1409 = vmatpush2.bf16.msra.mxu0 0
      %1410 = vmatprep.subr.bf16.mxu0 0
      %1411 = vmatpush2.bf16.msra.mxu0 0
      %1412 = vmatprep.mubr.bf16.mxu0 0
      %1413 = vmatmul.mubr.bf16.gmra.mxu0 %v1345
      %v1414 = vpop.f32.mrf.mxu0
      %v1415 = vadd.f32 0.0, %v1414
      %v1416 = vpop.f32.mrf.mxu0
      %v1417 = vpop.f32.mrf.mxu0
      %v1418 = vadd.f32 0.0, %v1417
      %v1419 = vpop.f32.mrf.mxu0
      %1420 = vmatprep.mubr.bf16.mxu0 0
      %1421 = vmatmul.mubr.bf16.gmra.mxu0 %v1348
      %v1422 = vpop.f32.mrf.mxu0
      %v1423 = vadd.f32 0.0, %v1422
      %v1424 = vpop.f32.mrf.mxu0
      %v1425 = vpop.f32.mrf.mxu0
      %v1426 = vadd.f32 0.0, %v1425
      %v1427 = vpop.f32.mrf.mxu0
      %1428 = vmatprep.mubr.bf16.mxu0 0
      %1429 = vmatmul.mubr.bf16.gmra.mxu0 %v1351
      %v1430 = vpop.f32.mrf.mxu0
      %v1431 = vadd.f32 0.0, %v1430
      %v1432 = vpop.f32.mrf.mxu0
      %v1433 = vpop.f32.mrf.mxu0
      %v1434 = vadd.f32 0.0, %v1433
      %v1435 = vpop.f32.mrf.mxu0
      %1436 = vmatprep.mubr.bf16.mxu0 0
      %1437 = vmatmul.mubr.bf16.gmra.mxu0 %v1354
      %v1438 = vpop.f32.mrf.mxu0
      %v1439 = vadd.f32 0.0, %v1438
      %v1440 = vpop.f32.mrf.mxu0
      %v1441 = vpop.f32.mrf.mxu0
      %v1442 = vadd.f32 0.0, %v1441
      %v1443 = vpop.f32.mrf.mxu0
      %1444 = vmatprep.mubr.bf16.mxu0 0
      %1445 = vmatmul.mubr.bf16.gmra.mxu0 %v1357
      %v1446 = vpop.f32.mrf.mxu0
      %v1447 = vadd.f32 0.0, %v1446
      %v1448 = vpop.f32.mrf.mxu0
      %v1449 = vpop.f32.mrf.mxu0
      %v1450 = vadd.f32 0.0, %v1449
      %v1451 = vpop.f32.mrf.mxu0
      %1452 = vmatprep.mubr.bf16.mxu0 0
      %1453 = vmatmul.mubr.bf16.gmra.mxu0 %v1360
      %v1454 = vpop.f32.mrf.mxu0
      %v1455 = vadd.f32 0.0, %v1454
      %v1456 = vpop.f32.mrf.mxu0
      %v1457 = vpop.f32.mrf.mxu0
      %v1458 = vadd.f32 0.0, %v1457
      %v1459 = vpop.f32.mrf.mxu0
      %1460 = vmatprep.mubr.bf16.mxu0 0
      %1461 = vmatmul.mubr.bf16.gmra.mxu0 %v1363
      %v1462 = vpop.f32.mrf.mxu0
      %v1463 = vadd.f32 0.0, %v1462
      %v1464 = vpop.f32.mrf.mxu0
      %v1465 = vpop.f32.mrf.mxu0
      %v1466 = vadd.f32 0.0, %v1465
      %v1467 = vpop.f32.mrf.mxu0
      %1468 = vmatprep.mubr.bf16.mxu0 0
      %1469 = vmatmul.mubr.bf16.gmra.mxu0 %v1366
      %v1470 = vpop.f32.mrf.mxu0
      %v1471 = vadd.f32 0.0, %v1470
      %v1472 = vpop.f32.mrf.mxu0
      %v1473 = vpop.f32.mrf.mxu0
      %v1474 = vadd.f32 0.0, %v1473
      %v1475 = vpop.f32.mrf.mxu0
      %1476 = vmatprep.mubr.bf16.mxu0 0
      %1477 = vmatmul.mubr.bf16.gmra.mxu0 %v1369
      %v1478 = vpop.f32.mrf.mxu0
      %v1479 = vadd.f32 0.0, %v1478
      %v1480 = vpop.f32.mrf.mxu0
      %v1481 = vpop.f32.mrf.mxu0
      %v1482 = vadd.f32 0.0, %v1481
      %v1483 = vpop.f32.mrf.mxu0
      %1484 = vmatprep.mubr.bf16.mxu0 0
      %1485 = vmatmul.mubr.bf16.gmra.mxu0 %v1372
      %v1486 = vpop.f32.mrf.mxu0
      %v1487 = vadd.f32 0.0, %v1486
      %v1488 = vpop.f32.mrf.mxu0
      %v1489 = vpop.f32.mrf.mxu0
      %v1490 = vadd.f32 0.0, %v1489
      %v1491 = vpop.f32.mrf.mxu0
      %1492 = vmatprep.mubr.bf16.mxu0 0
      %1493 = vmatmul.mubr.bf16.gmra.mxu0 %v1375
      %v1494 = vpop.f32.mrf.mxu0
      %v1495 = vadd.f32 0.0, %v1494
      %v1496 = vpop.f32.mrf.mxu0
      %v1497 = vpop.f32.mrf.mxu0
      %v1498 = vpop.f32.mrf.mxu0
      %1499 = vdwg.mxu0
      %v1500 = vpack.c.bf16 %v1418, %v1415
      %v1501 = vpack.c.bf16 %v1426, %v1423
      %v1502 = vpack.c.bf16 %v1434, %v1431
      %v1503 = vpack.c.bf16 %v1442, %v1439
      %v1504 = vpack.c.bf16 %v1450, %v1447
      %v1505 = vpack.c.bf16 %v1458, %v1455
      %v1506 = vpack.c.bf16 %v1466, %v1463
      %v1507 = vpack.c.bf16 %v1474, %v1471
      %v1508 = vpack.c.bf16 %v1482, %v1479
      %v1509 = vpack.c.bf16 %v1490, %v1487
      %v1510 = vpack.c.bf16 %v1495, %v1495
      %v1522 = vunpack.c.l.b16 %v1500
      %v1523 = vunpack.c.h.b16 %v1500
      %v1524 = vunpack.c.l.b16 %v1501
      %v1525 = vunpack.c.h.b16 %v1501
      %v1526 = vunpack.c.l.b16 %v1502
      %v1527 = vunpack.c.h.b16 %v1502
      %v1528 = vunpack.c.l.b16 %v1503
      %v1529 = vunpack.c.h.b16 %v1503
      %v1530 = vunpack.c.l.b16 %v1504
      %v1531 = vunpack.c.h.b16 %v1504
      %v1532 = vunpack.c.l.b16 %v1505
      %v1533 = vunpack.c.h.b16 %v1505
      %v1534 = vunpack.c.l.b16 %v1506
      %v1535 = vunpack.c.h.b16 %v1506
      %v1536 = vunpack.c.l.b16 %v1507
      %v1537 = vunpack.c.h.b16 %v1507
      %v1538 = vunpack.c.l.b16 %v1508
      %v1539 = vunpack.c.h.b16 %v1508
      %v1540 = vunpack.c.l.b16 %v1509
      %v1541 = vunpack.c.h.b16 %v1509
      %v1542 = vunpack.c.l.b16 %v1510
      %v1543 = vpack.c.b16 %v1522, %v1522
      %v1544 = vpack.c.b16 %v1523, %v1523
      %v1545 = vpack.c.b16 %v1524, %v1524
      %v1546 = vpack.c.b16 %v1525, %v1525
      %v1547 = vpack.c.b16 %v1526, %v1526
      %v1548 = vpack.c.b16 %v1527, %v1527
      %v1549 = vpack.c.b16 %v1528, %v1528
      %v1550 = vpack.c.b16 %v1529, %v1529
      %v1551 = vpack.c.b16 %v1530, %v1530
      %v1552 = vpack.c.b16 %v1531, %v1531
      %v1553 = vpack.c.b16 %v1532, %v1532
      %v1554 = vpack.c.b16 %v1533, %v1533
      %v1555 = vpack.c.b16 %v1534, %v1534
      %v1556 = vpack.c.b16 %v1535, %v1535
      %v1557 = vpack.c.b16 %v1536, %v1536
      %v1558 = vpack.c.b16 %v1537, %v1537
      %v1559 = vpack.c.b16 %v1538, %v1538
      %v1560 = vpack.c.b16 %v1539, %v1539
      %v1561 = vpack.c.b16 %v1540, %v1540
      %v1562 = vpack.c.b16 %v1541, %v1541
      %v1563 = vpack.c.b16 %v1542, %v1542
      %v1564 = vrot.slane %v1543, 5
      %v1565 = vrot.slane %v1564, 4
      %v1566 = vrot.slane %v1544, 5
      %v1567 = vsel %vm571, %v1565, %v1566
      %v1568 = vrot.slane %v1566, 4
      %v1569 = vrot.slane %v1545, 5
      %v1570 = vsel %vm571, %v1568, %v1569
      %v1571 = vrot.slane %v1569, 4
      %v1572 = vrot.slane %v1546, 5
      %v1573 = vsel %vm571, %v1571, %v1572
      %v1574 = vrot.slane %v1572, 4
      %v1575 = vrot.slane %v1547, 5
      %v1576 = vsel %vm571, %v1574, %v1575
      %v1577 = vrot.slane %v1575, 4
      %v1578 = vrot.slane %v1548, 5
      %v1579 = vsel %vm571, %v1577, %v1578
      %v1580 = vrot.slane %v1578, 4
      %v1581 = vrot.slane %v1549, 5
      %v1582 = vsel %vm571, %v1580, %v1581
      %v1583 = vrot.slane %v1581, 4
      %v1584 = vrot.slane %v1550, 5
      %v1585 = vsel %vm571, %v1583, %v1584
      %v1586 = vrot.slane %v1584, 4
      %v1587 = vrot.slane %v1551, 5
      %v1588 = vsel %vm571, %v1586, %v1587
      %v1589 = vrot.slane %v1587, 4
      %v1590 = vrot.slane %v1552, 5
      %v1591 = vsel %vm571, %v1589, %v1590
      %v1592 = vrot.slane %v1590, 4
      %v1593 = vrot.slane %v1553, 5
      %v1594 = vsel %vm571, %v1592, %v1593
      %v1595 = vrot.slane %v1593, 4
      %v1596 = vrot.slane %v1554, 5
      %v1597 = vsel %vm571, %v1595, %v1596
      %v1598 = vrot.slane %v1596, 4
      %v1599 = vrot.slane %v1555, 5
      %v1600 = vsel %vm571, %v1598, %v1599
      %v1601 = vrot.slane %v1599, 4
      %v1602 = vrot.slane %v1556, 5
      %v1603 = vsel %vm571, %v1601, %v1602
      %v1604 = vrot.slane %v1602, 4
      %v1605 = vrot.slane %v1557, 5
      %v1606 = vsel %vm571, %v1604, %v1605
      %v1607 = vrot.slane %v1605, 4
      %v1608 = vrot.slane %v1558, 5
      %v1609 = vsel %vm571, %v1607, %v1608
      %v1610 = vrot.slane %v1608, 4
      %v1611 = vrot.slane %v1559, 5
      %v1612 = vsel %vm571, %v1610, %v1611
      %v1613 = vrot.slane %v1611, 4
      %v1614 = vrot.slane %v1560, 5
      %v1615 = vsel %vm571, %v1613, %v1614
      %v1616 = vrot.slane %v1614, 4
      %v1617 = vrot.slane %v1561, 5
      %v1618 = vsel %vm571, %v1616, %v1617
      %v1619 = vrot.slane %v1617, 4
      %v1620 = vrot.slane %v1562, 5
      %v1621 = vsel %vm571, %v1619, %v1620
      %v1622 = vrot.slane %v1620, 4
      %v1623 = vrot.slane %v1563, 5
      %v1624 = vsel %vm571, %v1622, %v1623
      %v1625 = vrot.slane %v1623, 4
      %1626 = vrot.lane.b32.xlu0 %v1564, 96
      %v1627 = vpop.permute.xlu0 %1626
      %1628 = vrot.lane.b32.xlu0 %v1567, 96
      %v1629 = vpop.permute.xlu0 %1628
      %1630 = vrot.lane.b32.xlu0 %v1570, 96
      %v1631 = vpop.permute.xlu0 %1630
      %1632 = vrot.lane.b32.xlu0 %v1573, 96
      %v1633 = vpop.permute.xlu0 %1632
      %1634 = vrot.lane.b32.xlu0 %v1576, 96
      %v1635 = vpop.permute.xlu0 %1634
      %1636 = vrot.lane.b32.xlu0 %v1579, 96
      %v1637 = vpop.permute.xlu0 %1636
      %1638 = vrot.lane.b32.xlu0 %v1582, 96
      %v1639 = vpop.permute.xlu0 %1638
      %1640 = vrot.lane.b32.xlu0 %v1585, 96
      %v1641 = vpop.permute.xlu0 %1640
      %1642 = vrot.lane.b32.xlu0 %v1588, 96
      %v1643 = vpop.permute.xlu0 %1642
      %1644 = vrot.lane.b32.xlu0 %v1591, 96
      %v1645 = vpop.permute.xlu0 %1644
      %1646 = vrot.lane.b32.xlu0 %v1594, 96
      %v1647 = vpop.permute.xlu0 %1646
      %1648 = vrot.lane.b32.xlu0 %v1597, 96
      %v1649 = vpop.permute.xlu0 %1648
      %1650 = vrot.lane.b32.xlu0 %v1600, 96
      %v1651 = vpop.permute.xlu0 %1650
      %1652 = vrot.lane.b32.xlu0 %v1603, 96
      %v1653 = vpop.permute.xlu0 %1652
      %1654 = vrot.lane.b32.xlu0 %v1606, 96
      %v1655 = vpop.permute.xlu0 %1654
      %1656 = vrot.lane.b32.xlu0 %v1609, 96
      %v1657 = vpop.permute.xlu0 %1656
      %1658 = vrot.lane.b32.xlu0 %v1612, 96
      %v1659 = vpop.permute.xlu0 %1658
      %1660 = vrot.lane.b32.xlu0 %v1615, 96
      %v1661 = vpop.permute.xlu0 %1660
      %1662 = vrot.lane.b32.xlu0 %v1618, 96
      %v1663 = vpop.permute.xlu0 %1662
      %1664 = vrot.lane.b32.xlu0 %v1621, 96
      %v1665 = vpop.permute.xlu0 %1664
      %1666 = vrot.lane.b32.xlu0 %v1624, 96
      %v1667 = vpop.permute.xlu0 %1666
      %1668 = vrot.lane.b32.xlu0 %v1625, 96
      %v1669 = vpop.permute.xlu0 %1668
      %v1670 = vrot.slane %v1627, 4
      %v1671 = vrot.slane %v1629, 4
      %v1672 = vrot.slane %v1631, 4
      %v1673 = vrot.slane %v1633, 4
      %v1674 = vrot.slane %v1635, 4
      %v1675 = vrot.slane %v1637, 4
      %v1676 = vrot.slane %v1639, 4
      %v1677 = vrot.slane %v1641, 4
      %v1678 = vrot.slane %v1643, 4
      %v1679 = vrot.slane %v1645, 4
      %v1680 = vrot.slane %v1647, 4
      %v1681 = vrot.slane %v1649, 4
      %v1682 = vrot.slane %v1651, 4
      %v1683 = vrot.slane %v1653, 4
      %v1684 = vrot.slane %v1655, 4
      %v1685 = vrot.slane %v1657, 4
      %v1686 = vrot.slane %v1659, 4
      %v1687 = vrot.slane %v1661, 4
      %v1688 = vrot.slane %v1663, 4
      %v1689 = vrot.slane %v1665, 4
      %v1690 = vrot.slane %v1667, 4
      %v1691 = vrot.slane %v1669, 4
      %vm1692 = vcmask 785408
      %v1693 = vsel %vm1692, %v1670, %v1627
      %v1694 = vsel %vm1692, %v1671, %v1629
      %v1695 = vsel %vm1692, %v1672, %v1631
      %v1696 = vsel %vm1692, %v1673, %v1633
      %v1697 = vsel %vm1692, %v1674, %v1635
      %v1698 = vsel %vm1692, %v1675, %v1637
      %v1699 = vsel %vm1692, %v1676, %v1639
      %v1700 = vsel %vm1692, %v1677, %v1641
      %v1701 = vsel %vm1692, %v1678, %v1643
      %v1702 = vsel %vm1692, %v1679, %v1645
      %v1703 = vsel %vm1692, %v1680, %v1647
      %v1704 = vsel %vm1692, %v1681, %v1649
      %v1705 = vsel %vm1692, %v1682, %v1651
      %v1706 = vsel %vm1692, %v1683, %v1653
      %v1707 = vsel %vm1692, %v1684, %v1655
      %v1708 = vsel %vm1692, %v1685, %v1657
      %v1709 = vsel %vm1692, %v1686, %v1659
      %v1710 = vsel %vm1692, %v1687, %v1661
      %v1711 = vsel %vm1692, %v1688, %v1663
      %v1712 = vsel %vm1692, %v1689, %v1665
      %v1713 = vsel %vm1692, %v1690, %v1667
      %v1714 = vsel %vm1692, %v1691, %v1669
      %vm1737 = vcmask 1044227
      %vm1738 = vcmask 261127
      %vm1739 = vmor %vm1738, %vm1737
      %1740 = vst.msk [vmem:[%s305 + $0xc] sm:$0x88] %vm1739, %v1693
      %vm1741 = vcmask 1044224
      %vm1742 = vcmask 261124
      %vm1743 = vmor %vm1742, %vm1741
      %1744 = vst.msk [vmem:[%s305 + $0x18] sm:$0xff] %vm1743, %v1694
      %1745 = vst.msk [vmem:[%s305 + $0x24] sm:$0xff] %vm1743, %v1695
      %1746 = vst.msk [vmem:[%s305 + $0x30] sm:$0xff] %vm1743, %v1696
      %1747 = vst.msk [vmem:[%s305 + $0x3c] sm:$0xff] %vm1743, %v1697
      %1748 = vst.msk [vmem:[%s305 + $0x48] sm:$0xff] %vm1743, %v1698
      %1749 = vst.msk [vmem:[%s305 + $0x54] sm:$0xff] %vm1743, %v1699
      %1750 = vst.msk [vmem:[%s305 + $0x60] sm:$0xff] %vm1743, %v1700
      %1751 = vst.msk [vmem:[%s305 + $0x6c] sm:$0xff] %vm1743, %v1701
      %1752 = vst.msk [vmem:[%s305 + $0x78] sm:$0xff] %vm1743, %v1702
      %1753 = vst.msk [vmem:[%s305 + $0x84] sm:$0xff] %vm1743, %v1703
      %1754 = vst.msk [vmem:[%s305 + $0x90] sm:$0xff] %vm1743, %v1704
      %1755 = vst.msk [vmem:[%s305 + $0x9c] sm:$0xff] %vm1743, %v1705
      %1756 = vst.msk [vmem:[%s305 + $0xa8] sm:$0xff] %vm1743, %v1706
      %1757 = vst.msk [vmem:[%s305 + $0xb4] sm:$0xff] %vm1743, %v1707
      %1758 = vst.msk [vmem:[%s305 + $0xc0] sm:$0xff] %vm1743, %v1708
      %1759 = vst.msk [vmem:[%s305 + $0xcc] sm:$0xff] %vm1743, %v1709
      %1760 = vst.msk [vmem:[%s305 + $0xd8] sm:$0xff] %vm1743, %v1710
      %1761 = vst.msk [vmem:[%s305 + $0xe4] sm:$0xff] %vm1743, %v1711
      %1762 = vst.msk [vmem:[%s305 + $0xf0] sm:$0xff] %vm1743, %v1712
      %1763 = vst.msk [vmem:[%s305 + $0xfc] sm:$0xff] %vm1743, %v1713
      %vm1764 = vcmask 1043200
      %vm1765 = vcmask 260100
      %vm1766 = vmor %vm1765, %vm1764
      %1767 = vst.msk [vmem:[%s305 + $0x108] sm:$0x77] %vm1766, %v1714
      %v1768 = vpack.c.bf16 %v508, %v505
      %s1769 = scalar_lea.vmem %s2, 32
      %v1770 = vld [vmem:[%s1769] sm:$0xf]
      %v1771 = vld [vmem:[%s1769 + $0x4] sm:$0xf]
      %v1772 = vld [vmem:[%s1769 + $0x8] sm:$0xf]
      %v1773 = vld [vmem:[%s1769 + $0xc] sm:$0xf]
      %s1774 = scalar_lea.vmem %s3, 2
      %v1775 = vld [vmem:[%s1774] sm:$0x1]
      %v1777 = vlaneseq
      %v1778 = vshrl.u32 %v1777, 7
      %v1779 = vsub.s32 0, %v1778
      %v1780 = vrot.slane %v1775, %v1779
      %v1786 = vunpack.c.l.b16 %v1770
      %v1787 = vunpack.c.l.b16 %v1771
      %v1788 = vunpack.c.l.b16 %v1772
      %v1789 = vunpack.c.l.b16 %v1773
      %v1790 = vpack.c.b16 %v1787, %v1786
      %v1791 = vpack.c.b16 %v1789, %v1788
      %v1795 = vsel %vm705, %v1768, 0
      %1797 = vmatprep.subr.bf16.mxu0 0
      %1798 = vmatpush1.bf16.msra.mxu0 0
      %1799 = vmatprep.subr.bf16.mxu0 0
      %1800 = vmatpush1.bf16.msra.mxu0 0
      %1801 = vmatprep.subr.bf16.mxu0 0
      %1802 = vmatpush1.bf16.msra.mxu0 0
      %1803 = vmatprep.subr.bf16.mxu0 0
      %1804 = vmatpush1.bf16.msra.mxu0 0
      %1805 = vmatprep.subr.bf16.mxu0 0
      %1806 = vmatpush1.bf16.msra.mxu0 0
      %1807 = vmatprep.subr.bf16.mxu0 0
      %1808 = vmatpush1.bf16.msra.mxu0 0
      %1809 = vmatprep.subr.bf16.mxu0 0
      %1810 = vmatpush1.bf16.msra.mxu0 %v1791
      %1811 = vmatprep.subr.bf16.mxu0 0
      %1812 = vmatpush1.bf16.msra.mxu0 %v1790
      %1813 = vmatprep.subr.bf16.mxu0 0
      %1814 = vmatpush2.bf16.msra.mxu0 0
      %1815 = vmatprep.subr.bf16.mxu0 0
      %1816 = vmatpush2.bf16.msra.mxu0 0
      %1817 = vmatprep.subr.bf16.mxu0 0
      %1818 = vmatpush2.bf16.msra.mxu0 0
      %1819 = vmatprep.subr.bf16.mxu0 0
      %1820 = vmatpush2.bf16.msra.mxu0 0
      %1821 = vmatprep.subr.bf16.mxu0 0
      %1822 = vmatpush2.bf16.msra.mxu0 0
      %1823 = vmatprep.subr.bf16.mxu0 0
      %1824 = vmatpush2.bf16.msra.mxu0 0
      %1825 = vmatprep.subr.bf16.mxu0 0
      %1826 = vmatpush2.bf16.msra.mxu0 0
      %1827 = vmatprep.subr.bf16.mxu0 0
      %1828 = vmatpush2.bf16.msra.mxu0 0
      %1829 = vmatprep.mubr.bf16.mxu0 0
      %1830 = vmatmul.mubr.bf16.gmra.mxu0 %v1795
      %v1831 = vpop.f32.mrf.mxu0
      %v1832 = vadd.f32 %v1780, %v1831
      %v1833 = vpop.f32.mrf.mxu0
      %v1834 = vpop.f32.mrf.mxu0
      %v1835 = vadd.f32 %v1780, %v1834
      %v1836 = vpop.f32.mrf.mxu0
      %1837 = vdwg.mxu0
      %v1838 = vmax.f32 %v1832, 0.0
      %v1839 = vmax.f32 %v1835, 0.0
      %v1840 = vld [vmem:[%s6] sm:$0xf]
      %v1841 = vld [vmem:[%s6 + $0x4] sm:$0xf]
      %v1842 = vld [vmem:[%s6 + $0x8] sm:$0xf]
      %v1843 = vld [vmem:[%s6 + $0xc] sm:$0xf]
      %v1844 = vld [vmem:[%s6 + $0x10] sm:$0xf]
      %v1845 = vld [vmem:[%s6 + $0x14] sm:$0xf]
      %v1846 = vld [vmem:[%s6 + $0x18] sm:$0xf]
      %v1847 = vld [vmem:[%s6 + $0x1c] sm:$0xf]
      %v1848 = vld [vmem:[%s6 + $0x20] sm:$0xf]
      %v1849 = vld [vmem:[%s6 + $0x24] sm:$0xf]
      %v1850 = vld [vmem:[%s6 + $0x28] sm:$0xf]
      %v1851 = vld [vmem:[%s6 + $0x2c] sm:$0xf]
      %v1852 = vld [vmem:[%s6 + $0x30] sm:$0xf]
      %v1853 = vld [vmem:[%s6 + $0x34] sm:$0xf]
      %v1854 = vld [vmem:[%s6 + $0x38] sm:$0xf]
      %v1855 = vld [vmem:[%s6 + $0x3c] sm:$0xf]
      %v1856 = vld [vmem:[%s6 + $0x40] sm:$0xf]
      %v1857 = vld [vmem:[%s6 + $0x44] sm:$0xf]
      %v1858 = vld [vmem:[%s6 + $0x48] sm:$0xf]
      %v1859 = vld [vmem:[%s6 + $0x4c] sm:$0xf]
      %v1860 = vld [vmem:[%s6 + $0x50] sm:$0xf]
      %v1861 = vpack.c.bf16 %v1839, %v1838
      %v1883 = vunpack.c.l.b16 %v1840
      %v1884 = vunpack.c.l.b16 %v1841
      %v1885 = vunpack.c.l.b16 %v1842
      %v1886 = vunpack.c.l.b16 %v1843
      %v1887 = vunpack.c.l.b16 %v1844
      %v1888 = vunpack.c.l.b16 %v1845
      %v1889 = vunpack.c.l.b16 %v1846
      %v1890 = vunpack.c.l.b16 %v1847
      %v1891 = vunpack.c.l.b16 %v1848
      %v1892 = vunpack.c.l.b16 %v1849
      %v1893 = vunpack.c.l.b16 %v1850
      %v1894 = vunpack.c.l.b16 %v1851
      %v1895 = vunpack.c.l.b16 %v1852
      %v1896 = vunpack.c.l.b16 %v1853
      %v1897 = vunpack.c.l.b16 %v1854
      %v1898 = vunpack.c.l.b16 %v1855
      %v1899 = vunpack.c.l.b16 %v1856
      %v1900 = vunpack.c.l.b16 %v1857
      %v1901 = vunpack.c.l.b16 %v1858
      %v1902 = vunpack.c.l.b16 %v1859
      %v1903 = vunpack.c.l.b16 %v1860
      %v1904 = vpack.c.b16 %v1884, %v1883
      %v1905 = vpack.c.b16 %v1886, %v1885
      %v1906 = vpack.c.b16 %v1888, %v1887
      %v1907 = vpack.c.b16 %v1890, %v1889
      %v1908 = vpack.c.b16 %v1892, %v1891
      %v1909 = vpack.c.b16 %v1894, %v1893
      %v1910 = vpack.c.b16 %v1896, %v1895
      %v1911 = vpack.c.b16 %v1898, %v1897
      %v1912 = vpack.c.b16 %v1900, %v1899
      %v1913 = vpack.c.b16 %v1902, %v1901
      %v1914 = vpack.c.b16 %v1903, %v1903
      %vm1915 = vcmask 130048
      %v1917 = vsel %vm1915, %v1904, 0
      %v1920 = vsel %vm1915, %v1905, 0
      %v1923 = vsel %vm1915, %v1906, 0
      %v1926 = vsel %vm1915, %v1907, 0
      %v1929 = vsel %vm1915, %v1908, 0
      %v1932 = vsel %vm1915, %v1909, 0
      %v1935 = vsel %vm1915, %v1910, 0
      %v1938 = vsel %vm1915, %v1911, 0
      %v1941 = vsel %vm1915, %v1912, 0
      %v1944 = vsel %vm1915, %v1913, 0
      %v1947 = vsel %vm1915, %v1914, 0
      %1949 = vmatprep.subr.bf16.mxu0 0
      %1950 = vmatpush1.bf16.msra.mxu0 0
      %1951 = vmatprep.subr.bf16.mxu0 0
      %1952 = vmatpush1.bf16.msra.mxu0 0
      %1953 = vmatprep.subr.bf16.mxu0 0
      %1954 = vmatpush1.bf16.msra.mxu0 0
      %1955 = vmatprep.subr.bf16.mxu0 0
      %1956 = vmatpush1.bf16.msra.mxu0 0
      %1957 = vmatprep.subr.bf16.mxu0 0
      %1958 = vmatpush1.bf16.msra.mxu0 0
      %1959 = vmatprep.subr.bf16.mxu0 0
      %1960 = vmatpush1.bf16.msra.mxu0 0
      %1961 = vmatprep.subr.bf16.mxu0 0
      %1962 = vmatpush1.bf16.msra.mxu0 0
      %1963 = vmatprep.subr.bf16.mxu0 0
      %1964 = vmatpush1.bf16.msra.mxu0 %v1861
      %1965 = vmatprep.subr.bf16.mxu0 0
      %1966 = vmatpush2.bf16.msra.mxu0 0
      %1967 = vmatprep.subr.bf16.mxu0 0
      %1968 = vmatpush2.bf16.msra.mxu0 0
      %1969 = vmatprep.subr.bf16.mxu0 0
      %1970 = vmatpush2.bf16.msra.mxu0 0
      %1971 = vmatprep.subr.bf16.mxu0 0
      %1972 = vmatpush2.bf16.msra.mxu0 0
      %1973 = vmatprep.subr.bf16.mxu0 0
      %1974 = vmatpush2.bf16.msra.mxu0 0
      %1975 = vmatprep.subr.bf16.mxu0 0
      %1976 = vmatpush2.bf16.msra.mxu0 0
      %1977 = vmatprep.subr.bf16.mxu0 0
      %1978 = vmatpush2.bf16.msra.mxu0 0
      %1979 = vmatprep.subr.bf16.mxu0 0
      %1980 = vmatpush2.bf16.msra.mxu0 0
      %1981 = vmatprep.mubr.bf16.mxu0 0
      %1982 = vmatmul.mubr.bf16.gmra.mxu0 %v1917
      %v1983 = vpop.f32.mrf.mxu0
      %v1984 = vadd.f32 0.0, %v1983
      %v1985 = vpop.f32.mrf.mxu0
      %v1986 = vpop.f32.mrf.mxu0
      %v1987 = vadd.f32 0.0, %v1986
      %v1988 = vpop.f32.mrf.mxu0
      %1989 = vmatprep.mubr.bf16.mxu0 0
      %1990 = vmatmul.mubr.bf16.gmra.mxu0 %v1920
      %v1991 = vpop.f32.mrf.mxu0
      %v1992 = vadd.f32 0.0, %v1991
      %v1993 = vpop.f32.mrf.mxu0
      %v1994 = vpop.f32.mrf.mxu0
      %v1995 = vadd.f32 0.0, %v1994
      %v1996 = vpop.f32.mrf.mxu0
      %1997 = vmatprep.mubr.bf16.mxu0 0
      %1998 = vmatmul.mubr.bf16.gmra.mxu0 %v1923
      %v1999 = vpop.f32.mrf.mxu0
      %v2000 = vadd.f32 0.0, %v1999
      %v2001 = vpop.f32.mrf.mxu0
      %v2002 = vpop.f32.mrf.mxu0
      %v2003 = vadd.f32 0.0, %v2002
      %v2004 = vpop.f32.mrf.mxu0
      %2005 = vmatprep.mubr.bf16.mxu0 0
      %2006 = vmatmul.mubr.bf16.gmra.mxu0 %v1926
      %v2007 = vpop.f32.mrf.mxu0
      %v2008 = vadd.f32 0.0, %v2007
      %v2009 = vpop.f32.mrf.mxu0
      %v2010 = vpop.f32.mrf.mxu0
      %v2011 = vadd.f32 0.0, %v2010
      %v2012 = vpop.f32.mrf.mxu0
      %2013 = vmatprep.mubr.bf16.mxu0 0
      %2014 = vmatmul.mubr.bf16.gmra.mxu0 %v1929
      %v2015 = vpop.f32.mrf.mxu0
      %v2016 = vadd.f32 0.0, %v2015
      %v2017 = vpop.f32.mrf.mxu0
      %v2018 = vpop.f32.mrf.mxu0
      %v2019 = vadd.f32 0.0, %v2018
      %v2020 = vpop.f32.mrf.mxu0
      %2021 = vmatprep.mubr.bf16.mxu0 0
      %2022 = vmatmul.mubr.bf16.gmra.mxu0 %v1932
      %v2023 = vpop.f32.mrf.mxu0
      %v2024 = vadd.f32 0.0, %v2023
      %v2025 = vpop.f32.mrf.mxu0
      %v2026 = vpop.f32.mrf.mxu0
      %v2027 = vadd.f32 0.0, %v2026
      %v2028 = vpop.f32.mrf.mxu0
      %2029 = vmatprep.mubr.bf16.mxu0 0
      %2030 = vmatmul.mubr.bf16.gmra.mxu0 %v1935
      %v2031 = vpop.f32.mrf.mxu0
      %v2032 = vadd.f32 0.0, %v2031
      %v2033 = vpop.f32.mrf.mxu0
      %v2034 = vpop.f32.mrf.mxu0
      %v2035 = vadd.f32 0.0, %v2034
      %v2036 = vpop.f32.mrf.mxu0
      %2037 = vmatprep.mubr.bf16.mxu0 0
      %2038 = vmatmul.mubr.bf16.gmra.mxu0 %v1938
      %v2039 = vpop.f32.mrf.mxu0
      %v2040 = vadd.f32 0.0, %v2039
      %v2041 = vpop.f32.mrf.mxu0
      %v2042 = vpop.f32.mrf.mxu0
      %v2043 = vadd.f32 0.0, %v2042
      %v2044 = vpop.f32.mrf.mxu0
      %2045 = vmatprep.mubr.bf16.mxu0 0
      %2046 = vmatmul.mubr.bf16.gmra.mxu0 %v1941
      %v2047 = vpop.f32.mrf.mxu0
      %v2048 = vadd.f32 0.0, %v2047
      %v2049 = vpop.f32.mrf.mxu0
      %v2050 = vpop.f32.mrf.mxu0
      %v2051 = vadd.f32 0.0, %v2050
      %v2052 = vpop.f32.mrf.mxu0
      %2053 = vmatprep.mubr.bf16.mxu0 0
      %2054 = vmatmul.mubr.bf16.gmra.mxu0 %v1944
      %v2055 = vpop.f32.mrf.mxu0
      %v2056 = vadd.f32 0.0, %v2055
      %v2057 = vpop.f32.mrf.mxu0
      %v2058 = vpop.f32.mrf.mxu0
      %v2059 = vadd.f32 0.0, %v2058
      %v2060 = vpop.f32.mrf.mxu0
      %2061 = vmatprep.mubr.bf16.mxu0 0
      %2062 = vmatmul.mubr.bf16.gmra.mxu0 %v1947
      %v2063 = vpop.f32.mrf.mxu0
      %v2064 = vadd.f32 0.0, %v2063
      %v2065 = vpop.f32.mrf.mxu0
      %v2066 = vpop.f32.mrf.mxu0
      %v2067 = vpop.f32.mrf.mxu0
      %2068 = vdwg.mxu0
      %v2069 = vpack.c.bf16 %v1987, %v1984
      %v2070 = vpack.c.bf16 %v1995, %v1992
      %v2071 = vpack.c.bf16 %v2003, %v2000
      %v2072 = vpack.c.bf16 %v2011, %v2008
      %v2073 = vpack.c.bf16 %v2019, %v2016
      %v2074 = vpack.c.bf16 %v2027, %v2024
      %v2075 = vpack.c.bf16 %v2035, %v2032
      %v2076 = vpack.c.bf16 %v2043, %v2040
      %v2077 = vpack.c.bf16 %v2051, %v2048
      %v2078 = vpack.c.bf16 %v2059, %v2056
      %v2079 = vpack.c.bf16 %v2064, %v2064
      %v2091 = vunpack.c.l.b16 %v2069
      %v2092 = vunpack.c.h.b16 %v2069
      %v2093 = vunpack.c.l.b16 %v2070
      %v2094 = vunpack.c.h.b16 %v2070
      %v2095 = vunpack.c.l.b16 %v2071
      %v2096 = vunpack.c.h.b16 %v2071
      %v2097 = vunpack.c.l.b16 %v2072
      %v2098 = vunpack.c.h.b16 %v2072
      %v2099 = vunpack.c.l.b16 %v2073
      %v2100 = vunpack.c.h.b16 %v2073
      %v2101 = vunpack.c.l.b16 %v2074
      %v2102 = vunpack.c.h.b16 %v2074
      %v2103 = vunpack.c.l.b16 %v2075
      %v2104 = vunpack.c.h.b16 %v2075
      %v2105 = vunpack.c.l.b16 %v2076
      %v2106 = vunpack.c.h.b16 %v2076
      %v2107 = vunpack.c.l.b16 %v2077
      %v2108 = vunpack.c.h.b16 %v2077
      %v2109 = vunpack.c.l.b16 %v2078
      %v2110 = vunpack.c.h.b16 %v2078
      %v2111 = vunpack.c.l.b16 %v2079
      %v2112 = vpack.c.b16 %v2091, %v2091
      %v2113 = vpack.c.b16 %v2092, %v2092
      %v2114 = vpack.c.b16 %v2093, %v2093
      %v2115 = vpack.c.b16 %v2094, %v2094
      %v2116 = vpack.c.b16 %v2095, %v2095
      %v2117 = vpack.c.b16 %v2096, %v2096
      %v2118 = vpack.c.b16 %v2097, %v2097
      %v2119 = vpack.c.b16 %v2098, %v2098
      %v2120 = vpack.c.b16 %v2099, %v2099
      %v2121 = vpack.c.b16 %v2100, %v2100
      %v2122 = vpack.c.b16 %v2101, %v2101
      %v2123 = vpack.c.b16 %v2102, %v2102
      %v2124 = vpack.c.b16 %v2103, %v2103
      %v2125 = vpack.c.b16 %v2104, %v2104
      %v2126 = vpack.c.b16 %v2105, %v2105
      %v2127 = vpack.c.b16 %v2106, %v2106
      %v2128 = vpack.c.b16 %v2107, %v2107
      %v2129 = vpack.c.b16 %v2108, %v2108
      %v2130 = vpack.c.b16 %v2109, %v2109
      %v2131 = vpack.c.b16 %v2110, %v2110
      %v2132 = vpack.c.b16 %v2111, %v2111
      %v2133 = vrot.slane %v2112, 5
      %v2134 = vrot.slane %v2133, 4
      %v2135 = vrot.slane %v2113, 5
      %v2136 = vsel %vm571, %v2134, %v2135
      %v2137 = vrot.slane %v2135, 4
      %v2138 = vrot.slane %v2114, 5
      %v2139 = vsel %vm571, %v2137, %v2138
      %v2140 = vrot.slane %v2138, 4
      %v2141 = vrot.slane %v2115, 5
      %v2142 = vsel %vm571, %v2140, %v2141
      %v2143 = vrot.slane %v2141, 4
      %v2144 = vrot.slane %v2116, 5
      %v2145 = vsel %vm571, %v2143, %v2144
      %v2146 = vrot.slane %v2144, 4
      %v2147 = vrot.slane %v2117, 5
      %v2148 = vsel %vm571, %v2146, %v2147
      %v2149 = vrot.slane %v2147, 4
      %v2150 = vrot.slane %v2118, 5
      %v2151 = vsel %vm571, %v2149, %v2150
      %v2152 = vrot.slane %v2150, 4
      %v2153 = vrot.slane %v2119, 5
      %v2154 = vsel %vm571, %v2152, %v2153
      %v2155 = vrot.slane %v2153, 4
      %v2156 = vrot.slane %v2120, 5
      %v2157 = vsel %vm571, %v2155, %v2156
      %v2158 = vrot.slane %v2156, 4
      %v2159 = vrot.slane %v2121, 5
      %v2160 = vsel %vm571, %v2158, %v2159
      %v2161 = vrot.slane %v2159, 4
      %v2162 = vrot.slane %v2122, 5
      %v2163 = vsel %vm571, %v2161, %v2162
      %v2164 = vrot.slane %v2162, 4
      %v2165 = vrot.slane %v2123, 5
      %v2166 = vsel %vm571, %v2164, %v2165
      %v2167 = vrot.slane %v2165, 4
      %v2168 = vrot.slane %v2124, 5
      %v2169 = vsel %vm571, %v2167, %v2168
      %v2170 = vrot.slane %v2168, 4
      %v2171 = vrot.slane %v2125, 5
      %v2172 = vsel %vm571, %v2170, %v2171
      %v2173 = vrot.slane %v2171, 4
      %v2174 = vrot.slane %v2126, 5
      %v2175 = vsel %vm571, %v2173, %v2174
      %v2176 = vrot.slane %v2174, 4
      %v2177 = vrot.slane %v2127, 5
      %v2178 = vsel %vm571, %v2176, %v2177
      %v2179 = vrot.slane %v2177, 4
      %v2180 = vrot.slane %v2128, 5
      %v2181 = vsel %vm571, %v2179, %v2180
      %v2182 = vrot.slane %v2180, 4
      %v2183 = vrot.slane %v2129, 5
      %v2184 = vsel %vm571, %v2182, %v2183
      %v2185 = vrot.slane %v2183, 4
      %v2186 = vrot.slane %v2130, 5
      %v2187 = vsel %vm571, %v2185, %v2186
      %v2188 = vrot.slane %v2186, 4
      %v2189 = vrot.slane %v2131, 5
      %v2190 = vsel %vm571, %v2188, %v2189
      %v2191 = vrot.slane %v2189, 4
      %v2192 = vrot.slane %v2132, 5
      %v2193 = vsel %vm571, %v2191, %v2192
      %v2194 = vrot.slane %v2192, 4
      %2195 = vrot.lane.b32.xlu0 %v2133, 32
      %v2196 = vpop.permute.xlu0 %2195
      %2197 = vrot.lane.b32.xlu0 %v2136, 32
      %v2198 = vpop.permute.xlu0 %2197
      %2199 = vrot.lane.b32.xlu0 %v2139, 32
      %v2200 = vpop.permute.xlu0 %2199
      %2201 = vrot.lane.b32.xlu0 %v2142, 32
      %v2202 = vpop.permute.xlu0 %2201
      %2203 = vrot.lane.b32.xlu0 %v2145, 32
      %v2204 = vpop.permute.xlu0 %2203
      %2205 = vrot.lane.b32.xlu0 %v2148, 32
      %v2206 = vpop.permute.xlu0 %2205
      %2207 = vrot.lane.b32.xlu0 %v2151, 32
      %v2208 = vpop.permute.xlu0 %2207
      %2209 = vrot.lane.b32.xlu0 %v2154, 32
      %v2210 = vpop.permute.xlu0 %2209
      %2211 = vrot.lane.b32.xlu0 %v2157, 32
      %v2212 = vpop.permute.xlu0 %2211
      %2213 = vrot.lane.b32.xlu0 %v2160, 32
      %v2214 = vpop.permute.xlu0 %2213
      %2215 = vrot.lane.b32.xlu0 %v2163, 32
      %v2216 = vpop.permute.xlu0 %2215
      %2217 = vrot.lane.b32.xlu0 %v2166, 32
      %v2218 = vpop.permute.xlu0 %2217
      %2219 = vrot.lane.b32.xlu0 %v2169, 32
      %v2220 = vpop.permute.xlu0 %2219
      %2221 = vrot.lane.b32.xlu0 %v2172, 32
      %v2222 = vpop.permute.xlu0 %2221
      %2223 = vrot.lane.b32.xlu0 %v2175, 32
      %v2224 = vpop.permute.xlu0 %2223
      %2225 = vrot.lane.b32.xlu0 %v2178, 32
      %v2226 = vpop.permute.xlu0 %2225
      %2227 = vrot.lane.b32.xlu0 %v2181, 32
      %v2228 = vpop.permute.xlu0 %2227
      %2229 = vrot.lane.b32.xlu0 %v2184, 32
      %v2230 = vpop.permute.xlu0 %2229
      %2231 = vrot.lane.b32.xlu0 %v2187, 32
      %v2232 = vpop.permute.xlu0 %2231
      %2233 = vrot.lane.b32.xlu0 %v2190, 32
      %v2234 = vpop.permute.xlu0 %2233
      %2235 = vrot.lane.b32.xlu0 %v2193, 32
      %v2236 = vpop.permute.xlu0 %2235
      %2237 = vrot.lane.b32.xlu0 %v2194, 32
      %v2238 = vpop.permute.xlu0 %2237
      %2261 = vst.msk [vmem:[%s305 + $0x10] sm:$0x8] %vm1174, %v2196
      %2262 = vst.msk [vmem:[%s305 + $0x1c] sm:$0xf] %vm1176, %v2198
      %2263 = vst.msk [vmem:[%s305 + $0x28] sm:$0xf] %vm1176, %v2200
      %2264 = vst.msk [vmem:[%s305 + $0x34] sm:$0xf] %vm1176, %v2202
      %2265 = vst.msk [vmem:[%s305 + $0x40] sm:$0xf] %vm1176, %v2204
      %2266 = vst.msk [vmem:[%s305 + $0x4c] sm:$0xf] %vm1176, %v2206
      %2267 = vst.msk [vmem:[%s305 + $0x58] sm:$0xf] %vm1176, %v2208
      %2268 = vst.msk [vmem:[%s305 + $0x64] sm:$0xf] %vm1176, %v2210
      %2269 = vst.msk [vmem:[%s305 + $0x70] sm:$0xf] %vm1176, %v2212
      %2270 = vst.msk [vmem:[%s305 + $0x7c] sm:$0xf] %vm1176, %v2214
      %2271 = vst.msk [vmem:[%s305 + $0x88] sm:$0xf] %vm1176, %v2216
      %2272 = vst.msk [vmem:[%s305 + $0x94] sm:$0xf] %vm1176, %v2218
      %2273 = vst.msk [vmem:[%s305 + $0xa0] sm:$0xf] %vm1176, %v2220
      %2274 = vst.msk [vmem:[%s305 + $0xac] sm:$0xf] %vm1176, %v2222
      %2275 = vst.msk [vmem:[%s305 + $0xb8] sm:$0xf] %vm1176, %v2224
      %2276 = vst.msk [vmem:[%s305 + $0xc4] sm:$0xf] %vm1176, %v2226
      %2277 = vst.msk [vmem:[%s305 + $0xd0] sm:$0xf] %vm1176, %v2228
      %2278 = vst.msk [vmem:[%s305 + $0xdc] sm:$0xf] %vm1176, %v2230
      %2279 = vst.msk [vmem:[%s305 + $0xe8] sm:$0xf] %vm1176, %v2232
      %2280 = vst.msk [vmem:[%s305 + $0xf4] sm:$0xf] %vm1176, %v2234
      %2281 = vst.msk [vmem:[%s305 + $0x100] sm:$0xf] %vm1176, %v2236
      %2282 = vst.msk [vmem:[%s305 + $0x10c] sm:$0x7] %vm1197, %v2238
      %v2283 = vpack.c.bf16 %v516, %v513
      %v2284 = vpack.c.bf16 %v524, %v521
      %v2285 = vpack.c.bf16 %v529, %v529
      %s2286 = scalar_lea.vmem %s2, 48
      %v2287 = vld [vmem:[%s2286] sm:$0xf]
      %v2288 = vld [vmem:[%s2286 + $0x4] sm:$0xf]
      %v2289 = vld [vmem:[%s2286 + $0x8] sm:$0xf]
      %v2290 = vld [vmem:[%s2286 + $0xc] sm:$0xf]
      %s2291 = scalar_lea.vmem %s3, 3
      %v2292 = vld [vmem:[%s2291] sm:$0x1]
      %v2294 = vlaneseq
      %v2295 = vshrl.u32 %v2294, 7
      %v2296 = vsub.s32 0, %v2295
      %v2297 = vrot.slane %v2292, %v2296
      %v2303 = vunpack.c.l.b16 %v2287
      %v2304 = vunpack.c.l.b16 %v2288
      %v2305 = vunpack.c.l.b16 %v2289
      %v2306 = vunpack.c.l.b16 %v2290
      %v2307 = vpack.c.b16 %v2304, %v2303
      %v2308 = vpack.c.b16 %v2306, %v2305
      %v2312 = vsel %vm705, %v2283, 0
      %v2315 = vsel %vm705, %v2284, 0
      %v2318 = vsel %vm705, %v2285, 0
      %2320 = vmatprep.subr.bf16.mxu0 0
      %2321 = vmatpush1.bf16.msra.mxu0 0
      %2322 = vmatprep.subr.bf16.mxu0 0
      %2323 = vmatpush1.bf16.msra.mxu0 0
      %2324 = vmatprep.subr.bf16.mxu0 0
      %2325 = vmatpush1.bf16.msra.mxu0 0
      %2326 = vmatprep.subr.bf16.mxu0 0
      %2327 = vmatpush1.bf16.msra.mxu0 0
      %2328 = vmatprep.subr.bf16.mxu0 0
      %2329 = vmatpush1.bf16.msra.mxu0 0
      %2330 = vmatprep.subr.bf16.mxu0 0
      %2331 = vmatpush1.bf16.msra.mxu0 0
      %2332 = vmatprep.subr.bf16.mxu0 0
      %2333 = vmatpush1.bf16.msra.mxu0 %v2308
      %2334 = vmatprep.subr.bf16.mxu0 0
      %2335 = vmatpush1.bf16.msra.mxu0 %v2307
      %2336 = vmatprep.subr.bf16.mxu0 0
      %2337 = vmatpush2.bf16.msra.mxu0 0
      %2338 = vmatprep.subr.bf16.mxu0 0
      %2339 = vmatpush2.bf16.msra.mxu0 0
      %2340 = vmatprep.subr.bf16.mxu0 0
      %2341 = vmatpush2.bf16.msra.mxu0 0
      %2342 = vmatprep.subr.bf16.mxu0 0
      %2343 = vmatpush2.bf16.msra.mxu0 0
      %2344 = vmatprep.subr.bf16.mxu0 0
      %2345 = vmatpush2.bf16.msra.mxu0 0
      %2346 = vmatprep.subr.bf16.mxu0 0
      %2347 = vmatpush2.bf16.msra.mxu0 0
      %2348 = vmatprep.subr.bf16.mxu0 0
      %2349 = vmatpush2.bf16.msra.mxu0 0
      %2350 = vmatprep.subr.bf16.mxu0 0
      %2351 = vmatpush2.bf16.msra.mxu0 0
      %2352 = vmatprep.mubr.bf16.mxu0 0
      %2353 = vmatmul.mubr.bf16.gmra.mxu0 %v2312
      %v2354 = vpop.f32.mrf.mxu0
      %v2355 = vadd.f32 %v2297, %v2354
      %v2356 = vpop.f32.mrf.mxu0
      %v2357 = vpop.f32.mrf.mxu0
      %v2358 = vadd.f32 %v2297, %v2357
      %v2359 = vpop.f32.mrf.mxu0
      %2360 = vmatprep.mubr.bf16.mxu0 0
      %2361 = vmatmul.mubr.bf16.gmra.mxu0 %v2315
      %v2362 = vpop.f32.mrf.mxu0
      %v2363 = vadd.f32 %v2297, %v2362
      %v2364 = vpop.f32.mrf.mxu0
      %v2365 = vpop.f32.mrf.mxu0
      %v2366 = vadd.f32 %v2297, %v2365
      %v2367 = vpop.f32.mrf.mxu0
      %2368 = vmatprep.mubr.bf16.mxu0 0
      %2369 = vmatmul.mubr.bf16.gmra.mxu0 %v2318
      %v2370 = vpop.f32.mrf.mxu0
      %v2371 = vadd.f32 %v2297, %v2370
      %v2372 = vpop.f32.mrf.mxu0
      %v2373 = vpop.f32.mrf.mxu0
      %v2374 = vpop.f32.mrf.mxu0
      %2375 = vdwg.mxu0
      %v2376 = vmax.f32 %v2355, 0.0
      %v2377 = vmax.f32 %v2358, 0.0
      %v2378 = vmax.f32 %v2363, 0.0
      %v2379 = vmax.f32 %v2366, 0.0
      %v2380 = vmax.f32 %v2371, 0.0
      %v2381 = vld [vmem:[%s7] sm:$0xf]
      %v2382 = vld [vmem:[%s7 + $0x4] sm:$0xf]
      %v2383 = vld [vmem:[%s7 + $0x8] sm:$0xf]
      %v2384 = vld [vmem:[%s7 + $0xc] sm:$0xf]
      %v2385 = vld [vmem:[%s7 + $0x10] sm:$0xf]
      %v2386 = vld [vmem:[%s7 + $0x14] sm:$0xf]
      %v2387 = vld [vmem:[%s7 + $0x18] sm:$0xf]
      %v2388 = vld [vmem:[%s7 + $0x1c] sm:$0xf]
      %v2389 = vld [vmem:[%s7 + $0x20] sm:$0xf]
      %v2390 = vld [vmem:[%s7 + $0x24] sm:$0xf]
      %v2391 = vld [vmem:[%s7 + $0x28] sm:$0xf]
      %v2392 = vld [vmem:[%s7 + $0x2c] sm:$0xf]
      %v2393 = vld [vmem:[%s7 + $0x30] sm:$0xf]
      %v2394 = vld [vmem:[%s7 + $0x34] sm:$0xf]
      %v2395 = vld [vmem:[%s7 + $0x38] sm:$0xf]
      %v2396 = vld [vmem:[%s7 + $0x3c] sm:$0xf]
      %v2397 = vld [vmem:[%s7 + $0x40] sm:$0xf]
      %v2398 = vld [vmem:[%s7 + $0x44] sm:$0xf]
      %v2399 = vld [vmem:[%s7 + $0x48] sm:$0xf]
      %v2400 = vld [vmem:[%s7 + $0x4c] sm:$0xf]
      %v2401 = vld [vmem:[%s7 + $0x50] sm:$0xf]
      %v2402 = vpack.c.bf16 %v2377, %v2376
      %v2403 = vpack.c.bf16 %v2379, %v2378
      %v2404 = vpack.c.bf16 %v2380, %v2380
      %v2426 = vunpack.c.l.b16 %v2381
      %v2427 = vunpack.c.l.b16 %v2382
      %v2428 = vunpack.c.l.b16 %v2383
      %v2429 = vunpack.c.l.b16 %v2384
      %v2430 = vunpack.c.l.b16 %v2385
      %v2431 = vunpack.c.l.b16 %v2386
      %v2432 = vunpack.c.l.b16 %v2387
      %v2433 = vunpack.c.l.b16 %v2388
      %v2434 = vunpack.c.l.b16 %v2389
      %v2435 = vunpack.c.l.b16 %v2390
      %v2436 = vunpack.c.l.b16 %v2391
      %v2437 = vunpack.c.l.b16 %v2392
      %v2438 = vunpack.c.l.b16 %v2393
      %v2439 = vunpack.c.l.b16 %v2394
      %v2440 = vunpack.c.l.b16 %v2395
      %v2441 = vunpack.c.l.b16 %v2396
      %v2442 = vunpack.c.l.b16 %v2397
      %v2443 = vunpack.c.l.b16 %v2398
      %v2444 = vunpack.c.l.b16 %v2399
      %v2445 = vunpack.c.l.b16 %v2400
      %v2446 = vunpack.c.l.b16 %v2401
      %v2447 = vpack.c.b16 %v2427, %v2426
      %v2448 = vpack.c.b16 %v2429, %v2428
      %v2449 = vpack.c.b16 %v2431, %v2430
      %v2450 = vpack.c.b16 %v2433, %v2432
      %v2451 = vpack.c.b16 %v2435, %v2434
      %v2452 = vpack.c.b16 %v2437, %v2436
      %v2453 = vpack.c.b16 %v2439, %v2438
      %v2454 = vpack.c.b16 %v2441, %v2440
      %v2455 = vpack.c.b16 %v2443, %v2442
      %v2456 = vpack.c.b16 %v2445, %v2444
      %v2457 = vpack.c.b16 %v2446, %v2446
      %v2459 = vsel %vm442, %v2447, 0
      %v2462 = vsel %vm442, %v2448, 0
      %v2465 = vsel %vm442, %v2449, 0
      %v2468 = vsel %vm442, %v2450, 0
      %v2471 = vsel %vm442, %v2451, 0
      %v2474 = vsel %vm442, %v2452, 0
      %v2477 = vsel %vm442, %v2453, 0
      %v2480 = vsel %vm442, %v2454, 0
      %v2483 = vsel %vm442, %v2455, 0
      %v2486 = vsel %vm442, %v2456, 0
      %v2489 = vsel %vm442, %v2457, 0
      %v2492 = vsel %vm458, %v2404, 0
      %2494 = vmatprep.subr.bf16.mxu0 0
      %2495 = vmatpush1.bf16.msra.mxu0 0
      %2496 = vmatprep.subr.bf16.mxu0 0
      %2497 = vmatpush1.bf16.msra.mxu0 0
      %2498 = vmatprep.subr.bf16.mxu0 0
      %2499 = vmatpush1.bf16.msra.mxu0 0
      %2500 = vmatprep.subr.bf16.mxu0 0
      %2501 = vmatpush1.bf16.msra.mxu0 0
      %2502 = vmatprep.subr.bf16.mxu0 0
      %2503 = vmatpush1.bf16.msra.mxu0 0
      %2504 = vmatprep.subr.bf16.mxu0 0
      %2505 = vmatpush1.bf16.msra.mxu0 %v2492
      %2506 = vmatprep.subr.bf16.mxu0 0
      %2507 = vmatpush1.bf16.msra.mxu0 %v2403
      %2508 = vmatprep.subr.bf16.mxu0 0
      %2509 = vmatpush1.bf16.msra.mxu0 %v2402
      %2510 = vmatprep.subr.bf16.mxu0 0
      %2511 = vmatpush2.bf16.msra.mxu0 0
      %2512 = vmatprep.subr.bf16.mxu0 0
      %2513 = vmatpush2.bf16.msra.mxu0 0
      %2514 = vmatprep.subr.bf16.mxu0 0
      %2515 = vmatpush2.bf16.msra.mxu0 0
      %2516 = vmatprep.subr.bf16.mxu0 0
      %2517 = vmatpush2.bf16.msra.mxu0 0
      %2518 = vmatprep.subr.bf16.mxu0 0
      %2519 = vmatpush2.bf16.msra.mxu0 0
      %2520 = vmatprep.subr.bf16.mxu0 0
      %2521 = vmatpush2.bf16.msra.mxu0 0
      %2522 = vmatprep.subr.bf16.mxu0 0
      %2523 = vmatpush2.bf16.msra.mxu0 0
      %2524 = vmatprep.subr.bf16.mxu0 0
      %2525 = vmatpush2.bf16.msra.mxu0 0
      %2526 = vmatprep.mubr.bf16.mxu0 0
      %2527 = vmatmul.mubr.bf16.gmra.mxu0 %v2459
      %v2528 = vpop.f32.mrf.mxu0
      %v2529 = vadd.f32 0.0, %v2528
      %v2530 = vpop.f32.mrf.mxu0
      %v2531 = vpop.f32.mrf.mxu0
      %v2532 = vadd.f32 0.0, %v2531
      %v2533 = vpop.f32.mrf.mxu0
      %2534 = vmatprep.mubr.bf16.mxu0 0
      %2535 = vmatmul.mubr.bf16.gmra.mxu0 %v2462
      %v2536 = vpop.f32.mrf.mxu0
      %v2537 = vadd.f32 0.0, %v2536
      %v2538 = vpop.f32.mrf.mxu0
      %v2539 = vpop.f32.mrf.mxu0
      %v2540 = vadd.f32 0.0, %v2539
      %v2541 = vpop.f32.mrf.mxu0
      %2542 = vmatprep.mubr.bf16.mxu0 0
      %2543 = vmatmul.mubr.bf16.gmra.mxu0 %v2465
      %v2544 = vpop.f32.mrf.mxu0
      %v2545 = vadd.f32 0.0, %v2544
      %v2546 = vpop.f32.mrf.mxu0
      %v2547 = vpop.f32.mrf.mxu0
      %v2548 = vadd.f32 0.0, %v2547
      %v2549 = vpop.f32.mrf.mxu0
      %2550 = vmatprep.mubr.bf16.mxu0 0
      %2551 = vmatmul.mubr.bf16.gmra.mxu0 %v2468
      %v2552 = vpop.f32.mrf.mxu0
      %v2553 = vadd.f32 0.0, %v2552
      %v2554 = vpop.f32.mrf.mxu0
      %v2555 = vpop.f32.mrf.mxu0
      %v2556 = vadd.f32 0.0, %v2555
      %v2557 = vpop.f32.mrf.mxu0
      %2558 = vmatprep.mubr.bf16.mxu0 0
      %2559 = vmatmul.mubr.bf16.gmra.mxu0 %v2471
      %v2560 = vpop.f32.mrf.mxu0
      %v2561 = vadd.f32 0.0, %v2560
      %v2562 = vpop.f32.mrf.mxu0
      %v2563 = vpop.f32.mrf.mxu0
      %v2564 = vadd.f32 0.0, %v2563
      %v2565 = vpop.f32.mrf.mxu0
      %2566 = vmatprep.mubr.bf16.mxu0 0
      %2567 = vmatmul.mubr.bf16.gmra.mxu0 %v2474
      %v2568 = vpop.f32.mrf.mxu0
      %v2569 = vadd.f32 0.0, %v2568
      %v2570 = vpop.f32.mrf.mxu0
      %v2571 = vpop.f32.mrf.mxu0
      %v2572 = vadd.f32 0.0, %v2571
      %v2573 = vpop.f32.mrf.mxu0
      %2574 = vmatprep.mubr.bf16.mxu0 0
      %2575 = vmatmul.mubr.bf16.gmra.mxu0 %v2477
      %v2576 = vpop.f32.mrf.mxu0
      %v2577 = vadd.f32 0.0, %v2576
      %v2578 = vpop.f32.mrf.mxu0
      %v2579 = vpop.f32.mrf.mxu0
      %v2580 = vadd.f32 0.0, %v2579
      %v2581 = vpop.f32.mrf.mxu0
      %2582 = vmatprep.mubr.bf16.mxu0 0
      %2583 = vmatmul.mubr.bf16.gmra.mxu0 %v2480
      %v2584 = vpop.f32.mrf.mxu0
      %v2585 = vadd.f32 0.0, %v2584
      %v2586 = vpop.f32.mrf.mxu0
      %v2587 = vpop.f32.mrf.mxu0
      %v2588 = vadd.f32 0.0, %v2587
      %v2589 = vpop.f32.mrf.mxu0
      %2590 = vmatprep.mubr.bf16.mxu0 0
      %2591 = vmatmul.mubr.bf16.gmra.mxu0 %v2483
      %v2592 = vpop.f32.mrf.mxu0
      %v2593 = vadd.f32 0.0, %v2592
      %v2594 = vpop.f32.mrf.mxu0
      %v2595 = vpop.f32.mrf.mxu0
      %v2596 = vadd.f32 0.0, %v2595
      %v2597 = vpop.f32.mrf.mxu0
      %2598 = vmatprep.mubr.bf16.mxu0 0
      %2599 = vmatmul.mubr.bf16.gmra.mxu0 %v2486
      %v2600 = vpop.f32.mrf.mxu0
      %v2601 = vadd.f32 0.0, %v2600
      %v2602 = vpop.f32.mrf.mxu0
      %v2603 = vpop.f32.mrf.mxu0
      %v2604 = vadd.f32 0.0, %v2603
      %v2605 = vpop.f32.mrf.mxu0
      %2606 = vmatprep.mubr.bf16.mxu0 0
      %2607 = vmatmul.mubr.bf16.gmra.mxu0 %v2489
      %v2608 = vpop.f32.mrf.mxu0
      %v2609 = vadd.f32 0.0, %v2608
      %v2610 = vpop.f32.mrf.mxu0
      %v2611 = vpop.f32.mrf.mxu0
      %v2612 = vpop.f32.mrf.mxu0
      %2613 = vdwg.mxu0
      %v2614 = vpack.c.bf16 %v2532, %v2529
      %v2615 = vpack.c.bf16 %v2540, %v2537
      %v2616 = vpack.c.bf16 %v2548, %v2545
      %v2617 = vpack.c.bf16 %v2556, %v2553
      %v2618 = vpack.c.bf16 %v2564, %v2561
      %v2619 = vpack.c.bf16 %v2572, %v2569
      %v2620 = vpack.c.bf16 %v2580, %v2577
      %v2621 = vpack.c.bf16 %v2588, %v2585
      %v2622 = vpack.c.bf16 %v2596, %v2593
      %v2623 = vpack.c.bf16 %v2604, %v2601
      %v2624 = vpack.c.bf16 %v2609, %v2609
      %v2636 = vunpack.c.l.b16 %v2614
      %v2637 = vunpack.c.h.b16 %v2614
      %v2638 = vunpack.c.l.b16 %v2615
      %v2639 = vunpack.c.h.b16 %v2615
      %v2640 = vunpack.c.l.b16 %v2616
      %v2641 = vunpack.c.h.b16 %v2616
      %v2642 = vunpack.c.l.b16 %v2617
      %v2643 = vunpack.c.h.b16 %v2617
      %v2644 = vunpack.c.l.b16 %v2618
      %v2645 = vunpack.c.h.b16 %v2618
      %v2646 = vunpack.c.l.b16 %v2619
      %v2647 = vunpack.c.h.b16 %v2619
      %v2648 = vunpack.c.l.b16 %v2620
      %v2649 = vunpack.c.h.b16 %v2620
      %v2650 = vunpack.c.l.b16 %v2621
      %v2651 = vunpack.c.h.b16 %v2621
      %v2652 = vunpack.c.l.b16 %v2622
      %v2653 = vunpack.c.h.b16 %v2622
      %v2654 = vunpack.c.l.b16 %v2623
      %v2655 = vunpack.c.h.b16 %v2623
      %v2656 = vunpack.c.l.b16 %v2624
      %v2657 = vpack.c.b16 %v2636, %v2636
      %v2658 = vpack.c.b16 %v2637, %v2637
      %v2659 = vpack.c.b16 %v2638, %v2638
      %v2660 = vpack.c.b16 %v2639, %v2639
      %v2661 = vpack.c.b16 %v2640, %v2640
      %v2662 = vpack.c.b16 %v2641, %v2641
      %v2663 = vpack.c.b16 %v2642, %v2642
      %v2664 = vpack.c.b16 %v2643, %v2643
      %v2665 = vpack.c.b16 %v2644, %v2644
      %v2666 = vpack.c.b16 %v2645, %v2645
      %v2667 = vpack.c.b16 %v2646, %v2646
      %v2668 = vpack.c.b16 %v2647, %v2647
      %v2669 = vpack.c.b16 %v2648, %v2648
      %v2670 = vpack.c.b16 %v2649, %v2649
      %v2671 = vpack.c.b16 %v2650, %v2650
      %v2672 = vpack.c.b16 %v2651, %v2651
      %v2673 = vpack.c.b16 %v2652, %v2652
      %v2674 = vpack.c.b16 %v2653, %v2653
      %v2675 = vpack.c.b16 %v2654, %v2654
      %v2676 = vpack.c.b16 %v2655, %v2655
      %v2677 = vpack.c.b16 %v2656, %v2656
      %v2678 = vrot.slane %v2657, 5
      %v2679 = vrot.slane %v2678, 4
      %v2680 = vrot.slane %v2658, 5
      %v2681 = vsel %vm571, %v2679, %v2680
      %v2682 = vrot.slane %v2680, 4
      %v2683 = vrot.slane %v2659, 5
      %v2684 = vsel %vm571, %v2682, %v2683
      %v2685 = vrot.slane %v2683, 4
      %v2686 = vrot.slane %v2660, 5
      %v2687 = vsel %vm571, %v2685, %v2686
      %v2688 = vrot.slane %v2686, 4
      %v2689 = vrot.slane %v2661, 5
      %v2690 = vsel %vm571, %v2688, %v2689
      %v2691 = vrot.slane %v2689, 4
      %v2692 = vrot.slane %v2662, 5
      %v2693 = vsel %vm571, %v2691, %v2692
      %v2694 = vrot.slane %v2692, 4
      %v2695 = vrot.slane %v2663, 5
      %v2696 = vsel %vm571, %v2694, %v2695
      %v2697 = vrot.slane %v2695, 4
      %v2698 = vrot.slane %v2664, 5
      %v2699 = vsel %vm571, %v2697, %v2698
      %v2700 = vrot.slane %v2698, 4
      %v2701 = vrot.slane %v2665, 5
      %v2702 = vsel %vm571, %v2700, %v2701
      %v2703 = vrot.slane %v2701, 4
      %v2704 = vrot.slane %v2666, 5
      %v2705 = vsel %vm571, %v2703, %v2704
      %v2706 = vrot.slane %v2704, 4
      %v2707 = vrot.slane %v2667, 5
      %v2708 = vsel %vm571, %v2706, %v2707
      %v2709 = vrot.slane %v2707, 4
      %v2710 = vrot.slane %v2668, 5
      %v2711 = vsel %vm571, %v2709, %v2710
      %v2712 = vrot.slane %v2710, 4
      %v2713 = vrot.slane %v2669, 5
      %v2714 = vsel %vm571, %v2712, %v2713
      %v2715 = vrot.slane %v2713, 4
      %v2716 = vrot.slane %v2670, 5
      %v2717 = vsel %vm571, %v2715, %v2716
      %v2718 = vrot.slane %v2716, 4
      %v2719 = vrot.slane %v2671, 5
      %v2720 = vsel %vm571, %v2718, %v2719
      %v2721 = vrot.slane %v2719, 4
      %v2722 = vrot.slane %v2672, 5
      %v2723 = vsel %vm571, %v2721, %v2722
      %v2724 = vrot.slane %v2722, 4
      %v2725 = vrot.slane %v2673, 5
      %v2726 = vsel %vm571, %v2724, %v2725
      %v2727 = vrot.slane %v2725, 4
      %v2728 = vrot.slane %v2674, 5
      %v2729 = vsel %vm571, %v2727, %v2728
      %v2730 = vrot.slane %v2728, 4
      %v2731 = vrot.slane %v2675, 5
      %v2732 = vsel %vm571, %v2730, %v2731
      %v2733 = vrot.slane %v2731, 4
      %v2734 = vrot.slane %v2676, 5
      %v2735 = vsel %vm571, %v2733, %v2734
      %v2736 = vrot.slane %v2734, 4
      %v2737 = vrot.slane %v2677, 5
      %v2738 = vsel %vm571, %v2736, %v2737
      %v2739 = vrot.slane %v2737, 4
      %2740 = vrot.lane.b32.xlu0 %v2678, 96
      %v2741 = vpop.permute.xlu0 %2740
      %2742 = vrot.lane.b32.xlu0 %v2681, 96
      %v2743 = vpop.permute.xlu0 %2742
      %2744 = vrot.lane.b32.xlu0 %v2684, 96
      %v2745 = vpop.permute.xlu0 %2744
      %2746 = vrot.lane.b32.xlu0 %v2687, 96
      %v2747 = vpop.permute.xlu0 %2746
      %2748 = vrot.lane.b32.xlu0 %v2690, 96
      %v2749 = vpop.permute.xlu0 %2748
      %2750 = vrot.lane.b32.xlu0 %v2693, 96
      %v2751 = vpop.permute.xlu0 %2750
      %2752 = vrot.lane.b32.xlu0 %v2696, 96
      %v2753 = vpop.permute.xlu0 %2752
      %2754 = vrot.lane.b32.xlu0 %v2699, 96
      %v2755 = vpop.permute.xlu0 %2754
      %2756 = vrot.lane.b32.xlu0 %v2702, 96
      %v2757 = vpop.permute.xlu0 %2756
      %2758 = vrot.lane.b32.xlu0 %v2705, 96
      %v2759 = vpop.permute.xlu0 %2758
      %2760 = vrot.lane.b32.xlu0 %v2708, 96
      %v2761 = vpop.permute.xlu0 %2760
      %2762 = vrot.lane.b32.xlu0 %v2711, 96
      %v2763 = vpop.permute.xlu0 %2762
      %2764 = vrot.lane.b32.xlu0 %v2714, 96
      %v2765 = vpop.permute.xlu0 %2764
      %2766 = vrot.lane.b32.xlu0 %v2717, 96
      %v2767 = vpop.permute.xlu0 %2766
      %2768 = vrot.lane.b32.xlu0 %v2720, 96
      %v2769 = vpop.permute.xlu0 %2768
      %2770 = vrot.lane.b32.xlu0 %v2723, 96
      %v2771 = vpop.permute.xlu0 %2770
      %2772 = vrot.lane.b32.xlu0 %v2726, 96
      %v2773 = vpop.permute.xlu0 %2772
      %2774 = vrot.lane.b32.xlu0 %v2729, 96
      %v2775 = vpop.permute.xlu0 %2774
      %2776 = vrot.lane.b32.xlu0 %v2732, 96
      %v2777 = vpop.permute.xlu0 %2776
      %2778 = vrot.lane.b32.xlu0 %v2735, 96
      %v2779 = vpop.permute.xlu0 %2778
      %2780 = vrot.lane.b32.xlu0 %v2738, 96
      %v2781 = vpop.permute.xlu0 %2780
      %2782 = vrot.lane.b32.xlu0 %v2739, 96
      %v2783 = vpop.permute.xlu0 %2782
      %v2784 = vrot.slane %v2741, 4
      %v2785 = vrot.slane %v2743, 4
      %v2786 = vrot.slane %v2745, 4
      %v2787 = vrot.slane %v2747, 4
      %v2788 = vrot.slane %v2749, 4
      %v2789 = vrot.slane %v2751, 4
      %v2790 = vrot.slane %v2753, 4
      %v2791 = vrot.slane %v2755, 4
      %v2792 = vrot.slane %v2757, 4
      %v2793 = vrot.slane %v2759, 4
      %v2794 = vrot.slane %v2761, 4
      %v2795 = vrot.slane %v2763, 4
      %v2796 = vrot.slane %v2765, 4
      %v2797 = vrot.slane %v2767, 4
      %v2798 = vrot.slane %v2769, 4
      %v2799 = vrot.slane %v2771, 4
      %v2800 = vrot.slane %v2773, 4
      %v2801 = vrot.slane %v2775, 4
      %v2802 = vrot.slane %v2777, 4
      %v2803 = vrot.slane %v2779, 4
      %v2804 = vrot.slane %v2781, 4
      %v2805 = vrot.slane %v2783, 4
      %v2806 = vsel %vm1692, %v2784, %v2741
      %v2807 = vsel %vm1692, %v2785, %v2743
      %v2808 = vsel %vm1692, %v2786, %v2745
      %v2809 = vsel %vm1692, %v2787, %v2747
      %v2810 = vsel %vm1692, %v2788, %v2749
      %v2811 = vsel %vm1692, %v2789, %v2751
      %v2812 = vsel %vm1692, %v2790, %v2753
      %v2813 = vsel %vm1692, %v2791, %v2755
      %v2814 = vsel %vm1692, %v2792, %v2757
      %v2815 = vsel %vm1692, %v2793, %v2759
      %v2816 = vsel %vm1692, %v2794, %v2761
      %v2817 = vsel %vm1692, %v2795, %v2763
      %v2818 = vsel %vm1692, %v2796, %v2765
      %v2819 = vsel %vm1692, %v2797, %v2767
      %v2820 = vsel %vm1692, %v2798, %v2769
      %v2821 = vsel %vm1692, %v2799, %v2771
      %v2822 = vsel %vm1692, %v2800, %v2773
      %v2823 = vsel %vm1692, %v2801, %v2775
      %v2824 = vsel %vm1692, %v2802, %v2777
      %v2825 = vsel %vm1692, %v2803, %v2779
      %v2826 = vsel %vm1692, %v2804, %v2781
      %v2827 = vsel %vm1692, %v2805, %v2783
      %2850 = vst.msk [vmem:[%s305 + $0x10] sm:$0x88] %vm1739, %v2806
      %2851 = vst.msk [vmem:[%s305 + $0x1c] sm:$0xff] %vm1743, %v2807
      %2852 = vst.msk [vmem:[%s305 + $0x28] sm:$0xff] %vm1743, %v2808
      %2853 = vst.msk [vmem:[%s305 + $0x34] sm:$0xff] %vm1743, %v2809
      %2854 = vst.msk [vmem:[%s305 + $0x40] sm:$0xff] %vm1743, %v2810
      %2855 = vst.msk [vmem:[%s305 + $0x4c] sm:$0xff] %vm1743, %v2811
      %2856 = vst.msk [vmem:[%s305 + $0x58] sm:$0xff] %vm1743, %v2812
      %2857 = vst.msk [vmem:[%s305 + $0x64] sm:$0xff] %vm1743, %v2813
      %2858 = vst.msk [vmem:[%s305 + $0x70] sm:$0xff] %vm1743, %v2814
      %2859 = vst.msk [vmem:[%s305 + $0x7c] sm:$0xff] %vm1743, %v2815
      %2860 = vst.msk [vmem:[%s305 + $0x88] sm:$0xff] %vm1743, %v2816
      %2861 = vst.msk [vmem:[%s305 + $0x94] sm:$0xff] %vm1743, %v2817
      %2862 = vst.msk [vmem:[%s305 + $0xa0] sm:$0xff] %vm1743, %v2818
      %2863 = vst.msk [vmem:[%s305 + $0xac] sm:$0xff] %vm1743, %v2819
      %2864 = vst.msk [vmem:[%s305 + $0xb8] sm:$0xff] %vm1743, %v2820
      %2865 = vst.msk [vmem:[%s305 + $0xc4] sm:$0xff] %vm1743, %v2821
      %2866 = vst.msk [vmem:[%s305 + $0xd0] sm:$0xff] %vm1743, %v2822
      %2867 = vst.msk [vmem:[%s305 + $0xdc] sm:$0xff] %vm1743, %v2823
      %2868 = vst.msk [vmem:[%s305 + $0xe8] sm:$0xff] %vm1743, %v2824
      %2869 = vst.msk [vmem:[%s305 + $0xf4] sm:$0xff] %vm1743, %v2825
      %2870 = vst.msk [vmem:[%s305 + $0x100] sm:$0xff] %vm1743, %v2826
      %2871 = vst.msk [vmem:[%s305 + $0x10c] sm:$0x77] %vm1766, %v2827
      %p2872 = scmp.lt.s32.totalorder %s19, 1
      %s2873 = scalar_select %p2872, %s19, 1
      %s2874 = smul.addr %s2873, 75
      %s2875 = smul.addr %s2874, 4
      %s2876 = scalar_lea.vmem %s8, %s2875
      // Predicated region
      $region53: #{ppm_deepsup_forward.2} parent=51 // pred_check
        %p2877 = pneg %p210
      $region54: #{ppm_deepsup_forward.2} parent=51 // pred_check_branch
        %2879 = sbr.rel (%p2877) target = $region56
      $region55: #{ppm_deepsup_forward.2} parent=51 // pred_region
        _
      $region56: #{ppm_deepsup_forward.2} parent=51 // pred_fallthru
        _
    $region52: #{ppm_deepsup_forward.2} parent=5 // pred_fallthru
      _
    %p2880 = scmp.le.s32.totalorder 2, %s14
    // Predicated region
    $region57: #{ppm_deepsup_forward.2} parent=5 // pred_check
      %p2881 = pneg %p2880
    $region58: #{ppm_deepsup_forward.2} parent=5 // pred_check_branch
      %2883 = sbr.rel (%p2881) target = $region60
    $region59: #{ppm_deepsup_forward.2} parent=5 // pred_region
      %s2884 = ssub.s32 %s14, 2
      // Predicated region
      $region61: #{ppm_deepsup_forward.2} parent=59 // pred_check
        %p2885 = pneg %p216
      $region62: #{ppm_deepsup_forward.2} parent=59 // pred_check_branch
        %2887 = sbr.rel (%p2885) target = $region64
      $region63: #{ppm_deepsup_forward.2} parent=59 // pred_region
        %p2888 = scmp.lt.s32.totalorder %s20, 1
        %s2889 = scalar_select %p2888, %s20, 1
        %s2890 = smul.addr %s2889, 75
        %s2891 = smul.addr %s2890, 4
        %s2892 = scalar_lea.vmem %s8, %s2891
      $region64: #{ppm_deepsup_forward.2} parent=59 // pred_fallthru
        _
    $region60: #{ppm_deepsup_forward.2} parent=5 // pred_fallthru
      _
  $region6: #{ppm_deepsup_forward.2} parent=0 // loop_footer
    %s18 = sadd.s32 1, %s14
  $region7: #{ppm_deepsup_forward.2} parent=0 // loop_footer_branch
    %13 = sbr.rel target = $region3
  $region8: #{ppm_deepsup_forward.2} parent=0 // loop_exit
    _

// kernel: ppm_deepsup_forward.3
$region0: #{ppm_deepsup_forward.3}
  #allocation0 [shape = 'u32[]', space=smem, size = 0x4, offset = 0x4, fixed_abs, tag = 'smem constant byte address 0x4 - core index']
  #allocation1 [shape = 'u32[144,128]{1,0:T(1,128)}', space=vmem, size = 0x12000, scoped, tag = 'internal scratch']
  #allocation2 [shape = 'f32[168,64]{1,0:T(8,128)}', space=vmem, size = 0x15000, scoped, tag = 'scratch operand']
  %s0 = inlined_call_operand.vmem [shape: bf16[2,200,384], index: 0, kind: input, shape index: {}]
  %s1 = inlined_call_operand.vmem [shape: bf16[9,384,64], index: 1, kind: input, shape index: {}]
  %s2 = inlined_call_operand.vmem [shape: f32[1,64], index: 2, kind: input, shape index: {}]
  %s3 = inlined_call_operand.vmem [shape: bf16[64,128], index: 3, kind: input, shape index: {}]
  %s4 = inlined_call_operand.vmem [shape: f32[1,128], index: 4, kind: input, shape index: {}]
  %s5 = inlined_call_operand.vmem [shape: f32[2,168,128], index: 5, kind: output, shape index: {}]
  %s6 = sld [smem:[#allocation0]]
  $region143: #{ppm_deepsup_forward.3} parent=0
    _
  %s8 = ssub.s32 1, %s6
  %s9 = scalar_select 0, %s8, %s6
  $region1: #{ppm_deepsup_forward.3} parent=0
    #allocation3 [shape = 'u8[102400]{0}', space=vmem, size = 0x19000, scoped, tag = 'input window, operand 0']
    #allocation4 [shape = 'u8[589824]{0}', space=vmem, size = 0x90000, scoped, tag = 'input window, operand 1']
    loop: start=0, step=1, limit=8
    $region2: #{ppm_deepsup_forward.3} parent=1 // loop_pre_header
      _
    $region3: #{ppm_deepsup_forward.3} parent=1 // loop_header
      %s11 = sphi 0, %s15
      %p12 = scmp.ge.s32.totalorder %s11, 8
      %s18 = sphi 0, %s30
      %s19 = sphi 0, %s26
      %s20 = sphi 0, %s18
      %s21 = sphi 0, %s19
      %s22 = sphi 0, %s20
      %s23 = sphi 0, %s21
      %s35 = sphi 0, %s37
      %s38 = sphi 0, %s35
      %s39 = sphi 0, %s38
      %s55 = sphi 0, %s39
      %s61 = sphi 0, %s63
      %s64 = sphi 0, %s61
      %s65 = sphi 0, %s64
      %s81 = sphi 0, %s65
      %s85 = sphi 0, %s85
      %s87 = sphi 0, %s85
      %s88 = sphi 0, %s87
      %s102 = sphi 0, %s88
      %s106 = sphi 0, %s106
      %s108 = sphi 0, %s106
      %s109 = sphi 0, %s108
      %s123 = sphi 0, %s109
      %s127 = sphi 0, %s127
      %s129 = sphi 0, %s127
      %s130 = sphi 0, %s129
      %s144 = sphi 0, %s130
      %s150 = sphi 0, %s152
      %s153 = sphi 0, %s150
      %s154 = sphi 0, %s153
      %s170 = sphi 0, %s154
    $region4: #{ppm_deepsup_forward.3} parent=1 // loop_header_branch
      %14 = sbr.rel (%p12) target = $region8
    $region5: #{ppm_deepsup_forward.3} parent=1 // loop_body
      %s16 = ssub.s32 %s11, 1
      %s17 = ssub.s32 %s11, 2
      %s24 = sadd.s32 1, %s19
      %p25 = scmp.ge.s32.totalorder %s24, 3
      %s26 = scalar_select %p25, 0, %s24
      %s27 = sadd.s32 1, %s18
      %s28 = scalar_select %p25, %s27, %s18
      %p29 = scmp.ge.s32.totalorder %s28, 2
      %s30 = scalar_select %p29, 0, %s28
      %s31 = ssub.s32 %s18, %s30
      %s32 = ssub.s32 %s19, %s26
      %s33 = sor.u32 %s31, %s32
      %p34 = scmp.eq.s32.totalorder %s33, 0
      %s36 = sadd.s32 %s35, 1
      %s37 = scalar_select %p34, %s35, %s36
      %p40 = pneg %p34
      %p41 = scmp.eq.s32.totalorder %s11, 5
      %p42 = por %p40, %p41
      %p43 = scmp.ne.s32.totalorder %s35, %s38
      %p44 = scmp.eq.s32.totalorder %s11, 0
      %p45 = por %p43, %p44
      %p46 = scmp.ne.s32.totalorder %s35, %s38
      %p47 = scmp.eq.s32.totalorder %s16, 5
      %p48 = por %p46, %p47
      %p49 = scmp.ne.s32.totalorder %s38, %s39
      %p50 = scmp.eq.s32.totalorder %s16, 0
      %p51 = por %p49, %p50
      %p52 = scmp.ne.s32.totalorder %s38, %s39
      %p53 = scmp.eq.s32.totalorder %s17, 5
      %p54 = por %p52, %p53
      %p56 = scmp.ne.s32.totalorder %s39, %s55
      %p57 = scmp.eq.s32.totalorder %s17, 0
      %p58 = por %p56, %p57
      %s59 = ssub.s32 %s19, %s26
      %p60 = scmp.eq.s32.totalorder %s59, 0
      %s62 = sadd.s32 %s61, 1
      %s63 = scalar_select %p60, %s61, %s62
      %p66 = pneg %p60
      %p67 = scmp.eq.s32.totalorder %s11, 5
      %p68 = por %p66, %p67
      %p69 = scmp.ne.s32.totalorder %s61, %s64
      %p70 = scmp.eq.s32.totalorder %s11, 0
      %p71 = por %p69, %p70
      %p72 = scmp.ne.s32.totalorder %s61, %s64
      %p73 = scmp.eq.s32.totalorder %s16, 5
      %p74 = por %p72, %p73
      %p75 = scmp.ne.s32.totalorder %s64, %s65
      %p76 = scmp.eq.s32.totalorder %s16, 0
      %p77 = por %p75, %p76
      %p78 = scmp.ne.s32.totalorder %s64, %s65
      %p79 = scmp.eq.s32.totalorder %s17, 5
      %p80 = por %p78, %p79
      %p82 = scmp.ne.s32.totalorder %s65, %s81
      %p83 = scmp.eq.s32.totalorder %s17, 0
      %p84 = por %p82, %p83
      %s86 = sadd.s32 %s85, 1
      %p89 = scmp.eq.s32.totalorder %s11, 5
      %p90 = scmp.ne.s32.totalorder %s85, %s87
      %p91 = scmp.eq.s32.totalorder %s11, 0
      %p92 = por %p90, %p91
      %p93 = scmp.ne.s32.totalorder %s85, %s87
      %p94 = scmp.eq.s32.totalorder %s16, 5
      %p95 = por %p93, %p94
      %p96 = scmp.ne.s32.totalorder %s87, %s88
      %p97 = scmp.eq.s32.totalorder %s16, 0
      %p98 = por %p96, %p97
      %p99 = scmp.ne.s32.totalorder %s87, %s88
      %p100 = scmp.eq.s32.totalorder %s17, 5
      %p101 = por %p99, %p100
      %p103 = scmp.ne.s32.totalorder %s88, %s102
      %p104 = scmp.eq.s32.totalorder %s17, 0
      %p105 = por %p103, %p104
      %s107 = sadd.s32 %s106, 1
      %p110 = scmp.eq.s32.totalorder %s11, 5
      %p111 = scmp.ne.s32.totalorder %s106, %s108
      %p112 = scmp.eq.s32.totalorder %s11, 0
      %p113 = por %p111, %p112
      %p114 = scmp.ne.s32.totalorder %s106, %s108
      %p115 = scmp.eq.s32.totalorder %s16, 5
      %p116 = por %p114, %p115
      %p117 = scmp.ne.s32.totalorder %s108, %s109
      %p118 = scmp.eq.s32.totalorder %s16, 0
      %p119 = por %p117, %p118
      %p120 = scmp.ne.s32.totalorder %s108, %s109
      %p121 = scmp.eq.s32.totalorder %s17, 5
      %p122 = por %p120, %p121
      %p124 = scmp.ne.s32.totalorder %s109, %s123
      %p125 = scmp.eq.s32.totalorder %s17, 0
      %p126 = por %p124, %p125
      %s128 = sadd.s32 %s127, 1
      %p131 = scmp.eq.s32.totalorder %s11, 5
      %p132 = scmp.ne.s32.totalorder %s127, %s129
      %p133 = scmp.eq.s32.totalorder %s11, 0
      %p134 = por %p132, %p133
      %p135 = scmp.ne.s32.totalorder %s127, %s129
      %p136 = scmp.eq.s32.totalorder %s16, 5
      %p137 = por %p135, %p136
      %p138 = scmp.ne.s32.totalorder %s129, %s130
      %p139 = scmp.eq.s32.totalorder %s16, 0
      %p140 = por %p138, %p139
      %p141 = scmp.ne.s32.totalorder %s129, %s130
      %p142 = scmp.eq.s32.totalorder %s17, 5
      %p143 = por %p141, %p142
      %p145 = scmp.ne.s32.totalorder %s130, %s144
      %p146 = scmp.eq.s32.totalorder %s17, 0
      %p147 = por %p145, %p146
      %s148 = ssub.s32 %s18, %s30
      %p149 = scmp.eq.s32.totalorder %s148, 0
      %s151 = sadd.s32 %s150, 1
      %s152 = scalar_select %p149, %s150, %s151
      %p155 = pneg %p149
      %p156 = scmp.eq.s32.totalorder %s11, 5
      %p157 = por %p155, %p156
      %p158 = scmp.ne.s32.totalorder %s150, %s153
      %p159 = scmp.eq.s32.totalorder %s11, 0
      %p160 = por %p158, %p159
      %p161 = scmp.ne.s32.totalorder %s150, %s153
      %p162 = scmp.eq.s32.totalorder %s16, 5
      %p163 = por %p161, %p162
      %p164 = scmp.ne.s32.totalorder %s153, %s154
      %p165 = scmp.eq.s32.totalorder %s16, 0
      %p166 = por %p164, %p165
      %p167 = scmp.ne.s32.totalorder %s153, %s154
      %p168 = scmp.eq.s32.totalorder %s17, 5
      %p169 = por %p167, %p168
      %p171 = scmp.ne.s32.totalorder %s154, %s170
      %p172 = scmp.eq.s32.totalorder %s17, 0
      %p173 = por %p171, %p172
      %p174 = scmp.le.s32.totalorder 1, %s11
      %p175 = scmp.lt.s32.totalorder %s11, 7
      %p176 = pnand %p174, %p175
      %p177 = pneg %p176
      // Predicated region
      $region9: #{ppm_deepsup_forward.3} parent=5 // pred_check
        _
      $region10: #{ppm_deepsup_forward.3} parent=5 // pred_check_branch
        %179 = sbr.rel (%p176) target = $region12
      $region11: #{ppm_deepsup_forward.3} parent=5 // pred_region
        %s180 = ssub.s32 %s11, 1
        // Predicated region
        $region13: #{ppm_deepsup_forward.3} parent=11 // pred_check
          %p181 = pneg %p98
        $region14: #{ppm_deepsup_forward.3} parent=11 // pred_check_branch
          %183 = sbr.rel (%p181) target = $region16
        $region15: #{ppm_deepsup_forward.3} parent=11 // pred_region
          _
        $region16: #{ppm_deepsup_forward.3} parent=11 // pred_fallthru
          _
        // Predicated region
        $region17: #{ppm_deepsup_forward.3} parent=11 // pred_check
          %p184 = pneg %p119
        $region18: #{ppm_deepsup_forward.3} parent=11 // pred_check_branch
          %186 = sbr.rel (%p184) target = $region20
        $region19: #{ppm_deepsup_forward.3} parent=11 // pred_region
          _
        $region20: #{ppm_deepsup_forward.3} parent=11 // pred_fallthru
          _
        // Predicated region
        $region21: #{ppm_deepsup_forward.3} parent=11 // pred_check
          %p187 = pneg %p140
        $region22: #{ppm_deepsup_forward.3} parent=11 // pred_check_branch
          %189 = sbr.rel (%p187) target = $region24
        $region23: #{ppm_deepsup_forward.3} parent=11 // pred_region
          _
        $region24: #{ppm_deepsup_forward.3} parent=11 // pred_fallthru
          _
      $region12: #{ppm_deepsup_forward.3} parent=5 // pred_fallthru
        _
      %p190 = scmp.lt.s32.totalorder %s11, 6
      // Predicated region
      $region25: #{ppm_deepsup_forward.3} parent=5 // pred_check
        %p191 = pneg %p190
      $region26: #{ppm_deepsup_forward.3} parent=5 // pred_check_branch
        %193 = sbr.rel (%p191) target = $region28
      $region27: #{ppm_deepsup_forward.3} parent=5 // pred_region
        // Predicated region
        $region29: #{ppm_deepsup_forward.3} parent=27 // pred_check
          %p194 = pneg %p45
        $region30: #{ppm_deepsup_forward.3} parent=27 // pred_check_branch
          %196 = sbr.rel (%p194) target = $region32
        $region31: #{ppm_deepsup_forward.3} parent=27 // pred_region
          %s197 = sand.u32 %s35, 1
          %s198 = sand.u32 %s35, 1
          %s199 = smul.addr %s198, 100
          %s200 = scalar_lea.vmem [#allocation3], %s199
          %s201 = smul.addr %s18, 75
          %s202 = sadd.s32 %s19, %s201
          %s203 = smul.addr %s202, 4
          %s204 = scalar_lea.vmem %s0, %s203
          // Predicated region
          $region33: #{ppm_deepsup_forward.3} parent=31 // pred_check
            _
          $region34: #{ppm_deepsup_forward.3} parent=31 // pred_check_branch
            %206 = sbr.rel (0) target = $region36
          $region35: #{ppm_deepsup_forward.3} parent=31 // pred_region
            // Predicated region
            $region37: #{ppm_deepsup_forward.3} parent=35 // pred_check
              _
            $region38: #{ppm_deepsup_forward.3} parent=35 // pred_check_branch
              %208 = sbr.rel target = $region40
            $region39: #{ppm_deepsup_forward.3} parent=35 // pred_region
              // Predicated region
              $region52: #{ppm_deepsup_forward.3} parent=39 // pred_check
                _
              $region53: #{ppm_deepsup_forward.3} parent=39 // pred_check_branch
                %272 = sbr.rel (0) target = $region55
              $region54: #{ppm_deepsup_forward.3} parent=39 // pred_region
                loop: start=0, step=1, limit=1
                $region56: #{ppm_deepsup_forward.3} parent=54 // loop_pre_header
                  _
                $region57: #{ppm_deepsup_forward.3} parent=54 // loop_header
                  %s274 = sphi 0, %s278
                  %p275 = scmp.ge.s32.totalorder %s274, 1
                  %s279 = sphi %s204, %s204
                  %s280 = sphi %s200, %s200
                $region58: #{ppm_deepsup_forward.3} parent=54 // loop_header_branch
                  %277 = sbr.rel (%p275) target = $region62
                $region59: #{ppm_deepsup_forward.3} parent=54 // loop_body
                  _
                $region60: #{ppm_deepsup_forward.3} parent=54 // loop_footer
                  %s278 = sadd.s32 1, %s274
                $region61: #{ppm_deepsup_forward.3} parent=54 // loop_footer_branch
                  %273 = sbr.rel target = $region57
                $region62: #{ppm_deepsup_forward.3} parent=54 // loop_exit
                  _
                %s282 = ssub.s32 16, 1
                loop: start=0, step=1, limit=1
                $region63: #{ppm_deepsup_forward.3} parent=54 // loop_pre_header
                  _
                $region64: #{ppm_deepsup_forward.3} parent=54 // loop_header
                  %s284 = sphi 0, %s288
                  %p285 = scmp.ge.s32.totalorder %s284, 1
                  %s289 = sphi %s204, %s204
                  %s290 = sphi %s200, %s200
                $region65: #{ppm_deepsup_forward.3} parent=54 // loop_header_branch
                  %287 = sbr.rel (%p285) target = $region69
                $region66: #{ppm_deepsup_forward.3} parent=54 // loop_body
                  %v291 = vld [vmem:[%s289] sm:%s282]
                  %292 = vst [vmem:[%s290] sm:%s282] %v291
                  %v293 = vld [vmem:[%s289 + $0xc] sm:%s282]
                  %294 = vst [vmem:[%s290 + $0x4] sm:%s282] %v293
                  %v295 = vld [vmem:[%s289 + $0x18] sm:%s282]
                  %296 = vst [vmem:[%s290 + $0x8] sm:%s282] %v295
                  %v297 = vld [vmem:[%s289 + $0x24] sm:%s282]
                  %298 = vst [vmem:[%s290 + $0xc] sm:%s282] %v297
                  %v299 = vld [vmem:[%s289 + $0x30] sm:%s282]
                  %300 = vst [vmem:[%s290 + $0x10] sm:%s282] %v299
                  %v301 = vld [vmem:[%s289 + $0x3c] sm:%s282]
                  %302 = vst [vmem:[%s290 + $0x14] sm:%s282] %v301
                  %v303 = vld [vmem:[%s289 + $0x48] sm:%s282]
                  %304 = vst [vmem:[%s290 + $0x18] sm:%s282] %v303
                  %v305 = vld [vmem:[%s289 + $0x54] sm:%s282]
                  %306 = vst [vmem:[%s290 + $0x1c] sm:%s282] %v305
                  %v307 = vld [vmem:[%s289 + $0x60] sm:%s282]
                  %308 = vst [vmem:[%s290 + $0x20] sm:%s282] %v307
                  %v309 = vld [vmem:[%s289 + $0x6c] sm:%s282]
                  %310 = vst [vmem:[%s290 + $0x24] sm:%s282] %v309
                  %v311 = vld [vmem:[%s289 + $0x78] sm:%s282]
                  %312 = vst [vmem:[%s290 + $0x28] sm:%s282] %v311
                  %v313 = vld [vmem:[%s289 + $0x84] sm:%s282]
                  %314 = vst [vmem:[%s290 + $0x2c] sm:%s282] %v313
                  %v315 = vld [vmem:[%s289 + $0x90] sm:%s282]
                  %316 = vst [vmem:[%s290 + $0x30] sm:%s282] %v315
                  %v317 = vld [vmem:[%s289 + $0x9c] sm:%s282]
                  %318 = vst [vmem:[%s290 + $0x34] sm:%s282] %v317
                  %v319 = vld [vmem:[%s289 + $0xa8] sm:%s282]
                  %320 = vst [vmem:[%s290 + $0x38] sm:%s282] %v319
                  %v321 = vld [vmem:[%s289 + $0xb4] sm:%s282]
                  %322 = vst [vmem:[%s290 + $0x3c] sm:%s282] %v321
                  %v323 = vld [vmem:[%s289 + $0xc0] sm:%s282]
                  %324 = vst [vmem:[%s290 + $0x40] sm:%s282] %v323
                  %v325 = vld [vmem:[%s289 + $0xcc] sm:%s282]
                  %326 = vst [vmem:[%s290 + $0x44] sm:%s282] %v325
                  %v327 = vld [vmem:[%s289 + $0xd8] sm:%s282]
                  %328 = vst [vmem:[%s290 + $0x48] sm:%s282] %v327
                  %v329 = vld [vmem:[%s289 + $0xe4] sm:%s282]
                  %330 = vst [vmem:[%s290 + $0x4c] sm:%s282] %v329
                  %v331 = vld [vmem:[%s289 + $0xf0] sm:%s282]
                  %332 = vst [vmem:[%s290 + $0x50] sm:%s282] %v331
                  %v333 = vld [vmem:[%s289 + $0xfc] sm:%s282]
                  %334 = vst [vmem:[%s290 + $0x54] sm:%s282] %v333
                  %v335 = vld [vmem:[%s289 + $0x108] sm:%s282]
                  %336 = vst [vmem:[%s290 + $0x58] sm:%s282] %v335
                  %v337 = vld [vmem:[%s289 + $0x114] sm:%s282]
                  %338 = vst [vmem:[%s290 + $0x5c] sm:%s282] %v337
                  %v339 = vld [vmem:[%s289 + $0x120] sm:%s282]
                  %340 = vst [vmem:[%s290 + $0x60] sm:%s282] %v339
                $region67: #{ppm_deepsup_forward.3} parent=54 // loop_footer
                  %s288 = sadd.s32 1, %s284
                $region68: #{ppm_deepsup_forward.3} parent=54 // loop_footer_branch
                  %283 = sbr.rel target = $region64
                $region69: #{ppm_deepsup_forward.3} parent=54 // loop_exit
                  _
              $region55: #{ppm_deepsup_forward.3} parent=39 // pred_fallthru
                _
            $region40: #{ppm_deepsup_forward.3} parent=35 // pred_fallthru
              _
            // Predicated region
            $region41: #{ppm_deepsup_forward.3} parent=35 // pred_check
              _
            $region42: #{ppm_deepsup_forward.3} parent=35 // pred_check_branch
              %210 = sbr.rel (0) target = $region44
            $region43: #{ppm_deepsup_forward.3} parent=35 // pred_region
              %s212 = ssub.s32 16, 1
              loop: start=0, step=1, limit=1
              $region45: #{ppm_deepsup_forward.3} parent=43 // loop_pre_header
                _
              $region46: #{ppm_deepsup_forward.3} parent=43 // loop_header
                %s214 = sphi 0, %s218
                %p215 = scmp.ge.s32.totalorder %s214, 1
                %s219 = sphi %s204, %s204
                %s220 = sphi %s200, %s200
              $region47: #{ppm_deepsup_forward.3} parent=43 // loop_header_branch
                %217 = sbr.rel (%p215) target = $region51
              $region48: #{ppm_deepsup_forward.3} parent=43 // loop_body
                %v221 = vld [vmem:[%s219] sm:%s212]
                %222 = vst [vmem:[%s220] sm:%s212] %v221
                %v223 = vld [vmem:[%s219 + $0xc] sm:%s212]
                %224 = vst [vmem:[%s220 + $0x4] sm:%s212] %v223
                %v225 = vld [vmem:[%s219 + $0x18] sm:%s212]
                %226 = vst [vmem:[%s220 + $0x8] sm:%s212] %v225
                %v227 = vld [vmem:[%s219 + $0x24] sm:%s212]
                %228 = vst [vmem:[%s220 + $0xc] sm:%s212] %v227
                %v229 = vld [vmem:[%s219 + $0x30] sm:%s212]
                %230 = vst [vmem:[%s220 + $0x10] sm:%s212] %v229
                %v231 = vld [vmem:[%s219 + $0x3c] sm:%s212]
                %232 = vst [vmem:[%s220 + $0x14] sm:%s212] %v231
                %v233 = vld [vmem:[%s219 + $0x48] sm:%s212]
                %234 = vst [vmem:[%s220 + $0x18] sm:%s212] %v233
                %v235 = vld [vmem:[%s219 + $0x54] sm:%s212]
                %236 = vst [vmem:[%s220 + $0x1c] sm:%s212] %v235
                %v237 = vld [vmem:[%s219 + $0x60] sm:%s212]
                %238 = vst [vmem:[%s220 + $0x20] sm:%s212] %v237
                %v239 = vld [vmem:[%s219 + $0x6c] sm:%s212]
                %240 = vst [vmem:[%s220 + $0x24] sm:%s212] %v239
                %v241 = vld [vmem:[%s219 + $0x78] sm:%s212]
                %242 = vst [vmem:[%s220 + $0x28] sm:%s212] %v241
                %v243 = vld [vmem:[%s219 + $0x84] sm:%s212]
                %244 = vst [vmem:[%s220 + $0x2c] sm:%s212] %v243
                %v245 = vld [vmem:[%s219 + $0x90] sm:%s212]
                %246 = vst [vmem:[%s220 + $0x30] sm:%s212] %v245
                %v247 = vld [vmem:[%s219 + $0x9c] sm:%s212]
                %248 = vst [vmem:[%s220 + $0x34] sm:%s212] %v247
                %v249 = vld [vmem:[%s219 + $0xa8] sm:%s212]
                %250 = vst [vmem:[%s220 + $0x38] sm:%s212] %v249
                %v251 = vld [vmem:[%s219 + $0xb4] sm:%s212]
                %252 = vst [vmem:[%s220 + $0x3c] sm:%s212] %v251
                %v253 = vld [vmem:[%s219 + $0xc0] sm:%s212]
                %254 = vst [vmem:[%s220 + $0x40] sm:%s212] %v253
                %v255 = vld [vmem:[%s219 + $0xcc] sm:%s212]
                %256 = vst [vmem:[%s220 + $0x44] sm:%s212] %v255
                %v257 = vld [vmem:[%s219 + $0xd8] sm:%s212]
                %258 = vst [vmem:[%s220 + $0x48] sm:%s212] %v257
                %v259 = vld [vmem:[%s219 + $0xe4] sm:%s212]
                %260 = vst [vmem:[%s220 + $0x4c] sm:%s212] %v259
                %v261 = vld [vmem:[%s219 + $0xf0] sm:%s212]
                %262 = vst [vmem:[%s220 + $0x50] sm:%s212] %v261
                %v263 = vld [vmem:[%s219 + $0xfc] sm:%s212]
                %264 = vst [vmem:[%s220 + $0x54] sm:%s212] %v263
                %v265 = vld [vmem:[%s219 + $0x108] sm:%s212]
                %266 = vst [vmem:[%s220 + $0x58] sm:%s212] %v265
                %v267 = vld [vmem:[%s219 + $0x114] sm:%s212]
                %268 = vst [vmem:[%s220 + $0x5c] sm:%s212] %v267
                %v269 = vld [vmem:[%s219 + $0x120] sm:%s212]
                %270 = vst [vmem:[%s220 + $0x60] sm:%s212] %v269
              $region49: #{ppm_deepsup_forward.3} parent=43 // loop_footer
                %s218 = sadd.s32 1, %s214
              $region50: #{ppm_deepsup_forward.3} parent=43 // loop_footer_branch
                %213 = sbr.rel target = $region46
              $region51: #{ppm_deepsup_forward.3} parent=43 // loop_exit
                _
            $region44: #{ppm_deepsup_forward.3} parent=35 // pred_fallthru
              _
          $region36: #{ppm_deepsup_forward.3} parent=31 // pred_fallthru
            _
          %341 = vnop
        $region32: #{ppm_deepsup_forward.3} parent=27 // pred_fallthru
          _
        // Predicated region
        $region70: #{ppm_deepsup_forward.3} parent=27 // pred_check
          %p342 = pneg %p71
        $region71: #{ppm_deepsup_forward.3} parent=27 // pred_check_branch
          %344 = sbr.rel (%p342) target = $region73
        $region72: #{ppm_deepsup_forward.3} parent=27 // pred_region
          %s345 = sand.u32 %s61, 1
          %s346 = sand.u32 %s61, 1
          %s347 = smul.addr %s346, 576
          %s348 = scalar_lea.vmem [#allocation4], %s347
          %s349 = smul.u32 16, %s19
          %s350 = smul.addr %s349, 4
          %s351 = scalar_lea.vmem %s1, %s350
          // Predicated region
          $region74: #{ppm_deepsup_forward.3} parent=72 // pred_check
            _
          $region75: #{ppm_deepsup_forward.3} parent=72 // pred_check_branch
            %353 = sbr.rel (0) target = $region77
          $region76: #{ppm_deepsup_forward.3} parent=72 // pred_region
            // Predicated region
            $region78: #{ppm_deepsup_forward.3} parent=76 // pred_check
              _
            $region79: #{ppm_deepsup_forward.3} parent=76 // pred_check_branch
              %355 = sbr.rel target = $region81
            $region80: #{ppm_deepsup_forward.3} parent=76 // pred_region
              // Predicated region
              $region93: #{ppm_deepsup_forward.3} parent=80 // pred_check
                _
              $region94: #{ppm_deepsup_forward.3} parent=80 // pred_check_branch
                %657 = sbr.rel (0) target = $region96
              $region95: #{ppm_deepsup_forward.3} parent=80 // pred_region
                loop: start=0, step=1, limit=1
                $region97: #{ppm_deepsup_forward.3} parent=95 // loop_pre_header
                  _
                $region98: #{ppm_deepsup_forward.3} parent=95 // loop_header
                  %s659 = sphi 0, %s663
                  %p660 = scmp.ge.s32.totalorder %s659, 1
                  %s664 = sphi %s351, %s351
                  %s665 = sphi %s348, %s348
                $region99: #{ppm_deepsup_forward.3} parent=95 // loop_header_branch
                  %662 = sbr.rel (%p660) target = $region103
                $region100: #{ppm_deepsup_forward.3} parent=95 // loop_body
                  _
                $region101: #{ppm_deepsup_forward.3} parent=95 // loop_footer
                  %s663 = sadd.s32 1, %s659
                $region102: #{ppm_deepsup_forward.3} parent=95 // loop_footer_branch
                  %658 = sbr.rel target = $region98
                $region103: #{ppm_deepsup_forward.3} parent=95 // loop_exit
                  _
                %s667 = ssub.s32 16, 1
                loop: start=0, step=1, limit=1
                $region104: #{ppm_deepsup_forward.3} parent=95 // loop_pre_header
                  _
                $region105: #{ppm_deepsup_forward.3} parent=95 // loop_header
                  %s669 = sphi 0, %s673
                  %p670 = scmp.ge.s32.totalorder %s669, 1
                  %s674 = sphi %s351, %s351
                  %s675 = sphi %s348, %s348
                $region106: #{ppm_deepsup_forward.3} parent=95 // loop_header_branch
                  %672 = sbr.rel (%p670) target = $region110
                $region107: #{ppm_deepsup_forward.3} parent=95 // loop_body
                  %v676 = vld [vmem:[%s674] sm:%s667]
                  %677 = vst [vmem:[%s675] sm:%s667] %v676
                  %v678 = vld [vmem:[%s674 + $0x4] sm:%s667]
                  %679 = vst [vmem:[%s675 + $0x4] sm:%s667] %v678
                  %v680 = vld [vmem:[%s674 + $0x8] sm:%s667]
                  %681 = vst [vmem:[%s675 + $0x8] sm:%s667] %v680
                  %v682 = vld [vmem:[%s674 + $0xc] sm:%s667]
                  %683 = vst [vmem:[%s675 + $0xc] sm:%s667] %v682
                  %v684 = vld [vmem:[%s674 + $0x10] sm:%s667]
                  %685 = vst [vmem:[%s675 + $0x10] sm:%s667] %v684
                  %v686 = vld [vmem:[%s674 + $0x14] sm:%s667]
                  %687 = vst [vmem:[%s675 + $0x14] sm:%s667] %v686
                  %v688 = vld [vmem:[%s674 + $0x18] sm:%s667]
                  %689 = vst [vmem:[%s675 + $0x18] sm:%s667] %v688
                  %v690 = vld [vmem:[%s674 + $0x1c] sm:%s667]
                  %691 = vst [vmem:[%s675 + $0x1c] sm:%s667] %v690
                  %v692 = vld [vmem:[%s674 + $0x20] sm:%s667]
                  %693 = vst [vmem:[%s675 + $0x20] sm:%s667] %v692
                  %v694 = vld [vmem:[%s674 + $0x24] sm:%s667]
                  %695 = vst [vmem:[%s675 + $0x24] sm:%s667] %v694
                  %v696 = vld [vmem:[%s674 + $0x28] sm:%s667]
                  %697 = vst [vmem:[%s675 + $0x28] sm:%s667] %v696
                  %v698 = vld [vmem:[%s674 + $0x2c] sm:%s667]
                  %699 = vst [vmem:[%s675 + $0x2c] sm:%s667] %v698
                  %v700 = vld [vmem:[%s674 + $0x30] sm:%s667]
                  %701 = vst [vmem:[%s675 + $0x30] sm:%s667] %v700
                  %v702 = vld [vmem:[%s674 + $0x34] sm:%s667]
                  %703 = vst [vmem:[%s675 + $0x34] sm:%s667] %v702
                  %v704 = vld [vmem:[%s674 + $0x38] sm:%s667]
                  %705 = vst [vmem:[%s675 + $0x38] sm:%s667] %v704
                  %v706 = vld [vmem:[%s674 + $0x3c] sm:%s667]
                  %707 = vst [vmem:[%s675 + $0x3c] sm:%s667] %v706
                  %v708 = vld [vmem:[%s674 + $0xc0] sm:%s667]
                  %709 = vst [vmem:[%s675 + $0x40] sm:%s667] %v708
                  %v710 = vld [vmem:[%s674 + $0xc4] sm:%s667]
                  %711 = vst [vmem:[%s675 + $0x44] sm:%s667] %v710
                  %v712 = vld [vmem:[%s674 + $0xc8] sm:%s667]
                  %713 = vst [vmem:[%s675 + $0x48] sm:%s667] %v712
                  %v714 = vld [vmem:[%s674 + $0xcc] sm:%s667]
                  %715 = vst [vmem:[%s675 + $0x4c] sm:%s667] %v714
                  %v716 = vld [vmem:[%s674 + $0xd0] sm:%s667]
                  %717 = vst [vmem:[%s675 + $0x50] sm:%s667] %v716
                  %v718 = vld [vmem:[%s674 + $0xd4] sm:%s667]
                  %719 = vst [vmem:[%s675 + $0x54] sm:%s667] %v718
                  %v720 = vld [vmem:[%s674 + $0xd8] sm:%s667]
                  %721 = vst [vmem:[%s675 + $0x58] sm:%s667] %v720
                  %v722 = vld [vmem:[%s674 + $0xdc] sm:%s667]
                  %723 = vst [vmem:[%s675 + $0x5c] sm:%s667] %v722
                  %v724 = vld [vmem:[%s674 + $0xe0] sm:%s667]
                  %725 = vst [vmem:[%s675 + $0x60] sm:%s667] %v724
                  %v726 = vld [vmem:[%s674 + $0xe4] sm:%s667]
                  %727 = vst [vmem:[%s675 + $0x64] sm:%s667] %v726
                  %v728 = vld [vmem:[%s674 + $0xe8] sm:%s667]
                  %729 = vst [vmem:[%s675 + $0x68] sm:%s667] %v728
                  %v730 = vld [vmem:[%s674 + $0xec] sm:%s667]
                  %731 = vst [vmem:[%s675 + $0x6c] sm:%s667] %v730
                  %v732 = vld [vmem:[%s674 + $0xf0] sm:%s667]
                  %733 = vst [vmem:[%s675 + $0x70] sm:%s667] %v732
                  %v734 = vld [vmem:[%s674 + $0xf4] sm:%s667]
                  %735 = vst [vmem:[%s675 + $0x74] sm:%s667] %v734
                  %v736 = vld [vmem:[%s674 + $0xf8] sm:%s667]
                  %737 = vst [vmem:[%s675 + $0x78] sm:%s667] %v736
                  %v738 = vld [vmem:[%s674 + $0xfc] sm:%s667]
                  %739 = vst [vmem:[%s675 + $0x7c] sm:%s667] %v738
                  %v740 = vld [vmem:[%s674 + $0x180] sm:%s667]
                  %741 = vst [vmem:[%s675 + $0x80] sm:%s667] %v740
                  %v742 = vld [vmem:[%s674 + $0x184] sm:%s667]
                  %743 = vst [vmem:[%s675 + $0x84] sm:%s667] %v742
                  %v744 = vld [vmem:[%s674 + $0x188] sm:%s667]
                  %745 = vst [vmem:[%s675 + $0x88] sm:%s667] %v744
                  %v746 = vld [vmem:[%s674 + $0x18c] sm:%s667]
                  %747 = vst [vmem:[%s675 + $0x8c] sm:%s667] %v746
                  %v748 = vld [vmem:[%s674 + $0x190] sm:%s667]
                  %749 = vst [vmem:[%s675 + $0x90] sm:%s667] %v748
                  %v750 = vld [vmem:[%s674 + $0x194] sm:%s667]
                  %751 = vst [vmem:[%s675 + $0x94] sm:%s667] %v750
                  %v752 = vld [vmem:[%s674 + $0x198] sm:%s667]
                  %753 = vst [vmem:[%s675 + $0x98] sm:%s667] %v752
                  %v754 = vld [vmem:[%s674 + $0x19c] sm:%s667]
                  %755 = vst [vmem:[%s675 + $0x9c] sm:%s667] %v754
                  %v756 = vld [vmem:[%s674 + $0x1a0] sm:%s667]
                  %757 = vst [vmem:[%s675 + $0xa0] sm:%s667] %v756
                  %v758 = vld [vmem:[%s674 + $0x1a4] sm:%s667]
                  %759 = vst [vmem:[%s675 + $0xa4] sm:%s667] %v758
                  %v760 = vld [vmem:[%s674 + $0x1a8] sm:%s667]
                  %761 = vst [vmem:[%s675 + $0xa8] sm:%s667] %v760
                  %v762 = vld [vmem:[%s674 + $0x1ac] sm:%s667]
                  %763 = vst [vmem:[%s675 + $0xac] sm:%s667] %v762
                  %v764 = vld [vmem:[%s674 + $0x1b0] sm:%s667]
                  %765 = vst [vmem:[%s675 + $0xb0] sm:%s667] %v764
                  %v766 = vld [vmem:[%s674 + $0x1b4] sm:%s667]
                  %767 = vst [vmem:[%s675 + $0xb4] sm:%s667] %v766
                  %v768 = vld [vmem:[%s674 + $0x1b8] sm:%s667]
                  %769 = vst [vmem:[%s675 + $0xb8] sm:%s667] %v768
                  %v770 = vld [vmem:[%s674 + $0x1bc] sm:%s667]
                  %771 = vst [vmem:[%s675 + $0xbc] sm:%s667] %v770
                  %v772 = vld [vmem:[%s674 + $0x240] sm:%s667]
                  %773 = vst [vmem:[%s675 + $0xc0] sm:%s667] %v772
                  %v774 = vld [vmem:[%s674 + $0x244] sm:%s667]
                  %775 = vst [vmem:[%s675 + $0xc4] sm:%s667] %v774
                  %v776 = vld [vmem:[%s674 + $0x248] sm:%s667]
                  %777 = vst [vmem:[%s675 + $0xc8] sm:%s667] %v776
                  %v778 = vld [vmem:[%s674 + $0x24c] sm:%s667]
                  %779 = vst [vmem:[%s675 + $0xcc] sm:%s667] %v778
                  %v780 = vld [vmem:[%s674 + $0x250] sm:%s667]
                  %781 = vst [vmem:[%s675 + $0xd0] sm:%s667] %v780
                  %v782 = vld [vmem:[%s674 + $0x254] sm:%s667]
                  %783 = vst [vmem:[%s675 + $0xd4] sm:%s667] %v782
                  %v784 = vld [vmem:[%s674 + $0x258] sm:%s667]
                  %785 = vst [vmem:[%s675 + $0xd8] sm:%s667] %v784
                  %v786 = vld [vmem:[%s674 + $0x25c] sm:%s667]
                  %787 = vst [vmem:[%s675 + $0xdc] sm:%s667] %v786
                  %v788 = vld [vmem:[%s674 + $0x260] sm:%s667]
                  %789 = vst [vmem:[%s675 + $0xe0] sm:%s667] %v788
                  %v790 = vld [vmem:[%s674 + $0x264] sm:%s667]
                  %791 = vst [vmem:[%s675 + $0xe4] sm:%s667] %v790
                  %v792 = vld [vmem:[%s674 + $0x268] sm:%s667]
                  %793 = vst [vmem:[%s675 + $0xe8] sm:%s667] %v792
                  %v794 = vld [vmem:[%s674 + $0x26c] sm:%s667]
                  %795 = vst [vmem:[%s675 + $0xec] sm:%s667] %v794
                  %v796 = vld [vmem:[%s674 + $0x270] sm:%s667]
                  %797 = vst [vmem:[%s675 + $0xf0] sm:%s667] %v796
                  %v798 = vld [vmem:[%s674 + $0x274] sm:%s667]
                  %799 = vst [vmem:[%s675 + $0xf4] sm:%s667] %v798
                  %v800 = vld [vmem:[%s674 + $0x278] sm:%s667]
                  %801 = vst [vmem:[%s675 + $0xf8] sm:%s667] %v800
                  %v802 = vld [vmem:[%s674 + $0x27c] sm:%s667]
                  %803 = vst [vmem:[%s675 + $0xfc] sm:%s667] %v802
                  %v804 = vld [vmem:[%s674 + $0x300] sm:%s667]
                  %805 = vst [vmem:[%s675 + $0x100] sm:%s667] %v804
                  %v806 = vld [vmem:[%s674 + $0x304] sm:%s667]
                  %807 = vst [vmem:[%s675 + $0x104] sm:%s667] %v806
                  %v808 = vld [vmem:[%s674 + $0x308] sm:%s667]
                  %809 = vst [vmem:[%s675 + $0x108] sm:%s667] %v808
                  %v810 = vld [vmem:[%s674 + $0x30c] sm:%s667]
                  %811 = vst [vmem:[%s675 + $0x10c] sm:%s667] %v810
                  %v812 = vld [vmem:[%s674 + $0x310] sm:%s667]
                  %813 = vst [vmem:[%s675 + $0x110] sm:%s667] %v812
                  %v814 = vld [vmem:[%s674 + $0x314] sm:%s667]
                  %815 = vst [vmem:[%s675 + $0x114] sm:%s667] %v814
                  %v816 = vld [vmem:[%s674 + $0x318] sm:%s667]
                  %817 = vst [vmem:[%s675 + $0x118] sm:%s667] %v816
                  %v818 = vld [vmem:[%s674 + $0x31c] sm:%s667]
                  %819 = vst [vmem:[%s675 + $0x11c] sm:%s667] %v818
                  %v820 = vld [vmem:[%s674 + $0x320] sm:%s667]
                  %821 = vst [vmem:[%s675 + $0x120] sm:%s667] %v820
                  %v822 = vld [vmem:[%s674 + $0x324] sm:%s667]
                  %823 = vst [vmem:[%s675 + $0x124] sm:%s667] %v822
                  %v824 = vld [vmem:[%s674 + $0x328] sm:%s667]
                  %825 = vst [vmem:[%s675 + $0x128] sm:%s667] %v824
                  %v826 = vld [vmem:[%s674 + $0x32c] sm:%s667]
                  %827 = vst [vmem:[%s675 + $0x12c] sm:%s667] %v826
                  %v828 = vld [vmem:[%s674 + $0x330] sm:%s667]
                  %829 = vst [vmem:[%s675 + $0x130] sm:%s667] %v828
                  %v830 = vld [vmem:[%s674 + $0x334] sm:%s667]
                  %831 = vst [vmem:[%s675 + $0x134] sm:%s667] %v830
                  %v832 = vld [vmem:[%s674 + $0x338] sm:%s667]
                  %833 = vst [vmem:[%s675 + $0x138] sm:%s667] %v832
                  %v834 = vld [vmem:[%s674 + $0x33c] sm:%s667]
                  %835 = vst [vmem:[%s675 + $0x13c] sm:%s667] %v834
                  %v836 = vld [vmem:[%s674 + $0x3c0] sm:%s667]
                  %837 = vst [vmem:[%s675 + $0x140] sm:%s667] %v836
                  %v838 = vld [vmem:[%s674 + $0x3c4] sm:%s667]
                  %839 = vst [vmem:[%s675 + $0x144] sm:%s667] %v838
                  %v840 = vld [vmem:[%s674 + $0x3c8] sm:%s667]
                  %841 = vst [vmem:[%s675 + $0x148] sm:%s667] %v840
                  %v842 = vld [vmem:[%s674 + $0x3cc] sm:%s667]
                  %843 = vst [vmem:[%s675 + $0x14c] sm:%s667] %v842
                  %v844 = vld [vmem:[%s674 + $0x3d0] sm:%s667]
                  %845 = vst [vmem:[%s675 + $0x150] sm:%s667] %v844
                  %v846 = vld [vmem:[%s674 + $0x3d4] sm:%s667]
                  %847 = vst [vmem:[%s675 + $0x154] sm:%s667] %v846
                  %v848 = vld [vmem:[%s674 + $0x3d8] sm:%s667]
                  %849 = vst [vmem:[%s675 + $0x158] sm:%s667] %v848
                  %v850 = vld [vmem:[%s674 + $0x3dc] sm:%s667]
                  %851 = vst [vmem:[%s675 + $0x15c] sm:%s667] %v850
                  %v852 = vld [vmem:[%s674 + $0x3e0] sm:%s667]
                  %853 = vst [vmem:[%s675 + $0x160] sm:%s667] %v852
                  %v854 = vld [vmem:[%s674 + $0x3e4] sm:%s667]
                  %855 = vst [vmem:[%s675 + $0x164] sm:%s667] %v854
                  %v856 = vld [vmem:[%s674 + $0x3e8] sm:%s667]
                  %857 = vst [vmem:[%s675 + $0x168] sm:%s667] %v856
                  %v858 = vld [vmem:[%s674 + $0x3ec] sm:%s667]
                  %859 = vst [vmem:[%s675 + $0x16c] sm:%s667] %v858
                  %v860 = vld [vmem:[%s674 + $0x3f0] sm:%s667]
                  %861 = vst [vmem:[%s675 + $0x170] sm:%s667] %v860
                  %v862 = vld [vmem:[%s674 + $0x3f4] sm:%s667]
                  %863 = vst [vmem:[%s675 + $0x174] sm:%s667] %v862
                  %v864 = vld [vmem:[%s674 + $0x3f8] sm:%s667]
                  %865 = vst [vmem:[%s675 + $0x178] sm:%s667] %v864
                  %v866 = vld [vmem:[%s674 + $0x3fc] sm:%s667]
                  %867 = vst [vmem:[%s675 + $0x17c] sm:%s667] %v866
                  %v868 = vld [vmem:[%s674 + $0x480] sm:%s667]
                  %869 = vst [vmem:[%s675 + $0x180] sm:%s667] %v868
                  %v870 = vld [vmem:[%s674 + $0x484] sm:%s667]
                  %871 = vst [vmem:[%s675 + $0x184] sm:%s667] %v870
                  %v872 = vld [vmem:[%s674 + $0x488] sm:%s667]
                  %873 = vst [vmem:[%s675 + $0x188] sm:%s667] %v872
                  %v874 = vld [vmem:[%s674 + $0x48c] sm:%s667]
                  %875 = vst [vmem:[%s675 + $0x18c] sm:%s667] %v874
                  %v876 = vld [vmem:[%s674 + $0x490] sm:%s667]
                  %877 = vst [vmem:[%s675 + $0x190] sm:%s667] %v876
                  %v878 = vld [vmem:[%s674 + $0x494] sm:%s667]
                  %879 = vst [vmem:[%s675 + $0x194] sm:%s667] %v878
                  %v880 = vld [vmem:[%s674 + $0x498] sm:%s667]
                  %881 = vst [vmem:[%s675 + $0x198] sm:%s667] %v880
                  %v882 = vld [vmem:[%s674 + $0x49c] sm:%s667]
                  %883 = vst [vmem:[%s675 + $0x19c] sm:%s667] %v882
                  %v884 = vld [vmem:[%s674 + $0x4a0] sm:%s667]
                  %885 = vst [vmem:[%s675 + $0x1a0] sm:%s667] %v884
                  %v886 = vld [vmem:[%s674 + $0x4a4] sm:%s667]
                  %887 = vst [vmem:[%s675 + $0x1a4] sm:%s667] %v886
                  %v888 = vld [vmem:[%s674 + $0x4a8] sm:%s667]
                  %889 = vst [vmem:[%s675 + $0x1a8] sm:%s667] %v888
                  %v890 = vld [vmem:[%s674 + $0x4ac] sm:%s667]
                  %891 = vst [vmem:[%s675 + $0x1ac] sm:%s667] %v890
                  %v892 = vld [vmem:[%s674 + $0x4b0] sm:%s667]
                  %893 = vst [vmem:[%s675 + $0x1b0] sm:%s667] %v892
                  %v894 = vld [vmem:[%s674 + $0x4b4] sm:%s667]
                  %895 = vst [vmem:[%s675 + $0x1b4] sm:%s667] %v894
                  %v896 = vld [vmem:[%s674 + $0x4b8] sm:%s667]
                  %897 = vst [vmem:[%s675 + $0x1b8] sm:%s667] %v896
                  %v898 = vld [vmem:[%s674 + $0x4bc] sm:%s667]
                  %899 = vst [vmem:[%s675 + $0x1bc] sm:%s667] %v898
                  %v900 = vld [vmem:[%s674 + $0x540] sm:%s667]
                  %901 = vst [vmem:[%s675 + $0x1c0] sm:%s667] %v900
                  %v902 = vld [vmem:[%s674 + $0x544] sm:%s667]
                  %903 = vst [vmem:[%s675 + $0x1c4] sm:%s667] %v902
                  %v904 = vld [vmem:[%s674 + $0x548] sm:%s667]
                  %905 = vst [vmem:[%s675 + $0x1c8] sm:%s667] %v904
                  %v906 = vld [vmem:[%s674 + $0x54c] sm:%s667]
                  %907 = vst [vmem:[%s675 + $0x1cc] sm:%s667] %v906
                  %v908 = vld [vmem:[%s674 + $0x550] sm:%s667]
                  %909 = vst [vmem:[%s675 + $0x1d0] sm:%s667] %v908
                  %v910 = vld [vmem:[%s674 + $0x554] sm:%s667]
                  %911 = vst [vmem:[%s675 + $0x1d4] sm:%s667] %v910
                  %v912 = vld [vmem:[%s674 + $0x558] sm:%s667]
                  %913 = vst [vmem:[%s675 + $0x1d8] sm:%s667] %v912
                  %v914 = vld [vmem:[%s674 + $0x55c] sm:%s667]
                  %915 = vst [vmem:[%s675 + $0x1dc] sm:%s667] %v914
                  %v916 = vld [vmem:[%s674 + $0x560] sm:%s667]
                  %917 = vst [vmem:[%s675 + $0x1e0] sm:%s667] %v916
                  %v918 = vld [vmem:[%s674 + $0x564] sm:%s667]
                  %919 = vst [vmem:[%s675 + $0x1e4] sm:%s667] %v918
                  %v920 = vld [vmem:[%s674 + $0x568] sm:%s667]
                  %921 = vst [vmem:[%s675 + $0x1e8] sm:%s667] %v920
                  %v922 = vld [vmem:[%s674 + $0x56c] sm:%s667]
                  %923 = vst [vmem:[%s675 + $0x1ec] sm:%s667] %v922
                  %v924 = vld [vmem:[%s674 + $0x570] sm:%s667]
                  %925 = vst [vmem:[%s675 + $0x1f0] sm:%s667] %v924
                  %v926 = vld [vmem:[%s674 + $0x574] sm:%s667]
                  %927 = vst [vmem:[%s675 + $0x1f4] sm:%s667] %v926
                  %v928 = vld [vmem:[%s674 + $0x578] sm:%s667]
                  %929 = vst [vmem:[%s675 + $0x1f8] sm:%s667] %v928
                  %v930 = vld [vmem:[%s674 + $0x57c] sm:%s667]
                  %931 = vst [vmem:[%s675 + $0x1fc] sm:%s667] %v930
                  %v932 = vld [vmem:[%s674 + $0x600] sm:%s667]
                  %933 = vst [vmem:[%s675 + $0x200] sm:%s667] %v932
                  %v934 = vld [vmem:[%s674 + $0x604] sm:%s667]
                  %935 = vst [vmem:[%s675 + $0x204] sm:%s667] %v934
                  %v936 = vld [vmem:[%s674 + $0x608] sm:%s667]
                  %937 = vst [vmem:[%s675 + $0x208] sm:%s667] %v936
                  %v938 = vld [vmem:[%s674 + $0x60c] sm:%s667]
                  %939 = vst [vmem:[%s675 + $0x20c] sm:%s667] %v938
                  %v940 = vld [vmem:[%s674 + $0x610] sm:%s667]
                  %941 = vst [vmem:[%s675 + $0x210] sm:%s667] %v940
                  %v942 = vld [vmem:[%s674 + $0x614] sm:%s667]
                  %943 = vst [vmem:[%s675 + $0x214] sm:%s667] %v942
                  %v944 = vld [vmem:[%s674 + $0x618] sm:%s667]
                  %945 = vst [vmem:[%s675 + $0x218] sm:%s667] %v944
                  %v946 = vld [vmem:[%s674 + $0x61c] sm:%s667]
                  %947 = vst [vmem:[%s675 + $0x21c] sm:%s667] %v946
                  %v948 = vld [vmem:[%s674 + $0x620] sm:%s667]
                  %949 = vst [vmem:[%s675 + $0x220] sm:%s667] %v948
                  %v950 = vld [vmem:[%s674 + $0x624] sm:%s667]
                  %951 = vst [vmem:[%s675 + $0x224] sm:%s667] %v950
                  %v952 = vld [vmem:[%s674 + $0x628] sm:%s667]
                  %953 = vst [vmem:[%s675 + $0x228] sm:%s667] %v952
                  %v954 = vld [vmem:[%s674 + $0x62c] sm:%s667]
                  %955 = vst [vmem:[%s675 + $0x22c] sm:%s667] %v954
                  %v956 = vld [vmem:[%s674 + $0x630] sm:%s667]
                  %957 = vst [vmem:[%s675 + $0x230] sm:%s667] %v956
                  %v958 = vld [vmem:[%s674 + $0x634] sm:%s667]
                  %959 = vst [vmem:[%s675 + $0x234] sm:%s667] %v958
                  %v960 = vld [vmem:[%s674 + $0x638] sm:%s667]
                  %961 = vst [vmem:[%s675 + $0x238] sm:%s667] %v960
                  %v962 = vld [vmem:[%s674 + $0x63c] sm:%s667]
                  %963 = vst [vmem:[%s675 + $0x23c] sm:%s667] %v962
                $region108: #{ppm_deepsup_forward.3} parent=95 // loop_footer
                  %s673 = sadd.s32 1, %s669
                $region109: #{ppm_deepsup_forward.3} parent=95 // loop_footer_branch
                  %668 = sbr.rel target = $region105
                $region110: #{ppm_deepsup_forward.3} parent=95 // loop_exit
                  _
              $region96: #{ppm_deepsup_forward.3} parent=80 // pred_fallthru
                _
            $region81: #{ppm_deepsup_forward.3} parent=76 // pred_fallthru
              _
            // Predicated region
            $region82: #{ppm_deepsup_forward.3} parent=76 // pred_check
              _
            $region83: #{ppm_deepsup_forward.3} parent=76 // pred_check_branch
              %357 = sbr.rel (0) target = $region85
            $region84: #{ppm_deepsup_forward.3} parent=76 // pred_region
              %s359 = ssub.s32 16, 1
              loop: start=0, step=1, limit=1
              $region86: #{ppm_deepsup_forward.3} parent=84 // loop_pre_header
                _
              $region87: #{ppm_deepsup_forward.3} parent=84 // loop_header
                %s361 = sphi 0, %s365
                %p362 = scmp.ge.s32.totalorder %s361, 1
                %s366 = sphi %s351, %s351
                %s367 = sphi %s348, %s348
              $region88: #{ppm_deepsup_forward.3} parent=84 // loop_header_branch
                %364 = sbr.rel (%p362) target = $region92
              $region89: #{ppm_deepsup_forward.3} parent=84 // loop_body
                %v368 = vld [vmem:[%s366] sm:%s359]
                %369 = vst [vmem:[%s367] sm:%s359] %v368
                %v370 = vld [vmem:[%s366 + $0x4] sm:%s359]
                %371 = vst [vmem:[%s367 + $0x4] sm:%s359] %v370
                %v372 = vld [vmem:[%s366 + $0x8] sm:%s359]
                %373 = vst [vmem:[%s367 + $0x8] sm:%s359] %v372
                %v374 = vld [vmem:[%s366 + $0xc] sm:%s359]
                %375 = vst [vmem:[%s367 + $0xc] sm:%s359] %v374
                %v376 = vld [vmem:[%s366 + $0x10] sm:%s359]
                %377 = vst [vmem:[%s367 + $0x10] sm:%s359] %v376
                %v378 = vld [vmem:[%s366 + $0x14] sm:%s359]
                %379 = vst [vmem:[%s367 + $0x14] sm:%s359] %v378
                %v380 = vld [vmem:[%s366 + $0x18] sm:%s359]
                %381 = vst [vmem:[%s367 + $0x18] sm:%s359] %v380
                %v382 = vld [vmem:[%s366 + $0x1c] sm:%s359]
                %383 = vst [vmem:[%s367 + $0x1c] sm:%s359] %v382
                %v384 = vld [vmem:[%s366 + $0x20] sm:%s359]
                %385 = vst [vmem:[%s367 + $0x20] sm:%s359] %v384
                %v386 = vld [vmem:[%s366 + $0x24] sm:%s359]
                %387 = vst [vmem:[%s367 + $0x24] sm:%s359] %v386
                %v388 = vld [vmem:[%s366 + $0x28] sm:%s359]
                %389 = vst [vmem:[%s367 + $0x28] sm:%s359] %v388
                %v390 = vld [vmem:[%s366 + $0x2c] sm:%s359]
                %391 = vst [vmem:[%s367 + $0x2c] sm:%s359] %v390
                %v392 = vld [vmem:[%s366 + $0x30] sm:%s359]
                %393 = vst [vmem:[%s367 + $0x30] sm:%s359] %v392
                %v394 = vld [vmem:[%s366 + $0x34] sm:%s359]
                %395 = vst [vmem:[%s367 + $0x34] sm:%s359] %v394
                %v396 = vld [vmem:[%s366 + $0x38] sm:%s359]
                %397 = vst [vmem:[%s367 + $0x38] sm:%s359] %v396
                %v398 = vld [vmem:[%s366 + $0x3c] sm:%s359]
                %399 = vst [vmem:[%s367 + $0x3c] sm:%s359] %v398
                %v400 = vld [vmem:[%s366 + $0xc0] sm:%s359]
                %401 = vst [vmem:[%s367 + $0x40] sm:%s359] %v400
                %v402 = vld [vmem:[%s366 + $0xc4] sm:%s359]
                %403 = vst [vmem:[%s367 + $0x44] sm:%s359] %v402
                %v404 = vld [vmem:[%s366 + $0xc8] sm:%s359]
                %405 = vst [vmem:[%s367 + $0x48] sm:%s359] %v404
                %v406 = vld [vmem:[%s366 + $0xcc] sm:%s359]
                %407 = vst [vmem:[%s367 + $0x4c] sm:%s359] %v406
                %v408 = vld [vmem:[%s366 + $0xd0] sm:%s359]
                %409 = vst [vmem:[%s367 + $0x50] sm:%s359] %v408
                %v410 = vld [vmem:[%s366 + $0xd4] sm:%s359]
                %411 = vst [vmem:[%s367 + $0x54] sm:%s359] %v410
                %v412 = vld [vmem:[%s366 + $0xd8] sm:%s359]
                %413 = vst [vmem:[%s367 + $0x58] sm:%s359] %v412
                %v414 = vld [vmem:[%s366 + $0xdc] sm:%s359]
                %415 = vst [vmem:[%s367 + $0x5c] sm:%s359] %v414
                %v416 = vld [vmem:[%s366 + $0xe0] sm:%s359]
                %417 = vst [vmem:[%s367 + $0x60] sm:%s359] %v416
                %v418 = vld [vmem:[%s366 + $0xe4] sm:%s359]
                %419 = vst [vmem:[%s367 + $0x64] sm:%s359] %v418
                %v420 = vld [vmem:[%s366 + $0xe8] sm:%s359]
                %421 = vst [vmem:[%s367 + $0x68] sm:%s359] %v420
                %v422 = vld [vmem:[%s366 + $0xec] sm:%s359]
                %423 = vst [vmem:[%s367 + $0x6c] sm:%s359] %v422
                %v424 = vld [vmem:[%s366 + $0xf0] sm:%s359]
                %425 = vst [vmem:[%s367 + $0x70] sm:%s359] %v424
                %v426 = vld [vmem:[%s366 + $0xf4] sm:%s359]
                %427 = vst [vmem:[%s367 + $0x74] sm:%s359] %v426
                %v428 = vld [vmem:[%s366 + $0xf8] sm:%s359]
                %429 = vst [vmem:[%s367 + $0x78] sm:%s359] %v428
                %v430 = vld [vmem:[%s366 + $0xfc] sm:%s359]
                %431 = vst [vmem:[%s367 + $0x7c] sm:%s359] %v430
                %v432 = vld [vmem:[%s366 + $0x180] sm:%s359]
                %433 = vst [vmem:[%s367 + $0x80] sm:%s359] %v432
                %v434 = vld [vmem:[%s366 + $0x184] sm:%s359]
                %435 = vst [vmem:[%s367 + $0x84] sm:%s359] %v434
                %v436 = vld [vmem:[%s366 + $0x188] sm:%s359]
                %437 = vst [vmem:[%s367 + $0x88] sm:%s359] %v436
                %v438 = vld [vmem:[%s366 + $0x18c] sm:%s359]
                %439 = vst [vmem:[%s367 + $0x8c] sm:%s359] %v438
                %v440 = vld [vmem:[%s366 + $0x190] sm:%s359]
                %441 = vst [vmem:[%s367 + $0x90] sm:%s359] %v440
                %v442 = vld [vmem:[%s366 + $0x194] sm:%s359]
                %443 = vst [vmem:[%s367 + $0x94] sm:%s359] %v442
                %v444 = vld [vmem:[%s366 + $0x198] sm:%s359]
                %445 = vst [vmem:[%s367 + $0x98] sm:%s359] %v444
                %v446 = vld [vmem:[%s366 + $0x19c] sm:%s359]
                %447 = vst [vmem:[%s367 + $0x9c] sm:%s359] %v446
                %v448 = vld [vmem:[%s366 + $0x1a0] sm:%s359]
                %449 = vst [vmem:[%s367 + $0xa0] sm:%s359] %v448
                %v450 = vld [vmem:[%s366 + $0x1a4] sm:%s359]
                %451 = vst [vmem:[%s367 + $0xa4] sm:%s359] %v450
                %v452 = vld [vmem:[%s366 + $0x1a8] sm:%s359]
                %453 = vst [vmem:[%s367 + $0xa8] sm:%s359] %v452
                %v454 = vld [vmem:[%s366 + $0x1ac] sm:%s359]
                %455 = vst [vmem:[%s367 + $0xac] sm:%s359] %v454
                %v456 = vld [vmem:[%s366 + $0x1b0] sm:%s359]
                %457 = vst [vmem:[%s367 + $0xb0] sm:%s359] %v456
                %v458 = vld [vmem:[%s366 + $0x1b4] sm:%s359]
                %459 = vst [vmem:[%s367 + $0xb4] sm:%s359] %v458
                %v460 = vld [vmem:[%s366 + $0x1b8] sm:%s359]
                %461 = vst [vmem:[%s367 + $0xb8] sm:%s359] %v460
                %v462 = vld [vmem:[%s366 + $0x1bc] sm:%s359]
                %463 = vst [vmem:[%s367 + $0xbc] sm:%s359] %v462
                %v464 = vld [vmem:[%s366 + $0x240] sm:%s359]
                %465 = vst [vmem:[%s367 + $0xc0] sm:%s359] %v464
                %v466 = vld [vmem:[%s366 + $0x244] sm:%s359]
                %467 = vst [vmem:[%s367 + $0xc4] sm:%s359] %v466
                %v468 = vld [vmem:[%s366 + $0x248] sm:%s359]
                %469 = vst [vmem:[%s367 + $0xc8] sm:%s359] %v468
                %v470 = vld [vmem:[%s366 + $0x24c] sm:%s359]
                %471 = vst [vmem:[%s367 + $0xcc] sm:%s359] %v470
                %v472 = vld [vmem:[%s366 + $0x250] sm:%s359]
                %473 = vst [vmem:[%s367 + $0xd0] sm:%s359] %v472
                %v474 = vld [vmem:[%s366 + $0x254] sm:%s359]
                %475 = vst [vmem:[%s367 + $0xd4] sm:%s359] %v474
                %v476 = vld [vmem:[%s366 + $0x258] sm:%s359]
                %477 = vst [vmem:[%s367 + $0xd8] sm:%s359] %v476
                %v478 = vld [vmem:[%s366 + $0x25c] sm:%s359]
                %479 = vst [vmem:[%s367 + $0xdc] sm:%s359] %v478
                %v480 = vld [vmem:[%s366 + $0x260] sm:%s359]
                %481 = vst [vmem:[%s367 + $0xe0] sm:%s359] %v480
                %v482 = vld [vmem:[%s366 + $0x264] sm:%s359]
                %483 = vst [vmem:[%s367 + $0xe4] sm:%s359] %v482
                %v484 = vld [vmem:[%s366 + $0x268] sm:%s359]
                %485 = vst [vmem:[%s367 + $0xe8] sm:%s359] %v484
                %v486 = vld [vmem:[%s366 + $0x26c] sm:%s359]
                %487 = vst [vmem:[%s367 + $0xec] sm:%s359] %v486
                %v488 = vld [vmem:[%s366 + $0x270] sm:%s359]
                %489 = vst [vmem:[%s367 + $0xf0] sm:%s359] %v488
                %v490 = vld [vmem:[%s366 + $0x274] sm:%s359]
                %491 = vst [vmem:[%s367 + $0xf4] sm:%s359] %v490
                %v492 = vld [vmem:[%s366 + $0x278] sm:%s359]
                %493 = vst [vmem:[%s367 + $0xf8] sm:%s359] %v492
                %v494 = vld [vmem:[%s366 + $0x27c] sm:%s359]
                %495 = vst [vmem:[%s367 + $0xfc] sm:%s359] %v494
                %v496 = vld [vmem:[%s366 + $0x300] sm:%s359]
                %497 = vst [vmem:[%s367 + $0x100] sm:%s359] %v496
                %v498 = vld [vmem:[%s366 + $0x304] sm:%s359]
                %499 = vst [vmem:[%s367 + $0x104] sm:%s359] %v498
                %v500 = vld [vmem:[%s366 + $0x308] sm:%s359]
                %501 = vst [vmem:[%s367 + $0x108] sm:%s359] %v500
                %v502 = vld [vmem:[%s366 + $0x30c] sm:%s359]
                %503 = vst [vmem:[%s367 + $0x10c] sm:%s359] %v502
                %v504 = vld [vmem:[%s366 + $0x310] sm:%s359]
                %505 = vst [vmem:[%s367 + $0x110] sm:%s359] %v504
                %v506 = vld [vmem:[%s366 + $0x314] sm:%s359]
                %507 = vst [vmem:[%s367 + $0x114] sm:%s359] %v506
                %v508 = vld [vmem:[%s366 + $0x318] sm:%s359]
                %509 = vst [vmem:[%s367 + $0x118] sm:%s359] %v508
                %v510 = vld [vmem:[%s366 + $0x31c] sm:%s359]
                %511 = vst [vmem:[%s367 + $0x11c] sm:%s359] %v510
                %v512 = vld [vmem:[%s366 + $0x320] sm:%s359]
                %513 = vst [vmem:[%s367 + $0x120] sm:%s359] %v512
                %v514 = vld [vmem:[%s366 + $0x324] sm:%s359]
                %515 = vst [vmem:[%s367 + $0x124] sm:%s359] %v514
                %v516 = vld [vmem:[%s366 + $0x328] sm:%s359]
                %517 = vst [vmem:[%s367 + $0x128] sm:%s359] %v516
                %v518 = vld [vmem:[%s366 + $0x32c] sm:%s359]
                %519 = vst [vmem:[%s367 + $0x12c] sm:%s359] %v518
                %v520 = vld [vmem:[%s366 + $0x330] sm:%s359]
                %521 = vst [vmem:[%s367 + $0x130] sm:%s359] %v520
                %v522 = vld [vmem:[%s366 + $0x334] sm:%s359]
                %523 = vst [vmem:[%s367 + $0x134] sm:%s359] %v522
                %v524 = vld [vmem:[%s366 + $0x338] sm:%s359]
                %525 = vst [vmem:[%s367 + $0x138] sm:%s359] %v524
                %v526 = vld [vmem:[%s366 + $0x33c] sm:%s359]
                %527 = vst [vmem:[%s367 + $0x13c] sm:%s359] %v526
                %v528 = vld [vmem:[%s366 + $0x3c0] sm:%s359]
                %529 = vst [vmem:[%s367 + $0x140] sm:%s359] %v528
                %v530 = vld [vmem:[%s366 + $0x3c4] sm:%s359]
                %531 = vst [vmem:[%s367 + $0x144] sm:%s359] %v530
                %v532 = vld [vmem:[%s366 + $0x3c8] sm:%s359]
                %533 = vst [vmem:[%s367 + $0x148] sm:%s359] %v532
                %v534 = vld [vmem:[%s366 + $0x3cc] sm:%s359]
                %535 = vst [vmem:[%s367 + $0x14c] sm:%s359] %v534
                %v536 = vld [vmem:[%s366 + $0x3d0] sm:%s359]
                %537 = vst [vmem:[%s367 + $0x150] sm:%s359] %v536
                %v538 = vld [vmem:[%s366 + $0x3d4] sm:%s359]
                %539 = vst [vmem:[%s367 + $0x154] sm:%s359] %v538
                %v540 = vld [vmem:[%s366 + $0x3d8] sm:%s359]
                %541 = vst [vmem:[%s367 + $0x158] sm:%s359] %v540
                %v542 = vld [vmem:[%s366 + $0x3dc] sm:%s359]
                %543 = vst [vmem:[%s367 + $0x15c] sm:%s359] %v542
                %v544 = vld [vmem:[%s366 + $0x3e0] sm:%s359]
                %545 = vst [vmem:[%s367 + $0x160] sm:%s359] %v544
                %v546 = vld [vmem:[%s366 + $0x3e4] sm:%s359]
                %547 = vst [vmem:[%s367 + $0x164] sm:%s359] %v546
                %v548 = vld [vmem:[%s366 + $0x3e8] sm:%s359]
                %549 = vst [vmem:[%s367 + $0x168] sm:%s359] %v548
                %v550 = vld [vmem:[%s366 + $0x3ec] sm:%s359]
                %551 = vst [vmem:[%s367 + $0x16c] sm:%s359] %v550
                %v552 = vld [vmem:[%s366 + $0x3f0] sm:%s359]
                %553 = vst [vmem:[%s367 + $0x170] sm:%s359] %v552
                %v554 = vld [vmem:[%s366 + $0x3f4] sm:%s359]
                %555 = vst [vmem:[%s367 + $0x174] sm:%s359] %v554
                %v556 = vld [vmem:[%s366 + $0x3f8] sm:%s359]
                %557 = vst [vmem:[%s367 + $0x178] sm:%s359] %v556
                %v558 = vld [vmem:[%s366 + $0x3fc] sm:%s359]
                %559 = vst [vmem:[%s367 + $0x17c] sm:%s359] %v558
                %v560 = vld [vmem:[%s366 + $0x480] sm:%s359]
                %561 = vst [vmem:[%s367 + $0x180] sm:%s359] %v560
                %v562 = vld [vmem:[%s366 + $0x484] sm:%s359]
                %563 = vst [vmem:[%s367 + $0x184] sm:%s359] %v562
                %v564 = vld [vmem:[%s366 + $0x488] sm:%s359]
                %565 = vst [vmem:[%s367 + $0x188] sm:%s359] %v564
                %v566 = vld [vmem:[%s366 + $0x48c] sm:%s359]
                %567 = vst [vmem:[%s367 + $0x18c] sm:%s359] %v566
                %v568 = vld [vmem:[%s366 + $0x490] sm:%s359]
                %569 = vst [vmem:[%s367 + $0x190] sm:%s359] %v568
                %v570 = vld [vmem:[%s366 + $0x494] sm:%s359]
                %571 = vst [vmem:[%s367 + $0x194] sm:%s359] %v570
                %v572 = vld [vmem:[%s366 + $0x498] sm:%s359]
                %573 = vst [vmem:[%s367 + $0x198] sm:%s359] %v572
                %v574 = vld [vmem:[%s366 + $0x49c] sm:%s359]
                %575 = vst [vmem:[%s367 + $0x19c] sm:%s359] %v574
                %v576 = vld [vmem:[%s366 + $0x4a0] sm:%s359]
                %577 = vst [vmem:[%s367 + $0x1a0] sm:%s359] %v576
                %v578 = vld [vmem:[%s366 + $0x4a4] sm:%s359]
                %579 = vst [vmem:[%s367 + $0x1a4] sm:%s359] %v578
                %v580 = vld [vmem:[%s366 + $0x4a8] sm:%s359]
                %581 = vst [vmem:[%s367 + $0x1a8] sm:%s359] %v580
                %v582 = vld [vmem:[%s366 + $0x4ac] sm:%s359]
                %583 = vst [vmem:[%s367 + $0x1ac] sm:%s359] %v582
                %v584 = vld [vmem:[%s366 + $0x4b0] sm:%s359]
                %585 = vst [vmem:[%s367 + $0x1b0] sm:%s359] %v584
                %v586 = vld [vmem:[%s366 + $0x4b4] sm:%s359]
                %587 = vst [vmem:[%s367 + $0x1b4] sm:%s359] %v586
                %v588 = vld [vmem:[%s366 + $0x4b8] sm:%s359]
                %589 = vst [vmem:[%s367 + $0x1b8] sm:%s359] %v588
                %v590 = vld [vmem:[%s366 + $0x4bc] sm:%s359]
                %591 = vst [vmem:[%s367 + $0x1bc] sm:%s359] %v590
                %v592 = vld [vmem:[%s366 + $0x540] sm:%s359]
                %593 = vst [vmem:[%s367 + $0x1c0] sm:%s359] %v592
                %v594 = vld [vmem:[%s366 + $0x544] sm:%s359]
                %595 = vst [vmem:[%s367 + $0x1c4] sm:%s359] %v594
                %v596 = vld [vmem:[%s366 + $0x548] sm:%s359]
                %597 = vst [vmem:[%s367 + $0x1c8] sm:%s359] %v596
                %v598 = vld [vmem:[%s366 + $0x54c] sm:%s359]
                %599 = vst [vmem:[%s367 + $0x1cc] sm:%s359] %v598
                %v600 = vld [vmem:[%s366 + $0x550] sm:%s359]
                %601 = vst [vmem:[%s367 + $0x1d0] sm:%s359] %v600
                %v602 = vld [vmem:[%s366 + $0x554] sm:%s359]
                %603 = vst [vmem:[%s367 + $0x1d4] sm:%s359] %v602
                %v604 = vld [vmem:[%s366 + $0x558] sm:%s359]
                %605 = vst [vmem:[%s367 + $0x1d8] sm:%s359] %v604
                %v606 = vld [vmem:[%s366 + $0x55c] sm:%s359]
                %607 = vst [vmem:[%s367 + $0x1dc] sm:%s359] %v606
                %v608 = vld [vmem:[%s366 + $0x560] sm:%s359]
                %609 = vst [vmem:[%s367 + $0x1e0] sm:%s359] %v608
                %v610 = vld [vmem:[%s366 + $0x564] sm:%s359]
                %611 = vst [vmem:[%s367 + $0x1e4] sm:%s359] %v610
                %v612 = vld [vmem:[%s366 + $0x568] sm:%s359]
                %613 = vst [vmem:[%s367 + $0x1e8] sm:%s359] %v612
                %v614 = vld [vmem:[%s366 + $0x56c] sm:%s359]
                %615 = vst [vmem:[%s367 + $0x1ec] sm:%s359] %v614
                %v616 = vld [vmem:[%s366 + $0x570] sm:%s359]
                %617 = vst [vmem:[%s367 + $0x1f0] sm:%s359] %v616
                %v618 = vld [vmem:[%s366 + $0x574] sm:%s359]
                %619 = vst [vmem:[%s367 + $0x1f4] sm:%s359] %v618
                %v620 = vld [vmem:[%s366 + $0x578] sm:%s359]
                %621 = vst [vmem:[%s367 + $0x1f8] sm:%s359] %v620
                %v622 = vld [vmem:[%s366 + $0x57c] sm:%s359]
                %623 = vst [vmem:[%s367 + $0x1fc] sm:%s359] %v622
                %v624 = vld [vmem:[%s366 + $0x600] sm:%s359]
                %625 = vst [vmem:[%s367 + $0x200] sm:%s359] %v624
                %v626 = vld [vmem:[%s366 + $0x604] sm:%s359]
                %627 = vst [vmem:[%s367 + $0x204] sm:%s359] %v626
                %v628 = vld [vmem:[%s366 + $0x608] sm:%s359]
                %629 = vst [vmem:[%s367 + $0x208] sm:%s359] %v628
                %v630 = vld [vmem:[%s366 + $0x60c] sm:%s359]
                %631 = vst [vmem:[%s367 + $0x20c] sm:%s359] %v630
                %v632 = vld [vmem:[%s366 + $0x610] sm:%s359]
                %633 = vst [vmem:[%s367 + $0x210] sm:%s359] %v632
                %v634 = vld [vmem:[%s366 + $0x614] sm:%s359]
                %635 = vst [vmem:[%s367 + $0x214] sm:%s359] %v634
                %v636 = vld [vmem:[%s366 + $0x618] sm:%s359]
                %637 = vst [vmem:[%s367 + $0x218] sm:%s359] %v636
                %v638 = vld [vmem:[%s366 + $0x61c] sm:%s359]
                %639 = vst [vmem:[%s367 + $0x21c] sm:%s359] %v638
                %v640 = vld [vmem:[%s366 + $0x620] sm:%s359]
                %641 = vst [vmem:[%s367 + $0x220] sm:%s359] %v640
                %v642 = vld [vmem:[%s366 + $0x624] sm:%s359]
                %643 = vst [vmem:[%s367 + $0x224] sm:%s359] %v642
                %v644 = vld [vmem:[%s366 + $0x628] sm:%s359]
                %645 = vst [vmem:[%s367 + $0x228] sm:%s359] %v644
                %v646 = vld [vmem:[%s366 + $0x62c] sm:%s359]
                %647 = vst [vmem:[%s367 + $0x22c] sm:%s359] %v646
                %v648 = vld [vmem:[%s366 + $0x630] sm:%s359]
                %649 = vst [vmem:[%s367 + $0x230] sm:%s359] %v648
                %v650 = vld [vmem:[%s366 + $0x634] sm:%s359]
                %651 = vst [vmem:[%s367 + $0x234] sm:%s359] %v650
                %v652 = vld [vmem:[%s366 + $0x638] sm:%s359]
                %653 = vst [vmem:[%s367 + $0x238] sm:%s359] %v652
                %v654 = vld [vmem:[%s366 + $0x63c] sm:%s359]
                %655 = vst [vmem:[%s367 + $0x23c] sm:%s359] %v654
              $region90: #{ppm_deepsup_forward.3} parent=84 // loop_footer
                %s365 = sadd.s32 1, %s361
              $region91: #{ppm_deepsup_forward.3} parent=84 // loop_footer_branch
                %360 = sbr.rel target = $region87
              $region92: #{ppm_deepsup_forward.3} parent=84 // loop_exit
                _
            $region85: #{ppm_deepsup_forward.3} parent=76 // pred_fallthru
              _
          $region77: #{ppm_deepsup_forward.3} parent=72 // pred_fallthru
            _
          %964 = vnop
        $region73: #{ppm_deepsup_forward.3} parent=27 // pred_fallthru
          _
      $region28: #{ppm_deepsup_forward.3} parent=5 // pred_fallthru
        _
      %p965 = scmp.le.s32.totalorder 1, %s11
      %p966 = scmp.lt.s32.totalorder %s11, 7
      %p967 = pnand %p965, %p966
      %p968 = pneg %p967
      // Predicated region
      $region111: #{ppm_deepsup_forward.3} parent=5 // pred_check
        _
      $region112: #{ppm_deepsup_forward.3} parent=5 // pred_check_branch
        %970 = sbr.rel (%p967) target = $region114
      $region113: #{ppm_deepsup_forward.3} parent=5 // pred_region
        %s971 = ssub.s32 %s11, 1
        %s972 = sand.u32 %s38, 1
        %s973 = sand.u32 %s38, 1
        %s974 = smul.addr %s973, 100
        %s975 = scalar_lea.vmem [#allocation3], %s974
        // Predicated region
        $region115: #{ppm_deepsup_forward.3} parent=113 // pred_check
          %p976 = pneg %p51
        $region116: #{ppm_deepsup_forward.3} parent=113 // pred_check_branch
          %978 = sbr.rel (%p976) target = $region118
        $region117: #{ppm_deepsup_forward.3} parent=113 // pred_region
          _
        $region118: #{ppm_deepsup_forward.3} parent=113 // pred_fallthru
          _
        %s979 = sand.u32 %s64, 1
        %s980 = sand.u32 %s64, 1
        %s981 = smul.addr %s980, 576
        %s982 = scalar_lea.vmem [#allocation4], %s981
        // Predicated region
        $region119: #{ppm_deepsup_forward.3} parent=113 // pred_check
          %p983 = pneg %p77
        $region120: #{ppm_deepsup_forward.3} parent=113 // pred_check_branch
          %985 = sbr.rel (%p983) target = $region122
        $region121: #{ppm_deepsup_forward.3} parent=113 // pred_region
          _
        $region122: #{ppm_deepsup_forward.3} parent=113 // pred_fallthru
          _
        %s986 = sand.u32 %s38, 1
        %s987 = sand.u32 %s38, 1
        %s988 = smul.addr %s987, 100
        %s989 = scalar_lea.vmem [#allocation3], %s988
        %p990 = pneg %p51
        %p991 = pneg %p48
        %s992 = sand.u32 %s64, 1
        %s993 = sand.u32 %s64, 1
        %s994 = smul.addr %s993, 576
        %s995 = scalar_lea.vmem [#allocation4], %s994
        %p996 = pneg %p77
        %p997 = pneg %p74
        %p998 = pneg %p98
        %p999 = pneg %p95
        %p1000 = pneg %p119
        %p1001 = pneg %p116
        %p1002 = pneg %p140
        %p1003 = pneg %p137
        %p1004 = pneg %p166
        %p1005 = pneg %p163
        %p1006 = scmp.lt.s32.totalorder %s20, 1
        %s1007 = scalar_select %p1006, %s20, 1
        %s1008 = smul.addr %s1007, 21
        %s1009 = smul.addr %s1008, 8
        %s1010 = scalar_lea.vmem %s5, %s1009
        %s1011 = smul.u32 16, %s21
        %p1012 = scmp.lt.s32.totalorder %s20, 1
        %s1013 = scalar_select %p1012, %s20, 1
        %s1014 = smul.addr %s1013, 21
        %s1015 = smul.addr %s1014, 8
        %s1016 = scalar_lea.vmem %s5, %s1015
        %p1018 = scmp.eq.s32.totalorder %s21, 0
        // Predicated region
        $region123: #{ppm_deepsup_forward.3} parent=113 // pred_check
          %p1019 = pneg %p1018
        $region124: #{ppm_deepsup_forward.3} parent=113 // pred_check_branch
          %1021 = sbr.rel (%p1019) target = $region126
        $region125: #{ppm_deepsup_forward.3} parent=113 // pred_region
          %vm1022 = vcmask 523264
          %1023 = vst.msk [vmem:[#allocation2] sm:$0xff] %vm1022, 0.0
          %1024 = vst.msk [vmem:[#allocation2 + $0x8] sm:$0xff] %vm1022, 0.0
          %1025 = vst.msk [vmem:[#allocation2 + $0x10] sm:$0xff] %vm1022, 0.0
          %1026 = vst.msk [vmem:[#allocation2 + $0x18] sm:$0xff] %vm1022, 0.0
          %1027 = vst.msk [vmem:[#allocation2 + $0x20] sm:$0xff] %vm1022, 0.0
          %1028 = vst.msk [vmem:[#allocation2 + $0x28] sm:$0xff] %vm1022, 0.0
          %1029 = vst.msk [vmem:[#allocation2 + $0x30] sm:$0xff] %vm1022, 0.0
          %1030 = vst.msk [vmem:[#allocation2 + $0x38] sm:$0xff] %vm1022, 0.0
          %1031 = vst.msk [vmem:[#allocation2 + $0x40] sm:$0xff] %vm1022, 0.0
          %1032 = vst.msk [vmem:[#allocation2 + $0x48] sm:$0xff] %vm1022, 0.0
          %1033 = vst.msk [vmem:[#allocation2 + $0x50] sm:$0xff] %vm1022, 0.0
          %1034 = vst.msk [vmem:[#allocation2 + $0x58] sm:$0xff] %vm1022, 0.0
          %1035 = vst.msk [vmem:[#allocation2 + $0x60] sm:$0xff] %vm1022, 0.0
          %1036 = vst.msk [vmem:[#allocation2 + $0x68] sm:$0xff] %vm1022, 0.0
          %1037 = vst.msk [vmem:[#allocation2 + $0x70] sm:$0xff] %vm1022, 0.0
          %1038 = vst.msk [vmem:[#allocation2 + $0x78] sm:$0xff] %vm1022, 0.0
          %1039 = vst.msk [vmem:[#allocation2 + $0x80] sm:$0xff] %vm1022, 0.0
          %1040 = vst.msk [vmem:[#allocation2 + $0x88] sm:$0xff] %vm1022, 0.0
          %1041 = vst.msk [vmem:[#allocation2 + $0x90] sm:$0xff] %vm1022, 0.0
          %1042 = vst.msk [vmem:[#allocation2 + $0x98] sm:$0xff] %vm1022, 0.0
          %1043 = vst.msk [vmem:[#allocation2 + $0xa0] sm:$0xff] %vm1022, 0.0
        $region126: #{ppm_deepsup_forward.3} parent=113 // pred_fallthru
          _
        %v1044 = vld [vmem:[%s975] sm:$0xf]
        %v1045 = vld [vmem:[%s975 + $0x4] sm:$0xf]
        %v1046 = vld [vmem:[%s975 + $0x8] sm:$0xf]
        %v1047 = vld [vmem:[%s975 + $0xc] sm:$0xf]
        %v1048 = vld [vmem:[%s975 + $0x10] sm:$0xf]
        %v1049 = vld [vmem:[%s975 + $0x14] sm:$0xf]
        %v1050 = vld [vmem:[%s975 + $0x18] sm:$0xf]
        %v1051 = vld [vmem:[%s975 + $0x1c] sm:$0xf]
        %v1052 = vld [vmem:[%s975 + $0x20] sm:$0xf]
        %v1053 = vld [vmem:[%s975 + $0x24] sm:$0xf]
        %v1054 = vld [vmem:[%s975 + $0x28] sm:$0xf]
        %v1055 = vld [vmem:[%s975 + $0x2c] sm:$0xf]
        %v1056 = vld [vmem:[%s975 + $0x30] sm:$0xf]
        %v1057 = vld [vmem:[%s975 + $0x34] sm:$0xf]
        %v1058 = vld [vmem:[%s975 + $0x38] sm:$0xf]
        %v1059 = vld [vmem:[%s975 + $0x3c] sm:$0xf]
        %v1060 = vld [vmem:[%s975 + $0x40] sm:$0xf]
        %v1061 = vld [vmem:[%s975 + $0x44] sm:$0xf]
        %v1062 = vld [vmem:[%s975 + $0x48] sm:$0xf]
        %v1063 = vld [vmem:[%s975 + $0x4c] sm:$0xf]
        %v1064 = vld [vmem:[%s975 + $0x50] sm:$0xf]
        %v1065 = vld [vmem:[%s982] sm:$0xf]
        %v1066 = vld [vmem:[%s982 + $0x4] sm:$0xf]
        %v1067 = vld [vmem:[%s982 + $0x8] sm:$0xf]
        %v1068 = vld [vmem:[%s982 + $0xc] sm:$0xf]
        %v1069 = vld [vmem:[%s982 + $0x10] sm:$0xf]
        %v1070 = vld [vmem:[%s982 + $0x14] sm:$0xf]
        %v1071 = vld [vmem:[%s982 + $0x18] sm:$0xf]
        %v1072 = vld [vmem:[%s982 + $0x1c] sm:$0xf]
        %v1073 = vld [vmem:[%s982 + $0x20] sm:$0xf]
        %v1074 = vld [vmem:[%s982 + $0x24] sm:$0xf]
        %v1075 = vld [vmem:[%s982 + $0x28] sm:$0xf]
        %v1076 = vld [vmem:[%s982 + $0x2c] sm:$0xf]
        %v1077 = vld [vmem:[%s982 + $0x30] sm:$0xf]
        %v1078 = vld [vmem:[%s982 + $0x34] sm:$0xf]
        %v1079 = vld [vmem:[%s982 + $0x38] sm:$0xf]
        %v1080 = vld [vmem:[%s982 + $0x3c] sm:$0xf]
        %v1081 = vld [vmem:[%s975 + $0x54] sm:$0x1]
        %s1082 = scalar_lea.vmem %s982, 64 [#allocation4]
        %v1083 = vld [vmem:[%s1082] sm:$0xf]
        %v1084 = vld [vmem:[%s1082 + $0x4] sm:$0xf]
        %v1085 = vld [vmem:[%s1082 + $0x8] sm:$0xf]
        %v1086 = vld [vmem:[%s1082 + $0xc] sm:$0xf]
        %v1087 = vld [vmem:[%s1082 + $0x10] sm:$0xf]
        %v1088 = vld [vmem:[%s1082 + $0x14] sm:$0xf]
        %v1089 = vld [vmem:[%s1082 + $0x18] sm:$0xf]
        %v1090 = vld [vmem:[%s1082 + $0x1c] sm:$0xf]
        %v1091 = vld [vmem:[%s1082 + $0x20] sm:$0xf]
        %v1092 = vld [vmem:[%s1082 + $0x24] sm:$0xf]
        %v1093 = vld [vmem:[%s1082 + $0x28] sm:$0xf]
        %v1094 = vld [vmem:[%s1082 + $0x2c] sm:$0xf]
        %v1095 = vld [vmem:[%s1082 + $0x30] sm:$0xf]
        %v1096 = vld [vmem:[%s1082 + $0x34] sm:$0xf]
        %v1097 = vld [vmem:[%s1082 + $0x38] sm:$0xf]
        %v1098 = vld [vmem:[%s1082 + $0x3c] sm:$0xf]
        %v1121 = vunpack.c.l.b16 %v1044
        %v1122 = vunpack.c.l.b16 %v1045
        %v1123 = vunpack.c.l.b16 %v1046
        %v1124 = vunpack.c.l.b16 %v1047
        %v1125 = vunpack.c.l.b16 %v1048
        %v1126 = vunpack.c.l.b16 %v1049
        %v1127 = vunpack.c.l.b16 %v1050
        %v1128 = vunpack.c.l.b16 %v1051
        %v1129 = vunpack.c.l.b16 %v1052
        %v1130 = vunpack.c.l.b16 %v1053
        %v1131 = vunpack.c.l.b16 %v1054
        %v1132 = vunpack.c.l.b16 %v1055
        %v1133 = vunpack.c.l.b16 %v1056
        %v1134 = vunpack.c.l.b16 %v1057
        %v1135 = vunpack.c.l.b16 %v1058
        %v1136 = vunpack.c.l.b16 %v1059
        %v1137 = vunpack.c.l.b16 %v1060
        %v1138 = vunpack.c.l.b16 %v1061
        %v1139 = vunpack.c.l.b16 %v1062
        %v1140 = vunpack.c.l.b16 %v1063
        %v1141 = vunpack.c.l.b16 %v1064
        %v1142 = vunpack.c.l.b16 %v1081
        %v1143 = vpack.c.b16 %v1122, %v1121
        %v1144 = vpack.c.b16 %v1124, %v1123
        %v1145 = vpack.c.b16 %v1126, %v1125
        %v1146 = vpack.c.b16 %v1128, %v1127
        %v1147 = vpack.c.b16 %v1130, %v1129
        %v1148 = vpack.c.b16 %v1132, %v1131
        %v1149 = vpack.c.b16 %v1134, %v1133
        %v1150 = vpack.c.b16 %v1136, %v1135
        %v1151 = vpack.c.b16 %v1138, %v1137
        %v1152 = vpack.c.b16 %v1140, %v1139
        %v1153 = vpack.c.b16 %v1142, %v1141
        %vm1154 = vsmask.f32 7424
        %v1156 = vshrl.u32 %v1143, 16
        %v1158 = vshll.u32 %v1143, 16
        %v1160 = vrot.slane %v1158, 1
        %v1161 = vor.u32 %v1156, %v1160
        %v1163 = vshll.u32 %v1144, 16
        %v1165 = vrot.slane %v1163, 1
        %v1166 = vsel %vm1154, %v1161, %v1165
        %v1167 = vshrl.u32 %v1144, 16
        %v1169 = vor.u32 %v1167, %v1165
        %v1171 = vshll.u32 %v1145, 16
        %v1173 = vrot.slane %v1171, 1
        %v1174 = vsel %vm1154, %v1169, %v1173
        %v1175 = vshrl.u32 %v1145, 16
        %v1177 = vor.u32 %v1175, %v1173
        %v1179 = vshll.u32 %v1146, 16
        %v1181 = vrot.slane %v1179, 1
        %v1182 = vsel %vm1154, %v1177, %v1181
        %v1183 = vshrl.u32 %v1146, 16
        %v1185 = vor.u32 %v1183, %v1181
        %v1187 = vshll.u32 %v1147, 16
        %v1189 = vrot.slane %v1187, 1
        %v1190 = vsel %vm1154, %v1185, %v1189
        %v1191 = vshrl.u32 %v1147, 16
        %v1193 = vor.u32 %v1191, %v1189
        %v1195 = vshll.u32 %v1148, 16
        %v1197 = vrot.slane %v1195, 1
        %v1198 = vsel %vm1154, %v1193, %v1197
        %v1199 = vshrl.u32 %v1148, 16
        %v1201 = vor.u32 %v1199, %v1197
        %v1203 = vshll.u32 %v1149, 16
        %v1205 = vrot.slane %v1203, 1
        %v1206 = vsel %vm1154, %v1201, %v1205
        %v1207 = vshrl.u32 %v1149, 16
        %v1209 = vor.u32 %v1207, %v1205
        %v1211 = vshll.u32 %v1150, 16
        %v1213 = vrot.slane %v1211, 1
        %v1214 = vsel %vm1154, %v1209, %v1213
        %v1215 = vshrl.u32 %v1150, 16
        %v1217 = vor.u32 %v1215, %v1213
        %v1219 = vshll.u32 %v1151, 16
        %v1221 = vrot.slane %v1219, 1
        %v1222 = vsel %vm1154, %v1217, %v1221
        %v1223 = vshrl.u32 %v1151, 16
        %v1225 = vor.u32 %v1223, %v1221
        %v1227 = vshll.u32 %v1152, 16
        %v1229 = vrot.slane %v1227, 1
        %v1230 = vsel %vm1154, %v1225, %v1229
        %v1231 = vshrl.u32 %v1152, 16
        %v1233 = vor.u32 %v1231, %v1229
        %v1235 = vshll.u32 %v1153, 16
        %v1237 = vrot.slane %v1235, 1
        %v1238 = vsel %vm1154, %v1233, %v1237
        %v1239 = vshrl.u32 %v1153, 16
        %v1241 = vor.u32 %v1239, %v1237
        %v1269 = vunpack.c.l.b16 %v1083
        %v1270 = vunpack.c.l.b16 %v1084
        %v1271 = vunpack.c.l.b16 %v1085
        %v1272 = vunpack.c.l.b16 %v1086
        %v1273 = vunpack.c.l.b16 %v1087
        %v1274 = vunpack.c.l.b16 %v1088
        %v1275 = vunpack.c.l.b16 %v1089
        %v1276 = vunpack.c.l.b16 %v1090
        %v1277 = vunpack.c.l.b16 %v1091
        %v1278 = vunpack.c.l.b16 %v1092
        %v1279 = vunpack.c.l.b16 %v1093
        %v1280 = vunpack.c.l.b16 %v1094
        %v1281 = vunpack.c.l.b16 %v1095
        %v1282 = vunpack.c.l.b16 %v1096
        %v1283 = vunpack.c.l.b16 %v1097
        %v1284 = vunpack.c.l.b16 %v1098
        %v1285 = vpack.c.b16 %v1270, %v1269
        %v1286 = vpack.c.b16 %v1272, %v1271
        %v1287 = vpack.c.b16 %v1274, %v1273
        %v1288 = vpack.c.b16 %v1276, %v1275
        %v1289 = vpack.c.b16 %v1278, %v1277
        %v1290 = vpack.c.b16 %v1280, %v1279
        %v1291 = vpack.c.b16 %v1282, %v1281
        %v1292 = vpack.c.b16 %v1284, %v1283
        %1301 = vmatprep.subr.bf16.mxu0 0
        %1302 = vmatpush1.bf16.msra.mxu0 %v1292
        %1303 = vmatprep.subr.bf16.mxu0 0
        %1304 = vmatpush1.bf16.msra.mxu0 %v1291
        %1305 = vmatprep.subr.bf16.mxu0 0
        %1306 = vmatpush1.bf16.msra.mxu0 %v1290
        %1307 = vmatprep.subr.bf16.mxu0 0
        %1308 = vmatpush1.bf16.msra.mxu0 %v1289
        %1309 = vmatprep.subr.bf16.mxu0 0
        %1310 = vmatpush1.bf16.msra.mxu0 %v1288
        %1311 = vmatprep.subr.bf16.mxu0 0
        %1312 = vmatpush1.bf16.msra.mxu0 %v1287
        %1313 = vmatprep.subr.bf16.mxu0 0
        %1314 = vmatpush1.bf16.msra.mxu0 %v1286
        %1315 = vmatprep.subr.bf16.mxu0 0
        %1316 = vmatpush1.bf16.msra.mxu0 %v1285
        %1317 = vmatprep.subr.bf16.mxu0 0
        %1318 = vmatpush2.bf16.msra.mxu0 0
        %1319 = vmatprep.subr.bf16.mxu0 0
        %1320 = vmatpush2.bf16.msra.mxu0 0
        %1321 = vmatprep.subr.bf16.mxu0 0
        %1322 = vmatpush2.bf16.msra.mxu0 0
        %1323 = vmatprep.subr.bf16.mxu0 0
        %1324 = vmatpush2.bf16.msra.mxu0 0
        %1325 = vmatprep.subr.bf16.mxu0 0
        %1326 = vmatpush2.bf16.msra.mxu0 0
        %1327 = vmatprep.subr.bf16.mxu0 0
        %1328 = vmatpush2.bf16.msra.mxu0 0
        %1329 = vmatprep.subr.bf16.mxu0 0
        %1330 = vmatpush2.bf16.msra.mxu0 0
        %1331 = vmatprep.subr.bf16.mxu0 0
        %1332 = vmatpush2.bf16.msra.mxu0 0
        %1333 = vmatprep.mubr.bf16.mxu0 0
        %1334 = vmatmul.mubr.bf16.gmra.mxu0 %v1166
        %v1335 = vpop.f32.mrf.mxu0
        %v1336 = vadd.f32 0.0, %v1335
        %v1337 = vpop.f32.mrf.mxu0
        %v1338 = vpop.f32.mrf.mxu0
        %v1339 = vadd.f32 0.0, %v1338
        %v1340 = vpop.f32.mrf.mxu0
        %1341 = vmatprep.mubr.bf16.mxu0 0
        %1342 = vmatmul.mubr.bf16.gmra.mxu0 %v1174
        %v1343 = vpop.f32.mrf.mxu0
        %v1344 = vadd.f32 0.0, %v1343
        %v1345 = vpop.f32.mrf.mxu0
        %v1346 = vpop.f32.mrf.mxu0
        %v1347 = vadd.f32 0.0, %v1346
        %v1348 = vpop.f32.mrf.mxu0
        %1349 = vmatprep.mubr.bf16.mxu0 0
        %1350 = vmatmul.mubr.bf16.gmra.mxu0 %v1182
        %v1351 = vpop.f32.mrf.mxu0
        %v1352 = vadd.f32 0.0, %v1351
        %v1353 = vpop.f32.mrf.mxu0
        %v1354 = vpop.f32.mrf.mxu0
        %v1355 = vadd.f32 0.0, %v1354
        %v1356 = vpop.f32.mrf.mxu0
        %1357 = vmatprep.mubr.bf16.mxu0 0
        %1358 = vmatmul.mubr.bf16.gmra.mxu0 %v1190
        %v1359 = vpop.f32.mrf.mxu0
        %v1360 = vadd.f32 0.0, %v1359
        %v1361 = vpop.f32.mrf.mxu0
        %v1362 = vpop.f32.mrf.mxu0
        %v1363 = vadd.f32 0.0, %v1362
        %v1364 = vpop.f32.mrf.mxu0
        %1365 = vmatprep.mubr.bf16.mxu0 0
        %1366 = vmatmul.mubr.bf16.gmra.mxu0 %v1198
        %v1367 = vpop.f32.mrf.mxu0
        %v1368 = vadd.f32 0.0, %v1367
        %v1369 = vpop.f32.mrf.mxu0
        %v1370 = vpop.f32.mrf.mxu0
        %v1371 = vadd.f32 0.0, %v1370
        %v1372 = vpop.f32.mrf.mxu0
        %1373 = vmatprep.mubr.bf16.mxu0 0
        %1374 = vmatmul.mubr.bf16.gmra.mxu0 %v1206
        %v1375 = vpop.f32.mrf.mxu0
        %v1376 = vadd.f32 0.0, %v1375
        %v1377 = vpop.f32.mrf.mxu0
        %v1378 = vpop.f32.mrf.mxu0
        %v1379 = vadd.f32 0.0, %v1378
        %v1380 = vpop.f32.mrf.mxu0
        %1381 = vmatprep.mubr.bf16.mxu0 0
        %1382 = vmatmul.mubr.bf16.gmra.mxu0 %v1214
        %v1383 = vpop.f32.mrf.mxu0
        %v1384 = vadd.f32 0.0, %v1383
        %v1385 = vpop.f32.mrf.mxu0
        %v1386 = vpop.f32.mrf.mxu0
        %v1387 = vadd.f32 0.0, %v1386
        %v1388 = vpop.f32.mrf.mxu0
        %1389 = vmatprep.mubr.bf16.mxu0 0
        %1390 = vmatmul.mubr.bf16.gmra.mxu0 %v1222
        %v1391 = vpop.f32.mrf.mxu0
        %v1392 = vadd.f32 0.0, %v1391
        %v1393 = vpop.f32.mrf.mxu0
        %v1394 = vpop.f32.mrf.mxu0
        %v1395 = vadd.f32 0.0, %v1394
        %v1396 = vpop.f32.mrf.mxu0
        %1397 = vmatprep.mubr.bf16.mxu0 0
        %1398 = vmatmul.mubr.bf16.gmra.mxu0 %v1230
        %v1399 = vpop.f32.mrf.mxu0
        %v1400 = vadd.f32 0.0, %v1399
        %v1401 = vpop.f32.mrf.mxu0
        %v1402 = vpop.f32.mrf.mxu0
        %v1403 = vadd.f32 0.0, %v1402
        %v1404 = vpop.f32.mrf.mxu0
        %1405 = vmatprep.mubr.bf16.mxu0 0
        %1406 = vmatmul.mubr.bf16.gmra.mxu0 %v1238
        %v1407 = vpop.f32.mrf.mxu0
        %v1408 = vadd.f32 0.0, %v1407
        %v1409 = vpop.f32.mrf.mxu0
        %v1410 = vpop.f32.mrf.mxu0
        %v1411 = vadd.f32 0.0, %v1410
        %v1412 = vpop.f32.mrf.mxu0
        %1413 = vmatprep.mubr.bf16.mxu0 0
        %1414 = vmatmul.mubr.bf16.gmra.mxu0 %v1241
        %v1415 = vpop.f32.mrf.mxu0
        %v1416 = vadd.f32 0.0, %v1415
        %v1417 = vpop.f32.mrf.mxu0
        %v1418 = vpop.f32.mrf.mxu0
        %v1419 = vpop.f32.mrf.mxu0
        %1420 = vdwg.mxu0
        %v1421 = vpack.c.b16 %v1141, %v1141
        %v1449 = vunpack.c.l.b16 %v1065
        %v1450 = vunpack.c.l.b16 %v1066
        %v1451 = vunpack.c.l.b16 %v1067
        %v1452 = vunpack.c.l.b16 %v1068
        %v1453 = vunpack.c.l.b16 %v1069
        %v1454 = vunpack.c.l.b16 %v1070
        %v1455 = vunpack.c.l.b16 %v1071
        %v1456 = vunpack.c.l.b16 %v1072
        %v1457 = vunpack.c.l.b16 %v1073
        %v1458 = vunpack.c.l.b16 %v1074
        %v1459 = vunpack.c.l.b16 %v1075
        %v1460 = vunpack.c.l.b16 %v1076
        %v1461 = vunpack.c.l.b16 %v1077
        %v1462 = vunpack.c.l.b16 %v1078
        %v1463 = vunpack.c.l.b16 %v1079
        %v1464 = vunpack.c.l.b16 %v1080
        %v1465 = vpack.c.b16 %v1450, %v1449
        %v1466 = vpack.c.b16 %v1452, %v1451
        %v1467 = vpack.c.b16 %v1454, %v1453
        %v1468 = vpack.c.b16 %v1456, %v1455
        %v1469 = vpack.c.b16 %v1458, %v1457
        %v1470 = vpack.c.b16 %v1460, %v1459
        %v1471 = vpack.c.b16 %v1462, %v1461
        %v1472 = vpack.c.b16 %v1464, %v1463
        %1481 = vmatprep.subr.bf16.mxu0 0
        %1482 = vmatpush1.bf16.msra.mxu0 %v1472
        %1483 = vmatprep.subr.bf16.mxu0 0
        %1484 = vmatpush1.bf16.msra.mxu0 %v1471
        %1485 = vmatprep.subr.bf16.mxu0 0
        %1486 = vmatpush1.bf16.msra.mxu0 %v1470
        %1487 = vmatprep.subr.bf16.mxu0 0
        %1488 = vmatpush1.bf16.msra.mxu0 %v1469
        %1489 = vmatprep.subr.bf16.mxu0 0
        %1490 = vmatpush1.bf16.msra.mxu0 %v1468
        %1491 = vmatprep.subr.bf16.mxu0 0
        %1492 = vmatpush1.bf16.msra.mxu0 %v1467
        %1493 = vmatprep.subr.bf16.mxu0 0
        %1494 = vmatpush1.bf16.msra.mxu0 %v1466
        %1495 = vmatprep.subr.bf16.mxu0 0
        %1496 = vmatpush1.bf16.msra.mxu0 %v1465
        %1497 = vmatprep.subr.bf16.mxu0 0
        %1498 = vmatpush2.bf16.msra.mxu0 0
        %1499 = vmatprep.subr.bf16.mxu0 0
        %1500 = vmatpush2.bf16.msra.mxu0 0
        %1501 = vmatprep.subr.bf16.mxu0 0
        %1502 = vmatpush2.bf16.msra.mxu0 0
        %1503 = vmatprep.subr.bf16.mxu0 0
        %1504 = vmatpush2.bf16.msra.mxu0 0
        %1505 = vmatprep.subr.bf16.mxu0 0
        %1506 = vmatpush2.bf16.msra.mxu0 0
        %1507 = vmatprep.subr.bf16.mxu0 0
        %1508 = vmatpush2.bf16.msra.mxu0 0
        %1509 = vmatprep.subr.bf16.mxu0 0
        %1510 = vmatpush2.bf16.msra.mxu0 0
        %1511 = vmatprep.subr.bf16.mxu0 0
        %1512 = vmatpush2.bf16.msra.mxu0 0
        %1513 = vmatprep.mubr.bf16.mxu0 0
        %1514 = vmatmul.mubr.bf16.gmra.mxu0 %v1143
        %v1515 = vpop.f32.mrf.mxu0
        %v1516 = vadd.f32 %v1336, %v1515
        %v1517 = vpop.f32.mrf.mxu0
        %v1518 = vpop.f32.mrf.mxu0
        %v1519 = vadd.f32 %v1339, %v1518
        %v1520 = vpop.f32.mrf.mxu0
        %1521 = vmatprep.mubr.bf16.mxu0 0
        %1522 = vmatmul.mubr.bf16.gmra.mxu0 %v1144
        %v1523 = vpop.f32.mrf.mxu0
        %v1524 = vadd.f32 %v1344, %v1523
        %v1525 = vpop.f32.mrf.mxu0
        %v1526 = vpop.f32.mrf.mxu0
        %v1527 = vadd.f32 %v1347, %v1526
        %v1528 = vpop.f32.mrf.mxu0
        %1529 = vmatprep.mubr.bf16.mxu0 0
        %1530 = vmatmul.mubr.bf16.gmra.mxu0 %v1145
        %v1531 = vpop.f32.mrf.mxu0
        %v1532 = vadd.f32 %v1352, %v1531
        %v1533 = vpop.f32.mrf.mxu0
        %v1534 = vpop.f32.mrf.mxu0
        %v1535 = vadd.f32 %v1355, %v1534
        %v1536 = vpop.f32.mrf.mxu0
        %1537 = vmatprep.mubr.bf16.mxu0 0
        %1538 = vmatmul.mubr.bf16.gmra.mxu0 %v1146
        %v1539 = vpop.f32.mrf.mxu0
        %v1540 = vadd.f32 %v1360, %v1539
        %v1541 = vpop.f32.mrf.mxu0
        %v1542 = vpop.f32.mrf.mxu0
        %v1543 = vadd.f32 %v1363, %v1542
        %v1544 = vpop.f32.mrf.mxu0
        %1545 = vmatprep.mubr.bf16.mxu0 0
        %1546 = vmatmul.mubr.bf16.gmra.mxu0 %v1147
        %v1547 = vpop.f32.mrf.mxu0
        %v1548 = vadd.f32 %v1368, %v1547
        %v1549 = vpop.f32.mrf.mxu0
        %v1550 = vpop.f32.mrf.mxu0
        %v1551 = vadd.f32 %v1371, %v1550
        %v1552 = vpop.f32.mrf.mxu0
        %1553 = vmatprep.mubr.bf16.mxu0 0
        %1554 = vmatmul.mubr.bf16.gmra.mxu0 %v1148
        %v1555 = vpop.f32.mrf.mxu0
        %v1556 = vadd.f32 %v1376, %v1555
        %v1557 = vpop.f32.mrf.mxu0
        %v1558 = vpop.f32.mrf.mxu0
        %v1559 = vadd.f32 %v1379, %v1558
        %v1560 = vpop.f32.mrf.mxu0
        %1561 = vmatprep.mubr.bf16.mxu0 0
        %1562 = vmatmul.mubr.bf16.gmra.mxu0 %v1149
        %v1563 = vpop.f32.mrf.mxu0
        %v1564 = vadd.f32 %v1384, %v1563
        %v1565 = vpop.f32.mrf.mxu0
        %v1566 = vpop.f32.mrf.mxu0
        %v1567 = vadd.f32 %v1387, %v1566
        %v1568 = vpop.f32.mrf.mxu0
        %1569 = vmatprep.mubr.bf16.mxu0 0
        %1570 = vmatmul.mubr.bf16.gmra.mxu0 %v1150
        %v1571 = vpop.f32.mrf.mxu0
        %v1572 = vadd.f32 %v1392, %v1571
        %v1573 = vpop.f32.mrf.mxu0
        %v1574 = vpop.f32.mrf.mxu0
        %v1575 = vadd.f32 %v1395, %v1574
        %v1576 = vpop.f32.mrf.mxu0
        %1577 = vmatprep.mubr.bf16.mxu0 0
        %1578 = vmatmul.mubr.bf16.gmra.mxu0 %v1151
        %v1579 = vpop.f32.mrf.mxu0
        %v1580 = vadd.f32 %v1400, %v1579
        %v1581 = vpop.f32.mrf.mxu0
        %v1582 = vpop.f32.mrf.mxu0
        %v1583 = vadd.f32 %v1403, %v1582
        %v1584 = vpop.f32.mrf.mxu0
        %1585 = vmatprep.mubr.bf16.mxu0 0
        %1586 = vmatmul.mubr.bf16.gmra.mxu0 %v1152
        %v1587 = vpop.f32.mrf.mxu0
        %v1588 = vadd.f32 %v1408, %v1587
        %v1589 = vpop.f32.mrf.mxu0
        %v1590 = vpop.f32.mrf.mxu0
        %v1591 = vadd.f32 %v1411, %v1590
        %v1592 = vpop.f32.mrf.mxu0
        %1593 = vmatprep.mubr.bf16.mxu0 0
        %1594 = vmatmul.mubr.bf16.gmra.mxu0 %v1421
        %v1595 = vpop.f32.mrf.mxu0
        %v1596 = vadd.f32 %v1416, %v1595
        %v1597 = vpop.f32.mrf.mxu0
        %v1598 = vpop.f32.mrf.mxu0
        %v1599 = vpop.f32.mrf.mxu0
        %1600 = vdwg.mxu0
        %v1601 = vld [vmem:[%s975] sm:$0xe]
        %s1602 = scalar_lea.vmem %s982, 128 [#allocation4]
        %v1603 = vld [vmem:[%s1602] sm:$0xf]
        %v1604 = vld [vmem:[%s1602 + $0x4] sm:$0xf]
        %v1605 = vld [vmem:[%s1602 + $0x8] sm:$0xf]
        %v1606 = vld [vmem:[%s1602 + $0xc] sm:$0xf]
        %v1607 = vld [vmem:[%s1602 + $0x10] sm:$0xf]
        %v1608 = vld [vmem:[%s1602 + $0x14] sm:$0xf]
        %v1609 = vld [vmem:[%s1602 + $0x18] sm:$0xf]
        %v1610 = vld [vmem:[%s1602 + $0x1c] sm:$0xf]
        %v1611 = vld [vmem:[%s1602 + $0x20] sm:$0xf]
        %v1612 = vld [vmem:[%s1602 + $0x24] sm:$0xf]
        %v1613 = vld [vmem:[%s1602 + $0x28] sm:$0xf]
        %v1614 = vld [vmem:[%s1602 + $0x2c] sm:$0xf]
        %v1615 = vld [vmem:[%s1602 + $0x30] sm:$0xf]
        %v1616 = vld [vmem:[%s1602 + $0x34] sm:$0xf]
        %v1617 = vld [vmem:[%s1602 + $0x38] sm:$0xf]
        %v1618 = vld [vmem:[%s1602 + $0x3c] sm:$0xf]
        %v1620 = vunpack.c.l.b16 %v1601
        %v1621 = vpack.c.b16 %v1122, %v1620
        %vm1622 = vcmask 1046528
        %v1623 = vrot.slane %v1621, 1
        %v1624 = vrot.slane %v1144, 1
        %v1625 = vsel %vm1622, %v1623, %v1624
        %v1626 = vrot.slane %v1145, 1
        %v1627 = vsel %vm1622, %v1624, %v1626
        %v1628 = vrot.slane %v1146, 1
        %v1629 = vsel %vm1622, %v1626, %v1628
        %v1630 = vrot.slane %v1147, 1
        %v1631 = vsel %vm1622, %v1628, %v1630
        %v1632 = vrot.slane %v1148, 1
        %v1633 = vsel %vm1622, %v1630, %v1632
        %v1634 = vrot.slane %v1149, 1
        %v1635 = vsel %vm1622, %v1632, %v1634
        %v1636 = vrot.slane %v1150, 1
        %v1637 = vsel %vm1622, %v1634, %v1636
        %v1638 = vrot.slane %v1151, 1
        %v1639 = vsel %vm1622, %v1636, %v1638
        %v1640 = vrot.slane %v1152, 1
        %v1641 = vsel %vm1622, %v1638, %v1640
        %v1642 = vrot.slane %v1153, 1
        %v1643 = vsel %vm1622, %v1640, %v1642
        %v1671 = vunpack.c.l.b16 %v1603
        %v1672 = vunpack.c.l.b16 %v1604
        %v1673 = vunpack.c.l.b16 %v1605
        %v1674 = vunpack.c.l.b16 %v1606
        %v1675 = vunpack.c.l.b16 %v1607
        %v1676 = vunpack.c.l.b16 %v1608
        %v1677 = vunpack.c.l.b16 %v1609
        %v1678 = vunpack.c.l.b16 %v1610
        %v1679 = vunpack.c.l.b16 %v1611
        %v1680 = vunpack.c.l.b16 %v1612
        %v1681 = vunpack.c.l.b16 %v1613
        %v1682 = vunpack.c.l.b16 %v1614
        %v1683 = vunpack.c.l.b16 %v1615
        %v1684 = vunpack.c.l.b16 %v1616
        %v1685 = vunpack.c.l.b16 %v1617
        %v1686 = vunpack.c.l.b16 %v1618
        %v1687 = vpack.c.b16 %v1672, %v1671
        %v1688 = vpack.c.b16 %v1674, %v1673
        %v1689 = vpack.c.b16 %v1676, %v1675
        %v1690 = vpack.c.b16 %v1678, %v1677
        %v1691 = vpack.c.b16 %v1680, %v1679
        %v1692 = vpack.c.b16 %v1682, %v1681
        %v1693 = vpack.c.b16 %v1684, %v1683
        %v1694 = vpack.c.b16 %v1686, %v1685
        %1703 = vmatprep.subr.bf16.mxu0 0
        %1704 = vmatpush1.bf16.msra.mxu0 %v1694
        %1705 = vmatprep.subr.bf16.mxu0 0
        %1706 = vmatpush1.bf16.msra.mxu0 %v1693
        %1707 = vmatprep.subr.bf16.mxu0 0
        %1708 = vmatpush1.bf16.msra.mxu0 %v1692
        %1709 = vmatprep.subr.bf16.mxu0 0
        %1710 = vmatpush1.bf16.msra.mxu0 %v1691
        %1711 = vmatprep.subr.bf16.mxu0 0
        %1712 = vmatpush1.bf16.msra.mxu0 %v1690
        %1713 = vmatprep.subr.bf16.mxu0 0
        %1714 = vmatpush1.bf16.msra.mxu0 %v1689
        %1715 = vmatprep.subr.bf16.mxu0 0
        %1716 = vmatpush1.bf16.msra.mxu0 %v1688
        %1717 = vmatprep.subr.bf16.mxu0 0
        %1718 = vmatpush1.bf16.msra.mxu0 %v1687
        %1719 = vmatprep.subr.bf16.mxu0 0
        %1720 = vmatpush2.bf16.msra.mxu0 0
        %1721 = vmatprep.subr.bf16.mxu0 0
        %1722 = vmatpush2.bf16.msra.mxu0 0
        %1723 = vmatprep.subr.bf16.mxu0 0
        %1724 = vmatpush2.bf16.msra.mxu0 0
        %1725 = vmatprep.subr.bf16.mxu0 0
        %1726 = vmatpush2.bf16.msra.mxu0 0
        %1727 = vmatprep.subr.bf16.mxu0 0
        %1728 = vmatpush2.bf16.msra.mxu0 0
        %1729 = vmatprep.subr.bf16.mxu0 0
        %1730 = vmatpush2.bf16.msra.mxu0 0
        %1731 = vmatprep.subr.bf16.mxu0 0
        %1732 = vmatpush2.bf16.msra.mxu0 0
        %1733 = vmatprep.subr.bf16.mxu0 0
        %1734 = vmatpush2.bf16.msra.mxu0 0
        %1735 = vmatprep.mubr.bf16.mxu0 0
        %1736 = vmatmul.mubr.bf16.gmra.mxu0 %v1625
        %v1737 = vpop.f32.mrf.mxu0
        %v1738 = vadd.f32 0.0, %v1737
        %v1739 = vpop.f32.mrf.mxu0
        %v1740 = vpop.f32.mrf.mxu0
        %v1741 = vadd.f32 0.0, %v1740
        %v1742 = vpop.f32.mrf.mxu0
        %1743 = vmatprep.mubr.bf16.mxu0 0
        %1744 = vmatmul.mubr.bf16.gmra.mxu0 %v1627
        %v1745 = vpop.f32.mrf.mxu0
        %v1746 = vadd.f32 0.0, %v1745
        %v1747 = vpop.f32.mrf.mxu0
        %v1748 = vpop.f32.mrf.mxu0
        %v1749 = vadd.f32 0.0, %v1748
        %v1750 = vpop.f32.mrf.mxu0
        %1751 = vmatprep.mubr.bf16.mxu0 0
        %1752 = vmatmul.mubr.bf16.gmra.mxu0 %v1629
        %v1753 = vpop.f32.mrf.mxu0
        %v1754 = vadd.f32 0.0, %v1753
        %v1755 = vpop.f32.mrf.mxu0
        %v1756 = vpop.f32.mrf.mxu0
        %v1757 = vadd.f32 0.0, %v1756
        %v1758 = vpop.f32.mrf.mxu0
        %1759 = vmatprep.mubr.bf16.mxu0 0
        %1760 = vmatmul.mubr.bf16.gmra.mxu0 %v1631
        %v1761 = vpop.f32.mrf.mxu0
        %v1762 = vadd.f32 0.0, %v1761
        %v1763 = vpop.f32.mrf.mxu0
        %v1764 = vpop.f32.mrf.mxu0
        %v1765 = vadd.f32 0.0, %v1764
        %v1766 = vpop.f32.mrf.mxu0
        %1767 = vmatprep.mubr.bf16.mxu0 0
        %1768 = vmatmul.mubr.bf16.gmra.mxu0 %v1633
        %v1769 = vpop.f32.mrf.mxu0
        %v1770 = vadd.f32 0.0, %v1769
        %v1771 = vpop.f32.mrf.mxu0
        %v1772 = vpop.f32.mrf.mxu0
        %v1773 = vadd.f32 0.0, %v1772
        %v1774 = vpop.f32.mrf.mxu0
        %1775 = vmatprep.mubr.bf16.mxu0 0
        %1776 = vmatmul.mubr.bf16.gmra.mxu0 %v1635
        %v1777 = vpop.f32.mrf.mxu0
        %v1778 = vadd.f32 0.0, %v1777
        %v1779 = vpop.f32.mrf.mxu0
        %v1780 = vpop.f32.mrf.mxu0
        %v1781 = vadd.f32 0.0, %v1780
        %v1782 = vpop.f32.mrf.mxu0
        %1783 = vmatprep.mubr.bf16.mxu0 0
        %1784 = vmatmul.mubr.bf16.gmra.mxu0 %v1637
        %v1785 = vpop.f32.mrf.mxu0
        %v1786 = vadd.f32 0.0, %v1785
        %v1787 = vpop.f32.mrf.mxu0
        %v1788 = vpop.f32.mrf.mxu0
        %v1789 = vadd.f32 0.0, %v1788
        %v1790 = vpop.f32.mrf.mxu0
        %1791 = vmatprep.mubr.bf16.mxu0 0
        %1792 = vmatmul.mubr.bf16.gmra.mxu0 %v1639
        %v1793 = vpop.f32.mrf.mxu0
        %v1794 = vadd.f32 0.0, %v1793
        %v1795 = vpop.f32.mrf.mxu0
        %v1796 = vpop.f32.mrf.mxu0
        %v1797 = vadd.f32 0.0, %v1796
        %v1798 = vpop.f32.mrf.mxu0
        %1799 = vmatprep.mubr.bf16.mxu0 0
        %1800 = vmatmul.mubr.bf16.gmra.mxu0 %v1641
        %v1801 = vpop.f32.mrf.mxu0
        %v1802 = vadd.f32 0.0, %v1801
        %v1803 = vpop.f32.mrf.mxu0
        %v1804 = vpop.f32.mrf.mxu0
        %v1805 = vadd.f32 0.0, %v1804
        %v1806 = vpop.f32.mrf.mxu0
        %1807 = vmatprep.mubr.bf16.mxu0 0
        %1808 = vmatmul.mubr.bf16.gmra.mxu0 %v1643
        %v1809 = vpop.f32.mrf.mxu0
        %v1810 = vadd.f32 0.0, %v1809
        %v1811 = vpop.f32.mrf.mxu0
        %v1812 = vpop.f32.mrf.mxu0
        %v1813 = vadd.f32 0.0, %v1812
        %v1814 = vpop.f32.mrf.mxu0
        %1815 = vmatprep.mubr.bf16.mxu0 0
        %1816 = vmatmul.mubr.bf16.gmra.mxu0 %v1642
        %v1817 = vpop.f32.mrf.mxu0
        %v1818 = vadd.f32 0.0, %v1817
        %v1819 = vpop.f32.mrf.mxu0
        %v1820 = vpop.f32.mrf.mxu0
        %v1821 = vpop.f32.mrf.mxu0
        %1822 = vdwg.mxu0
        %v1823 = vadd.f32 %v1516, %v1738
        %v1824 = vadd.f32 %v1519, %v1741
        %v1825 = vadd.f32 %v1524, %v1746
        %v1826 = vadd.f32 %v1527, %v1749
        %v1827 = vadd.f32 %v1532, %v1754
        %v1828 = vadd.f32 %v1535, %v1757
        %v1829 = vadd.f32 %v1540, %v1762
        %v1830 = vadd.f32 %v1543, %v1765
        %v1831 = vadd.f32 %v1548, %v1770
        %v1832 = vadd.f32 %v1551, %v1773
        %v1833 = vadd.f32 %v1556, %v1778
        %v1834 = vadd.f32 %v1559, %v1781
        %v1835 = vadd.f32 %v1564, %v1786
        %v1836 = vadd.f32 %v1567, %v1789
        %v1837 = vadd.f32 %v1572, %v1794
        %v1838 = vadd.f32 %v1575, %v1797
        %v1839 = vadd.f32 %v1580, %v1802
        %v1840 = vadd.f32 %v1583, %v1805
        %v1841 = vadd.f32 %v1588, %v1810
        %v1842 = vadd.f32 %v1591, %v1813
        %v1843 = vadd.f32 %v1596, %v1818
        %v1844 = vld [vmem:[%s975 + $0x4] sm:$0x8]
        %v1845 = vld [vmem:[%s975 + $0x8] sm:$0xf]
        %v1846 = vld [vmem:[%s975 + $0xc] sm:$0xf]
        %v1847 = vld [vmem:[%s975 + $0x10] sm:$0xf]
        %v1848 = vld [vmem:[%s975 + $0x14] sm:$0xf]
        %v1849 = vld [vmem:[%s975 + $0x18] sm:$0xf]
        %v1850 = vld [vmem:[%s975 + $0x1c] sm:$0xf]
        %v1851 = vld [vmem:[%s975 + $0x20] sm:$0xf]
        %v1852 = vld [vmem:[%s975 + $0x24] sm:$0xf]
        %v1853 = vld [vmem:[%s975 + $0x28] sm:$0xf]
        %v1854 = vld [vmem:[%s975 + $0x2c] sm:$0xf]
        %v1855 = vld [vmem:[%s975 + $0x30] sm:$0xf]
        %v1856 = vld [vmem:[%s975 + $0x34] sm:$0xf]
        %v1857 = vld [vmem:[%s975 + $0x38] sm:$0xf]
        %v1858 = vld [vmem:[%s975 + $0x3c] sm:$0xf]
        %v1859 = vld [vmem:[%s975 + $0x40] sm:$0xf]
        %v1860 = vld [vmem:[%s975 + $0x44] sm:$0xf]
        %v1861 = vld [vmem:[%s975 + $0x48] sm:$0xf]
        %v1862 = vld [vmem:[%s975 + $0x4c] sm:$0xf]
        %v1863 = vld [vmem:[%s975 + $0x50] sm:$0xf]
        %v1864 = vld [vmem:[%s975 + $0x54] sm:$0xf]
        %v1865 = vld [vmem:[%s975 + $0x58] sm:$0x7]
        %s1866 = scalar_lea.vmem %s982, 192 [#allocation4]
        %v1867 = vld [vmem:[%s1866] sm:$0xf]
        %v1868 = vld [vmem:[%s1866 + $0x4] sm:$0xf]
        %v1869 = vld [vmem:[%s1866 + $0x8] sm:$0xf]
        %v1870 = vld [vmem:[%s1866 + $0xc] sm:$0xf]
        %v1871 = vld [vmem:[%s1866 + $0x10] sm:$0xf]
        %v1872 = vld [vmem:[%s1866 + $0x14] sm:$0xf]
        %v1873 = vld [vmem:[%s1866 + $0x18] sm:$0xf]
        %v1874 = vld [vmem:[%s1866 + $0x1c] sm:$0xf]
        %v1875 = vld [vmem:[%s1866 + $0x20] sm:$0xf]
        %v1876 = vld [vmem:[%s1866 + $0x24] sm:$0xf]
        %v1877 = vld [vmem:[%s1866 + $0x28] sm:$0xf]
        %v1878 = vld [vmem:[%s1866 + $0x2c] sm:$0xf]
        %v1879 = vld [vmem:[%s1866 + $0x30] sm:$0xf]
        %v1880 = vld [vmem:[%s1866 + $0x34] sm:$0xf]
        %v1881 = vld [vmem:[%s1866 + $0x38] sm:$0xf]
        %v1882 = vld [vmem:[%s1866 + $0x3c] sm:$0xf]
        %v1905 = vunpack.c.l.b16 %v1844
        %v1906 = vunpack.c.l.b16 %v1845
        %v1907 = vunpack.c.l.b16 %v1846
        %v1908 = vunpack.c.l.b16 %v1847
        %v1909 = vunpack.c.l.b16 %v1848
        %v1910 = vunpack.c.l.b16 %v1849
        %v1911 = vunpack.c.l.b16 %v1850
        %v1912 = vunpack.c.l.b16 %v1851
        %v1913 = vunpack.c.l.b16 %v1852
        %v1914 = vunpack.c.l.b16 %v1853
        %v1915 = vunpack.c.l.b16 %v1854
        %v1916 = vunpack.c.l.b16 %v1855
        %v1917 = vunpack.c.l.b16 %v1856
        %v1918 = vunpack.c.l.b16 %v1857
        %v1919 = vunpack.c.l.b16 %v1858
        %v1920 = vunpack.c.l.b16 %v1859
        %v1921 = vunpack.c.l.b16 %v1860
        %v1922 = vunpack.c.l.b16 %v1861
        %v1923 = vunpack.c.l.b16 %v1862
        %v1924 = vunpack.c.l.b16 %v1863
        %v1925 = vunpack.c.l.b16 %v1864
        %v1926 = vunpack.c.l.b16 %v1865
        %v1927 = vpack.c.b16 %v1906, %v1905
        %v1928 = vpack.c.b16 %v1908, %v1907
        %v1929 = vpack.c.b16 %v1910, %v1909
        %v1930 = vpack.c.b16 %v1912, %v1911
        %v1931 = vpack.c.b16 %v1914, %v1913
        %v1932 = vpack.c.b16 %v1916, %v1915
        %v1933 = vpack.c.b16 %v1918, %v1917
        %v1934 = vpack.c.b16 %v1920, %v1919
        %v1935 = vpack.c.b16 %v1922, %v1921
        %v1936 = vpack.c.b16 %v1924, %v1923
        %v1937 = vpack.c.b16 %v1926, %v1925
        %vm1938 = vcmask 1044480
        %v1939 = vrot.slane %v1927, 3
        %v1940 = vrot.slane %v1928, 3
        %v1941 = vsel %vm1938, %v1939, %v1940
        %v1942 = vrot.slane %v1929, 3
        %v1943 = vsel %vm1938, %v1940, %v1942
        %v1944 = vrot.slane %v1930, 3
        %v1945 = vsel %vm1938, %v1942, %v1944
        %v1946 = vrot.slane %v1931, 3
        %v1947 = vsel %vm1938, %v1944, %v1946
        %v1948 = vrot.slane %v1932, 3
        %v1949 = vsel %vm1938, %v1946, %v1948
        %v1950 = vrot.slane %v1933, 3
        %v1951 = vsel %vm1938, %v1948, %v1950
        %v1952 = vrot.slane %v1934, 3
        %v1953 = vsel %vm1938, %v1950, %v1952
        %v1954 = vrot.slane %v1935, 3
        %v1955 = vsel %vm1938, %v1952, %v1954
        %v1956 = vrot.slane %v1936, 3
        %v1957 = vsel %vm1938, %v1954, %v1956
        %v1958 = vrot.slane %v1937, 3
        %v1959 = vsel %vm1938, %v1956, %v1958
        %v1987 = vunpack.c.l.b16 %v1867
        %v1988 = vunpack.c.l.b16 %v1868
        %v1989 = vunpack.c.l.b16 %v1869
        %v1990 = vunpack.c.l.b16 %v1870
        %v1991 = vunpack.c.l.b16 %v1871
        %v1992 = vunpack.c.l.b16 %v1872
        %v1993 = vunpack.c.l.b16 %v1873
        %v1994 = vunpack.c.l.b16 %v1874
        %v1995 = vunpack.c.l.b16 %v1875
        %v1996 = vunpack.c.l.b16 %v1876
        %v1997 = vunpack.c.l.b16 %v1877
        %v1998 = vunpack.c.l.b16 %v1878
        %v1999 = vunpack.c.l.b16 %v1879
        %v2000 = vunpack.c.l.b16 %v1880
        %v2001 = vunpack.c.l.b16 %v1881
        %v2002 = vunpack.c.l.b16 %v1882
        %v2003 = vpack.c.b16 %v1988, %v1987
        %v2004 = vpack.c.b16 %v1990, %v1989
        %v2005 = vpack.c.b16 %v1992, %v1991
        %v2006 = vpack.c.b16 %v1994, %v1993
        %v2007 = vpack.c.b16 %v1996, %v1995
        %v2008 = vpack.c.b16 %v1998, %v1997
        %v2009 = vpack.c.b16 %v2000, %v1999
        %v2010 = vpack.c.b16 %v2002, %v2001
        %2019 = vmatprep.subr.bf16.mxu0 0
        %2020 = vmatpush1.bf16.msra.mxu0 %v2010
        %2021 = vmatprep.subr.bf16.mxu0 0
        %2022 = vmatpush1.bf16.msra.mxu0 %v2009
        %2023 = vmatprep.subr.bf16.mxu0 0
        %2024 = vmatpush1.bf16.msra.mxu0 %v2008
        %2025 = vmatprep.subr.bf16.mxu0 0
        %2026 = vmatpush1.bf16.msra.mxu0 %v2007
        %2027 = vmatprep.subr.bf16.mxu0 0
        %2028 = vmatpush1.bf16.msra.mxu0 %v2006
        %2029 = vmatprep.subr.bf16.mxu0 0
        %2030 = vmatpush1.bf16.msra.mxu0 %v2005
        %2031 = vmatprep.subr.bf16.mxu0 0
        %2032 = vmatpush1.bf16.msra.mxu0 %v2004
        %2033 = vmatprep.subr.bf16.mxu0 0
        %2034 = vmatpush1.bf16.msra.mxu0 %v2003
        %2035 = vmatprep.subr.bf16.mxu0 0
        %2036 = vmatpush2.bf16.msra.mxu0 0
        %2037 = vmatprep.subr.bf16.mxu0 0
        %2038 = vmatpush2.bf16.msra.mxu0 0
        %2039 = vmatprep.subr.bf16.mxu0 0
        %2040 = vmatpush2.bf16.msra.mxu0 0
        %2041 = vmatprep.subr.bf16.mxu0 0
        %2042 = vmatpush2.bf16.msra.mxu0 0
        %2043 = vmatprep.subr.bf16.mxu0 0
        %2044 = vmatpush2.bf16.msra.mxu0 0
        %2045 = vmatprep.subr.bf16.mxu0 0
        %2046 = vmatpush2.bf16.msra.mxu0 0
        %2047 = vmatprep.subr.bf16.mxu0 0
        %2048 = vmatpush2.bf16.msra.mxu0 0
        %2049 = vmatprep.subr.bf16.mxu0 0
        %2050 = vmatpush2.bf16.msra.mxu0 0
        %2051 = vmatprep.mubr.bf16.mxu0 0
        %2052 = vmatmul.mubr.bf16.gmra.mxu0 %v1941
        %v2053 = vpop.f32.mrf.mxu0
        %v2054 = vadd.f32 0.0, %v2053
        %v2055 = vpop.f32.mrf.mxu0
        %v2056 = vpop.f32.mrf.mxu0
        %v2057 = vadd.f32 0.0, %v2056
        %v2058 = vpop.f32.mrf.mxu0
        %2059 = vmatprep.mubr.bf16.mxu0 0
        %2060 = vmatmul.mubr.bf16.gmra.mxu0 %v1943
        %v2061 = vpop.f32.mrf.mxu0
        %v2062 = vadd.f32 0.0, %v2061
        %v2063 = vpop.f32.mrf.mxu0
        %v2064 = vpop.f32.mrf.mxu0
        %v2065 = vadd.f32 0.0, %v2064
        %v2066 = vpop.f32.mrf.mxu0
        %2067 = vmatprep.mubr.bf16.mxu0 0
        %2068 = vmatmul.mubr.bf16.gmra.mxu0 %v1945
        %v2069 = vpop.f32.mrf.mxu0
        %v2070 = vadd.f32 0.0, %v2069
        %v2071 = vpop.f32.mrf.mxu0
        %v2072 = vpop.f32.mrf.mxu0
        %v2073 = vadd.f32 0.0, %v2072
        %v2074 = vpop.f32.mrf.mxu0
        %2075 = vmatprep.mubr.bf16.mxu0 0
        %2076 = vmatmul.mubr.bf16.gmra.mxu0 %v1947
        %v2077 = vpop.f32.mrf.mxu0
        %v2078 = vadd.f32 0.0, %v2077
        %v2079 = vpop.f32.mrf.mxu0
        %v2080 = vpop.f32.mrf.mxu0
        %v2081 = vadd.f32 0.0, %v2080
        %v2082 = vpop.f32.mrf.mxu0
        %2083 = vmatprep.mubr.bf16.mxu0 0
        %2084 = vmatmul.mubr.bf16.gmra.mxu0 %v1949
        %v2085 = vpop.f32.mrf.mxu0
        %v2086 = vadd.f32 0.0, %v2085
        %v2087 = vpop.f32.mrf.mxu0
        %v2088 = vpop.f32.mrf.mxu0
        %v2089 = vadd.f32 0.0, %v2088
        %v2090 = vpop.f32.mrf.mxu0
        %2091 = vmatprep.mubr.bf16.mxu0 0
        %2092 = vmatmul.mubr.bf16.gmra.mxu0 %v1951
        %v2093 = vpop.f32.mrf.mxu0
        %v2094 = vadd.f32 0.0, %v2093
        %v2095 = vpop.f32.mrf.mxu0
        %v2096 = vpop.f32.mrf.mxu0
        %v2097 = vadd.f32 0.0, %v2096
        %v2098 = vpop.f32.mrf.mxu0
        %2099 = vmatprep.mubr.bf16.mxu0 0
        %2100 = vmatmul.mubr.bf16.gmra.mxu0 %v1953
        %v2101 = vpop.f32.mrf.mxu0
        %v2102 = vadd.f32 0.0, %v2101
        %v2103 = vpop.f32.mrf.mxu0
        %v2104 = vpop.f32.mrf.mxu0
        %v2105 = vadd.f32 0.0, %v2104
        %v2106 = vpop.f32.mrf.mxu0
        %2107 = vmatprep.mubr.bf16.mxu0 0
        %2108 = vmatmul.mubr.bf16.gmra.mxu0 %v1955
        %v2109 = vpop.f32.mrf.mxu0
        %v2110 = vadd.f32 0.0, %v2109
        %v2111 = vpop.f32.mrf.mxu0
        %v2112 = vpop.f32.mrf.mxu0
        %v2113 = vadd.f32 0.0, %v2112
        %v2114 = vpop.f32.mrf.mxu0
        %2115 = vmatprep.mubr.bf16.mxu0 0
        %2116 = vmatmul.mubr.bf16.gmra.mxu0 %v1957
        %v2117 = vpop.f32.mrf.mxu0
        %v2118 = vadd.f32 0.0, %v2117
        %v2119 = vpop.f32.mrf.mxu0
        %v2120 = vpop.f32.mrf.mxu0
        %v2121 = vadd.f32 0.0, %v2120
        %v2122 = vpop.f32.mrf.mxu0
        %2123 = vmatprep.mubr.bf16.mxu0 0
        %2124 = vmatmul.mubr.bf16.gmra.mxu0 %v1959
        %v2125 = vpop.f32.mrf.mxu0
        %v2126 = vadd.f32 0.0, %v2125
        %v2127 = vpop.f32.mrf.mxu0
        %v2128 = vpop.f32.mrf.mxu0
        %v2129 = vadd.f32 0.0, %v2128
        %v2130 = vpop.f32.mrf.mxu0
        %2131 = vmatprep.mubr.bf16.mxu0 0
        %2132 = vmatmul.mubr.bf16.gmra.mxu0 %v1958
        %v2133 = vpop.f32.mrf.mxu0
        %v2134 = vadd.f32 0.0, %v2133
        %v2135 = vpop.f32.mrf.mxu0
        %v2136 = vpop.f32.mrf.mxu0
        %v2137 = vpop.f32.mrf.mxu0
        %2138 = vdwg.mxu0
        %v2139 = vadd.f32 %v1823, %v2054
        %v2140 = vadd.f32 %v1824, %v2057
        %v2141 = vadd.f32 %v1825, %v2062
        %v2142 = vadd.f32 %v1826, %v2065
        %v2143 = vadd.f32 %v1827, %v2070
        %v2144 = vadd.f32 %v1828, %v2073
        %v2145 = vadd.f32 %v1829, %v2078
        %v2146 = vadd.f32 %v1830, %v2081
        %v2147 = vadd.f32 %v1831, %v2086
        %v2148 = vadd.f32 %v1832, %v2089
        %v2149 = vadd.f32 %v1833, %v2094
        %v2150 = vadd.f32 %v1834, %v2097
        %v2151 = vadd.f32 %v1835, %v2102
        %v2152 = vadd.f32 %v1836, %v2105
        %v2153 = vadd.f32 %v1837, %v2110
        %v2154 = vadd.f32 %v1838, %v2113
        %v2155 = vadd.f32 %v1839, %v2118
        %v2156 = vadd.f32 %v1840, %v2121
        %v2157 = vadd.f32 %v1841, %v2126
        %v2158 = vadd.f32 %v1842, %v2129
        %v2159 = vadd.f32 %v1843, %v2134
        %v2160 = vld [vmem:[%s975 + $0x58] sm:$0xf]
        %s2161 = scalar_lea.vmem %s982, 256 [#allocation4]
        %v2162 = vld [vmem:[%s2161] sm:$0xf]
        %v2163 = vld [vmem:[%s2161 + $0x4] sm:$0xf]
        %v2164 = vld [vmem:[%s2161 + $0x8] sm:$0xf]
        %v2165 = vld [vmem:[%s2161 + $0xc] sm:$0xf]
        %v2166 = vld [vmem:[%s2161 + $0x10] sm:$0xf]
        %v2167 = vld [vmem:[%s2161 + $0x14] sm:$0xf]
        %v2168 = vld [vmem:[%s2161 + $0x18] sm:$0xf]
        %v2169 = vld [vmem:[%s2161 + $0x1c] sm:$0xf]
        %v2170 = vld [vmem:[%s2161 + $0x20] sm:$0xf]
        %v2171 = vld [vmem:[%s2161 + $0x24] sm:$0xf]
        %v2172 = vld [vmem:[%s2161 + $0x28] sm:$0xf]
        %v2173 = vld [vmem:[%s2161 + $0x2c] sm:$0xf]
        %v2174 = vld [vmem:[%s2161 + $0x30] sm:$0xf]
        %v2175 = vld [vmem:[%s2161 + $0x34] sm:$0xf]
        %v2176 = vld [vmem:[%s2161 + $0x38] sm:$0xf]
        %v2177 = vld [vmem:[%s2161 + $0x3c] sm:$0xf]
        %v2179 = vunpack.c.l.b16 %v2160
        %v2180 = vpack.c.b16 %v2179, %v1925
        %vm2181 = vsmask.f32 4352
        %v2183 = vshrl.u32 %v1927, 16
        %v2185 = vrot.slane %v2183, 3
        %v2186 = vshll.u32 %v1927, 16
        %v2188 = vrot.slane %v2186, 4
        %v2189 = vor.u32 %v2185, %v2188
        %v2191 = vshrl.u32 %v1928, 16
        %v2193 = vrot.slane %v2191, 3
        %v2194 = vshll.u32 %v1928, 16
        %v2196 = vrot.slane %v2194, 4
        %v2197 = vor.u32 %v2193, %v2196
        %v2198 = vsel %vm2181, %v2189, %v2197
        %v2200 = vshrl.u32 %v1929, 16
        %v2202 = vrot.slane %v2200, 3
        %v2203 = vshll.u32 %v1929, 16
        %v2205 = vrot.slane %v2203, 4
        %v2206 = vor.u32 %v2202, %v2205
        %v2207 = vsel %vm2181, %v2197, %v2206
        %v2209 = vshrl.u32 %v1930, 16
        %v2211 = vrot.slane %v2209, 3
        %v2212 = vshll.u32 %v1930, 16
        %v2214 = vrot.slane %v2212, 4
        %v2215 = vor.u32 %v2211, %v2214
        %v2216 = vsel %vm2181, %v2206, %v2215
        %v2218 = vshrl.u32 %v1931, 16
        %v2220 = vrot.slane %v2218, 3
        %v2221 = vshll.u32 %v1931, 16
        %v2223 = vrot.slane %v2221, 4
        %v2224 = vor.u32 %v2220, %v2223
        %v2225 = vsel %vm2181, %v2215, %v2224
        %v2227 = vshrl.u32 %v1932, 16
        %v2229 = vrot.slane %v2227, 3
        %v2230 = vshll.u32 %v1932, 16
        %v2232 = vrot.slane %v2230, 4
        %v2233 = vor.u32 %v2229, %v2232
        %v2234 = vsel %vm2181, %v2224, %v2233
        %v2236 = vshrl.u32 %v1933, 16
        %v2238 = vrot.slane %v2236, 3
        %v2239 = vshll.u32 %v1933, 16
        %v2241 = vrot.slane %v2239, 4
        %v2242 = vor.u32 %v2238, %v2241
        %v2243 = vsel %vm2181, %v2233, %v2242
        %v2245 = vshrl.u32 %v1934, 16
        %v2247 = vrot.slane %v2245, 3
        %v2248 = vshll.u32 %v1934, 16
        %v2250 = vrot.slane %v2248, 4
        %v2251 = vor.u32 %v2247, %v2250
        %v2252 = vsel %vm2181, %v2242, %v2251
        %v2254 = vshrl.u32 %v1935, 16
        %v2256 = vrot.slane %v2254, 3
        %v2257 = vshll.u32 %v1935, 16
        %v2259 = vrot.slane %v2257, 4
        %v2260 = vor.u32 %v2256, %v2259
        %v2261 = vsel %vm2181, %v2251, %v2260
        %v2263 = vshrl.u32 %v1936, 16
        %v2265 = vrot.slane %v2263, 3
        %v2266 = vshll.u32 %v1936, 16
        %v2268 = vrot.slane %v2266, 4
        %v2269 = vor.u32 %v2265, %v2268
        %v2270 = vsel %vm2181, %v2260, %v2269
        %v2272 = vshrl.u32 %v2180, 16
        %v2274 = vrot.slane %v2272, 3
        %v2275 = vshll.u32 %v2180, 16
        %v2277 = vrot.slane %v2275, 4
        %v2278 = vor.u32 %v2274, %v2277
        %v2279 = vsel %vm2181, %v2269, %v2278
        %v2307 = vunpack.c.l.b16 %v2162
        %v2308 = vunpack.c.l.b16 %v2163
        %v2309 = vunpack.c.l.b16 %v2164
        %v2310 = vunpack.c.l.b16 %v2165
        %v2311 = vunpack.c.l.b16 %v2166
        %v2312 = vunpack.c.l.b16 %v2167
        %v2313 = vunpack.c.l.b16 %v2168
        %v2314 = vunpack.c.l.b16 %v2169
        %v2315 = vunpack.c.l.b16 %v2170
        %v2316 = vunpack.c.l.b16 %v2171
        %v2317 = vunpack.c.l.b16 %v2172
        %v2318 = vunpack.c.l.b16 %v2173
        %v2319 = vunpack.c.l.b16 %v2174
        %v2320 = vunpack.c.l.b16 %v2175
        %v2321 = vunpack.c.l.b16 %v2176
        %v2322 = vunpack.c.l.b16 %v2177
        %v2323 = vpack.c.b16 %v2308, %v2307
        %v2324 = vpack.c.b16 %v2310, %v2309
        %v2325 = vpack.c.b16 %v2312, %v2311
        %v2326 = vpack.c.b16 %v2314, %v2313
        %v2327 = vpack.c.b16 %v2316, %v2315
        %v2328 = vpack.c.b16 %v2318, %v2317
        %v2329 = vpack.c.b16 %v2320, %v2319
        %v2330 = vpack.c.b16 %v2322, %v2321
        %2339 = vmatprep.subr.bf16.mxu0 0
        %2340 = vmatpush1.bf16.msra.mxu0 %v2330
        %2341 = vmatprep.subr.bf16.mxu0 0
        %2342 = vmatpush1.bf16.msra.mxu0 %v2329
        %2343 = vmatprep.subr.bf16.mxu0 0
        %2344 = vmatpush1.bf16.msra.mxu0 %v2328
        %2345 = vmatprep.subr.bf16.mxu0 0
        %2346 = vmatpush1.bf16.msra.mxu0 %v2327
        %2347 = vmatprep.subr.bf16.mxu0 0
        %2348 = vmatpush1.bf16.msra.mxu0 %v2326
        %2349 = vmatprep.subr.bf16.mxu0 0
        %2350 = vmatpush1.bf16.msra.mxu0 %v2325
        %2351 = vmatprep.subr.bf16.mxu0 0
        %2352 = vmatpush1.bf16.msra.mxu0 %v2324
        %2353 = vmatprep.subr.bf16.mxu0 0
        %2354 = vmatpush1.bf16.msra.mxu0 %v2323
        %2355 = vmatprep.subr.bf16.mxu0 0
        %2356 = vmatpush2.bf16.msra.mxu0 0
        %2357 = vmatprep.subr.bf16.mxu0 0
        %2358 = vmatpush2.bf16.msra.mxu0 0
        %2359 = vmatprep.subr.bf16.mxu0 0
        %2360 = vmatpush2.bf16.msra.mxu0 0
        %2361 = vmatprep.subr.bf16.mxu0 0
        %2362 = vmatpush2.bf16.msra.mxu0 0
        %2363 = vmatprep.subr.bf16.mxu0 0
        %2364 = vmatpush2.bf16.msra.mxu0 0
        %2365 = vmatprep.subr.bf16.mxu0 0
        %2366 = vmatpush2.bf16.msra.mxu0 0
        %2367 = vmatprep.subr.bf16.mxu0 0
        %2368 = vmatpush2.bf16.msra.mxu0 0
        %2369 = vmatprep.subr.bf16.mxu0 0
        %2370 = vmatpush2.bf16.msra.mxu0 0
        %2371 = vmatprep.mubr.bf16.mxu0 0
        %2372 = vmatmul.mubr.bf16.gmra.mxu0 %v2198
        %v2373 = vpop.f32.mrf.mxu0
        %v2374 = vadd.f32 0.0, %v2373
        %v2375 = vpop.f32.mrf.mxu0
        %v2376 = vpop.f32.mrf.mxu0
        %v2377 = vadd.f32 0.0, %v2376
        %v2378 = vpop.f32.mrf.mxu0
        %2379 = vmatprep.mubr.bf16.mxu0 0
        %2380 = vmatmul.mubr.bf16.gmra.mxu0 %v2207
        %v2381 = vpop.f32.mrf.mxu0
        %v2382 = vadd.f32 0.0, %v2381
        %v2383 = vpop.f32.mrf.mxu0
        %v2384 = vpop.f32.mrf.mxu0
        %v2385 = vadd.f32 0.0, %v2384
        %v2386 = vpop.f32.mrf.mxu0
        %2387 = vmatprep.mubr.bf16.mxu0 0
        %2388 = vmatmul.mubr.bf16.gmra.mxu0 %v2216
        %v2389 = vpop.f32.mrf.mxu0
        %v2390 = vadd.f32 0.0, %v2389
        %v2391 = vpop.f32.mrf.mxu0
        %v2392 = vpop.f32.mrf.mxu0
        %v2393 = vadd.f32 0.0, %v2392
        %v2394 = vpop.f32.mrf.mxu0
        %2395 = vmatprep.mubr.bf16.mxu0 0
        %2396 = vmatmul.mubr.bf16.gmra.mxu0 %v2225
        %v2397 = vpop.f32.mrf.mxu0
        %v2398 = vadd.f32 0.0, %v2397
        %v2399 = vpop.f32.mrf.mxu0
        %v2400 = vpop.f32.mrf.mxu0
        %v2401 = vadd.f32 0.0, %v2400
        %v2402 = vpop.f32.mrf.mxu0
        %2403 = vmatprep.mubr.bf16.mxu0 0
        %2404 = vmatmul.mubr.bf16.gmra.mxu0 %v2234
        %v2405 = vpop.f32.mrf.mxu0
        %v2406 = vadd.f32 0.0, %v2405
        %v2407 = vpop.f32.mrf.mxu0
        %v2408 = vpop.f32.mrf.mxu0
        %v2409 = vadd.f32 0.0, %v2408
        %v2410 = vpop.f32.mrf.mxu0
        %2411 = vmatprep.mubr.bf16.mxu0 0
        %2412 = vmatmul.mubr.bf16.gmra.mxu0 %v2243
        %v2413 = vpop.f32.mrf.mxu0
        %v2414 = vadd.f32 0.0, %v2413
        %v2415 = vpop.f32.mrf.mxu0
        %v2416 = vpop.f32.mrf.mxu0
        %v2417 = vadd.f32 0.0, %v2416
        %v2418 = vpop.f32.mrf.mxu0
        %2419 = vmatprep.mubr.bf16.mxu0 0
        %2420 = vmatmul.mubr.bf16.gmra.mxu0 %v2252
        %v2421 = vpop.f32.mrf.mxu0
        %v2422 = vadd.f32 0.0, %v2421
        %v2423 = vpop.f32.mrf.mxu0
        %v2424 = vpop.f32.mrf.mxu0
        %v2425 = vadd.f32 0.0, %v2424
        %v2426 = vpop.f32.mrf.mxu0
        %2427 = vmatprep.mubr.bf16.mxu0 0
        %2428 = vmatmul.mubr.bf16.gmra.mxu0 %v2261
        %v2429 = vpop.f32.mrf.mxu0
        %v2430 = vadd.f32 0.0, %v2429
        %v2431 = vpop.f32.mrf.mxu0
        %v2432 = vpop.f32.mrf.mxu0
        %v2433 = vadd.f32 0.0, %v2432
        %v2434 = vpop.f32.mrf.mxu0
        %2435 = vmatprep.mubr.bf16.mxu0 0
        %2436 = vmatmul.mubr.bf16.gmra.mxu0 %v2270
        %v2437 = vpop.f32.mrf.mxu0
        %v2438 = vadd.f32 0.0, %v2437
        %v2439 = vpop.f32.mrf.mxu0
        %v2440 = vpop.f32.mrf.mxu0
        %v2441 = vadd.f32 0.0, %v2440
        %v2442 = vpop.f32.mrf.mxu0
        %2443 = vmatprep.mubr.bf16.mxu0 0
        %2444 = vmatmul.mubr.bf16.gmra.mxu0 %v2279
        %v2445 = vpop.f32.mrf.mxu0
        %v2446 = vadd.f32 0.0, %v2445
        %v2447 = vpop.f32.mrf.mxu0
        %v2448 = vpop.f32.mrf.mxu0
        %v2449 = vadd.f32 0.0, %v2448
        %v2450 = vpop.f32.mrf.mxu0
        %2451 = vmatprep.mubr.bf16.mxu0 0
        %2452 = vmatmul.mubr.bf16.gmra.mxu0 %v2278
        %v2453 = vpop.f32.mrf.mxu0
        %v2454 = vadd.f32 0.0, %v2453
        %v2455 = vpop.f32.mrf.mxu0
        %v2456 = vpop.f32.mrf.mxu0
        %v2457 = vpop.f32.mrf.mxu0
        %2458 = vdwg.mxu0
        %v2459 = vadd.f32 %v2139, %v2374
        %v2460 = vadd.f32 %v2140, %v2377
        %v2461 = vadd.f32 %v2141, %v2382
        %v2462 = vadd.f32 %v2142, %v2385
        %v2463 = vadd.f32 %v2143, %v2390
        %v2464 = vadd.f32 %v2144, %v2393
        %v2465 = vadd.f32 %v2145, %v2398
        %v2466 = vadd.f32 %v2146, %v2401
        %v2467 = vadd.f32 %v2147, %v2406
        %v2468 = vadd.f32 %v2148, %v2409
        %v2469 = vadd.f32 %v2149, %v2414
        %v2470 = vadd.f32 %v2150, %v2417
        %v2471 = vadd.f32 %v2151, %v2422
        %v2472 = vadd.f32 %v2152, %v2425
        %v2473 = vadd.f32 %v2153, %v2430
        %v2474 = vadd.f32 %v2154, %v2433
        %v2475 = vadd.f32 %v2155, %v2438
        %v2476 = vadd.f32 %v2156, %v2441
        %v2477 = vadd.f32 %v2157, %v2446
        %v2478 = vadd.f32 %v2158, %v2449
        %v2479 = vadd.f32 %v2159, %v2454
        %s2480 = scalar_lea.vmem %s982, 320 [#allocation4]
        %v2481 = vld [vmem:[%s2480] sm:$0xf]
        %v2482 = vld [vmem:[%s2480 + $0x4] sm:$0xf]
        %v2483 = vld [vmem:[%s2480 + $0x8] sm:$0xf]
        %v2484 = vld [vmem:[%s2480 + $0xc] sm:$0xf]
        %v2485 = vld [vmem:[%s2480 + $0x10] sm:$0xf]
        %v2486 = vld [vmem:[%s2480 + $0x14] sm:$0xf]
        %v2487 = vld [vmem:[%s2480 + $0x18] sm:$0xf]
        %v2488 = vld [vmem:[%s2480 + $0x1c] sm:$0xf]
        %v2489 = vld [vmem:[%s2480 + $0x20] sm:$0xf]
        %v2490 = vld [vmem:[%s2480 + $0x24] sm:$0xf]
        %v2491 = vld [vmem:[%s2480 + $0x28] sm:$0xf]
        %v2492 = vld [vmem:[%s2480 + $0x2c] sm:$0xf]
        %v2493 = vld [vmem:[%s2480 + $0x30] sm:$0xf]
        %v2494 = vld [vmem:[%s2480 + $0x34] sm:$0xf]
        %v2495 = vld [vmem:[%s2480 + $0x38] sm:$0xf]
        %v2496 = vld [vmem:[%s2480 + $0x3c] sm:$0xf]
        %v2497 = vpack.c.b16 %v1907, %v1906
        %v2498 = vpack.c.b16 %v1909, %v1908
        %v2499 = vpack.c.b16 %v1911, %v1910
        %v2500 = vpack.c.b16 %v1913, %v1912
        %v2501 = vpack.c.b16 %v1915, %v1914
        %v2502 = vpack.c.b16 %v1917, %v1916
        %v2503 = vpack.c.b16 %v1919, %v1918
        %v2504 = vpack.c.b16 %v1921, %v1920
        %v2505 = vpack.c.b16 %v1923, %v1922
        %v2506 = vpack.c.b16 %v1925, %v1924
        %v2507 = vpack.c.b16 %v2179, %v2179
        %v2535 = vunpack.c.l.b16 %v2481
        %v2536 = vunpack.c.l.b16 %v2482
        %v2537 = vunpack.c.l.b16 %v2483
        %v2538 = vunpack.c.l.b16 %v2484
        %v2539 = vunpack.c.l.b16 %v2485
        %v2540 = vunpack.c.l.b16 %v2486
        %v2541 = vunpack.c.l.b16 %v2487
        %v2542 = vunpack.c.l.b16 %v2488
        %v2543 = vunpack.c.l.b16 %v2489
        %v2544 = vunpack.c.l.b16 %v2490
        %v2545 = vunpack.c.l.b16 %v2491
        %v2546 = vunpack.c.l.b16 %v2492
        %v2547 = vunpack.c.l.b16 %v2493
        %v2548 = vunpack.c.l.b16 %v2494
        %v2549 = vunpack.c.l.b16 %v2495
        %v2550 = vunpack.c.l.b16 %v2496
        %v2551 = vpack.c.b16 %v2536, %v2535
        %v2552 = vpack.c.b16 %v2538, %v2537
        %v2553 = vpack.c.b16 %v2540, %v2539
        %v2554 = vpack.c.b16 %v2542, %v2541
        %v2555 = vpack.c.b16 %v2544, %v2543
        %v2556 = vpack.c.b16 %v2546, %v2545
        %v2557 = vpack.c.b16 %v2548, %v2547
        %v2558 = vpack.c.b16 %v2550, %v2549
        %2567 = vmatprep.subr.bf16.mxu0 0
        %2568 = vmatpush1.bf16.msra.mxu0 %v2558
        %2569 = vmatprep.subr.bf16.mxu0 0
        %2570 = vmatpush1.bf16.msra.mxu0 %v2557
        %2571 = vmatprep.subr.bf16.mxu0 0
        %2572 = vmatpush1.bf16.msra.mxu0 %v2556
        %2573 = vmatprep.subr.bf16.mxu0 0
        %2574 = vmatpush1.bf16.msra.mxu0 %v2555
        %2575 = vmatprep.subr.bf16.mxu0 0
        %2576 = vmatpush1.bf16.msra.mxu0 %v2554
        %2577 = vmatprep.subr.bf16.mxu0 0
        %2578 = vmatpush1.bf16.msra.mxu0 %v2553
        %2579 = vmatprep.subr.bf16.mxu0 0
        %2580 = vmatpush1.bf16.msra.mxu0 %v2552
        %2581 = vmatprep.subr.bf16.mxu0 0
        %2582 = vmatpush1.bf16.msra.mxu0 %v2551
        %2583 = vmatprep.subr.bf16.mxu0 0
        %2584 = vmatpush2.bf16.msra.mxu0 0
        %2585 = vmatprep.subr.bf16.mxu0 0
        %2586 = vmatpush2.bf16.msra.mxu0 0
        %2587 = vmatprep.subr.bf16.mxu0 0
        %2588 = vmatpush2.bf16.msra.mxu0 0
        %2589 = vmatprep.subr.bf16.mxu0 0
        %2590 = vmatpush2.bf16.msra.mxu0 0
        %2591 = vmatprep.subr.bf16.mxu0 0
        %2592 = vmatpush2.bf16.msra.mxu0 0
        %2593 = vmatprep.subr.bf16.mxu0 0
        %2594 = vmatpush2.bf16.msra.mxu0 0
        %2595 = vmatprep.subr.bf16.mxu0 0
        %2596 = vmatpush2.bf16.msra.mxu0 0
        %2597 = vmatprep.subr.bf16.mxu0 0
        %2598 = vmatpush2.bf16.msra.mxu0 0
        %2599 = vmatprep.mubr.bf16.mxu0 0
        %2600 = vmatmul.mubr.bf16.gmra.mxu0 %v2497
        %v2601 = vpop.f32.mrf.mxu0
        %v2602 = vadd.f32 0.0, %v2601
        %v2603 = vpop.f32.mrf.mxu0
        %v2604 = vpop.f32.mrf.mxu0
        %v2605 = vadd.f32 0.0, %v2604
        %v2606 = vpop.f32.mrf.mxu0
        %2607 = vmatprep.mubr.bf16.mxu0 0
        %2608 = vmatmul.mubr.bf16.gmra.mxu0 %v2498
        %v2609 = vpop.f32.mrf.mxu0
        %v2610 = vadd.f32 0.0, %v2609
        %v2611 = vpop.f32.mrf.mxu0
        %v2612 = vpop.f32.mrf.mxu0
        %v2613 = vadd.f32 0.0, %v2612
        %v2614 = vpop.f32.mrf.mxu0
        %2615 = vmatprep.mubr.bf16.mxu0 0
        %2616 = vmatmul.mubr.bf16.gmra.mxu0 %v2499
        %v2617 = vpop.f32.mrf.mxu0
        %v2618 = vadd.f32 0.0, %v2617
        %v2619 = vpop.f32.mrf.mxu0
        %v2620 = vpop.f32.mrf.mxu0
        %v2621 = vadd.f32 0.0, %v2620
        %v2622 = vpop.f32.mrf.mxu0
        %2623 = vmatprep.mubr.bf16.mxu0 0
        %2624 = vmatmul.mubr.bf16.gmra.mxu0 %v2500
        %v2625 = vpop.f32.mrf.mxu0
        %v2626 = vadd.f32 0.0, %v2625
        %v2627 = vpop.f32.mrf.mxu0
        %v2628 = vpop.f32.mrf.mxu0
        %v2629 = vadd.f32 0.0, %v2628
        %v2630 = vpop.f32.mrf.mxu0
        %2631 = vmatprep.mubr.bf16.mxu0 0
        %2632 = vmatmul.mubr.bf16.gmra.mxu0 %v2501
        %v2633 = vpop.f32.mrf.mxu0
        %v2634 = vadd.f32 0.0, %v2633
        %v2635 = vpop.f32.mrf.mxu0
        %v2636 = vpop.f32.mrf.mxu0
        %v2637 = vadd.f32 0.0, %v2636
        %v2638 = vpop.f32.mrf.mxu0
        %2639 = vmatprep.mubr.bf16.mxu0 0
        %2640 = vmatmul.mubr.bf16.gmra.mxu0 %v2502
        %v2641 = vpop.f32.mrf.mxu0
        %v2642 = vadd.f32 0.0, %v2641
        %v2643 = vpop.f32.mrf.mxu0
        %v2644 = vpop.f32.mrf.mxu0
        %v2645 = vadd.f32 0.0, %v2644
        %v2646 = vpop.f32.mrf.mxu0
        %2647 = vmatprep.mubr.bf16.mxu0 0
        %2648 = vmatmul.mubr.bf16.gmra.mxu0 %v2503
        %v2649 = vpop.f32.mrf.mxu0
        %v2650 = vadd.f32 0.0, %v2649
        %v2651 = vpop.f32.mrf.mxu0
        %v2652 = vpop.f32.mrf.mxu0
        %v2653 = vadd.f32 0.0, %v2652
        %v2654 = vpop.f32.mrf.mxu0
        %2655 = vmatprep.mubr.bf16.mxu0 0
        %2656 = vmatmul.mubr.bf16.gmra.mxu0 %v2504
        %v2657 = vpop.f32.mrf.mxu0
        %v2658 = vadd.f32 0.0, %v2657
        %v2659 = vpop.f32.mrf.mxu0
        %v2660 = vpop.f32.mrf.mxu0
        %v2661 = vadd.f32 0.0, %v2660
        %v2662 = vpop.f32.mrf.mxu0
        %2663 = vmatprep.mubr.bf16.mxu0 0
        %2664 = vmatmul.mubr.bf16.gmra.mxu0 %v2505
        %v2665 = vpop.f32.mrf.mxu0
        %v2666 = vadd.f32 0.0, %v2665
        %v2667 = vpop.f32.mrf.mxu0
        %v2668 = vpop.f32.mrf.mxu0
        %v2669 = vadd.f32 0.0, %v2668
        %v2670 = vpop.f32.mrf.mxu0
        %2671 = vmatprep.mubr.bf16.mxu0 0
        %2672 = vmatmul.mubr.bf16.gmra.mxu0 %v2506
        %v2673 = vpop.f32.mrf.mxu0
        %v2674 = vadd.f32 0.0, %v2673
        %v2675 = vpop.f32.mrf.mxu0
        %v2676 = vpop.f32.mrf.mxu0
        %v2677 = vadd.f32 0.0, %v2676
        %v2678 = vpop.f32.mrf.mxu0
        %2679 = vmatprep.mubr.bf16.mxu0 0
        %2680 = vmatmul.mubr.bf16.gmra.mxu0 %v2507
        %v2681 = vpop.f32.mrf.mxu0
        %v2682 = vadd.f32 0.0, %v2681
        %v2683 = vpop.f32.mrf.mxu0
        %v2684 = vpop.f32.mrf.mxu0
        %v2685 = vpop.f32.mrf.mxu0
        %2686 = vdwg.mxu0
        %v2687 = vadd.f32 %v2459, %v2602
        %v2688 = vadd.f32 %v2460, %v2605
        %v2689 = vadd.f32 %v2461, %v2610
        %v2690 = vadd.f32 %v2462, %v2613
        %v2691 = vadd.f32 %v2463, %v2618
        %v2692 = vadd.f32 %v2464, %v2621
        %v2693 = vadd.f32 %v2465, %v2626
        %v2694 = vadd.f32 %v2466, %v2629
        %v2695 = vadd.f32 %v2467, %v2634
        %v2696 = vadd.f32 %v2468, %v2637
        %v2697 = vadd.f32 %v2469, %v2642
        %v2698 = vadd.f32 %v2470, %v2645
        %v2699 = vadd.f32 %v2471, %v2650
        %v2700 = vadd.f32 %v2472, %v2653
        %v2701 = vadd.f32 %v2473, %v2658
        %v2702 = vadd.f32 %v2474, %v2661
        %v2703 = vadd.f32 %v2475, %v2666
        %v2704 = vadd.f32 %v2476, %v2669
        %v2705 = vadd.f32 %v2477, %v2674
        %v2706 = vadd.f32 %v2478, %v2677
        %v2707 = vadd.f32 %v2479, %v2682
        %v2708 = vld [vmem:[%s975 + $0xc] sm:$0xc]
        %v2709 = vld [vmem:[%s975 + $0x10] sm:$0xf]
        %v2710 = vld [vmem:[%s975 + $0x14] sm:$0xf]
        %v2711 = vld [vmem:[%s975 + $0x18] sm:$0xf]
        %v2712 = vld [vmem:[%s975 + $0x1c] sm:$0xf]
        %v2713 = vld [vmem:[%s975 + $0x20] sm:$0xf]
        %v2714 = vld [vmem:[%s975 + $0x24] sm:$0xf]
        %v2715 = vld [vmem:[%s975 + $0x28] sm:$0xf]
        %v2716 = vld [vmem:[%s975 + $0x2c] sm:$0xf]
        %v2717 = vld [vmem:[%s975 + $0x30] sm:$0xf]
        %v2718 = vld [vmem:[%s975 + $0x34] sm:$0xf]
        %v2719 = vld [vmem:[%s975 + $0x38] sm:$0xf]
        %v2720 = vld [vmem:[%s975 + $0x3c] sm:$0xf]
        %v2721 = vld [vmem:[%s975 + $0x40] sm:$0xf]
        %v2722 = vld [vmem:[%s975 + $0x44] sm:$0xf]
        %v2723 = vld [vmem:[%s975 + $0x48] sm:$0xf]
        %v2724 = vld [vmem:[%s975 + $0x4c] sm:$0xf]
        %v2725 = vld [vmem:[%s975 + $0x50] sm:$0xf]
        %v2726 = vld [vmem:[%s975 + $0x54] sm:$0xf]
        %v2727 = vld [vmem:[%s975 + $0x58] sm:$0xf]
        %v2728 = vld [vmem:[%s975 + $0x5c] sm:$0xf]
        %v2729 = vld [vmem:[%s975 + $0x60] sm:$0x3]
        %s2730 = scalar_lea.vmem %s982, 384 [#allocation4]
        %v2731 = vld [vmem:[%s2730] sm:$0xf]
        %v2732 = vld [vmem:[%s2730 + $0x4] sm:$0xf]
        %v2733 = vld [vmem:[%s2730 + $0x8] sm:$0xf]
        %v2734 = vld [vmem:[%s2730 + $0xc] sm:$0xf]
        %v2735 = vld [vmem:[%s2730 + $0x10] sm:$0xf]
        %v2736 = vld [vmem:[%s2730 + $0x14] sm:$0xf]
        %v2737 = vld [vmem:[%s2730 + $0x18] sm:$0xf]
        %v2738 = vld [vmem:[%s2730 + $0x1c] sm:$0xf]
        %v2739 = vld [vmem:[%s2730 + $0x20] sm:$0xf]
        %v2740 = vld [vmem:[%s2730 + $0x24] sm:$0xf]
        %v2741 = vld [vmem:[%s2730 + $0x28] sm:$0xf]
        %v2742 = vld [vmem:[%s2730 + $0x2c] sm:$0xf]
        %v2743 = vld [vmem:[%s2730 + $0x30] sm:$0xf]
        %v2744 = vld [vmem:[%s2730 + $0x34] sm:$0xf]
        %v2745 = vld [vmem:[%s2730 + $0x38] sm:$0xf]
        %v2746 = vld [vmem:[%s2730 + $0x3c] sm:$0xf]
        %v2769 = vunpack.c.l.b16 %v2708
        %v2770 = vunpack.c.l.b16 %v2709
        %v2771 = vunpack.c.l.b16 %v2710
        %v2772 = vunpack.c.l.b16 %v2711
        %v2773 = vunpack.c.l.b16 %v2712
        %v2774 = vunpack.c.l.b16 %v2713
        %v2775 = vunpack.c.l.b16 %v2714
        %v2776 = vunpack.c.l.b16 %v2715
        %v2777 = vunpack.c.l.b16 %v2716
        %v2778 = vunpack.c.l.b16 %v2717
        %v2779 = vunpack.c.l.b16 %v2718
        %v2780 = vunpack.c.l.b16 %v2719
        %v2781 = vunpack.c.l.b16 %v2720
        %v2782 = vunpack.c.l.b16 %v2721
        %v2783 = vunpack.c.l.b16 %v2722
        %v2784 = vunpack.c.l.b16 %v2723
        %v2785 = vunpack.c.l.b16 %v2724
        %v2786 = vunpack.c.l.b16 %v2725
        %v2787 = vunpack.c.l.b16 %v2726
        %v2788 = vunpack.c.l.b16 %v2727
        %v2789 = vunpack.c.l.b16 %v2728
        %v2790 = vunpack.c.l.b16 %v2729
        %v2791 = vpack.c.b16 %v2770, %v2769
        %v2792 = vpack.c.b16 %v2772, %v2771
        %v2793 = vpack.c.b16 %v2774, %v2773
        %v2794 = vpack.c.b16 %v2776, %v2775
        %v2795 = vpack.c.b16 %v2778, %v2777
        %v2796 = vpack.c.b16 %v2780, %v2779
        %v2797 = vpack.c.b16 %v2782, %v2781
        %v2798 = vpack.c.b16 %v2784, %v2783
        %v2799 = vpack.c.b16 %v2786, %v2785
        %v2800 = vpack.c.b16 %v2788, %v2787
        %v2801 = vpack.c.b16 %v2790, %v2789
        %vm2802 = vcmask 1045504
        %v2803 = vrot.slane %v2791, 2
        %v2804 = vrot.slane %v2792, 2
        %v2805 = vsel %vm2802, %v2803, %v2804
        %v2806 = vrot.slane %v2793, 2
        %v2807 = vsel %vm2802, %v2804, %v2806
        %v2808 = vrot.slane %v2794, 2
        %v2809 = vsel %vm2802, %v2806, %v2808
        %v2810 = vrot.slane %v2795, 2
        %v2811 = vsel %vm2802, %v2808, %v2810
        %v2812 = vrot.slane %v2796, 2
        %v2813 = vsel %vm2802, %v2810, %v2812
        %v2814 = vrot.slane %v2797, 2
        %v2815 = vsel %vm2802, %v2812, %v2814
        %v2816 = vrot.slane %v2798, 2
        %v2817 = vsel %vm2802, %v2814, %v2816
        %v2818 = vrot.slane %v2799, 2
        %v2819 = vsel %vm2802, %v2816, %v2818
        %v2820 = vrot.slane %v2800, 2
        %v2821 = vsel %vm2802, %v2818, %v2820
        %v2822 = vrot.slane %v2801, 2
        %v2823 = vsel %vm2802, %v2820, %v2822
        %v2851 = vunpack.c.l.b16 %v2731
        %v2852 = vunpack.c.l.b16 %v2732
        %v2853 = vunpack.c.l.b16 %v2733
        %v2854 = vunpack.c.l.b16 %v2734
        %v2855 = vunpack.c.l.b16 %v2735
        %v2856 = vunpack.c.l.b16 %v2736
        %v2857 = vunpack.c.l.b16 %v2737
        %v2858 = vunpack.c.l.b16 %v2738
        %v2859 = vunpack.c.l.b16 %v2739
        %v2860 = vunpack.c.l.b16 %v2740
        %v2861 = vunpack.c.l.b16 %v2741
        %v2862 = vunpack.c.l.b16 %v2742
        %v2863 = vunpack.c.l.b16 %v2743
        %v2864 = vunpack.c.l.b16 %v2744
        %v2865 = vunpack.c.l.b16 %v2745
        %v2866 = vunpack.c.l.b16 %v2746
        %v2867 = vpack.c.b16 %v2852, %v2851
        %v2868 = vpack.c.b16 %v2854, %v2853
        %v2869 = vpack.c.b16 %v2856, %v2855
        %v2870 = vpack.c.b16 %v2858, %v2857
        %v2871 = vpack.c.b16 %v2860, %v2859
        %v2872 = vpack.c.b16 %v2862, %v2861
        %v2873 = vpack.c.b16 %v2864, %v2863
        %v2874 = vpack.c.b16 %v2866, %v2865
        %2883 = vmatprep.subr.bf16.mxu0 0
        %2884 = vmatpush1.bf16.msra.mxu0 %v2874
        %2885 = vmatprep.subr.bf16.mxu0 0
        %2886 = vmatpush1.bf16.msra.mxu0 %v2873
        %2887 = vmatprep.subr.bf16.mxu0 0
        %2888 = vmatpush1.bf16.msra.mxu0 %v2872
        %2889 = vmatprep.subr.bf16.mxu0 0
        %2890 = vmatpush1.bf16.msra.mxu0 %v2871
        %2891 = vmatprep.subr.bf16.mxu0 0
        %2892 = vmatpush1.bf16.msra.mxu0 %v2870
        %2893 = vmatprep.subr.bf16.mxu0 0
        %2894 = vmatpush1.bf16.msra.mxu0 %v2869
        %2895 = vmatprep.subr.bf16.mxu0 0
        %2896 = vmatpush1.bf16.msra.mxu0 %v2868
        %2897 = vmatprep.subr.bf16.mxu0 0
        %2898 = vmatpush1.bf16.msra.mxu0 %v2867
        %2899 = vmatprep.subr.bf16.mxu0 0
        %2900 = vmatpush2.bf16.msra.mxu0 0
        %2901 = vmatprep.subr.bf16.mxu0 0
        %2902 = vmatpush2.bf16.msra.mxu0 0
        %2903 = vmatprep.subr.bf16.mxu0 0
        %2904 = vmatpush2.bf16.msra.mxu0 0
        %2905 = vmatprep.subr.bf16.mxu0 0
        %2906 = vmatpush2.bf16.msra.mxu0 0
        %2907 = vmatprep.subr.bf16.mxu0 0
        %2908 = vmatpush2.bf16.msra.mxu0 0
        %2909 = vmatprep.subr.bf16.mxu0 0
        %2910 = vmatpush2.bf16.msra.mxu0 0
        %2911 = vmatprep.subr.bf16.mxu0 0
        %2912 = vmatpush2.bf16.msra.mxu0 0
        %2913 = vmatprep.subr.bf16.mxu0 0
        %2914 = vmatpush2.bf16.msra.mxu0 0
        %2915 = vmatprep.mubr.bf16.mxu0 0
        %2916 = vmatmul.mubr.bf16.gmra.mxu0 %v2805
        %v2917 = vpop.f32.mrf.mxu0
        %v2918 = vadd.f32 0.0, %v2917
        %v2919 = vpop.f32.mrf.mxu0
        %v2920 = vpop.f32.mrf.mxu0
        %v2921 = vadd.f32 0.0, %v2920
        %v2922 = vpop.f32.mrf.mxu0
        %2923 = vmatprep.mubr.bf16.mxu0 0
        %2924 = vmatmul.mubr.bf16.gmra.mxu0 %v2807
        %v2925 = vpop.f32.mrf.mxu0
        %v2926 = vadd.f32 0.0, %v2925
        %v2927 = vpop.f32.mrf.mxu0
        %v2928 = vpop.f32.mrf.mxu0
        %v2929 = vadd.f32 0.0, %v2928
        %v2930 = vpop.f32.mrf.mxu0
        %2931 = vmatprep.mubr.bf16.mxu0 0
        %2932 = vmatmul.mubr.bf16.gmra.mxu0 %v2809
        %v2933 = vpop.f32.mrf.mxu0
        %v2934 = vadd.f32 0.0, %v2933
        %v2935 = vpop.f32.mrf.mxu0
        %v2936 = vpop.f32.mrf.mxu0
        %v2937 = vadd.f32 0.0, %v2936
        %v2938 = vpop.f32.mrf.mxu0
        %2939 = vmatprep.mubr.bf16.mxu0 0
        %2940 = vmatmul.mubr.bf16.gmra.mxu0 %v2811
        %v2941 = vpop.f32.mrf.mxu0
        %v2942 = vadd.f32 0.0, %v2941
        %v2943 = vpop.f32.mrf.mxu0
        %v2944 = vpop.f32.mrf.mxu0
        %v2945 = vadd.f32 0.0, %v2944
        %v2946 = vpop.f32.mrf.mxu0
        %2947 = vmatprep.mubr.bf16.mxu0 0
        %2948 = vmatmul.mubr.bf16.gmra.mxu0 %v2813
        %v2949 = vpop.f32.mrf.mxu0
        %v2950 = vadd.f32 0.0, %v2949
        %v2951 = vpop.f32.mrf.mxu0
        %v2952 = vpop.f32.mrf.mxu0
        %v2953 = vadd.f32 0.0, %v2952
        %v2954 = vpop.f32.mrf.mxu0
        %2955 = vmatprep.mubr.bf16.mxu0 0
        %2956 = vmatmul.mubr.bf16.gmra.mxu0 %v2815
        %v2957 = vpop.f32.mrf.mxu0
        %v2958 = vadd.f32 0.0, %v2957
        %v2959 = vpop.f32.mrf.mxu0
        %v2960 = vpop.f32.mrf.mxu0
        %v2961 = vadd.f32 0.0, %v2960
        %v2962 = vpop.f32.mrf.mxu0
        %2963 = vmatprep.mubr.bf16.mxu0 0
        %2964 = vmatmul.mubr.bf16.gmra.mxu0 %v2817
        %v2965 = vpop.f32.mrf.mxu0
        %v2966 = vadd.f32 0.0, %v2965
        %v2967 = vpop.f32.mrf.mxu0
        %v2968 = vpop.f32.mrf.mxu0
        %v2969 = vadd.f32 0.0, %v2968
        %v2970 = vpop.f32.mrf.mxu0
        %2971 = vmatprep.mubr.bf16.mxu0 0
        %2972 = vmatmul.mubr.bf16.gmra.mxu0 %v2819
        %v2973 = vpop.f32.mrf.mxu0
        %v2974 = vadd.f32 0.0, %v2973
        %v2975 = vpop.f32.mrf.mxu0
        %v2976 = vpop.f32.mrf.mxu0
        %v2977 = vadd.f32 0.0, %v2976
        %v2978 = vpop.f32.mrf.mxu0
        %2979 = vmatprep.mubr.bf16.mxu0 0
        %2980 = vmatmul.mubr.bf16.gmra.mxu0 %v2821
        %v2981 = vpop.f32.mrf.mxu0
        %v2982 = vadd.f32 0.0, %v2981
        %v2983 = vpop.f32.mrf.mxu0
        %v2984 = vpop.f32.mrf.mxu0
        %v2985 = vadd.f32 0.0, %v2984
        %v2986 = vpop.f32.mrf.mxu0
        %2987 = vmatprep.mubr.bf16.mxu0 0
        %2988 = vmatmul.mubr.bf16.gmra.mxu0 %v2823
        %v2989 = vpop.f32.mrf.mxu0
        %v2990 = vadd.f32 0.0, %v2989
        %v2991 = vpop.f32.mrf.mxu0
        %v2992 = vpop.f32.mrf.mxu0
        %v2993 = vadd.f32 0.0, %v2992
        %v2994 = vpop.f32.mrf.mxu0
        %2995 = vmatprep.mubr.bf16.mxu0 0
        %2996 = vmatmul.mubr.bf16.gmra.mxu0 %v2822
        %v2997 = vpop.f32.mrf.mxu0
        %v2998 = vadd.f32 0.0, %v2997
        %v2999 = vpop.f32.mrf.mxu0
        %v3000 = vpop.f32.mrf.mxu0
        %v3001 = vpop.f32.mrf.mxu0
        %3002 = vdwg.mxu0
        %v3003 = vadd.f32 %v2687, %v2918
        %v3004 = vadd.f32 %v2688, %v2921
        %v3005 = vadd.f32 %v2689, %v2926
        %v3006 = vadd.f32 %v2690, %v2929
        %v3007 = vadd.f32 %v2691, %v2934
        %v3008 = vadd.f32 %v2692, %v2937
        %v3009 = vadd.f32 %v2693, %v2942
        %v3010 = vadd.f32 %v2694, %v2945
        %v3011 = vadd.f32 %v2695, %v2950
        %v3012 = vadd.f32 %v2696, %v2953
        %v3013 = vadd.f32 %v2697, %v2958
        %v3014 = vadd.f32 %v2698, %v2961
        %v3015 = vadd.f32 %v2699, %v2966
        %v3016 = vadd.f32 %v2700, %v2969
        %v3017 = vadd.f32 %v2701, %v2974
        %v3018 = vadd.f32 %v2702, %v2977
        %v3019 = vadd.f32 %v2703, %v2982
        %v3020 = vadd.f32 %v2704, %v2985
        %v3021 = vadd.f32 %v2705, %v2990
        %v3022 = vadd.f32 %v2706, %v2993
        %v3023 = vadd.f32 %v2707, %v2998
        %v3024 = vld [vmem:[%s975 + $0x60] sm:$0x7]
        %s3025 = scalar_lea.vmem %s982, 448 [#allocation4]
        %v3026 = vld [vmem:[%s3025] sm:$0xf]
        %v3027 = vld [vmem:[%s3025 + $0x4] sm:$0xf]
        %v3028 = vld [vmem:[%s3025 + $0x8] sm:$0xf]
        %v3029 = vld [vmem:[%s3025 + $0xc] sm:$0xf]
        %v3030 = vld [vmem:[%s3025 + $0x10] sm:$0xf]
        %v3031 = vld [vmem:[%s3025 + $0x14] sm:$0xf]
        %v3032 = vld [vmem:[%s3025 + $0x18] sm:$0xf]
        %v3033 = vld [vmem:[%s3025 + $0x1c] sm:$0xf]
        %v3034 = vld [vmem:[%s3025 + $0x20] sm:$0xf]
        %v3035 = vld [vmem:[%s3025 + $0x24] sm:$0xf]
        %v3036 = vld [vmem:[%s3025 + $0x28] sm:$0xf]
        %v3037 = vld [vmem:[%s3025 + $0x2c] sm:$0xf]
        %v3038 = vld [vmem:[%s3025 + $0x30] sm:$0xf]
        %v3039 = vld [vmem:[%s3025 + $0x34] sm:$0xf]
        %v3040 = vld [vmem:[%s3025 + $0x38] sm:$0xf]
        %v3041 = vld [vmem:[%s3025 + $0x3c] sm:$0xf]
        %v3043 = vunpack.c.l.b16 %v3024
        %v3044 = vpack.c.b16 %v3043, %v2789
        %vm3045 = vsmask.f32 5376
        %v3047 = vshrl.u32 %v2791, 16
        %v3049 = vrot.slane %v3047, 2
        %v3050 = vshll.u32 %v2791, 16
        %v3052 = vrot.slane %v3050, 3
        %v3053 = vor.u32 %v3049, %v3052
        %v3055 = vshrl.u32 %v2792, 16
        %v3057 = vrot.slane %v3055, 2
        %v3058 = vshll.u32 %v2792, 16
        %v3060 = vrot.slane %v3058, 3
        %v3061 = vor.u32 %v3057, %v3060
        %v3062 = vsel %vm3045, %v3053, %v3061
        %v3064 = vshrl.u32 %v2793, 16
        %v3066 = vrot.slane %v3064, 2
        %v3067 = vshll.u32 %v2793, 16
        %v3069 = vrot.slane %v3067, 3
        %v3070 = vor.u32 %v3066, %v3069
        %v3071 = vsel %vm3045, %v3061, %v3070
        %v3073 = vshrl.u32 %v2794, 16
        %v3075 = vrot.slane %v3073, 2
        %v3076 = vshll.u32 %v2794, 16
        %v3078 = vrot.slane %v3076, 3
        %v3079 = vor.u32 %v3075, %v3078
        %v3080 = vsel %vm3045, %v3070, %v3079
        %v3082 = vshrl.u32 %v2795, 16
        %v3084 = vrot.slane %v3082, 2
        %v3085 = vshll.u32 %v2795, 16
        %v3087 = vrot.slane %v3085, 3
        %v3088 = vor.u32 %v3084, %v3087
        %v3089 = vsel %vm3045, %v3079, %v3088
        %v3091 = vshrl.u32 %v2796, 16
        %v3093 = vrot.slane %v3091, 2
        %v3094 = vshll.u32 %v2796, 16
        %v3096 = vrot.slane %v3094, 3
        %v3097 = vor.u32 %v3093, %v3096
        %v3098 = vsel %vm3045, %v3088, %v3097
        %v3100 = vshrl.u32 %v2797, 16
        %v3102 = vrot.slane %v3100, 2
        %v3103 = vshll.u32 %v2797, 16
        %v3105 = vrot.slane %v3103, 3
        %v3106 = vor.u32 %v3102, %v3105
        %v3107 = vsel %vm3045, %v3097, %v3106
        %v3109 = vshrl.u32 %v2798, 16
        %v3111 = vrot.slane %v3109, 2
        %v3112 = vshll.u32 %v2798, 16
        %v3114 = vrot.slane %v3112, 3
        %v3115 = vor.u32 %v3111, %v3114
        %v3116 = vsel %vm3045, %v3106, %v3115
        %v3118 = vshrl.u32 %v2799, 16
        %v3120 = vrot.slane %v3118, 2
        %v3121 = vshll.u32 %v2799, 16
        %v3123 = vrot.slane %v3121, 3
        %v3124 = vor.u32 %v3120, %v3123
        %v3125 = vsel %vm3045, %v3115, %v3124
        %v3127 = vshrl.u32 %v2800, 16
        %v3129 = vrot.slane %v3127, 2
        %v3130 = vshll.u32 %v2800, 16
        %v3132 = vrot.slane %v3130, 3
        %v3133 = vor.u32 %v3129, %v3132
        %v3134 = vsel %vm3045, %v3124, %v3133
        %v3136 = vshrl.u32 %v3044, 16
        %v3138 = vrot.slane %v3136, 2
        %v3139 = vshll.u32 %v3044, 16
        %v3141 = vrot.slane %v3139, 3
        %v3142 = vor.u32 %v3138, %v3141
        %v3143 = vsel %vm3045, %v3133, %v3142
        %v3171 = vunpack.c.l.b16 %v3026
        %v3172 = vunpack.c.l.b16 %v3027
        %v3173 = vunpack.c.l.b16 %v3028
        %v3174 = vunpack.c.l.b16 %v3029
        %v3175 = vunpack.c.l.b16 %v3030
        %v3176 = vunpack.c.l.b16 %v3031
        %v3177 = vunpack.c.l.b16 %v3032
        %v3178 = vunpack.c.l.b16 %v3033
        %v3179 = vunpack.c.l.b16 %v3034
        %v3180 = vunpack.c.l.b16 %v3035
        %v3181 = vunpack.c.l.b16 %v3036
        %v3182 = vunpack.c.l.b16 %v3037
        %v3183 = vunpack.c.l.b16 %v3038
        %v3184 = vunpack.c.l.b16 %v3039
        %v3185 = vunpack.c.l.b16 %v3040
        %v3186 = vunpack.c.l.b16 %v3041
        %v3187 = vpack.c.b16 %v3172, %v3171
        %v3188 = vpack.c.b16 %v3174, %v3173
        %v3189 = vpack.c.b16 %v3176, %v3175
        %v3190 = vpack.c.b16 %v3178, %v3177
        %v3191 = vpack.c.b16 %v3180, %v3179
        %v3192 = vpack.c.b16 %v3182, %v3181
        %v3193 = vpack.c.b16 %v3184, %v3183
        %v3194 = vpack.c.b16 %v3186, %v3185
        %3203 = vmatprep.subr.bf16.mxu0 0
        %3204 = vmatpush1.bf16.msra.mxu0 %v3194
        %3205 = vmatprep.subr.bf16.mxu0 0
        %3206 = vmatpush1.bf16.msra.mxu0 %v3193
        %3207 = vmatprep.subr.bf16.mxu0 0
        %3208 = vmatpush1.bf16.msra.mxu0 %v3192
        %3209 = vmatprep.subr.bf16.mxu0 0
        %3210 = vmatpush1.bf16.msra.mxu0 %v3191
        %3211 = vmatprep.subr.bf16.mxu0 0
        %3212 = vmatpush1.bf16.msra.mxu0 %v3190
        %3213 = vmatprep.subr.bf16.mxu0 0
        %3214 = vmatpush1.bf16.msra.mxu0 %v3189
        %3215 = vmatprep.subr.bf16.mxu0 0
        %3216 = vmatpush1.bf16.msra.mxu0 %v3188
        %3217 = vmatprep.subr.bf16.mxu0 0
        %3218 = vmatpush1.bf16.msra.mxu0 %v3187
        %3219 = vmatprep.subr.bf16.mxu0 0
        %3220 = vmatpush2.bf16.msra.mxu0 0
        %3221 = vmatprep.subr.bf16.mxu0 0
        %3222 = vmatpush2.bf16.msra.mxu0 0
        %3223 = vmatprep.subr.bf16.mxu0 0
        %3224 = vmatpush2.bf16.msra.mxu0 0
        %3225 = vmatprep.subr.bf16.mxu0 0
        %3226 = vmatpush2.bf16.msra.mxu0 0
        %3227 = vmatprep.subr.bf16.mxu0 0
        %3228 = vmatpush2.bf16.msra.mxu0 0
        %3229 = vmatprep.subr.bf16.mxu0 0
        %3230 = vmatpush2.bf16.msra.mxu0 0
        %3231 = vmatprep.subr.bf16.mxu0 0
        %3232 = vmatpush2.bf16.msra.mxu0 0
        %3233 = vmatprep.subr.bf16.mxu0 0
        %3234 = vmatpush2.bf16.msra.mxu0 0
        %3235 = vmatprep.mubr.bf16.mxu0 0
        %3236 = vmatmul.mubr.bf16.gmra.mxu0 %v3062
        %v3237 = vpop.f32.mrf.mxu0
        %v3238 = vadd.f32 0.0, %v3237
        %v3239 = vpop.f32.mrf.mxu0
        %v3240 = vpop.f32.mrf.mxu0
        %v3241 = vadd.f32 0.0, %v3240
        %v3242 = vpop.f32.mrf.mxu0
        %3243 = vmatprep.mubr.bf16.mxu0 0
        %3244 = vmatmul.mubr.bf16.gmra.mxu0 %v3071
        %v3245 = vpop.f32.mrf.mxu0
        %v3246 = vadd.f32 0.0, %v3245
        %v3247 = vpop.f32.mrf.mxu0
        %v3248 = vpop.f32.mrf.mxu0
        %v3249 = vadd.f32 0.0, %v3248
        %v3250 = vpop.f32.mrf.mxu0
        %3251 = vmatprep.mubr.bf16.mxu0 0
        %3252 = vmatmul.mubr.bf16.gmra.mxu0 %v3080
        %v3253 = vpop.f32.mrf.mxu0
        %v3254 = vadd.f32 0.0, %v3253
        %v3255 = vpop.f32.mrf.mxu0
        %v3256 = vpop.f32.mrf.mxu0
        %v3257 = vadd.f32 0.0, %v3256
        %v3258 = vpop.f32.mrf.mxu0
        %3259 = vmatprep.mubr.bf16.mxu0 0
        %3260 = vmatmul.mubr.bf16.gmra.mxu0 %v3089
        %v3261 = vpop.f32.mrf.mxu0
        %v3262 = vadd.f32 0.0, %v3261
        %v3263 = vpop.f32.mrf.mxu0
        %v3264 = vpop.f32.mrf.mxu0
        %v3265 = vadd.f32 0.0, %v3264
        %v3266 = vpop.f32.mrf.mxu0
        %3267 = vmatprep.mubr.bf16.mxu0 0
        %3268 = vmatmul.mubr.bf16.gmra.mxu0 %v3098
        %v3269 = vpop.f32.mrf.mxu0
        %v3270 = vadd.f32 0.0, %v3269
        %v3271 = vpop.f32.mrf.mxu0
        %v3272 = vpop.f32.mrf.mxu0
        %v3273 = vadd.f32 0.0, %v3272
        %v3274 = vpop.f32.mrf.mxu0
        %3275 = vmatprep.mubr.bf16.mxu0 0
        %3276 = vmatmul.mubr.bf16.gmra.mxu0 %v3107
        %v3277 = vpop.f32.mrf.mxu0
        %v3278 = vadd.f32 0.0, %v3277
        %v3279 = vpop.f32.mrf.mxu0
        %v3280 = vpop.f32.mrf.mxu0
        %v3281 = vadd.f32 0.0, %v3280
        %v3282 = vpop.f32.mrf.mxu0
        %3283 = vmatprep.mubr.bf16.mxu0 0
        %3284 = vmatmul.mubr.bf16.gmra.mxu0 %v3116
        %v3285 = vpop.f32.mrf.mxu0
        %v3286 = vadd.f32 0.0, %v3285
        %v3287 = vpop.f32.mrf.mxu0
        %v3288 = vpop.f32.mrf.mxu0
        %v3289 = vadd.f32 0.0, %v3288
        %v3290 = vpop.f32.mrf.mxu0
        %3291 = vmatprep.mubr.bf16.mxu0 0
        %3292 = vmatmul.mubr.bf16.gmra.mxu0 %v3125
        %v3293 = vpop.f32.mrf.mxu0
        %v3294 = vadd.f32 0.0, %v3293
        %v3295 = vpop.f32.mrf.mxu0
        %v3296 = vpop.f32.mrf.mxu0
        %v3297 = vadd.f32 0.0, %v3296
        %v3298 = vpop.f32.mrf.mxu0
        %3299 = vmatprep.mubr.bf16.mxu0 0
        %3300 = vmatmul.mubr.bf16.gmra.mxu0 %v3134
        %v3301 = vpop.f32.mrf.mxu0
        %v3302 = vadd.f32 0.0, %v3301
        %v3303 = vpop.f32.mrf.mxu0
        %v3304 = vpop.f32.mrf.mxu0
        %v3305 = vadd.f32 0.0, %v3304
        %v3306 = vpop.f32.mrf.mxu0
        %3307 = vmatprep.mubr.bf16.mxu0 0
        %3308 = vmatmul.mubr.bf16.gmra.mxu0 %v3143
        %v3309 = vpop.f32.mrf.mxu0
        %v3310 = vadd.f32 0.0, %v3309
        %v3311 = vpop.f32.mrf.mxu0
        %v3312 = vpop.f32.mrf.mxu0
        %v3313 = vadd.f32 0.0, %v3312
        %v3314 = vpop.f32.mrf.mxu0
        %3315 = vmatprep.mubr.bf16.mxu0 0
        %3316 = vmatmul.mubr.bf16.gmra.mxu0 %v3142
        %v3317 = vpop.f32.mrf.mxu0
        %v3318 = vadd.f32 0.0, %v3317
        %v3319 = vpop.f32.mrf.mxu0
        %v3320 = vpop.f32.mrf.mxu0
        %v3321 = vpop.f32.mrf.mxu0
        %3322 = vdwg.mxu0
        %v3323 = vadd.f32 %v3003, %v3238
        %v3324 = vadd.f32 %v3004, %v3241
        %v3325 = vadd.f32 %v3005, %v3246
        %v3326 = vadd.f32 %v3006, %v3249
        %v3327 = vadd.f32 %v3007, %v3254
        %v3328 = vadd.f32 %v3008, %v3257
        %v3329 = vadd.f32 %v3009, %v3262
        %v3330 = vadd.f32 %v3010, %v3265
        %v3331 = vadd.f32 %v3011, %v3270
        %v3332 = vadd.f32 %v3012, %v3273
        %v3333 = vadd.f32 %v3013, %v3278
        %v3334 = vadd.f32 %v3014, %v3281
        %v3335 = vadd.f32 %v3015, %v3286
        %v3336 = vadd.f32 %v3016, %v3289
        %v3337 = vadd.f32 %v3017, %v3294
        %v3338 = vadd.f32 %v3018, %v3297
        %v3339 = vadd.f32 %v3019, %v3302
        %v3340 = vadd.f32 %v3020, %v3305
        %v3341 = vadd.f32 %v3021, %v3310
        %v3342 = vadd.f32 %v3022, %v3313
        %v3343 = vadd.f32 %v3023, %v3318
        %v3344 = vld [vmem:[%s975 + $0xc] sm:$0x8]
        %s3345 = scalar_lea.vmem %s982, 512 [#allocation4]
        %v3346 = vld [vmem:[%s3345] sm:$0xf]
        %v3347 = vld [vmem:[%s3345 + $0x4] sm:$0xf]
        %v3348 = vld [vmem:[%s3345 + $0x8] sm:$0xf]
        %v3349 = vld [vmem:[%s3345 + $0xc] sm:$0xf]
        %v3350 = vld [vmem:[%s3345 + $0x10] sm:$0xf]
        %v3351 = vld [vmem:[%s3345 + $0x14] sm:$0xf]
        %v3352 = vld [vmem:[%s3345 + $0x18] sm:$0xf]
        %v3353 = vld [vmem:[%s3345 + $0x1c] sm:$0xf]
        %v3354 = vld [vmem:[%s3345 + $0x20] sm:$0xf]
        %v3355 = vld [vmem:[%s3345 + $0x24] sm:$0xf]
        %v3356 = vld [vmem:[%s3345 + $0x28] sm:$0xf]
        %v3357 = vld [vmem:[%s3345 + $0x2c] sm:$0xf]
        %v3358 = vld [vmem:[%s3345 + $0x30] sm:$0xf]
        %v3359 = vld [vmem:[%s3345 + $0x34] sm:$0xf]
        %v3360 = vld [vmem:[%s3345 + $0x38] sm:$0xf]
        %v3361 = vld [vmem:[%s3345 + $0x3c] sm:$0xf]
        %v3363 = vunpack.c.l.b16 %v3344
        %v3364 = vpack.c.b16 %v2770, %v3363
        %v3365 = vrot.slane %v3364, 3
        %v3366 = vrot.slane %v2792, 3
        %v3367 = vsel %vm1938, %v3365, %v3366
        %v3368 = vrot.slane %v2793, 3
        %v3369 = vsel %vm1938, %v3366, %v3368
        %v3370 = vrot.slane %v2794, 3
        %v3371 = vsel %vm1938, %v3368, %v3370
        %v3372 = vrot.slane %v2795, 3
        %v3373 = vsel %vm1938, %v3370, %v3372
        %v3374 = vrot.slane %v2796, 3
        %v3375 = vsel %vm1938, %v3372, %v3374
        %v3376 = vrot.slane %v2797, 3
        %v3377 = vsel %vm1938, %v3374, %v3376
        %v3378 = vrot.slane %v2798, 3
        %v3379 = vsel %vm1938, %v3376, %v3378
        %v3380 = vrot.slane %v2799, 3
        %v3381 = vsel %vm1938, %v3378, %v3380
        %v3382 = vrot.slane %v2800, 3
        %v3383 = vsel %vm1938, %v3380, %v3382
        %v3384 = vrot.slane %v3044, 3
        %v3385 = vsel %vm1938, %v3382, %v3384
        %v3413 = vunpack.c.l.b16 %v3346
        %v3414 = vunpack.c.l.b16 %v3347
        %v3415 = vunpack.c.l.b16 %v3348
        %v3416 = vunpack.c.l.b16 %v3349
        %v3417 = vunpack.c.l.b16 %v3350
        %v3418 = vunpack.c.l.b16 %v3351
        %v3419 = vunpack.c.l.b16 %v3352
        %v3420 = vunpack.c.l.b16 %v3353
        %v3421 = vunpack.c.l.b16 %v3354
        %v3422 = vunpack.c.l.b16 %v3355
        %v3423 = vunpack.c.l.b16 %v3356
        %v3424 = vunpack.c.l.b16 %v3357
        %v3425 = vunpack.c.l.b16 %v3358
        %v3426 = vunpack.c.l.b16 %v3359
        %v3427 = vunpack.c.l.b16 %v3360
        %v3428 = vunpack.c.l.b16 %v3361
        %v3429 = vpack.c.b16 %v3414, %v3413
        %v3430 = vpack.c.b16 %v3416, %v3415
        %v3431 = vpack.c.b16 %v3418, %v3417
        %v3432 = vpack.c.b16 %v3420, %v3419
        %v3433 = vpack.c.b16 %v3422, %v3421
        %v3434 = vpack.c.b16 %v3424, %v3423
        %v3435 = vpack.c.b16 %v3426, %v3425
        %v3436 = vpack.c.b16 %v3428, %v3427
        %3445 = vmatprep.subr.bf16.mxu0 0
        %3446 = vmatpush1.bf16.msra.mxu0 %v3436
        %3447 = vmatprep.subr.bf16.mxu0 0
        %3448 = vmatpush1.bf16.msra.mxu0 %v3435
        %3449 = vmatprep.subr.bf16.mxu0 0
        %3450 = vmatpush1.bf16.msra.mxu0 %v3434
        %3451 = vmatprep.subr.bf16.mxu0 0
        %3452 = vmatpush1.bf16.msra.mxu0 %v3433
        %3453 = vmatprep.subr.bf16.mxu0 0
        %3454 = vmatpush1.bf16.msra.mxu0 %v3432
        %3455 = vmatprep.subr.bf16.mxu0 0
        %3456 = vmatpush1.bf16.msra.mxu0 %v3431
        %3457 = vmatprep.subr.bf16.mxu0 0
        %3458 = vmatpush1.bf16.msra.mxu0 %v3430
        %3459 = vmatprep.subr.bf16.mxu0 0
        %3460 = vmatpush1.bf16.msra.mxu0 %v3429
        %3461 = vmatprep.subr.bf16.mxu0 0
        %3462 = vmatpush2.bf16.msra.mxu0 0
        %3463 = vmatprep.subr.bf16.mxu0 0
        %3464 = vmatpush2.bf16.msra.mxu0 0
        %3465 = vmatprep.subr.bf16.mxu0 0
        %3466 = vmatpush2.bf16.msra.mxu0 0
        %3467 = vmatprep.subr.bf16.mxu0 0
        %3468 = vmatpush2.bf16.msra.mxu0 0
        %3469 = vmatprep.subr.bf16.mxu0 0
        %3470 = vmatpush2.bf16.msra.mxu0 0
        %3471 = vmatprep.subr.bf16.mxu0 0
        %3472 = vmatpush2.bf16.msra.mxu0 0
        %3473 = vmatprep.subr.bf16.mxu0 0
        %3474 = vmatpush2.bf16.msra.mxu0 0
        %3475 = vmatprep.subr.bf16.mxu0 0
        %3476 = vmatpush2.bf16.msra.mxu0 0
        %3477 = vmatprep.mubr.bf16.mxu0 0
        %3478 = vmatmul.mubr.bf16.gmra.mxu0 %v3367
        %v3479 = vpop.f32.mrf.mxu0
        %v3480 = vadd.f32 0.0, %v3479
        %v3481 = vpop.f32.mrf.mxu0
        %v3482 = vpop.f32.mrf.mxu0
        %v3483 = vadd.f32 0.0, %v3482
        %v3484 = vpop.f32.mrf.mxu0
        %3485 = vmatprep.mubr.bf16.mxu0 0
        %3486 = vmatmul.mubr.bf16.gmra.mxu0 %v3369
        %v3487 = vpop.f32.mrf.mxu0
        %v3488 = vadd.f32 0.0, %v3487
        %v3489 = vpop.f32.mrf.mxu0
        %v3490 = vpop.f32.mrf.mxu0
        %v3491 = vadd.f32 0.0, %v3490
        %v3492 = vpop.f32.mrf.mxu0
        %3493 = vmatprep.mubr.bf16.mxu0 0
        %3494 = vmatmul.mubr.bf16.gmra.mxu0 %v3371
        %v3495 = vpop.f32.mrf.mxu0
        %v3496 = vadd.f32 0.0, %v3495
        %v3497 = vpop.f32.mrf.mxu0
        %v3498 = vpop.f32.mrf.mxu0
        %v3499 = vadd.f32 0.0, %v3498
        %v3500 = vpop.f32.mrf.mxu0
        %3501 = vmatprep.mubr.bf16.mxu0 0
        %3502 = vmatmul.mubr.bf16.gmra.mxu0 %v3373
        %v3503 = vpop.f32.mrf.mxu0
        %v3504 = vadd.f32 0.0, %v3503
        %v3505 = vpop.f32.mrf.mxu0
        %v3506 = vpop.f32.mrf.mxu0
        %v3507 = vadd.f32 0.0, %v3506
        %v3508 = vpop.f32.mrf.mxu0
        %3509 = vmatprep.mubr.bf16.mxu0 0
        %3510 = vmatmul.mubr.bf16.gmra.mxu0 %v3375
        %v3511 = vpop.f32.mrf.mxu0
        %v3512 = vadd.f32 0.0, %v3511
        %v3513 = vpop.f32.mrf.mxu0
        %v3514 = vpop.f32.mrf.mxu0
        %v3515 = vadd.f32 0.0, %v3514
        %v3516 = vpop.f32.mrf.mxu0
        %3517 = vmatprep.mubr.bf16.mxu0 0
        %3518 = vmatmul.mubr.bf16.gmra.mxu0 %v3377
        %v3519 = vpop.f32.mrf.mxu0
        %v3520 = vadd.f32 0.0, %v3519
        %v3521 = vpop.f32.mrf.mxu0
        %v3522 = vpop.f32.mrf.mxu0
        %v3523 = vadd.f32 0.0, %v3522
        %v3524 = vpop.f32.mrf.mxu0
        %3525 = vmatprep.mubr.bf16.mxu0 0
        %3526 = vmatmul.mubr.bf16.gmra.mxu0 %v3379
        %v3527 = vpop.f32.mrf.mxu0
        %v3528 = vadd.f32 0.0, %v3527
        %v3529 = vpop.f32.mrf.mxu0
        %v3530 = vpop.f32.mrf.mxu0
        %v3531 = vadd.f32 0.0, %v3530
        %v3532 = vpop.f32.mrf.mxu0
        %3533 = vmatprep.mubr.bf16.mxu0 0
        %3534 = vmatmul.mubr.bf16.gmra.mxu0 %v3381
        %v3535 = vpop.f32.mrf.mxu0
        %v3536 = vadd.f32 0.0, %v3535
        %v3537 = vpop.f32.mrf.mxu0
        %v3538 = vpop.f32.mrf.mxu0
        %v3539 = vadd.f32 0.0, %v3538
        %v3540 = vpop.f32.mrf.mxu0
        %3541 = vmatprep.mubr.bf16.mxu0 0
        %3542 = vmatmul.mubr.bf16.gmra.mxu0 %v3383
        %v3543 = vpop.f32.mrf.mxu0
        %v3544 = vadd.f32 0.0, %v3543
        %v3545 = vpop.f32.mrf.mxu0
        %v3546 = vpop.f32.mrf.mxu0
        %v3547 = vadd.f32 0.0, %v3546
        %v3548 = vpop.f32.mrf.mxu0
        %3549 = vmatprep.mubr.bf16.mxu0 0
        %3550 = vmatmul.mubr.bf16.gmra.mxu0 %v3385
        %v3551 = vpop.f32.mrf.mxu0
        %v3552 = vadd.f32 0.0, %v3551
        %v3553 = vpop.f32.mrf.mxu0
        %v3554 = vpop.f32.mrf.mxu0
        %v3555 = vadd.f32 0.0, %v3554
        %v3556 = vpop.f32.mrf.mxu0
        %3557 = vmatprep.mubr.bf16.mxu0 0
        %3558 = vmatmul.mubr.bf16.gmra.mxu0 %v3384
        %v3559 = vpop.f32.mrf.mxu0
        %v3560 = vadd.f32 0.0, %v3559
        %v3561 = vpop.f32.mrf.mxu0
        %v3562 = vpop.f32.mrf.mxu0
        %v3563 = vpop.f32.mrf.mxu0
        %3564 = vdwg.mxu0
        %v3565 = vadd.f32 %v3323, %v3480
        %v3566 = vadd.f32 %v3324, %v3483
        %v3567 = vadd.f32 %v3325, %v3488
        %v3568 = vadd.f32 %v3326, %v3491
        %v3569 = vadd.f32 %v3327, %v3496
        %v3570 = vadd.f32 %v3328, %v3499
        %v3571 = vadd.f32 %v3329, %v3504
        %v3572 = vadd.f32 %v3330, %v3507
        %v3573 = vadd.f32 %v3331, %v3512
        %v3574 = vadd.f32 %v3332, %v3515
        %v3575 = vadd.f32 %v3333, %v3520
        %v3576 = vadd.f32 %v3334, %v3523
        %v3577 = vadd.f32 %v3335, %v3528
        %v3578 = vadd.f32 %v3336, %v3531
        %v3579 = vadd.f32 %v3337, %v3536
        %v3580 = vadd.f32 %v3338, %v3539
        %v3581 = vadd.f32 %v3339, %v3544
        %v3582 = vadd.f32 %v3340, %v3547
        %v3583 = vadd.f32 %v3341, %v3552
        %v3584 = vadd.f32 %v3342, %v3555
        %v3585 = vadd.f32 %v3343, %v3560
        %v3586 = vld [vmem:[#allocation2] sm:$0xff]
        %v3587 = vld [vmem:[#allocation2 + $0x8] sm:$0xff]
        %v3588 = vld [vmem:[#allocation2 + $0x10] sm:$0xff]
        %v3589 = vld [vmem:[#allocation2 + $0x18] sm:$0xff]
        %v3590 = vld [vmem:[#allocation2 + $0x20] sm:$0xff]
        %v3591 = vld [vmem:[#allocation2 + $0x28] sm:$0xff]
        %v3592 = vld [vmem:[#allocation2 + $0x30] sm:$0xff]
        %v3593 = vld [vmem:[#allocation2 + $0x38] sm:$0xff]
        %v3594 = vld [vmem:[#allocation2 + $0x40] sm:$0xff]
        %v3595 = vld [vmem:[#allocation2 + $0x48] sm:$0xff]
        %v3596 = vld [vmem:[#allocation2 + $0x50] sm:$0xff]
        %v3597 = vld [vmem:[#allocation2 + $0x58] sm:$0xff]
        %v3598 = vld [vmem:[#allocation2 + $0x60] sm:$0xff]
        %v3599 = vld [vmem:[#allocation2 + $0x68] sm:$0xff]
        %v3600 = vld [vmem:[#allocation2 + $0x70] sm:$0xff]
        %v3601 = vld [vmem:[#allocation2 + $0x78] sm:$0xff]
        %v3602 = vld [vmem:[#allocation2 + $0x80] sm:$0xff]
        %v3603 = vld [vmem:[#allocation2 + $0x88] sm:$0xff]
        %v3604 = vld [vmem:[#allocation2 + $0x90] sm:$0xff]
        %v3605 = vld [vmem:[#allocation2 + $0x98] sm:$0xff]
        %v3606 = vld [vmem:[#allocation2 + $0xa0] sm:$0xff]
        %v3607 = vadd.f32 %v3586, %v3565
        %v3608 = vadd.f32 %v3587, %v3566
        %v3609 = vadd.f32 %v3588, %v3567
        %v3610 = vadd.f32 %v3589, %v3568
        %v3611 = vadd.f32 %v3590, %v3569
        %v3612 = vadd.f32 %v3591, %v3570
        %v3613 = vadd.f32 %v3592, %v3571
        %v3614 = vadd.f32 %v3593, %v3572
        %v3615 = vadd.f32 %v3594, %v3573
        %v3616 = vadd.f32 %v3595, %v3574
        %v3617 = vadd.f32 %v3596, %v3575
        %v3618 = vadd.f32 %v3597, %v3576
        %v3619 = vadd.f32 %v3598, %v3577
        %v3620 = vadd.f32 %v3599, %v3578
        %v3621 = vadd.f32 %v3600, %v3579
        %v3622 = vadd.f32 %v3601, %v3580
        %v3623 = vadd.f32 %v3602, %v3581
        %v3624 = vadd.f32 %v3603, %v3582
        %v3625 = vadd.f32 %v3604, %v3583
        %v3626 = vadd.f32 %v3605, %v3584
        %v3627 = vadd.f32 %v3606, %v3585
        %vm3628 = vcmask 523264
        %3629 = vst.msk [vmem:[#allocation2] sm:$0xff] %vm3628, %v3607
        %3630 = vst.msk [vmem:[#allocation2 + $0x8] sm:$0xff] %vm3628, %v3608
        %3631 = vst.msk [vmem:[#allocation2 + $0x10] sm:$0xff] %vm3628, %v3609
        %3632 = vst.msk [vmem:[#allocation2 + $0x18] sm:$0xff] %vm3628, %v3610
        %3633 = vst.msk [vmem:[#allocation2 + $0x20] sm:$0xff] %vm3628, %v3611
        %3634 = vst.msk [vmem:[#allocation2 + $0x28] sm:$0xff] %vm3628, %v3612
        %3635 = vst.msk [vmem:[#allocation2 + $0x30] sm:$0xff] %vm3628, %v3613
        %3636 = vst.msk [vmem:[#allocation2 + $0x38] sm:$0xff] %vm3628, %v3614
        %3637 = vst.msk [vmem:[#allocation2 + $0x40] sm:$0xff] %vm3628, %v3615
        %3638 = vst.msk [vmem:[#allocation2 + $0x48] sm:$0xff] %vm3628, %v3616
        %3639 = vst.msk [vmem:[#allocation2 + $0x50] sm:$0xff] %vm3628, %v3617
        %3640 = vst.msk [vmem:[#allocation2 + $0x58] sm:$0xff] %vm3628, %v3618
        %3641 = vst.msk [vmem:[#allocation2 + $0x60] sm:$0xff] %vm3628, %v3619
        %3642 = vst.msk [vmem:[#allocation2 + $0x68] sm:$0xff] %vm3628, %v3620
        %3643 = vst.msk [vmem:[#allocation2 + $0x70] sm:$0xff] %vm3628, %v3621
        %3644 = vst.msk [vmem:[#allocation2 + $0x78] sm:$0xff] %vm3628, %v3622
        %3645 = vst.msk [vmem:[#allocation2 + $0x80] sm:$0xff] %vm3628, %v3623
        %3646 = vst.msk [vmem:[#allocation2 + $0x88] sm:$0xff] %vm3628, %v3624
        %3647 = vst.msk [vmem:[#allocation2 + $0x90] sm:$0xff] %vm3628, %v3625
        %3648 = vst.msk [vmem:[#allocation2 + $0x98] sm:$0xff] %vm3628, %v3626
        %3649 = vst.msk [vmem:[#allocation2 + $0xa0] sm:$0xff] %vm3628, %v3627
        %p3650 = scmp.eq.s32.totalorder %s21, 2
        // Predicated region
        $region127: #{ppm_deepsup_forward.3} parent=113 // pred_check
          %p3651 = pneg %p3650
        $region128: #{ppm_deepsup_forward.3} parent=113 // pred_check_branch
          %3653 = sbr.rel (%p3651) target = $region130
        $region129: #{ppm_deepsup_forward.3} parent=113 // pred_region
          %v3654 = vld [vmem:[#allocation2] sm:$0xff]
          %v3655 = vld [vmem:[#allocation2 + $0x8] sm:$0xff]
          %v3656 = vld [vmem:[#allocation2 + $0x10] sm:$0xff]
          %v3657 = vld [vmem:[#allocation2 + $0x18] sm:$0xff]
          %v3658 = vld [vmem:[#allocation2 + $0x20] sm:$0xff]
          %v3659 = vld [vmem:[#allocation2 + $0x28] sm:$0xff]
          %v3660 = vld [vmem:[#allocation2 + $0x30] sm:$0xff]
          %v3661 = vld [vmem:[#allocation2 + $0x38] sm:$0xff]
          %v3662 = vld [vmem:[#allocation2 + $0x40] sm:$0xff]
          %v3663 = vld [vmem:[#allocation2 + $0x48] sm:$0xff]
          %v3664 = vld [vmem:[#allocation2 + $0x50] sm:$0xff]
          %v3665 = vld [vmem:[#allocation2 + $0x58] sm:$0xff]
          %v3666 = vld [vmem:[#allocation2 + $0x60] sm:$0xff]
          %v3667 = vld [vmem:[#allocation2 + $0x68] sm:$0xff]
          %v3668 = vld [vmem:[#allocation2 + $0x70] sm:$0xff]
          %v3669 = vld [vmem:[#allocation2 + $0x78] sm:$0xff]
          %v3670 = vld [vmem:[#allocation2 + $0x80] sm:$0xff]
          %v3671 = vld [vmem:[#allocation2 + $0x88] sm:$0xff]
          %v3672 = vld [vmem:[#allocation2 + $0x90] sm:$0xff]
          %v3673 = vld [vmem:[#allocation2 + $0x98] sm:$0xff]
          %v3674 = vld [vmem:[#allocation2 + $0xa0] sm:$0xff]
          %v3675 = vld [vmem:[%s2] sm:$0x1]
          %v3677 = vlaneseq
          %v3678 = vshrl.u32 %v3677, 7
          %v3679 = vsub.s32 0, %v3678
          %v3680 = vrot.slane %v3675, %v3679
          %v3682 = vadd.f32 %v3654, %v3680
          %v3683 = vadd.f32 %v3655, %v3680
          %v3684 = vadd.f32 %v3656, %v3680
          %v3685 = vadd.f32 %v3657, %v3680
          %v3686 = vadd.f32 %v3658, %v3680
          %v3687 = vadd.f32 %v3659, %v3680
          %v3688 = vadd.f32 %v3660, %v3680
          %v3689 = vadd.f32 %v3661, %v3680
          %v3690 = vadd.f32 %v3662, %v3680
          %v3691 = vadd.f32 %v3663, %v3680
          %v3692 = vadd.f32 %v3664, %v3680
          %v3693 = vadd.f32 %v3665, %v3680
          %v3694 = vadd.f32 %v3666, %v3680
          %v3695 = vadd.f32 %v3667, %v3680
          %v3696 = vadd.f32 %v3668, %v3680
          %v3697 = vadd.f32 %v3669, %v3680
          %v3698 = vadd.f32 %v3670, %v3680
          %v3699 = vadd.f32 %v3671, %v3680
          %v3700 = vadd.f32 %v3672, %v3680
          %v3701 = vadd.f32 %v3673, %v3680
          %v3702 = vadd.f32 %v3674, %v3680
          %v3703 = vmax.f32 %v3682, 0.0
          %v3704 = vmax.f32 %v3683, 0.0
          %v3705 = vmax.f32 %v3684, 0.0
          %v3706 = vmax.f32 %v3685, 0.0
          %v3707 = vmax.f32 %v3686, 0.0
          %v3708 = vmax.f32 %v3687, 0.0
          %v3709 = vmax.f32 %v3688, 0.0
          %v3710 = vmax.f32 %v3689, 0.0
          %v3711 = vmax.f32 %v3690, 0.0
          %v3712 = vmax.f32 %v3691, 0.0
          %v3713 = vmax.f32 %v3692, 0.0
          %v3714 = vmax.f32 %v3693, 0.0
          %v3715 = vmax.f32 %v3694, 0.0
          %v3716 = vmax.f32 %v3695, 0.0
          %v3717 = vmax.f32 %v3696, 0.0
          %v3718 = vmax.f32 %v3697, 0.0
          %v3719 = vmax.f32 %v3698, 0.0
          %v3720 = vmax.f32 %v3699, 0.0
          %v3721 = vmax.f32 %v3700, 0.0
          %v3722 = vmax.f32 %v3701, 0.0
          %v3723 = vmax.f32 %v3702, 0.0
          %v3724 = vpack.c.bf16 %v3704, %v3703
          %v3725 = vpack.c.bf16 %v3706, %v3705
          %v3726 = vpack.c.bf16 %v3708, %v3707
          %v3727 = vpack.c.bf16 %v3710, %v3709
          %v3728 = vpack.c.bf16 %v3712, %v3711
          %v3729 = vpack.c.bf16 %v3714, %v3713
          %v3730 = vpack.c.bf16 %v3716, %v3715
          %v3731 = vpack.c.bf16 %v3718, %v3717
          %v3732 = vpack.c.bf16 %v3720, %v3719
          %v3733 = vpack.c.bf16 %v3722, %v3721
          %v3734 = vpack.c.bf16 %v3723, %v3723
          %v3735 = vld [vmem:[%s3] sm:$0xf]
          %v3736 = vld [vmem:[%s3 + $0x4] sm:$0xf]
          %v3737 = vld [vmem:[%s3 + $0x8] sm:$0xf]
          %v3738 = vld [vmem:[%s3 + $0xc] sm:$0xf]
          %v3739 = vld [vmem:[%s3 + $0x10] sm:$0xf]
          %v3740 = vld [vmem:[%s3 + $0x14] sm:$0xf]
          %v3741 = vld [vmem:[%s3 + $0x18] sm:$0xf]
          %v3742 = vld [vmem:[%s3 + $0x1c] sm:$0xf]
          %v3743 = vld [vmem:[%s4] sm:$0x1]
          %v3745 = vlaneseq
          %v3746 = vshrl.u32 %v3745, 7
          %v3747 = vsub.s32 0, %v3746
          %v3748 = vrot.slane %v3743, %v3747
          %v3758 = vunpack.c.l.b16 %v3735
          %v3759 = vunpack.c.l.b16 %v3736
          %v3760 = vunpack.c.l.b16 %v3737
          %v3761 = vunpack.c.l.b16 %v3738
          %v3762 = vunpack.c.l.b16 %v3739
          %v3763 = vunpack.c.l.b16 %v3740
          %v3764 = vunpack.c.l.b16 %v3741
          %v3765 = vunpack.c.l.b16 %v3742
          %v3766 = vpack.c.b16 %v3759, %v3758
          %v3767 = vpack.c.b16 %v3761, %v3760
          %v3768 = vpack.c.b16 %v3763, %v3762
          %v3769 = vpack.c.b16 %v3765, %v3764
          %v3775 = vsel %vm3628, %v3724, 0
          %v3778 = vsel %vm3628, %v3725, 0
          %v3781 = vsel %vm3628, %v3726, 0
          %v3784 = vsel %vm3628, %v3727, 0
          %v3787 = vsel %vm3628, %v3728, 0
          %v3790 = vsel %vm3628, %v3729, 0
          %v3793 = vsel %vm3628, %v3730, 0
          %v3796 = vsel %vm3628, %v3731, 0
          %v3799 = vsel %vm3628, %v3732, 0
          %v3802 = vsel %vm3628, %v3733, 0
          %v3805 = vsel %vm3628, %v3734, 0
          %3807 = vmatprep.subr.bf16.mxu0 0
          %3808 = vmatpush1.bf16.msra.mxu0 0
          %3809 = vmatprep.subr.bf16.mxu0 0
          %3810 = vmatpush1.bf16.msra.mxu0 0
          %3811 = vmatprep.subr.bf16.mxu0 0
          %3812 = vmatpush1.bf16.msra.mxu0 0
          %3813 = vmatprep.subr.bf16.mxu0 0
          %3814 = vmatpush1.bf16.msra.mxu0 0
          %3815 = vmatprep.subr.bf16.mxu0 0
          %3816 = vmatpush1.bf16.msra.mxu0 %v3769
          %3817 = vmatprep.subr.bf16.mxu0 0
          %3818 = vmatpush1.bf16.msra.mxu0 %v3768
          %3819 = vmatprep.subr.bf16.mxu0 0
          %3820 = vmatpush1.bf16.msra.mxu0 %v3767
          %3821 = vmatprep.subr.bf16.mxu0 0
          %3822 = vmatpush1.bf16.msra.mxu0 %v3766
          %3823 = vmatprep.subr.bf16.mxu0 0
          %3824 = vmatpush2.bf16.msra.mxu0 0
          %3825 = vmatprep.subr.bf16.mxu0 0
          %3826 = vmatpush2.bf16.msra.mxu0 0
          %3827 = vmatprep.subr.bf16.mxu0 0
          %3828 = vmatpush2.bf16.msra.mxu0 0
          %3829 = vmatprep.subr.bf16.mxu0 0
          %3830 = vmatpush2.bf16.msra.mxu0 0
          %3831 = vmatprep.subr.bf16.mxu0 0
          %3832 = vmatpush2.bf16.msra.mxu0 0
          %3833 = vmatprep.subr.bf16.mxu0 0
          %3834 = vmatpush2.bf16.msra.mxu0 0
          %3835 = vmatprep.subr.bf16.mxu0 0
          %3836 = vmatpush2.bf16.msra.mxu0 0
          %3837 = vmatprep.subr.bf16.mxu0 0
          %3838 = vmatpush2.bf16.msra.mxu0 0
          %3839 = vmatprep.mubr.bf16.mxu0 0
          %3840 = vmatmul.mubr.bf16.gmra.mxu0 %v3775
          %v3841 = vpop.f32.mrf.mxu0
          %v3842 = vadd.f32 %v3748, %v3841
          %v3843 = vpop.f32.mrf.mxu0
          %v3844 = vpop.f32.mrf.mxu0
          %v3845 = vadd.f32 %v3748, %v3844
          %v3846 = vpop.f32.mrf.mxu0
          %3847 = vmatprep.mubr.bf16.mxu0 0
          %3848 = vmatmul.mubr.bf16.gmra.mxu0 %v3778
          %v3849 = vpop.f32.mrf.mxu0
          %v3850 = vadd.f32 %v3748, %v3849
          %v3851 = vpop.f32.mrf.mxu0
          %v3852 = vpop.f32.mrf.mxu0
          %v3853 = vadd.f32 %v3748, %v3852
          %v3854 = vpop.f32.mrf.mxu0
          %3855 = vmatprep.mubr.bf16.mxu0 0
          %3856 = vmatmul.mubr.bf16.gmra.mxu0 %v3781
          %v3857 = vpop.f32.mrf.mxu0
          %v3858 = vadd.f32 %v3748, %v3857
          %v3859 = vpop.f32.mrf.mxu0
          %v3860 = vpop.f32.mrf.mxu0
          %v3861 = vadd.f32 %v3748, %v3860
          %v3862 = vpop.f32.mrf.mxu0
          %3863 = vmatprep.mubr.bf16.mxu0 0
          %3864 = vmatmul.mubr.bf16.gmra.mxu0 %v3784
          %v3865 = vpop.f32.mrf.mxu0
          %v3866 = vadd.f32 %v3748, %v3865
          %v3867 = vpop.f32.mrf.mxu0
          %v3868 = vpop.f32.mrf.mxu0
          %v3869 = vadd.f32 %v3748, %v3868
          %v3870 = vpop.f32.mrf.mxu0
          %3871 = vmatprep.mubr.bf16.mxu0 0
          %3872 = vmatmul.mubr.bf16.gmra.mxu0 %v3787
          %v3873 = vpop.f32.mrf.mxu0
          %v3874 = vadd.f32 %v3748, %v3873
          %v3875 = vpop.f32.mrf.mxu0
          %v3876 = vpop.f32.mrf.mxu0
          %v3877 = vadd.f32 %v3748, %v3876
          %v3878 = vpop.f32.mrf.mxu0
          %3879 = vmatprep.mubr.bf16.mxu0 0
          %3880 = vmatmul.mubr.bf16.gmra.mxu0 %v3790
          %v3881 = vpop.f32.mrf.mxu0
          %v3882 = vadd.f32 %v3748, %v3881
          %v3883 = vpop.f32.mrf.mxu0
          %v3884 = vpop.f32.mrf.mxu0
          %v3885 = vadd.f32 %v3748, %v3884
          %v3886 = vpop.f32.mrf.mxu0
          %3887 = vmatprep.mubr.bf16.mxu0 0
          %3888 = vmatmul.mubr.bf16.gmra.mxu0 %v3793
          %v3889 = vpop.f32.mrf.mxu0
          %v3890 = vadd.f32 %v3748, %v3889
          %v3891 = vpop.f32.mrf.mxu0
          %v3892 = vpop.f32.mrf.mxu0
          %v3893 = vadd.f32 %v3748, %v3892
          %v3894 = vpop.f32.mrf.mxu0
          %3895 = vmatprep.mubr.bf16.mxu0 0
          %3896 = vmatmul.mubr.bf16.gmra.mxu0 %v3796
          %v3897 = vpop.f32.mrf.mxu0
          %v3898 = vadd.f32 %v3748, %v3897
          %v3899 = vpop.f32.mrf.mxu0
          %v3900 = vpop.f32.mrf.mxu0
          %v3901 = vadd.f32 %v3748, %v3900
          %v3902 = vpop.f32.mrf.mxu0
          %3903 = vmatprep.mubr.bf16.mxu0 0
          %3904 = vmatmul.mubr.bf16.gmra.mxu0 %v3799
          %v3905 = vpop.f32.mrf.mxu0
          %v3906 = vadd.f32 %v3748, %v3905
          %v3907 = vpop.f32.mrf.mxu0
          %v3908 = vpop.f32.mrf.mxu0
          %v3909 = vadd.f32 %v3748, %v3908
          %v3910 = vpop.f32.mrf.mxu0
          %3911 = vmatprep.mubr.bf16.mxu0 0
          %3912 = vmatmul.mubr.bf16.gmra.mxu0 %v3802
          %v3913 = vpop.f32.mrf.mxu0
          %v3914 = vadd.f32 %v3748, %v3913
          %v3915 = vpop.f32.mrf.mxu0
          %v3916 = vpop.f32.mrf.mxu0
          %v3917 = vadd.f32 %v3748, %v3916
          %v3918 = vpop.f32.mrf.mxu0
          %3919 = vmatprep.mubr.bf16.mxu0 0
          %3920 = vmatmul.mubr.bf16.gmra.mxu0 %v3805
          %v3921 = vpop.f32.mrf.mxu0
          %v3922 = vadd.f32 %v3748, %v3921
          %v3923 = vpop.f32.mrf.mxu0
          %v3924 = vpop.f32.mrf.mxu0
          %v3925 = vpop.f32.mrf.mxu0
          %3926 = vdwg.mxu0
          %3927 = vst [vmem:[%s1016] sm:$0xff] %v3842
          %3928 = vst [vmem:[%s1016 + $0x8] sm:$0xff] %v3845
          %3929 = vst [vmem:[%s1016 + $0x10] sm:$0xff] %v3850
          %3930 = vst [vmem:[%s1016 + $0x18] sm:$0xff] %v3853
          %3931 = vst [vmem:[%s1016 + $0x20] sm:$0xff] %v3858
          %3932 = vst [vmem:[%s1016 + $0x28] sm:$0xff] %v3861
          %3933 = vst [vmem:[%s1016 + $0x30] sm:$0xff] %v3866
          %3934 = vst [vmem:[%s1016 + $0x38] sm:$0xff] %v3869
          %3935 = vst [vmem:[%s1016 + $0x40] sm:$0xff] %v3874
          %3936 = vst [vmem:[%s1016 + $0x48] sm:$0xff] %v3877
          %3937 = vst [vmem:[%s1016 + $0x50] sm:$0xff] %v3882
          %3938 = vst [vmem:[%s1016 + $0x58] sm:$0xff] %v3885
          %3939 = vst [vmem:[%s1016 + $0x60] sm:$0xff] %v3890
          %3940 = vst [vmem:[%s1016 + $0x68] sm:$0xff] %v3893
          %3941 = vst [vmem:[%s1016 + $0x70] sm:$0xff] %v3898
          %3942 = vst [vmem:[%s1016 + $0x78] sm:$0xff] %v3901
          %3943 = vst [vmem:[%s1016 + $0x80] sm:$0xff] %v3906
          %3944 = vst [vmem:[%s1016 + $0x88] sm:$0xff] %v3909
          %3945 = vst [vmem:[%s1016 + $0x90] sm:$0xff] %v3914
          %3946 = vst [vmem:[%s1016 + $0x98] sm:$0xff] %v3917
          %3947 = vst [vmem:[%s1016 + $0xa0] sm:$0xff] %v3922
        $region130: #{ppm_deepsup_forward.3} parent=113 // pred_fallthru
          _
        %p3948 = scmp.lt.s32.totalorder %s20, 1
        %s3949 = scalar_select %p3948, %s20, 1
        %s3950 = smul.addr %s3949, 21
        %s3951 = smul.addr %s3950, 8
        %s3952 = scalar_lea.vmem %s5, %s3951
        // Predicated region
        $region131: #{ppm_deepsup_forward.3} parent=113 // pred_check
          %p3953 = pneg %p163
        $region132: #{ppm_deepsup_forward.3} parent=113 // pred_check_branch
          %3955 = sbr.rel (%p3953) target = $region134
        $region133: #{ppm_deepsup_forward.3} parent=113 // pred_region
          _
        $region134: #{ppm_deepsup_forward.3} parent=113 // pred_fallthru
          _
      $region114: #{ppm_deepsup_forward.3} parent=5 // pred_fallthru
        _
      %p3956 = scmp.le.s32.totalorder 2, %s11
      // Predicated region
      $region135: #{ppm_deepsup_forward.3} parent=5 // pred_check
        %p3957 = pneg %p3956
      $region136: #{ppm_deepsup_forward.3} parent=5 // pred_check_branch
        %3959 = sbr.rel (%p3957) target = $region138
      $region137: #{ppm_deepsup_forward.3} parent=5 // pred_region
        %s3960 = ssub.s32 %s11, 2
        // Predicated region
        $region139: #{ppm_deepsup_forward.3} parent=137 // pred_check
          %p3961 = pneg %p169
        $region140: #{ppm_deepsup_forward.3} parent=137 // pred_check_branch
          %3963 = sbr.rel (%p3961) target = $region142
        $region141: #{ppm_deepsup_forward.3} parent=137 // pred_region
          %p3964 = scmp.lt.s32.totalorder %s22, 1
          %s3965 = scalar_select %p3964, %s22, 1
          %s3966 = smul.addr %s3965, 21
          %s3967 = smul.addr %s3966, 8
          %s3968 = scalar_lea.vmem %s5, %s3967
        $region142: #{ppm_deepsup_forward.3} parent=137 // pred_fallthru
          _
      $region138: #{ppm_deepsup_forward.3} parent=5 // pred_fallthru
        _
    $region6: #{ppm_deepsup_forward.3} parent=1 // loop_footer
      %s15 = sadd.s32 1, %s11
    $region7: #{ppm_deepsup_forward.3} parent=1 // loop_footer_branch
      %10 = sbr.rel target = $region3
    $region8: #{ppm_deepsup_forward.3} parent=1 // loop_exit
      _

</llo_original>
